<compile_context>
chip_gen: v6e
topology: v6e:2x2x1
jax: 0.10.0
libtpu: 0.0.40
codegen_flags: <defaults>
</compile_context>

<pallas_src>
import jax
import jax.numpy as jnp
from jax import lax
from jax.experimental import pallas as pl
from jax.experimental.pallas import tpu as pltpu

_LANE = 128      # lane padding for hidden / channels / gates / projection output
_SUBLANE = 8     # fp32 sublane count -> batch padding


# ----------------------------------------------------------------------------
# Fused kernel: wavefront over (time x layers) + output projection, one call
# ----------------------------------------------------------------------------
def _fused_gru_kernel(x_ref, wih_ref, whh_ref, bif_ref, bhn_ref,
                      wproj_ref, bproj_ref, out_ref, gi_scratch):
    T, Bp, Hp = x_ref.shape
    L = wih_ref.shape[0]
    G = 3 * Hp
    out_len = out_ref.shape[0]
    first_out_t = T - out_len

    # --- Hoisted layer-0 input projection: one big MXU pass, off the recurrence ---
    seq = x_ref[...].reshape(T * Bp, Hp)
    gi0 = jnp.dot(seq, wih_ref[0], preferred_element_type=jnp.float32) + bif_ref[0]
    gi_scratch[...] = gi0.reshape(T, Bp, G)

    # --- Hoist weights & pre-broadcast biases once (loop-invariant SSA values give
    #     Mosaic the strongest hint to keep the W_hh RHS staged across unrolled steps) ---
    # TODO(synk): verify in the bundle dump that the W_hh RHS push is hoisted out of the
    # unrolled steps; if not, drive the MXU explicitly (matmul_push_rhs/acc_lhs/pop).
    whh = [whh_ref[l] for l in range(L)]
    wih = [wih_ref[l] for l in range(1, L)]              # layer-0 gi is hoisted above
    bif = [jnp.broadcast_to(bif_ref[l], (Bp, G)) for l in range(L)]
    bhn = [jnp.broadcast_to(bhn_ref[l], (Bp, Hp)) for l in range(L)]
    wproj = wproj_ref[...]
    bproj = jnp.broadcast_to(bproj_ref[...], (Bp, out_ref.shape[2]))

    def gru_cell(gi, gh, bhn_l, h_prev):
        # PyTorch gate packing [r, z, n]; each gate owns a 128-lane slot (free slicing).
        # b_hh's r/z columns are pre-folded into gi; b_hn must stay inside r*(...).
        r = jax.nn.sigmoid(gi[:, 0:Hp] + gh[:, 0:Hp])
        z = jax.nn.sigmoid(gi[:, Hp:2 * Hp] + gh[:, Hp:2 * Hp])
        n = jnp.tanh(gi[:, 2 * Hp:3 * Hp] + r * (gh[:, 2 * Hp:3 * Hp] + bhn_l))
        return (1.0 - z) * n + z * h_prev

    def wave_step(i, h_prev):
        # Wavefront: at iteration i, layer l advances time step t = i - l. All layers'
        # updates depend only on the previous iteration's carries -> they overlap.
        h_new = []
        for l in range(L):
            t = i - l
            active = jnp.logical_and(t >= 0, t < T)
            if l == 0:
                gi = gi_scratch[jnp.minimum(i, T - 1)]   # hoisted; clamp masked OOB tail
            else:
                gi = jnp.dot(h_prev[l - 1], wih[l - 1],
                             preferred_element_type=jnp.float32) + bif[l]
            gh = jnp.dot(h_prev[l], whh[l], preferred_element_type=jnp.float32)
            h_l = gru_cell(gi, gh, bhn[l], h_prev[l])
            h_new.append(jnp.where(active, h_l, h_prev[l]))

        # Final layer: only the last out_len steps feed the head -> project & store
        # immediately (no (T,Bp,Hp) buffer, no wasted vst's for earlier steps).
        t_last = i - (L - 1)
        @pl.when(jnp.logical_and(t_last >= first_out_t, t_last < T))
        def _():
            y = jnp.dot(h_new[L - 1], wproj,
                        preferred_element_type=jnp.float32) + bproj
            out_ref[t_last - first_out_t] = y

        return tuple(h_new)

    n_iters = T + L - 1
    h0 = tuple(jnp.zeros((Bp, Hp), jnp.float32) for _ in range(L))
    lax.fori_loop(0, n_iters, wave_step, h0,
                  unroll=(True if n_iters <= 16 else 8))


# ----------------------------------------------------------------------------
# Weight layout helpers: PyTorch [r,z,n]-packed gates -> 128-lane slots
# ----------------------------------------------------------------------------
def _pad_gate_cols(w, H, Hp):
    """(R, 3H) -> (R, 3*Hp): gate g occupies cols [g*Hp, g*Hp + H); rest zero."""
    out = jnp.zeros((w.shape[0], 3 * Hp), w.dtype)
    for g in range(3):
        out = out.at[:, g * Hp:g * Hp + H].set(w[:, g * H:(g + 1) * H])
    return out


def _pad_rows(w, Rp):
    out = jnp.zeros((Rp,) + w.shape[1:], w.dtype)
    return out.at[:w.shape[0]].set(w)


# ----------------------------------------------------------------------------
# Model wrapper (parameter setup + padding glue in plain JAX)
# ----------------------------------------------------------------------------
class BaselineGruModelPallas:
    def __init__(self, settings, key):
        self.output_len = settings['output_len']
        self.hidC = settings['in_var']
        self.hidR = 48
        self.out = settings['out_var']
        self.num_layers = settings['lstm_layer']
        # TODO(synk): dropout is applied only in training; forward here is eval-mode (identity).

        H, Hp = self.hidR, _LANE
        self._Bp = _SUBLANE
        bound = 1.0 / float(H) ** 0.5

        wih, whh, bif, bhn = [], [], [], []
        for layer in range(self.num_layers):
            D = self.hidC if layer == 0 else H
            key, k1, k2, k3, k4 = jax.random.split(key, 5)
            # logical PyTorch-equivalent params, stored transposed so kernels do x @ W
            w_ih = jax.random.uniform(k1, (D, 3 * H), jnp.float32, -bound, bound)
            w_hh = jax.random.uniform(k2, (H, 3 * H), jnp.float32, -bound, bound)
            b_ih = jax.random.uniform(k3, (1, 3 * H), jnp.float32, -bound, bound)
            b_hh = jax.random.uniform(k4, (1, 3 * H), jnp.float32, -bound, bound)
            w_ih_p = _pad_rows(_pad_gate_cols(w_ih, H, Hp), Hp)
            w_hh_p = _pad_rows(_pad_gate_cols(w_hh, H, Hp), Hp)
            b_ih_p = _pad_gate_cols(b_ih, H, Hp)
            b_hh_p = _pad_gate_cols(b_hh, H, Hp)
            # Fold b_hh's r/z columns into the input-side bias (removes per-step VPU adds);
            # the n-gate bias must stay inside r*(W_hn h + b_hn) to match PyTorch.
            b_if_p = b_ih_p.at[:, :2 * Hp].add(b_hh_p[:, :2 * Hp])
            b_hn_p = b_hh_p[:, 2 * Hp:3 * Hp]
            wih.append(w_ih_p); whh.append(w_hh_p); bif.append(b_if_p); bhn.append(b_hn_p)
        self.w_ih = jnp.stack(wih)      # (L, 128, 384)
        self.w_hh = jnp.stack(whh)      # (L, 128, 384)
        self.b_if = jnp.stack(bif)      # (L, 1, 384)  (b_ih + folded b_hh r/z)
        self.b_hn = jnp.stack(bhn)      # (L, 1, 128)  (b_hh n-gate)

        key, k5, k6 = jax.random.split(key, 3)
        w_p = jax.random.uniform(k5, (H, self.out), jnp.float32, -bound, bound)
        b_p = jax.random.uniform(k6, (1, self.out), jnp.float32, -bound, bound)
        self.w_proj = jnp.zeros((Hp, _LANE), jnp.float32).at[:H, :self.out].set(w_p)
        self.b_proj = jnp.zeros((1, _LANE), jnp.float32).at[:, :self.out].set(b_p)

    def __call__(self, x_enc):
        B, T_in, C = x_enc.shape
        T = T_in + self.output_len
        Bp, Hp, L = self._Bp, _LANE, self.num_layers

        # concat zero "decoder" steps, go time-major, zero-pad batch->8 and channels->128
        zeros = jnp.zeros((B, self.output_len, C), x_enc.dtype)
        x = jnp.concatenate([x_enc, zeros], axis=1)              # (B, T, C)
        x = jnp.transpose(x, (1, 0, 2)).astype(jnp.float32)      # (T, B, C)
        x_pad = jnp.zeros((T, Bp, Hp), jnp.float32).at[:, :B, :C].set(x)

        out_pad = pl.pallas_call(
            _fused_gru_kernel,
            out_shape=jax.ShapeDtypeStruct((self.output_len, Bp, _LANE), jnp.float32),
            grid_spec=pltpu.PrefetchScalarGridSpec(
                num_scalar_prefetch=0,
                grid=(1,),                                       # single fused invocation
                in_specs=[
                    pl.BlockSpec((T, Bp, Hp), lambda i: (0, 0, 0)),        # x (padded)
                    pl.BlockSpec((L, Hp, 3 * Hp), lambda i: (0, 0, 0)),    # W_ih (stacked)
                    pl.BlockSpec((L, Hp, 3 * Hp), lambda i: (0, 0, 0)),    # W_hh
                    pl.BlockSpec((L, 1, 3 * Hp), lambda i: (0, 0, 0)),     # b_ih (+ folded b_hh r/z)
                    pl.BlockSpec((L, 1, Hp), lambda i: (0, 0, 0)),         # b_hh n-gate
                    pl.BlockSpec((Hp, _LANE), lambda i: (0, 0)),           # W_proj
                    pl.BlockSpec((1, _LANE), lambda i: (0, 0)),            # b_proj
                ],
                out_specs=pl.BlockSpec((self.output_len, Bp, _LANE),
                                       lambda i: (0, 0, 0)),
                scratch_shapes=[
                    pltpu.VMEM((T, Bp, 3 * Hp), jnp.float32),   # hoisted layer-0 gi buffer
                ],
            ),
            compiler_params=pltpu.CompilerParams(
                dimension_semantics=("arbitrary",)),
        )(x_pad, self.w_ih, self.w_hh, self.b_if, self.b_hn,
          self.w_proj, self.b_proj)

        # strip padding: (output_len, Bp, 128) -> (B, output_len, out_var)
        y = jnp.transpose(out_pad, (1, 0, 2))[:B, :, :self.out]
        return y


if __name__ == "__main__":
    settings = {
        'output_len': 4,
        'in_var': 8,
        'out_var': 3,
        'dropout': 0.1,
        'lstm_layer': 2,
    }
    key = jax.random.PRNGKey(0)
    key, xkey, pkey = jax.random.split(key, 3)

    B, T_in = 2, 8
    x_enc = jax.random.normal(xkey, (B, T_in, settings['in_var']), jnp.float32)

    model = BaselineGruModelPallas(settings, pkey)
    out = jax.block_until_ready(model(x_enc))
    assert out.shape == (B, settings['output_len'], settings['out_var'])
    print("KERNEL_OK")
</pallas_src>

<mosaic_0001>
module attributes {stable_mosaic.version = 11 : i64} {
  func.func @_fused_gru_kernel(%arg0: i32, %arg1: memref<12x8x128xf32, #tpu.memory_space<vmem>>, %arg2: memref<2x128x384xf32, #tpu.memory_space<vmem>>, %arg3: memref<2x128x384xf32, #tpu.memory_space<vmem>>, %arg4: memref<2x1x384xf32, #tpu.memory_space<vmem>>, %arg5: memref<2x1x128xf32, #tpu.memory_space<vmem>>, %arg6: memref<128x128xf32, #tpu.memory_space<vmem>>, %arg7: memref<1x128xf32, #tpu.memory_space<vmem>>, %arg8: memref<4x8x128xf32, #tpu.memory_space<vmem>>, %arg9: memref<12x8x384xf32, #tpu.memory_space<vmem>>) attributes {dimension_semantics = [#tpu.dimension_semantics<arbitrary>], iteration_bounds = array<i64: 1>, scalar_prefetch = 0 : i64, scratch_operands = 1 : i64, tpu.core_type = #tpu.core_type<tc>, window_params = [{pipeline_mode = #tpu.pipeline_mode<synchronous>, transform_indices = @transform_0, window_bounds = array<i64: 12, 8, 128>}, {pipeline_mode = #tpu.pipeline_mode<synchronous>, transform_indices = @transform_1, window_bounds = array<i64: 2, 128, 384>}, {pipeline_mode = #tpu.pipeline_mode<synchronous>, transform_indices = @transform_2, window_bounds = array<i64: 2, 128, 384>}, {pipeline_mode = #tpu.pipeline_mode<synchronous>, transform_indices = @transform_3, window_bounds = array<i64: 2, 1, 384>}, {pipeline_mode = #tpu.pipeline_mode<synchronous>, transform_indices = @transform_4, window_bounds = array<i64: 2, 1, 128>}, {pipeline_mode = #tpu.pipeline_mode<synchronous>, transform_indices = @transform_5, window_bounds = array<i64: 128, 128>}, {pipeline_mode = #tpu.pipeline_mode<synchronous>, transform_indices = @transform_6, window_bounds = array<i64: 1, 128>}, {pipeline_mode = #tpu.pipeline_mode<synchronous>, transform_indices = @transform_7, window_bounds = array<i64: 4, 8, 128>}]} {
    %c0 = arith.constant 0 : index
    %c0_0 = arith.constant 0 : index
    %c0_1 = arith.constant 0 : index
    %0 = vector.load %arg1[%c0, %c0_0, %c0_1] : memref<12x8x128xf32, #tpu.memory_space<vmem>>, vector<12x8x128xf32>
    %1 = vector.shape_cast %0 : vector<12x8x128xf32> to vector<96x128xf32>
    %c0_2 = arith.constant 0 : index
    %c0_3 = arith.constant 0 : index
    %c0_4 = arith.constant 0 : index
    %2 = vector.load %arg2[%c0_2, %c0_3, %c0_4] : memref<2x128x384xf32, #tpu.memory_space<vmem>>, vector<1x128x384xf32>
    %3 = vector.shape_cast %2 : vector<1x128x384xf32> to vector<128x384xf32>
    %cst = arith.constant dense<0.000000e+00> : vector<96x384xf32>
    %4 = tpu.matmul %1, %3, %cst {dimension_numbers = #tpu.dot_dimension_numbers<[1], [0], [0], [1], [0, 0, 1, 1], [], []>} : vector<96x128xf32>, vector<128x384xf32>, vector<96x384xf32> -> vector<96x384xf32>
    %c0_5 = arith.constant 0 : index
    %c0_6 = arith.constant 0 : index
    %c0_7 = arith.constant 0 : index
    %5 = vector.load %arg4[%c0_5, %c0_6, %c0_7] : memref<2x1x384xf32, #tpu.memory_space<vmem>>, vector<1x1x384xf32>
    %6 = vector.shape_cast %5 : vector<1x1x384xf32> to vector<1x384xf32>
    %7 = vector.broadcast %6 : vector<1x384xf32> to vector<96x384xf32>
    %8 = arith.addf %4, %7 : vector<96x384xf32>
    %9 = vector.shape_cast %8 : vector<96x384xf32> to vector<12x8x384xf32>
    %c0_8 = arith.constant 0 : index
    %c0_9 = arith.constant 0 : index
    %c0_10 = arith.constant 0 : index
    %10 = vector.load %arg9[%c0_8, %c0_9, %c0_10] : memref<12x8x384xf32, #tpu.memory_space<vmem>>, vector<12x8x384xf32>
    tpu.vector_store %arg9[%c0_8, %c0_9, %c0_10], %9 {strides = array<i32>} : memref<12x8x384xf32, #tpu.memory_space<vmem>>, vector<12x8x384xf32>,
    %c0_11 = arith.constant 0 : index
    %c0_12 = arith.constant 0 : index
    %c0_13 = arith.constant 0 : index
    %11 = vector.load %arg3[%c0_11, %c0_12, %c0_13] : memref<2x128x384xf32, #tpu.memory_space<vmem>>, vector<1x128x384xf32>
    %12 = vector.shape_cast %11 : vector<1x128x384xf32> to vector<128x384xf32>
    %c1 = arith.constant 1 : index
    %c0_14 = arith.constant 0 : index
    %c0_15 = arith.constant 0 : index
    %13 = vector.load %arg3[%c1, %c0_14, %c0_15] : memref<2x128x384xf32, #tpu.memory_space<vmem>>, vector<1x128x384xf32>
    %14 = vector.shape_cast %13 : vector<1x128x384xf32> to vector<128x384xf32>
    %c1_16 = arith.constant 1 : index
    %c0_17 = arith.constant 0 : index
    %c0_18 = arith.constant 0 : index
    %15 = vector.load %arg2[%c1_16, %c0_17, %c0_18] : memref<2x128x384xf32, #tpu.memory_space<vmem>>, vector<1x128x384xf32>
    %16 = vector.shape_cast %15 : vector<1x128x384xf32> to vector<128x384xf32>
    %c1_19 = arith.constant 1 : index
    %c0_20 = arith.constant 0 : index
    %c0_21 = arith.constant 0 : index
    %17 = vector.load %arg4[%c1_19, %c0_20, %c0_21] : memref<2x1x384xf32, #tpu.memory_space<vmem>>, vector<1x1x384xf32>
    %18 = vector.shape_cast %17 : vector<1x1x384xf32> to vector<1x384xf32>
    %19 = vector.shape_cast %18 : vector<1x384xf32> to vector<1x384xf32>
    %20 = vector.broadcast %19 : vector<1x384xf32> to vector<8x384xf32>
    %c0_22 = arith.constant 0 : index
    %c0_23 = arith.constant 0 : index
    %c0_24 = arith.constant 0 : index
    %21 = vector.load %arg5[%c0_22, %c0_23, %c0_24] : memref<2x1x128xf32, #tpu.memory_space<vmem>>, vector<1x1x128xf32>
    %22 = vector.shape_cast %21 : vector<1x1x128xf32> to vector<1x128xf32>
    %23 = vector.shape_cast %22 : vector<1x128xf32> to vector<1x128xf32>
    %24 = vector.broadcast %23 : vector<1x128xf32> to vector<8x128xf32>
    %c1_25 = arith.constant 1 : index
    %c0_26 = arith.constant 0 : index
    %c0_27 = arith.constant 0 : index
    %25 = vector.load %arg5[%c1_25, %c0_26, %c0_27] : memref<2x1x128xf32, #tpu.memory_space<vmem>>, vector<1x1x128xf32>
    %26 = vector.shape_cast %25 : vector<1x1x128xf32> to vector<1x128xf32>
    %27 = vector.shape_cast %26 : vector<1x128xf32> to vector<1x128xf32>
    %28 = vector.broadcast %27 : vector<1x128xf32> to vector<8x128xf32>
    %c0_28 = arith.constant 0 : index
    %c0_29 = arith.constant 0 : index
    %29 = vector.load %arg6[%c0_28, %c0_29] : memref<128x128xf32, #tpu.memory_space<vmem>>, vector<128x128xf32>
    %c0_30 = arith.constant 0 : index
    %c0_31 = arith.constant 0 : index
    %30 = vector.load %arg7[%c0_30, %c0_31] : memref<1x128xf32, #tpu.memory_space<vmem>>, vector<1x128xf32>
    %31 = vector.shape_cast %30 : vector<1x128xf32> to vector<1x128xf32>
    %32 = vector.broadcast %31 : vector<1x128xf32> to vector<8x128xf32>
    %cst_32 = arith.constant 0.000000e+00 : f32
    %33 = vector.broadcast %cst_32 : f32 to vector<8x128xf32>
    %cst_33 = arith.constant 0.000000e+00 : f32
    %34 = vector.broadcast %cst_33 : f32 to vector<8x128xf32>
    %c0_i32 = arith.constant 0 : i32
    %c0_i32_34 = arith.constant 0 : i32
    %35 = arith.subi %c0_i32, %c0_i32_34 : i32
    %c0_i32_35 = arith.constant 0 : i32
    %36 = arith.cmpi sge, %35, %c0_i32_35 : i32
    %c12_i32 = arith.constant 12 : i32
    %37 = arith.cmpi slt, %35, %c12_i32 : i32
    %38 = arith.andi %36, %37 : i1
    %c11_i32 = arith.constant 11 : i32
    %39 = arith.minsi %c0_i32, %c11_i32 : i32
    %40 = arith.index_cast %39 : i32 to index
    %c0_36 = arith.constant 0 : index
    %c0_37 = arith.constant 0 : index
    %41 = vector.load %arg9[%40, %c0_36, %c0_37] : memref<12x8x384xf32, #tpu.memory_space<vmem>>, vector<1x8x384xf32>
    %42 = vector.shape_cast %41 : vector<1x8x384xf32> to vector<8x384xf32>
    %cst_38 = arith.constant dense<0.000000e+00> : vector<8x384xf32>
    %43 = tpu.matmul %33, %12, %cst_38 {dimension_numbers = #tpu.dot_dimension_numbers<[1], [0], [0], [1], [0, 0, 1, 1], [], []>} : vector<8x128xf32>, vector<128x384xf32>, vector<8x384xf32> -> vector<8x384xf32>
    %44 = vector.extract_strided_slice %42 {offsets = [0, 0], sizes = [8, 128], strides = [1, 1]} : vector<8x384xf32> to vector<8x128xf32>
    %45 = vector.extract_strided_slice %43 {offsets = [0, 0], sizes = [8, 128], strides = [1, 1]} : vector<8x384xf32> to vector<8x128xf32>
    %46 = arith.addf %44, %45 : vector<8x128xf32>
    %47 = arith.negf %46 : vector<8x128xf32>
    %48 = math.exp %47 : vector<8x128xf32>
    %cst_39 = arith.constant 1.000000e+00 : f32
    %49 = vector.broadcast %cst_39 : f32 to vector<8x128xf32>
    %50 = arith.addf %49, %48 : vector<8x128xf32>
    %51 = arith.divf %49, %50 : vector<8x128xf32>
    %52 = vector.extract_strided_slice %42 {offsets = [0, 128], sizes = [8, 128], strides = [1, 1]} : vector<8x384xf32> to vector<8x128xf32>
    %53 = vector.extract_strided_slice %43 {offsets = [0, 128], sizes = [8, 128], strides = [1, 1]} : vector<8x384xf32> to vector<8x128xf32>
    %54 = arith.addf %52, %53 : vector<8x128xf32>
    %55 = arith.negf %54 : vector<8x128xf32>
    %56 = math.exp %55 : vector<8x128xf32>
    %cst_40 = arith.constant 1.000000e+00 : f32
    %57 = vector.broadcast %cst_40 : f32 to vector<8x128xf32>
    %58 = arith.addf %57, %56 : vector<8x128xf32>
    %59 = arith.divf %57, %58 : vector<8x128xf32>
    %60 = vector.extract_strided_slice %42 {offsets = [0, 256], sizes = [8, 128], strides = [1, 1]} : vector<8x384xf32> to vector<8x128xf32>
    %61 = vector.extract_strided_slice %43 {offsets = [0, 256], sizes = [8, 128], strides = [1, 1]} : vector<8x384xf32> to vector<8x128xf32>
    %62 = arith.addf %61, %24 : vector<8x128xf32>
    %63 = arith.mulf %51, %62 : vector<8x128xf32>
    %64 = arith.addf %60, %63 : vector<8x128xf32>
    %65 = math.tanh %64 : vector<8x128xf32>
    %cst_41 = arith.constant 1.000000e+00 : f32
    %66 = vector.broadcast %cst_41 : f32 to vector<8x128xf32>
    %67 = arith.subf %66, %59 : vector<8x128xf32>
    %68 = arith.mulf %67, %65 : vector<8x128xf32>
    %69 = arith.mulf %59, %33 : vector<8x128xf32>
    %70 = arith.addf %68, %69 : vector<8x128xf32>
    %71 = arith.select %38, %70, %33 : vector<8x128xf32>
    %c1_i32 = arith.constant 1 : i32
    %72 = arith.subi %c0_i32, %c1_i32 : i32
    %c0_i32_42 = arith.constant 0 : i32
    %73 = arith.cmpi sge, %72, %c0_i32_42 : i32
    %c12_i32_43 = arith.constant 12 : i32
    %74 = arith.cmpi slt, %72, %c12_i32_43 : i32
    %75 = arith.andi %73, %74 : i1
    %cst_44 = arith.constant dense<0.000000e+00> : vector<8x384xf32>
    %76 = tpu.matmul %33, %16, %cst_44 {dimension_numbers = #tpu.dot_dimension_numbers<[1], [0], [0], [1], [0, 0, 1, 1], [], []>} : vector<8x128xf32>, vector<128x384xf32>, vector<8x384xf32> -> vector<8x384xf32>
    %77 = arith.addf %76, %20 : vector<8x384xf32>
    %cst_45 = arith.constant dense<0.000000e+00> : vector<8x384xf32>
    %78 = tpu.matmul %34, %14, %cst_45 {dimension_numbers = #tpu.dot_dimension_numbers<[1], [0], [0], [1], [0, 0, 1, 1], [], []>} : vector<8x128xf32>, vector<128x384xf32>, vector<8x384xf32> -> vector<8x384xf32>
    %79 = vector.extract_strided_slice %77 {offsets = [0, 0], sizes = [8, 128], strides = [1, 1]} : vector<8x384xf32> to vector<8x128xf32>
    %80 = vector.extract_strided_slice %78 {offsets = [0, 0], sizes = [8, 128], strides = [1, 1]} : vector<8x384xf32> to vector<8x128xf32>
    %81 = arith.addf %79, %80 : vector<8x128xf32>
    %82 = arith.negf %81 : vector<8x128xf32>
    %83 = math.exp %82 : vector<8x128xf32>
    %cst_46 = arith.constant 1.000000e+00 : f32
    %84 = vector.broadcast %cst_46 : f32 to vector<8x128xf32>
    %85 = arith.addf %84, %83 : vector<8x128xf32>
    %86 = arith.divf %84, %85 : vector<8x128xf32>
    %87 = vector.extract_strided_slice %77 {offsets = [0, 128], sizes = [8, 128], strides = [1, 1]} : vector<8x384xf32> to vector<8x128xf32>
    %88 = vector.extract_strided_slice %78 {offsets = [0, 128], sizes = [8, 128], strides = [1, 1]} : vector<8x384xf32> to vector<8x128xf32>
    %89 = arith.addf %87, %88 : vector<8x128xf32>
    %90 = arith.negf %89 : vector<8x128xf32>
    %91 = math.exp %90 : vector<8x128xf32>
    %cst_47 = arith.constant 1.000000e+00 : f32
    %92 = vector.broadcast %cst_47 : f32 to vector<8x128xf32>
    %93 = arith.addf %92, %91 : vector<8x128xf32>
    %94 = arith.divf %92, %93 : vector<8x128xf32>
    %95 = vector.extract_strided_slice %77 {offsets = [0, 256], sizes = [8, 128], strides = [1, 1]} : vector<8x384xf32> to vector<8x128xf32>
    %96 = vector.extract_strided_slice %78 {offsets = [0, 256], sizes = [8, 128], strides = [1, 1]} : vector<8x384xf32> to vector<8x128xf32>
    %97 = arith.addf %96, %28 : vector<8x128xf32>
    %98 = arith.mulf %86, %97 : vector<8x128xf32>
    %99 = arith.addf %95, %98 : vector<8x128xf32>
    %100 = math.tanh %99 : vector<8x128xf32>
    %cst_48 = arith.constant 1.000000e+00 : f32
    %101 = vector.broadcast %cst_48 : f32 to vector<8x128xf32>
    %102 = arith.subf %101, %94 : vector<8x128xf32>
    %103 = arith.mulf %102, %100 : vector<8x128xf32>
    %104 = arith.mulf %94, %34 : vector<8x128xf32>
    %105 = arith.addf %103, %104 : vector<8x128xf32>
    %106 = arith.select %75, %105, %34 : vector<8x128xf32>
    %c1_i32_49 = arith.constant 1 : i32
    %107 = arith.subi %c0_i32, %c1_i32_49 : i32
    %c8_i32 = arith.constant 8 : i32
    %108 = arith.cmpi sge, %107, %c8_i32 : i32
    %c12_i32_50 = arith.constant 12 : i32
    %109 = arith.cmpi slt, %107, %c12_i32_50 : i32
    %110 = arith.andi %108, %109 : i1
    %111 = arith.extui %110 : i1 to i32
    %c0_i32_51 = arith.constant 0 : i32
    %112 = arith.cmpi ne, %111, %c0_i32_51 : i32
    scf.if %112 {
      %cst_320 = arith.constant dense<0.000000e+00> : vector<8x128xf32>
      %1049 = tpu.matmul %106, %29, %cst_320 {dimension_numbers = #tpu.dot_dimension_numbers<[1], [0], [0], [1], [0, 0, 1, 1], [], []>} : vector<8x128xf32>, vector<128x128xf32>, vector<8x128xf32> -> vector<8x128xf32>
      %1050 = arith.addf %1049, %32 : vector<8x128xf32>
      %c8_i32_321 = arith.constant 8 : i32
      %1051 = arith.subi %107, %c8_i32_321 : i32
      %1052 = arith.index_cast %1051 : i32 to index
      %c0_322 = arith.constant 0 : index
      %c0_323 = arith.constant 0 : index
      %1053 = vector.load %arg8[%1052, %c0_322, %c0_323] : memref<4x8x128xf32, #tpu.memory_space<vmem>>, vector<1x8x128xf32>
      %1054 = vector.shape_cast %1053 : vector<1x8x128xf32> to vector<8x128xf32>
      %1055 = vector.shape_cast %1050 : vector<8x128xf32> to vector<1x8x128xf32>
      tpu.vector_store %arg8[%1052, %c0_322, %c0_323], %1055 {strides = array<i32>} : memref<4x8x128xf32, #tpu.memory_space<vmem>>, vector<1x8x128xf32>,
    } else {
    }
    %c1_i32_52 = arith.constant 1 : i32
    %c0_i32_53 = arith.constant 0 : i32
    %113 = arith.subi %c1_i32_52, %c0_i32_53 : i32
    %c0_i32_54 = arith.constant 0 : i32
    %114 = arith.cmpi sge, %113, %c0_i32_54 : i32
    %c12_i32_55 = arith.constant 12 : i32
    %115 = arith.cmpi slt, %113, %c12_i32_55 : i32
    %116 = arith.andi %114, %115 : i1
    %c11_i32_56 = arith.constant 11 : i32
    %117 = arith.minsi %c1_i32_52, %c11_i32_56 : i32
    %118 = arith.index_cast %117 : i32 to index
    %c0_57 = arith.constant 0 : index
    %c0_58 = arith.constant 0 : index
    %119 = vector.load %arg9[%118, %c0_57, %c0_58] : memref<12x8x384xf32, #tpu.memory_space<vmem>>, vector<1x8x384xf32>
    %120 = vector.shape_cast %119 : vector<1x8x384xf32> to vector<8x384xf32>
    %cst_59 = arith.constant dense<0.000000e+00> : vector<8x384xf32>
    %121 = tpu.matmul %71, %12, %cst_59 {dimension_numbers = #tpu.dot_dimension_numbers<[1], [0], [0], [1], [0, 0, 1, 1], [], []>} : vector<8x128xf32>, vector<128x384xf32>, vector<8x384xf32> -> vector<8x384xf32>
    %122 = vector.extract_strided_slice %120 {offsets = [0, 0], sizes = [8, 128], strides = [1, 1]} : vector<8x384xf32> to vector<8x128xf32>
    %123 = vector.extract_strided_slice %121 {offsets = [0, 0], sizes = [8, 128], strides = [1, 1]} : vector<8x384xf32> to vector<8x128xf32>
    %124 = arith.addf %122, %123 : vector<8x128xf32>
    %125 = arith.negf %124 : vector<8x128xf32>
    %126 = math.exp %125 : vector<8x128xf32>
    %cst_60 = arith.constant 1.000000e+00 : f32
    %127 = vector.broadcast %cst_60 : f32 to vector<8x128xf32>
    %128 = arith.addf %127, %126 : vector<8x128xf32>
    %129 = arith.divf %127, %128 : vector<8x128xf32>
    %130 = vector.extract_strided_slice %120 {offsets = [0, 128], sizes = [8, 128], strides = [1, 1]} : vector<8x384xf32> to vector<8x128xf32>
    %131 = vector.extract_strided_slice %121 {offsets = [0, 128], sizes = [8, 128], strides = [1, 1]} : vector<8x384xf32> to vector<8x128xf32>
    %132 = arith.addf %130, %131 : vector<8x128xf32>
    %133 = arith.negf %132 : vector<8x128xf32>
    %134 = math.exp %133 : vector<8x128xf32>
    %cst_61 = arith.constant 1.000000e+00 : f32
    %135 = vector.broadcast %cst_61 : f32 to vector<8x128xf32>
    %136 = arith.addf %135, %134 : vector<8x128xf32>
    %137 = arith.divf %135, %136 : vector<8x128xf32>
    %138 = vector.extract_strided_slice %120 {offsets = [0, 256], sizes = [8, 128], strides = [1, 1]} : vector<8x384xf32> to vector<8x128xf32>
    %139 = vector.extract_strided_slice %121 {offsets = [0, 256], sizes = [8, 128], strides = [1, 1]} : vector<8x384xf32> to vector<8x128xf32>
    %140 = arith.addf %139, %24 : vector<8x128xf32>
    %141 = arith.mulf %129, %140 : vector<8x128xf32>
    %142 = arith.addf %138, %141 : vector<8x128xf32>
    %143 = math.tanh %142 : vector<8x128xf32>
    %cst_62 = arith.constant 1.000000e+00 : f32
    %144 = vector.broadcast %cst_62 : f32 to vector<8x128xf32>
    %145 = arith.subf %144, %137 : vector<8x128xf32>
    %146 = arith.mulf %145, %143 : vector<8x128xf32>
    %147 = arith.mulf %137, %71 : vector<8x128xf32>
    %148 = arith.addf %146, %147 : vector<8x128xf32>
    %149 = arith.select %116, %148, %71 : vector<8x128xf32>
    %c1_i32_63 = arith.constant 1 : i32
    %150 = arith.subi %c1_i32_52, %c1_i32_63 : i32
    %c0_i32_64 = arith.constant 0 : i32
    %151 = arith.cmpi sge, %150, %c0_i32_64 : i32
    %c12_i32_65 = arith.constant 12 : i32
    %152 = arith.cmpi slt, %150, %c12_i32_65 : i32
    %153 = arith.andi %151, %152 : i1
    %cst_66 = arith.constant dense<0.000000e+00> : vector<8x384xf32>
    %154 = tpu.matmul %71, %16, %cst_66 {dimension_numbers = #tpu.dot_dimension_numbers<[1], [0], [0], [1], [0, 0, 1, 1], [], []>} : vector<8x128xf32>, vector<128x384xf32>, vector<8x384xf32> -> vector<8x384xf32>
    %155 = arith.addf %154, %20 : vector<8x384xf32>
    %cst_67 = arith.constant dense<0.000000e+00> : vector<8x384xf32>
    %156 = tpu.matmul %106, %14, %cst_67 {dimension_numbers = #tpu.dot_dimension_numbers<[1], [0], [0], [1], [0, 0, 1, 1], [], []>} : vector<8x128xf32>, vector<128x384xf32>, vector<8x384xf32> -> vector<8x384xf32>
    %157 = vector.extract_strided_slice %155 {offsets = [0, 0], sizes = [8, 128], strides = [1, 1]} : vector<8x384xf32> to vector<8x128xf32>
    %158 = vector.extract_strided_slice %156 {offsets = [0, 0], sizes = [8, 128], strides = [1, 1]} : vector<8x384xf32> to vector<8x128xf32>
    %159 = arith.addf %157, %158 : vector<8x128xf32>
    %160 = arith.negf %159 : vector<8x128xf32>
    %161 = math.exp %160 : vector<8x128xf32>
    %cst_68 = arith.constant 1.000000e+00 : f32
    %162 = vector.broadcast %cst_68 : f32 to vector<8x128xf32>
    %163 = arith.addf %162, %161 : vector<8x128xf32>
    %164 = arith.divf %162, %163 : vector<8x128xf32>
    %165 = vector.extract_strided_slice %155 {offsets = [0, 128], sizes = [8, 128], strides = [1, 1]} : vector<8x384xf32> to vector<8x128xf32>
    %166 = vector.extract_strided_slice %156 {offsets = [0, 128], sizes = [8, 128], strides = [1, 1]} : vector<8x384xf32> to vector<8x128xf32>
    %167 = arith.addf %165, %166 : vector<8x128xf32>
    %168 = arith.negf %167 : vector<8x128xf32>
    %169 = math.exp %168 : vector<8x128xf32>
    %cst_69 = arith.constant 1.000000e+00 : f32
    %170 = vector.broadcast %cst_69 : f32 to vector<8x128xf32>
    %171 = arith.addf %170, %169 : vector<8x128xf32>
    %172 = arith.divf %170, %171 : vector<8x128xf32>
    %173 = vector.extract_strided_slice %155 {offsets = [0, 256], sizes = [8, 128], strides = [1, 1]} : vector<8x384xf32> to vector<8x128xf32>
    %174 = vector.extract_strided_slice %156 {offsets = [0, 256], sizes = [8, 128], strides = [1, 1]} : vector<8x384xf32> to vector<8x128xf32>
    %175 = arith.addf %174, %28 : vector<8x128xf32>
    %176 = arith.mulf %164, %175 : vector<8x128xf32>
    %177 = arith.addf %173, %176 : vector<8x128xf32>
    %178 = math.tanh %177 : vector<8x128xf32>
    %cst_70 = arith.constant 1.000000e+00 : f32
    %179 = vector.broadcast %cst_70 : f32 to vector<8x128xf32>
    %180 = arith.subf %179, %172 : vector<8x128xf32>
    %181 = arith.mulf %180, %178 : vector<8x128xf32>
    %182 = arith.mulf %172, %106 : vector<8x128xf32>
    %183 = arith.addf %181, %182 : vector<8x128xf32>
    %184 = arith.select %153, %183, %106 : vector<8x128xf32>
    %c1_i32_71 = arith.constant 1 : i32
    %185 = arith.subi %c1_i32_52, %c1_i32_71 : i32
    %c8_i32_72 = arith.constant 8 : i32
    %186 = arith.cmpi sge, %185, %c8_i32_72 : i32
    %c12_i32_73 = arith.constant 12 : i32
    %187 = arith.cmpi slt, %185, %c12_i32_73 : i32
    %188 = arith.andi %186, %187 : i1
    %189 = arith.extui %188 : i1 to i32
    %c0_i32_74 = arith.constant 0 : i32
    %190 = arith.cmpi ne, %189, %c0_i32_74 : i32
    scf.if %190 {
      %cst_320 = arith.constant dense<0.000000e+00> : vector<8x128xf32>
      %1049 = tpu.matmul %184, %29, %cst_320 {dimension_numbers = #tpu.dot_dimension_numbers<[1], [0], [0], [1], [0, 0, 1, 1], [], []>} : vector<8x128xf32>, vector<128x128xf32>, vector<8x128xf32> -> vector<8x128xf32>
      %1050 = arith.addf %1049, %32 : vector<8x128xf32>
      %c8_i32_321 = arith.constant 8 : i32
      %1051 = arith.subi %185, %c8_i32_321 : i32
      %1052 = arith.index_cast %1051 : i32 to index
      %c0_322 = arith.constant 0 : index
      %c0_323 = arith.constant 0 : index
      %1053 = vector.load %arg8[%1052, %c0_322, %c0_323] : memref<4x8x128xf32, #tpu.memory_space<vmem>>, vector<1x8x128xf32>
      %1054 = vector.shape_cast %1053 : vector<1x8x128xf32> to vector<8x128xf32>
      %1055 = vector.shape_cast %1050 : vector<8x128xf32> to vector<1x8x128xf32>
      tpu.vector_store %arg8[%1052, %c0_322, %c0_323], %1055 {strides = array<i32>} : memref<4x8x128xf32, #tpu.memory_space<vmem>>, vector<1x8x128xf32>,
    } else {
    }
    %c2_i32 = arith.constant 2 : i32
    %c0_i32_75 = arith.constant 0 : i32
    %191 = arith.subi %c2_i32, %c0_i32_75 : i32
    %c0_i32_76 = arith.constant 0 : i32
    %192 = arith.cmpi sge, %191, %c0_i32_76 : i32
    %c12_i32_77 = arith.constant 12 : i32
    %193 = arith.cmpi slt, %191, %c12_i32_77 : i32
    %194 = arith.andi %192, %193 : i1
    %c11_i32_78 = arith.constant 11 : i32
    %195 = arith.minsi %c2_i32, %c11_i32_78 : i32
    %196 = arith.index_cast %195 : i32 to index
    %c0_79 = arith.constant 0 : index
    %c0_80 = arith.constant 0 : index
    %197 = vector.load %arg9[%196, %c0_79, %c0_80] : memref<12x8x384xf32, #tpu.memory_space<vmem>>, vector<1x8x384xf32>
    %198 = vector.shape_cast %197 : vector<1x8x384xf32> to vector<8x384xf32>
    %cst_81 = arith.constant dense<0.000000e+00> : vector<8x384xf32>
    %199 = tpu.matmul %149, %12, %cst_81 {dimension_numbers = #tpu.dot_dimension_numbers<[1], [0], [0], [1], [0, 0, 1, 1], [], []>} : vector<8x128xf32>, vector<128x384xf32>, vector<8x384xf32> -> vector<8x384xf32>
    %200 = vector.extract_strided_slice %198 {offsets = [0, 0], sizes = [8, 128], strides = [1, 1]} : vector<8x384xf32> to vector<8x128xf32>
    %201 = vector.extract_strided_slice %199 {offsets = [0, 0], sizes = [8, 128], strides = [1, 1]} : vector<8x384xf32> to vector<8x128xf32>
    %202 = arith.addf %200, %201 : vector<8x128xf32>
    %203 = arith.negf %202 : vector<8x128xf32>
    %204 = math.exp %203 : vector<8x128xf32>
    %cst_82 = arith.constant 1.000000e+00 : f32
    %205 = vector.broadcast %cst_82 : f32 to vector<8x128xf32>
    %206 = arith.addf %205, %204 : vector<8x128xf32>
    %207 = arith.divf %205, %206 : vector<8x128xf32>
    %208 = vector.extract_strided_slice %198 {offsets = [0, 128], sizes = [8, 128], strides = [1, 1]} : vector<8x384xf32> to vector<8x128xf32>
    %209 = vector.extract_strided_slice %199 {offsets = [0, 128], sizes = [8, 128], strides = [1, 1]} : vector<8x384xf32> to vector<8x128xf32>
    %210 = arith.addf %208, %209 : vector<8x128xf32>
    %211 = arith.negf %210 : vector<8x128xf32>
    %212 = math.exp %211 : vector<8x128xf32>
    %cst_83 = arith.constant 1.000000e+00 : f32
    %213 = vector.broadcast %cst_83 : f32 to vector<8x128xf32>
    %214 = arith.addf %213, %212 : vector<8x128xf32>
    %215 = arith.divf %213, %214 : vector<8x128xf32>
    %216 = vector.extract_strided_slice %198 {offsets = [0, 256], sizes = [8, 128], strides = [1, 1]} : vector<8x384xf32> to vector<8x128xf32>
    %217 = vector.extract_strided_slice %199 {offsets = [0, 256], sizes = [8, 128], strides = [1, 1]} : vector<8x384xf32> to vector<8x128xf32>
    %218 = arith.addf %217, %24 : vector<8x128xf32>
    %219 = arith.mulf %207, %218 : vector<8x128xf32>
    %220 = arith.addf %216, %219 : vector<8x128xf32>
    %221 = math.tanh %220 : vector<8x128xf32>
    %cst_84 = arith.constant 1.000000e+00 : f32
    %222 = vector.broadcast %cst_84 : f32 to vector<8x128xf32>
    %223 = arith.subf %222, %215 : vector<8x128xf32>
    %224 = arith.mulf %223, %221 : vector<8x128xf32>
    %225 = arith.mulf %215, %149 : vector<8x128xf32>
    %226 = arith.addf %224, %225 : vector<8x128xf32>
    %227 = arith.select %194, %226, %149 : vector<8x128xf32>
    %c1_i32_85 = arith.constant 1 : i32
    %228 = arith.subi %c2_i32, %c1_i32_85 : i32
    %c0_i32_86 = arith.constant 0 : i32
    %229 = arith.cmpi sge, %228, %c0_i32_86 : i32
    %c12_i32_87 = arith.constant 12 : i32
    %230 = arith.cmpi slt, %228, %c12_i32_87 : i32
    %231 = arith.andi %229, %230 : i1
    %cst_88 = arith.constant dense<0.000000e+00> : vector<8x384xf32>
    %232 = tpu.matmul %149, %16, %cst_88 {dimension_numbers = #tpu.dot_dimension_numbers<[1], [0], [0], [1], [0, 0, 1, 1], [], []>} : vector<8x128xf32>, vector<128x384xf32>, vector<8x384xf32> -> vector<8x384xf32>
    %233 = arith.addf %232, %20 : vector<8x384xf32>
    %cst_89 = arith.constant dense<0.000000e+00> : vector<8x384xf32>
    %234 = tpu.matmul %184, %14, %cst_89 {dimension_numbers = #tpu.dot_dimension_numbers<[1], [0], [0], [1], [0, 0, 1, 1], [], []>} : vector<8x128xf32>, vector<128x384xf32>, vector<8x384xf32> -> vector<8x384xf32>
    %235 = vector.extract_strided_slice %233 {offsets = [0, 0], sizes = [8, 128], strides = [1, 1]} : vector<8x384xf32> to vector<8x128xf32>
    %236 = vector.extract_strided_slice %234 {offsets = [0, 0], sizes = [8, 128], strides = [1, 1]} : vector<8x384xf32> to vector<8x128xf32>
    %237 = arith.addf %235, %236 : vector<8x128xf32>
    %238 = arith.negf %237 : vector<8x128xf32>
    %239 = math.exp %238 : vector<8x128xf32>
    %cst_90 = arith.constant 1.000000e+00 : f32
    %240 = vector.broadcast %cst_90 : f32 to vector<8x128xf32>
    %241 = arith.addf %240, %239 : vector<8x128xf32>
    %242 = arith.divf %240, %241 : vector<8x128xf32>
    %243 = vector.extract_strided_slice %233 {offsets = [0, 128], sizes = [8, 128], strides = [1, 1]} : vector<8x384xf32> to vector<8x128xf32>
    %244 = vector.extract_strided_slice %234 {offsets = [0, 128], sizes = [8, 128], strides = [1, 1]} : vector<8x384xf32> to vector<8x128xf32>
    %245 = arith.addf %243, %244 : vector<8x128xf32>
    %246 = arith.negf %245 : vector<8x128xf32>
    %247 = math.exp %246 : vector<8x128xf32>
    %cst_91 = arith.constant 1.000000e+00 : f32
    %248 = vector.broadcast %cst_91 : f32 to vector<8x128xf32>
    %249 = arith.addf %248, %247 : vector<8x128xf32>
    %250 = arith.divf %248, %249 : vector<8x128xf32>
    %251 = vector.extract_strided_slice %233 {offsets = [0, 256], sizes = [8, 128], strides = [1, 1]} : vector<8x384xf32> to vector<8x128xf32>
    %252 = vector.extract_strided_slice %234 {offsets = [0, 256], sizes = [8, 128], strides = [1, 1]} : vector<8x384xf32> to vector<8x128xf32>
    %253 = arith.addf %252, %28 : vector<8x128xf32>
    %254 = arith.mulf %242, %253 : vector<8x128xf32>
    %255 = arith.addf %251, %254 : vector<8x128xf32>
    %256 = math.tanh %255 : vector<8x128xf32>
    %cst_92 = arith.constant 1.000000e+00 : f32
    %257 = vector.broadcast %cst_92 : f32 to vector<8x128xf32>
    %258 = arith.subf %257, %250 : vector<8x128xf32>
    %259 = arith.mulf %258, %256 : vector<8x128xf32>
    %260 = arith.mulf %250, %184 : vector<8x128xf32>
    %261 = arith.addf %259, %260 : vector<8x128xf32>
    %262 = arith.select %231, %261, %184 : vector<8x128xf32>
    %c1_i32_93 = arith.constant 1 : i32
    %263 = arith.subi %c2_i32, %c1_i32_93 : i32
    %c8_i32_94 = arith.constant 8 : i32
    %264 = arith.cmpi sge, %263, %c8_i32_94 : i32
    %c12_i32_95 = arith.constant 12 : i32
    %265 = arith.cmpi slt, %263, %c12_i32_95 : i32
    %266 = arith.andi %264, %265 : i1
    %267 = arith.extui %266 : i1 to i32
    %c0_i32_96 = arith.constant 0 : i32
    %268 = arith.cmpi ne, %267, %c0_i32_96 : i32
    scf.if %268 {
      %cst_320 = arith.constant dense<0.000000e+00> : vector<8x128xf32>
      %1049 = tpu.matmul %262, %29, %cst_320 {dimension_numbers = #tpu.dot_dimension_numbers<[1], [0], [0], [1], [0, 0, 1, 1], [], []>} : vector<8x128xf32>, vector<128x128xf32>, vector<8x128xf32> -> vector<8x128xf32>
      %1050 = arith.addf %1049, %32 : vector<8x128xf32>
      %c8_i32_321 = arith.constant 8 : i32
      %1051 = arith.subi %263, %c8_i32_321 : i32
      %1052 = arith.index_cast %1051 : i32 to index
      %c0_322 = arith.constant 0 : index
      %c0_323 = arith.constant 0 : index
      %1053 = vector.load %arg8[%1052, %c0_322, %c0_323] : memref<4x8x128xf32, #tpu.memory_space<vmem>>, vector<1x8x128xf32>
      %1054 = vector.shape_cast %1053 : vector<1x8x128xf32> to vector<8x128xf32>
      %1055 = vector.shape_cast %1050 : vector<8x128xf32> to vector<1x8x128xf32>
      tpu.vector_store %arg8[%1052, %c0_322, %c0_323], %1055 {strides = array<i32>} : memref<4x8x128xf32, #tpu.memory_space<vmem>>, vector<1x8x128xf32>,
    } else {
    }
    %c3_i32 = arith.constant 3 : i32
    %c0_i32_97 = arith.constant 0 : i32
    %269 = arith.subi %c3_i32, %c0_i32_97 : i32
    %c0_i32_98 = arith.constant 0 : i32
    %270 = arith.cmpi sge, %269, %c0_i32_98 : i32
    %c12_i32_99 = arith.constant 12 : i32
    %271 = arith.cmpi slt, %269, %c12_i32_99 : i32
    %272 = arith.andi %270, %271 : i1
    %c11_i32_100 = arith.constant 11 : i32
    %273 = arith.minsi %c3_i32, %c11_i32_100 : i32
    %274 = arith.index_cast %273 : i32 to index
    %c0_101 = arith.constant 0 : index
    %c0_102 = arith.constant 0 : index
    %275 = vector.load %arg9[%274, %c0_101, %c0_102] : memref<12x8x384xf32, #tpu.memory_space<vmem>>, vector<1x8x384xf32>
    %276 = vector.shape_cast %275 : vector<1x8x384xf32> to vector<8x384xf32>
    %cst_103 = arith.constant dense<0.000000e+00> : vector<8x384xf32>
    %277 = tpu.matmul %227, %12, %cst_103 {dimension_numbers = #tpu.dot_dimension_numbers<[1], [0], [0], [1], [0, 0, 1, 1], [], []>} : vector<8x128xf32>, vector<128x384xf32>, vector<8x384xf32> -> vector<8x384xf32>
    %278 = vector.extract_strided_slice %276 {offsets = [0, 0], sizes = [8, 128], strides = [1, 1]} : vector<8x384xf32> to vector<8x128xf32>
    %279 = vector.extract_strided_slice %277 {offsets = [0, 0], sizes = [8, 128], strides = [1, 1]} : vector<8x384xf32> to vector<8x128xf32>
    %280 = arith.addf %278, %279 : vector<8x128xf32>
    %281 = arith.negf %280 : vector<8x128xf32>
    %282 = math.exp %281 : vector<8x128xf32>
    %cst_104 = arith.constant 1.000000e+00 : f32
    %283 = vector.broadcast %cst_104 : f32 to vector<8x128xf32>
    %284 = arith.addf %283, %282 : vector<8x128xf32>
    %285 = arith.divf %283, %284 : vector<8x128xf32>
    %286 = vector.extract_strided_slice %276 {offsets = [0, 128], sizes = [8, 128], strides = [1, 1]} : vector<8x384xf32> to vector<8x128xf32>
    %287 = vector.extract_strided_slice %277 {offsets = [0, 128], sizes = [8, 128], strides = [1, 1]} : vector<8x384xf32> to vector<8x128xf32>
    %288 = arith.addf %286, %287 : vector<8x128xf32>
    %289 = arith.negf %288 : vector<8x128xf32>
    %290 = math.exp %289 : vector<8x128xf32>
    %cst_105 = arith.constant 1.000000e+00 : f32
    %291 = vector.broadcast %cst_105 : f32 to vector<8x128xf32>
    %292 = arith.addf %291, %290 : vector<8x128xf32>
    %293 = arith.divf %291, %292 : vector<8x128xf32>
    %294 = vector.extract_strided_slice %276 {offsets = [0, 256], sizes = [8, 128], strides = [1, 1]} : vector<8x384xf32> to vector<8x128xf32>
    %295 = vector.extract_strided_slice %277 {offsets = [0, 256], sizes = [8, 128], strides = [1, 1]} : vector<8x384xf32> to vector<8x128xf32>
    %296 = arith.addf %295, %24 : vector<8x128xf32>
    %297 = arith.mulf %285, %296 : vector<8x128xf32>
    %298 = arith.addf %294, %297 : vector<8x128xf32>
    %299 = math.tanh %298 : vector<8x128xf32>
    %cst_106 = arith.constant 1.000000e+00 : f32
    %300 = vector.broadcast %cst_106 : f32 to vector<8x128xf32>
    %301 = arith.subf %300, %293 : vector<8x128xf32>
    %302 = arith.mulf %301, %299 : vector<8x128xf32>
    %303 = arith.mulf %293, %227 : vector<8x128xf32>
    %304 = arith.addf %302, %303 : vector<8x128xf32>
    %305 = arith.select %272, %304, %227 : vector<8x128xf32>
    %c1_i32_107 = arith.constant 1 : i32
    %306 = arith.subi %c3_i32, %c1_i32_107 : i32
    %c0_i32_108 = arith.constant 0 : i32
    %307 = arith.cmpi sge, %306, %c0_i32_108 : i32
    %c12_i32_109 = arith.constant 12 : i32
    %308 = arith.cmpi slt, %306, %c12_i32_109 : i32
    %309 = arith.andi %307, %308 : i1
    %cst_110 = arith.constant dense<0.000000e+00> : vector<8x384xf32>
    %310 = tpu.matmul %227, %16, %cst_110 {dimension_numbers = #tpu.dot_dimension_numbers<[1], [0], [0], [1], [0, 0, 1, 1], [], []>} : vector<8x128xf32>, vector<128x384xf32>, vector<8x384xf32> -> vector<8x384xf32>
    %311 = arith.addf %310, %20 : vector<8x384xf32>
    %cst_111 = arith.constant dense<0.000000e+00> : vector<8x384xf32>
    %312 = tpu.matmul %262, %14, %cst_111 {dimension_numbers = #tpu.dot_dimension_numbers<[1], [0], [0], [1], [0, 0, 1, 1], [], []>} : vector<8x128xf32>, vector<128x384xf32>, vector<8x384xf32> -> vector<8x384xf32>
    %313 = vector.extract_strided_slice %311 {offsets = [0, 0], sizes = [8, 128], strides = [1, 1]} : vector<8x384xf32> to vector<8x128xf32>
    %314 = vector.extract_strided_slice %312 {offsets = [0, 0], sizes = [8, 128], strides = [1, 1]} : vector<8x384xf32> to vector<8x128xf32>
    %315 = arith.addf %313, %314 : vector<8x128xf32>
    %316 = arith.negf %315 : vector<8x128xf32>
    %317 = math.exp %316 : vector<8x128xf32>
    %cst_112 = arith.constant 1.000000e+00 : f32
    %318 = vector.broadcast %cst_112 : f32 to vector<8x128xf32>
    %319 = arith.addf %318, %317 : vector<8x128xf32>
    %320 = arith.divf %318, %319 : vector<8x128xf32>
    %321 = vector.extract_strided_slice %311 {offsets = [0, 128], sizes = [8, 128], strides = [1, 1]} : vector<8x384xf32> to vector<8x128xf32>
    %322 = vector.extract_strided_slice %312 {offsets = [0, 128], sizes = [8, 128], strides = [1, 1]} : vector<8x384xf32> to vector<8x128xf32>
    %323 = arith.addf %321, %322 : vector<8x128xf32>
    %324 = arith.negf %323 : vector<8x128xf32>
    %325 = math.exp %324 : vector<8x128xf32>
    %cst_113 = arith.constant 1.000000e+00 : f32
    %326 = vector.broadcast %cst_113 : f32 to vector<8x128xf32>
    %327 = arith.addf %326, %325 : vector<8x128xf32>
    %328 = arith.divf %326, %327 : vector<8x128xf32>
    %329 = vector.extract_strided_slice %311 {offsets = [0, 256], sizes = [8, 128], strides = [1, 1]} : vector<8x384xf32> to vector<8x128xf32>
    %330 = vector.extract_strided_slice %312 {offsets = [0, 256], sizes = [8, 128], strides = [1, 1]} : vector<8x384xf32> to vector<8x128xf32>
    %331 = arith.addf %330, %28 : vector<8x128xf32>
    %332 = arith.mulf %320, %331 : vector<8x128xf32>
    %333 = arith.addf %329, %332 : vector<8x128xf32>
    %334 = math.tanh %333 : vector<8x128xf32>
    %cst_114 = arith.constant 1.000000e+00 : f32
    %335 = vector.broadcast %cst_114 : f32 to vector<8x128xf32>
    %336 = arith.subf %335, %328 : vector<8x128xf32>
    %337 = arith.mulf %336, %334 : vector<8x128xf32>
    %338 = arith.mulf %328, %262 : vector<8x128xf32>
    %339 = arith.addf %337, %338 : vector<8x128xf32>
    %340 = arith.select %309, %339, %262 : vector<8x128xf32>
    %c1_i32_115 = arith.constant 1 : i32
    %341 = arith.subi %c3_i32, %c1_i32_115 : i32
    %c8_i32_116 = arith.constant 8 : i32
    %342 = arith.cmpi sge, %341, %c8_i32_116 : i32
    %c12_i32_117 = arith.constant 12 : i32
    %343 = arith.cmpi slt, %341, %c12_i32_117 : i32
    %344 = arith.andi %342, %343 : i1
    %345 = arith.extui %344 : i1 to i32
    %c0_i32_118 = arith.constant 0 : i32
    %346 = arith.cmpi ne, %345, %c0_i32_118 : i32
    scf.if %346 {
      %cst_320 = arith.constant dense<0.000000e+00> : vector<8x128xf32>
      %1049 = tpu.matmul %340, %29, %cst_320 {dimension_numbers = #tpu.dot_dimension_numbers<[1], [0], [0], [1], [0, 0, 1, 1], [], []>} : vector<8x128xf32>, vector<128x128xf32>, vector<8x128xf32> -> vector<8x128xf32>
      %1050 = arith.addf %1049, %32 : vector<8x128xf32>
      %c8_i32_321 = arith.constant 8 : i32
      %1051 = arith.subi %341, %c8_i32_321 : i32
      %1052 = arith.index_cast %1051 : i32 to index
      %c0_322 = arith.constant 0 : index
      %c0_323 = arith.constant 0 : index
      %1053 = vector.load %arg8[%1052, %c0_322, %c0_323] : memref<4x8x128xf32, #tpu.memory_space<vmem>>, vector<1x8x128xf32>
      %1054 = vector.shape_cast %1053 : vector<1x8x128xf32> to vector<8x128xf32>
      %1055 = vector.shape_cast %1050 : vector<8x128xf32> to vector<1x8x128xf32>
      tpu.vector_store %arg8[%1052, %c0_322, %c0_323], %1055 {strides = array<i32>} : memref<4x8x128xf32, #tpu.memory_space<vmem>>, vector<1x8x128xf32>,
    } else {
    }
    %c4_i32 = arith.constant 4 : i32
    %c0_i32_119 = arith.constant 0 : i32
    %347 = arith.subi %c4_i32, %c0_i32_119 : i32
    %c0_i32_120 = arith.constant 0 : i32
    %348 = arith.cmpi sge, %347, %c0_i32_120 : i32
    %c12_i32_121 = arith.constant 12 : i32
    %349 = arith.cmpi slt, %347, %c12_i32_121 : i32
    %350 = arith.andi %348, %349 : i1
    %c11_i32_122 = arith.constant 11 : i32
    %351 = arith.minsi %c4_i32, %c11_i32_122 : i32
    %352 = arith.index_cast %351 : i32 to index
    %c0_123 = arith.constant 0 : index
    %c0_124 = arith.constant 0 : index
    %353 = vector.load %arg9[%352, %c0_123, %c0_124] : memref<12x8x384xf32, #tpu.memory_space<vmem>>, vector<1x8x384xf32>
    %354 = vector.shape_cast %353 : vector<1x8x384xf32> to vector<8x384xf32>
    %cst_125 = arith.constant dense<0.000000e+00> : vector<8x384xf32>
    %355 = tpu.matmul %305, %12, %cst_125 {dimension_numbers = #tpu.dot_dimension_numbers<[1], [0], [0], [1], [0, 0, 1, 1], [], []>} : vector<8x128xf32>, vector<128x384xf32>, vector<8x384xf32> -> vector<8x384xf32>
    %356 = vector.extract_strided_slice %354 {offsets = [0, 0], sizes = [8, 128], strides = [1, 1]} : vector<8x384xf32> to vector<8x128xf32>
    %357 = vector.extract_strided_slice %355 {offsets = [0, 0], sizes = [8, 128], strides = [1, 1]} : vector<8x384xf32> to vector<8x128xf32>
    %358 = arith.addf %356, %357 : vector<8x128xf32>
    %359 = arith.negf %358 : vector<8x128xf32>
    %360 = math.exp %359 : vector<8x128xf32>
    %cst_126 = arith.constant 1.000000e+00 : f32
    %361 = vector.broadcast %cst_126 : f32 to vector<8x128xf32>
    %362 = arith.addf %361, %360 : vector<8x128xf32>
    %363 = arith.divf %361, %362 : vector<8x128xf32>
    %364 = vector.extract_strided_slice %354 {offsets = [0, 128], sizes = [8, 128], strides = [1, 1]} : vector<8x384xf32> to vector<8x128xf32>
    %365 = vector.extract_strided_slice %355 {offsets = [0, 128], sizes = [8, 128], strides = [1, 1]} : vector<8x384xf32> to vector<8x128xf32>
    %366 = arith.addf %364, %365 : vector<8x128xf32>
    %367 = arith.negf %366 : vector<8x128xf32>
    %368 = math.exp %367 : vector<8x128xf32>
    %cst_127 = arith.constant 1.000000e+00 : f32
    %369 = vector.broadcast %cst_127 : f32 to vector<8x128xf32>
    %370 = arith.addf %369, %368 : vector<8x128xf32>
    %371 = arith.divf %369, %370 : vector<8x128xf32>
    %372 = vector.extract_strided_slice %354 {offsets = [0, 256], sizes = [8, 128], strides = [1, 1]} : vector<8x384xf32> to vector<8x128xf32>
    %373 = vector.extract_strided_slice %355 {offsets = [0, 256], sizes = [8, 128], strides = [1, 1]} : vector<8x384xf32> to vector<8x128xf32>
    %374 = arith.addf %373, %24 : vector<8x128xf32>
    %375 = arith.mulf %363, %374 : vector<8x128xf32>
    %376 = arith.addf %372, %375 : vector<8x128xf32>
    %377 = math.tanh %376 : vector<8x128xf32>
    %cst_128 = arith.constant 1.000000e+00 : f32
    %378 = vector.broadcast %cst_128 : f32 to vector<8x128xf32>
    %379 = arith.subf %378, %371 : vector<8x128xf32>
    %380 = arith.mulf %379, %377 : vector<8x128xf32>
    %381 = arith.mulf %371, %305 : vector<8x128xf32>
    %382 = arith.addf %380, %381 : vector<8x128xf32>
    %383 = arith.select %350, %382, %305 : vector<8x128xf32>
    %c1_i32_129 = arith.constant 1 : i32
    %384 = arith.subi %c4_i32, %c1_i32_129 : i32
    %c0_i32_130 = arith.constant 0 : i32
    %385 = arith.cmpi sge, %384, %c0_i32_130 : i32
    %c12_i32_131 = arith.constant 12 : i32
    %386 = arith.cmpi slt, %384, %c12_i32_131 : i32
    %387 = arith.andi %385, %386 : i1
    %cst_132 = arith.constant dense<0.000000e+00> : vector<8x384xf32>
    %388 = tpu.matmul %305, %16, %cst_132 {dimension_numbers = #tpu.dot_dimension_numbers<[1], [0], [0], [1], [0, 0, 1, 1], [], []>} : vector<8x128xf32>, vector<128x384xf32>, vector<8x384xf32> -> vector<8x384xf32>
    %389 = arith.addf %388, %20 : vector<8x384xf32>
    %cst_133 = arith.constant dense<0.000000e+00> : vector<8x384xf32>
    %390 = tpu.matmul %340, %14, %cst_133 {dimension_numbers = #tpu.dot_dimension_numbers<[1], [0], [0], [1], [0, 0, 1, 1], [], []>} : vector<8x128xf32>, vector<128x384xf32>, vector<8x384xf32> -> vector<8x384xf32>
    %391 = vector.extract_strided_slice %389 {offsets = [0, 0], sizes = [8, 128], strides = [1, 1]} : vector<8x384xf32> to vector<8x128xf32>
    %392 = vector.extract_strided_slice %390 {offsets = [0, 0], sizes = [8, 128], strides = [1, 1]} : vector<8x384xf32> to vector<8x128xf32>
    %393 = arith.addf %391, %392 : vector<8x128xf32>
    %394 = arith.negf %393 : vector<8x128xf32>
    %395 = math.exp %394 : vector<8x128xf32>
    %cst_134 = arith.constant 1.000000e+00 : f32
    %396 = vector.broadcast %cst_134 : f32 to vector<8x128xf32>
    %397 = arith.addf %396, %395 : vector<8x128xf32>
    %398 = arith.divf %396, %397 : vector<8x128xf32>
    %399 = vector.extract_strided_slice %389 {offsets = [0, 128], sizes = [8, 128], strides = [1, 1]} : vector<8x384xf32> to vector<8x128xf32>
    %400 = vector.extract_strided_slice %390 {offsets = [0, 128], sizes = [8, 128], strides = [1, 1]} : vector<8x384xf32> to vector<8x128xf32>
    %401 = arith.addf %399, %400 : vector<8x128xf32>
    %402 = arith.negf %401 : vector<8x128xf32>
    %403 = math.exp %402 : vector<8x128xf32>
    %cst_135 = arith.constant 1.000000e+00 : f32
    %404 = vector.broadcast %cst_135 : f32 to vector<8x128xf32>
    %405 = arith.addf %404, %403 : vector<8x128xf32>
    %406 = arith.divf %404, %405 : vector<8x128xf32>
    %407 = vector.extract_strided_slice %389 {offsets = [0, 256], sizes = [8, 128], strides = [1, 1]} : vector<8x384xf32> to vector<8x128xf32>
    %408 = vector.extract_strided_slice %390 {offsets = [0, 256], sizes = [8, 128], strides = [1, 1]} : vector<8x384xf32> to vector<8x128xf32>
    %409 = arith.addf %408, %28 : vector<8x128xf32>
    %410 = arith.mulf %398, %409 : vector<8x128xf32>
    %411 = arith.addf %407, %410 : vector<8x128xf32>
    %412 = math.tanh %411 : vector<8x128xf32>
    %cst_136 = arith.constant 1.000000e+00 : f32
    %413 = vector.broadcast %cst_136 : f32 to vector<8x128xf32>
    %414 = arith.subf %413, %406 : vector<8x128xf32>
    %415 = arith.mulf %414, %412 : vector<8x128xf32>
    %416 = arith.mulf %406, %340 : vector<8x128xf32>
    %417 = arith.addf %415, %416 : vector<8x128xf32>
    %418 = arith.select %387, %417, %340 : vector<8x128xf32>
    %c1_i32_137 = arith.constant 1 : i32
    %419 = arith.subi %c4_i32, %c1_i32_137 : i32
    %c8_i32_138 = arith.constant 8 : i32
    %420 = arith.cmpi sge, %419, %c8_i32_138 : i32
    %c12_i32_139 = arith.constant 12 : i32
    %421 = arith.cmpi slt, %419, %c12_i32_139 : i32
    %422 = arith.andi %420, %421 : i1
    %423 = arith.extui %422 : i1 to i32
    %c0_i32_140 = arith.constant 0 : i32
    %424 = arith.cmpi ne, %423, %c0_i32_140 : i32
    scf.if %424 {
      %cst_320 = arith.constant dense<0.000000e+00> : vector<8x128xf32>
      %1049 = tpu.matmul %418, %29, %cst_320 {dimension_numbers = #tpu.dot_dimension_numbers<[1], [0], [0], [1], [0, 0, 1, 1], [], []>} : vector<8x128xf32>, vector<128x128xf32>, vector<8x128xf32> -> vector<8x128xf32>
      %1050 = arith.addf %1049, %32 : vector<8x128xf32>
      %c8_i32_321 = arith.constant 8 : i32
      %1051 = arith.subi %419, %c8_i32_321 : i32
      %1052 = arith.index_cast %1051 : i32 to index
      %c0_322 = arith.constant 0 : index
      %c0_323 = arith.constant 0 : index
      %1053 = vector.load %arg8[%1052, %c0_322, %c0_323] : memref<4x8x128xf32, #tpu.memory_space<vmem>>, vector<1x8x128xf32>
      %1054 = vector.shape_cast %1053 : vector<1x8x128xf32> to vector<8x128xf32>
      %1055 = vector.shape_cast %1050 : vector<8x128xf32> to vector<1x8x128xf32>
      tpu.vector_store %arg8[%1052, %c0_322, %c0_323], %1055 {strides = array<i32>} : memref<4x8x128xf32, #tpu.memory_space<vmem>>, vector<1x8x128xf32>,
    } else {
    }
    %c5_i32 = arith.constant 5 : i32
    %c0_i32_141 = arith.constant 0 : i32
    %425 = arith.subi %c5_i32, %c0_i32_141 : i32
    %c0_i32_142 = arith.constant 0 : i32
    %426 = arith.cmpi sge, %425, %c0_i32_142 : i32
    %c12_i32_143 = arith.constant 12 : i32
    %427 = arith.cmpi slt, %425, %c12_i32_143 : i32
    %428 = arith.andi %426, %427 : i1
    %c11_i32_144 = arith.constant 11 : i32
    %429 = arith.minsi %c5_i32, %c11_i32_144 : i32
    %430 = arith.index_cast %429 : i32 to index
    %c0_145 = arith.constant 0 : index
    %c0_146 = arith.constant 0 : index
    %431 = vector.load %arg9[%430, %c0_145, %c0_146] : memref<12x8x384xf32, #tpu.memory_space<vmem>>, vector<1x8x384xf32>
    %432 = vector.shape_cast %431 : vector<1x8x384xf32> to vector<8x384xf32>
    %cst_147 = arith.constant dense<0.000000e+00> : vector<8x384xf32>
    %433 = tpu.matmul %383, %12, %cst_147 {dimension_numbers = #tpu.dot_dimension_numbers<[1], [0], [0], [1], [0, 0, 1, 1], [], []>} : vector<8x128xf32>, vector<128x384xf32>, vector<8x384xf32> -> vector<8x384xf32>
    %434 = vector.extract_strided_slice %432 {offsets = [0, 0], sizes = [8, 128], strides = [1, 1]} : vector<8x384xf32> to vector<8x128xf32>
    %435 = vector.extract_strided_slice %433 {offsets = [0, 0], sizes = [8, 128], strides = [1, 1]} : vector<8x384xf32> to vector<8x128xf32>
    %436 = arith.addf %434, %435 : vector<8x128xf32>
    %437 = arith.negf %436 : vector<8x128xf32>
    %438 = math.exp %437 : vector<8x128xf32>
    %cst_148 = arith.constant 1.000000e+00 : f32
    %439 = vector.broadcast %cst_148 : f32 to vector<8x128xf32>
    %440 = arith.addf %439, %438 : vector<8x128xf32>
    %441 = arith.divf %439, %440 : vector<8x128xf32>
    %442 = vector.extract_strided_slice %432 {offsets = [0, 128], sizes = [8, 128], strides = [1, 1]} : vector<8x384xf32> to vector<8x128xf32>
    %443 = vector.extract_strided_slice %433 {offsets = [0, 128], sizes = [8, 128], strides = [1, 1]} : vector<8x384xf32> to vector<8x128xf32>
    %444 = arith.addf %442, %443 : vector<8x128xf32>
    %445 = arith.negf %444 : vector<8x128xf32>
    %446 = math.exp %445 : vector<8x128xf32>
    %cst_149 = arith.constant 1.000000e+00 : f32
    %447 = vector.broadcast %cst_149 : f32 to vector<8x128xf32>
    %448 = arith.addf %447, %446 : vector<8x128xf32>
    %449 = arith.divf %447, %448 : vector<8x128xf32>
    %450 = vector.extract_strided_slice %432 {offsets = [0, 256], sizes = [8, 128], strides = [1, 1]} : vector<8x384xf32> to vector<8x128xf32>
    %451 = vector.extract_strided_slice %433 {offsets = [0, 256], sizes = [8, 128], strides = [1, 1]} : vector<8x384xf32> to vector<8x128xf32>
    %452 = arith.addf %451, %24 : vector<8x128xf32>
    %453 = arith.mulf %441, %452 : vector<8x128xf32>
    %454 = arith.addf %450, %453 : vector<8x128xf32>
    %455 = math.tanh %454 : vector<8x128xf32>
    %cst_150 = arith.constant 1.000000e+00 : f32
    %456 = vector.broadcast %cst_150 : f32 to vector<8x128xf32>
    %457 = arith.subf %456, %449 : vector<8x128xf32>
    %458 = arith.mulf %457, %455 : vector<8x128xf32>
    %459 = arith.mulf %449, %383 : vector<8x128xf32>
    %460 = arith.addf %458, %459 : vector<8x128xf32>
    %461 = arith.select %428, %460, %383 : vector<8x128xf32>
    %c1_i32_151 = arith.constant 1 : i32
    %462 = arith.subi %c5_i32, %c1_i32_151 : i32
    %c0_i32_152 = arith.constant 0 : i32
    %463 = arith.cmpi sge, %462, %c0_i32_152 : i32
    %c12_i32_153 = arith.constant 12 : i32
    %464 = arith.cmpi slt, %462, %c12_i32_153 : i32
    %465 = arith.andi %463, %464 : i1
    %cst_154 = arith.constant dense<0.000000e+00> : vector<8x384xf32>
    %466 = tpu.matmul %383, %16, %cst_154 {dimension_numbers = #tpu.dot_dimension_numbers<[1], [0], [0], [1], [0, 0, 1, 1], [], []>} : vector<8x128xf32>, vector<128x384xf32>, vector<8x384xf32> -> vector<8x384xf32>
    %467 = arith.addf %466, %20 : vector<8x384xf32>
    %cst_155 = arith.constant dense<0.000000e+00> : vector<8x384xf32>
    %468 = tpu.matmul %418, %14, %cst_155 {dimension_numbers = #tpu.dot_dimension_numbers<[1], [0], [0], [1], [0, 0, 1, 1], [], []>} : vector<8x128xf32>, vector<128x384xf32>, vector<8x384xf32> -> vector<8x384xf32>
    %469 = vector.extract_strided_slice %467 {offsets = [0, 0], sizes = [8, 128], strides = [1, 1]} : vector<8x384xf32> to vector<8x128xf32>
    %470 = vector.extract_strided_slice %468 {offsets = [0, 0], sizes = [8, 128], strides = [1, 1]} : vector<8x384xf32> to vector<8x128xf32>
    %471 = arith.addf %469, %470 : vector<8x128xf32>
    %472 = arith.negf %471 : vector<8x128xf32>
    %473 = math.exp %472 : vector<8x128xf32>
    %cst_156 = arith.constant 1.000000e+00 : f32
    %474 = vector.broadcast %cst_156 : f32 to vector<8x128xf32>
    %475 = arith.addf %474, %473 : vector<8x128xf32>
    %476 = arith.divf %474, %475 : vector<8x128xf32>
    %477 = vector.extract_strided_slice %467 {offsets = [0, 128], sizes = [8, 128], strides = [1, 1]} : vector<8x384xf32> to vector<8x128xf32>
    %478 = vector.extract_strided_slice %468 {offsets = [0, 128], sizes = [8, 128], strides = [1, 1]} : vector<8x384xf32> to vector<8x128xf32>
    %479 = arith.addf %477, %478 : vector<8x128xf32>
    %480 = arith.negf %479 : vector<8x128xf32>
    %481 = math.exp %480 : vector<8x128xf32>
    %cst_157 = arith.constant 1.000000e+00 : f32
    %482 = vector.broadcast %cst_157 : f32 to vector<8x128xf32>
    %483 = arith.addf %482, %481 : vector<8x128xf32>
    %484 = arith.divf %482, %483 : vector<8x128xf32>
    %485 = vector.extract_strided_slice %467 {offsets = [0, 256], sizes = [8, 128], strides = [1, 1]} : vector<8x384xf32> to vector<8x128xf32>
    %486 = vector.extract_strided_slice %468 {offsets = [0, 256], sizes = [8, 128], strides = [1, 1]} : vector<8x384xf32> to vector<8x128xf32>
    %487 = arith.addf %486, %28 : vector<8x128xf32>
    %488 = arith.mulf %476, %487 : vector<8x128xf32>
    %489 = arith.addf %485, %488 : vector<8x128xf32>
    %490 = math.tanh %489 : vector<8x128xf32>
    %cst_158 = arith.constant 1.000000e+00 : f32
    %491 = vector.broadcast %cst_158 : f32 to vector<8x128xf32>
    %492 = arith.subf %491, %484 : vector<8x128xf32>
    %493 = arith.mulf %492, %490 : vector<8x128xf32>
    %494 = arith.mulf %484, %418 : vector<8x128xf32>
    %495 = arith.addf %493, %494 : vector<8x128xf32>
    %496 = arith.select %465, %495, %418 : vector<8x128xf32>
    %c1_i32_159 = arith.constant 1 : i32
    %497 = arith.subi %c5_i32, %c1_i32_159 : i32
    %c8_i32_160 = arith.constant 8 : i32
    %498 = arith.cmpi sge, %497, %c8_i32_160 : i32
    %c12_i32_161 = arith.constant 12 : i32
    %499 = arith.cmpi slt, %497, %c12_i32_161 : i32
    %500 = arith.andi %498, %499 : i1
    %501 = arith.extui %500 : i1 to i32
    %c0_i32_162 = arith.constant 0 : i32
    %502 = arith.cmpi ne, %501, %c0_i32_162 : i32
    scf.if %502 {
      %cst_320 = arith.constant dense<0.000000e+00> : vector<8x128xf32>
      %1049 = tpu.matmul %496, %29, %cst_320 {dimension_numbers = #tpu.dot_dimension_numbers<[1], [0], [0], [1], [0, 0, 1, 1], [], []>} : vector<8x128xf32>, vector<128x128xf32>, vector<8x128xf32> -> vector<8x128xf32>
      %1050 = arith.addf %1049, %32 : vector<8x128xf32>
      %c8_i32_321 = arith.constant 8 : i32
      %1051 = arith.subi %497, %c8_i32_321 : i32
      %1052 = arith.index_cast %1051 : i32 to index
      %c0_322 = arith.constant 0 : index
      %c0_323 = arith.constant 0 : index
      %1053 = vector.load %arg8[%1052, %c0_322, %c0_323] : memref<4x8x128xf32, #tpu.memory_space<vmem>>, vector<1x8x128xf32>
      %1054 = vector.shape_cast %1053 : vector<1x8x128xf32> to vector<8x128xf32>
      %1055 = vector.shape_cast %1050 : vector<8x128xf32> to vector<1x8x128xf32>
      tpu.vector_store %arg8[%1052, %c0_322, %c0_323], %1055 {strides = array<i32>} : memref<4x8x128xf32, #tpu.memory_space<vmem>>, vector<1x8x128xf32>,
    } else {
    }
    %c6_i32 = arith.constant 6 : i32
    %c0_i32_163 = arith.constant 0 : i32
    %503 = arith.subi %c6_i32, %c0_i32_163 : i32
    %c0_i32_164 = arith.constant 0 : i32
    %504 = arith.cmpi sge, %503, %c0_i32_164 : i32
    %c12_i32_165 = arith.constant 12 : i32
    %505 = arith.cmpi slt, %503, %c12_i32_165 : i32
    %506 = arith.andi %504, %505 : i1
    %c11_i32_166 = arith.constant 11 : i32
    %507 = arith.minsi %c6_i32, %c11_i32_166 : i32
    %508 = arith.index_cast %507 : i32 to index
    %c0_167 = arith.constant 0 : index
    %c0_168 = arith.constant 0 : index
    %509 = vector.load %arg9[%508, %c0_167, %c0_168] : memref<12x8x384xf32, #tpu.memory_space<vmem>>, vector<1x8x384xf32>
    %510 = vector.shape_cast %509 : vector<1x8x384xf32> to vector<8x384xf32>
    %cst_169 = arith.constant dense<0.000000e+00> : vector<8x384xf32>
    %511 = tpu.matmul %461, %12, %cst_169 {dimension_numbers = #tpu.dot_dimension_numbers<[1], [0], [0], [1], [0, 0, 1, 1], [], []>} : vector<8x128xf32>, vector<128x384xf32>, vector<8x384xf32> -> vector<8x384xf32>
    %512 = vector.extract_strided_slice %510 {offsets = [0, 0], sizes = [8, 128], strides = [1, 1]} : vector<8x384xf32> to vector<8x128xf32>
    %513 = vector.extract_strided_slice %511 {offsets = [0, 0], sizes = [8, 128], strides = [1, 1]} : vector<8x384xf32> to vector<8x128xf32>
    %514 = arith.addf %512, %513 : vector<8x128xf32>
    %515 = arith.negf %514 : vector<8x128xf32>
    %516 = math.exp %515 : vector<8x128xf32>
    %cst_170 = arith.constant 1.000000e+00 : f32
    %517 = vector.broadcast %cst_170 : f32 to vector<8x128xf32>
    %518 = arith.addf %517, %516 : vector<8x128xf32>
    %519 = arith.divf %517, %518 : vector<8x128xf32>
    %520 = vector.extract_strided_slice %510 {offsets = [0, 128], sizes = [8, 128], strides = [1, 1]} : vector<8x384xf32> to vector<8x128xf32>
    %521 = vector.extract_strided_slice %511 {offsets = [0, 128], sizes = [8, 128], strides = [1, 1]} : vector<8x384xf32> to vector<8x128xf32>
    %522 = arith.addf %520, %521 : vector<8x128xf32>
    %523 = arith.negf %522 : vector<8x128xf32>
    %524 = math.exp %523 : vector<8x128xf32>
    %cst_171 = arith.constant 1.000000e+00 : f32
    %525 = vector.broadcast %cst_171 : f32 to vector<8x128xf32>
    %526 = arith.addf %525, %524 : vector<8x128xf32>
    %527 = arith.divf %525, %526 : vector<8x128xf32>
    %528 = vector.extract_strided_slice %510 {offsets = [0, 256], sizes = [8, 128], strides = [1, 1]} : vector<8x384xf32> to vector<8x128xf32>
    %529 = vector.extract_strided_slice %511 {offsets = [0, 256], sizes = [8, 128], strides = [1, 1]} : vector<8x384xf32> to vector<8x128xf32>
    %530 = arith.addf %529, %24 : vector<8x128xf32>
    %531 = arith.mulf %519, %530 : vector<8x128xf32>
    %532 = arith.addf %528, %531 : vector<8x128xf32>
    %533 = math.tanh %532 : vector<8x128xf32>
    %cst_172 = arith.constant 1.000000e+00 : f32
    %534 = vector.broadcast %cst_172 : f32 to vector<8x128xf32>
    %535 = arith.subf %534, %527 : vector<8x128xf32>
    %536 = arith.mulf %535, %533 : vector<8x128xf32>
    %537 = arith.mulf %527, %461 : vector<8x128xf32>
    %538 = arith.addf %536, %537 : vector<8x128xf32>
    %539 = arith.select %506, %538, %461 : vector<8x128xf32>
    %c1_i32_173 = arith.constant 1 : i32
    %540 = arith.subi %c6_i32, %c1_i32_173 : i32
    %c0_i32_174 = arith.constant 0 : i32
    %541 = arith.cmpi sge, %540, %c0_i32_174 : i32
    %c12_i32_175 = arith.constant 12 : i32
    %542 = arith.cmpi slt, %540, %c12_i32_175 : i32
    %543 = arith.andi %541, %542 : i1
    %cst_176 = arith.constant dense<0.000000e+00> : vector<8x384xf32>
    %544 = tpu.matmul %461, %16, %cst_176 {dimension_numbers = #tpu.dot_dimension_numbers<[1], [0], [0], [1], [0, 0, 1, 1], [], []>} : vector<8x128xf32>, vector<128x384xf32>, vector<8x384xf32> -> vector<8x384xf32>
    %545 = arith.addf %544, %20 : vector<8x384xf32>
    %cst_177 = arith.constant dense<0.000000e+00> : vector<8x384xf32>
    %546 = tpu.matmul %496, %14, %cst_177 {dimension_numbers = #tpu.dot_dimension_numbers<[1], [0], [0], [1], [0, 0, 1, 1], [], []>} : vector<8x128xf32>, vector<128x384xf32>, vector<8x384xf32> -> vector<8x384xf32>
    %547 = vector.extract_strided_slice %545 {offsets = [0, 0], sizes = [8, 128], strides = [1, 1]} : vector<8x384xf32> to vector<8x128xf32>
    %548 = vector.extract_strided_slice %546 {offsets = [0, 0], sizes = [8, 128], strides = [1, 1]} : vector<8x384xf32> to vector<8x128xf32>
    %549 = arith.addf %547, %548 : vector<8x128xf32>
    %550 = arith.negf %549 : vector<8x128xf32>
    %551 = math.exp %550 : vector<8x128xf32>
    %cst_178 = arith.constant 1.000000e+00 : f32
    %552 = vector.broadcast %cst_178 : f32 to vector<8x128xf32>
    %553 = arith.addf %552, %551 : vector<8x128xf32>
    %554 = arith.divf %552, %553 : vector<8x128xf32>
    %555 = vector.extract_strided_slice %545 {offsets = [0, 128], sizes = [8, 128], strides = [1, 1]} : vector<8x384xf32> to vector<8x128xf32>
    %556 = vector.extract_strided_slice %546 {offsets = [0, 128], sizes = [8, 128], strides = [1, 1]} : vector<8x384xf32> to vector<8x128xf32>
    %557 = arith.addf %555, %556 : vector<8x128xf32>
    %558 = arith.negf %557 : vector<8x128xf32>
    %559 = math.exp %558 : vector<8x128xf32>
    %cst_179 = arith.constant 1.000000e+00 : f32
    %560 = vector.broadcast %cst_179 : f32 to vector<8x128xf32>
    %561 = arith.addf %560, %559 : vector<8x128xf32>
    %562 = arith.divf %560, %561 : vector<8x128xf32>
    %563 = vector.extract_strided_slice %545 {offsets = [0, 256], sizes = [8, 128], strides = [1, 1]} : vector<8x384xf32> to vector<8x128xf32>
    %564 = vector.extract_strided_slice %546 {offsets = [0, 256], sizes = [8, 128], strides = [1, 1]} : vector<8x384xf32> to vector<8x128xf32>
    %565 = arith.addf %564, %28 : vector<8x128xf32>
    %566 = arith.mulf %554, %565 : vector<8x128xf32>
    %567 = arith.addf %563, %566 : vector<8x128xf32>
    %568 = math.tanh %567 : vector<8x128xf32>
    %cst_180 = arith.constant 1.000000e+00 : f32
    %569 = vector.broadcast %cst_180 : f32 to vector<8x128xf32>
    %570 = arith.subf %569, %562 : vector<8x128xf32>
    %571 = arith.mulf %570, %568 : vector<8x128xf32>
    %572 = arith.mulf %562, %496 : vector<8x128xf32>
    %573 = arith.addf %571, %572 : vector<8x128xf32>
    %574 = arith.select %543, %573, %496 : vector<8x128xf32>
    %c1_i32_181 = arith.constant 1 : i32
    %575 = arith.subi %c6_i32, %c1_i32_181 : i32
    %c8_i32_182 = arith.constant 8 : i32
    %576 = arith.cmpi sge, %575, %c8_i32_182 : i32
    %c12_i32_183 = arith.constant 12 : i32
    %577 = arith.cmpi slt, %575, %c12_i32_183 : i32
    %578 = arith.andi %576, %577 : i1
    %579 = arith.extui %578 : i1 to i32
    %c0_i32_184 = arith.constant 0 : i32
    %580 = arith.cmpi ne, %579, %c0_i32_184 : i32
    scf.if %580 {
      %cst_320 = arith.constant dense<0.000000e+00> : vector<8x128xf32>
      %1049 = tpu.matmul %574, %29, %cst_320 {dimension_numbers = #tpu.dot_dimension_numbers<[1], [0], [0], [1], [0, 0, 1, 1], [], []>} : vector<8x128xf32>, vector<128x128xf32>, vector<8x128xf32> -> vector<8x128xf32>
      %1050 = arith.addf %1049, %32 : vector<8x128xf32>
      %c8_i32_321 = arith.constant 8 : i32
      %1051 = arith.subi %575, %c8_i32_321 : i32
      %1052 = arith.index_cast %1051 : i32 to index
      %c0_322 = arith.constant 0 : index
      %c0_323 = arith.constant 0 : index
      %1053 = vector.load %arg8[%1052, %c0_322, %c0_323] : memref<4x8x128xf32, #tpu.memory_space<vmem>>, vector<1x8x128xf32>
      %1054 = vector.shape_cast %1053 : vector<1x8x128xf32> to vector<8x128xf32>
      %1055 = vector.shape_cast %1050 : vector<8x128xf32> to vector<1x8x128xf32>
      tpu.vector_store %arg8[%1052, %c0_322, %c0_323], %1055 {strides = array<i32>} : memref<4x8x128xf32, #tpu.memory_space<vmem>>, vector<1x8x128xf32>,
    } else {
    }
    %c7_i32 = arith.constant 7 : i32
    %c0_i32_185 = arith.constant 0 : i32
    %581 = arith.subi %c7_i32, %c0_i32_185 : i32
    %c0_i32_186 = arith.constant 0 : i32
    %582 = arith.cmpi sge, %581, %c0_i32_186 : i32
    %c12_i32_187 = arith.constant 12 : i32
    %583 = arith.cmpi slt, %581, %c12_i32_187 : i32
    %584 = arith.andi %582, %583 : i1
    %c11_i32_188 = arith.constant 11 : i32
    %585 = arith.minsi %c7_i32, %c11_i32_188 : i32
    %586 = arith.index_cast %585 : i32 to index
    %c0_189 = arith.constant 0 : index
    %c0_190 = arith.constant 0 : index
    %587 = vector.load %arg9[%586, %c0_189, %c0_190] : memref<12x8x384xf32, #tpu.memory_space<vmem>>, vector<1x8x384xf32>
    %588 = vector.shape_cast %587 : vector<1x8x384xf32> to vector<8x384xf32>
    %cst_191 = arith.constant dense<0.000000e+00> : vector<8x384xf32>
    %589 = tpu.matmul %539, %12, %cst_191 {dimension_numbers = #tpu.dot_dimension_numbers<[1], [0], [0], [1], [0, 0, 1, 1], [], []>} : vector<8x128xf32>, vector<128x384xf32>, vector<8x384xf32> -> vector<8x384xf32>
    %590 = vector.extract_strided_slice %588 {offsets = [0, 0], sizes = [8, 128], strides = [1, 1]} : vector<8x384xf32> to vector<8x128xf32>
    %591 = vector.extract_strided_slice %589 {offsets = [0, 0], sizes = [8, 128], strides = [1, 1]} : vector<8x384xf32> to vector<8x128xf32>
    %592 = arith.addf %590, %591 : vector<8x128xf32>
    %593 = arith.negf %592 : vector<8x128xf32>
    %594 = math.exp %593 : vector<8x128xf32>
    %cst_192 = arith.constant 1.000000e+00 : f32
    %595 = vector.broadcast %cst_192 : f32 to vector<8x128xf32>
    %596 = arith.addf %595, %594 : vector<8x128xf32>
    %597 = arith.divf %595, %596 : vector<8x128xf32>
    %598 = vector.extract_strided_slice %588 {offsets = [0, 128], sizes = [8, 128], strides = [1, 1]} : vector<8x384xf32> to vector<8x128xf32>
    %599 = vector.extract_strided_slice %589 {offsets = [0, 128], sizes = [8, 128], strides = [1, 1]} : vector<8x384xf32> to vector<8x128xf32>
    %600 = arith.addf %598, %599 : vector<8x128xf32>
    %601 = arith.negf %600 : vector<8x128xf32>
    %602 = math.exp %601 : vector<8x128xf32>
    %cst_193 = arith.constant 1.000000e+00 : f32
    %603 = vector.broadcast %cst_193 : f32 to vector<8x128xf32>
    %604 = arith.addf %603, %602 : vector<8x128xf32>
    %605 = arith.divf %603, %604 : vector<8x128xf32>
    %606 = vector.extract_strided_slice %588 {offsets = [0, 256], sizes = [8, 128], strides = [1, 1]} : vector<8x384xf32> to vector<8x128xf32>
    %607 = vector.extract_strided_slice %589 {offsets = [0, 256], sizes = [8, 128], strides = [1, 1]} : vector<8x384xf32> to vector<8x128xf32>
    %608 = arith.addf %607, %24 : vector<8x128xf32>
    %609 = arith.mulf %597, %608 : vector<8x128xf32>
    %610 = arith.addf %606, %609 : vector<8x128xf32>
    %611 = math.tanh %610 : vector<8x128xf32>
    %cst_194 = arith.constant 1.000000e+00 : f32
    %612 = vector.broadcast %cst_194 : f32 to vector<8x128xf32>
    %613 = arith.subf %612, %605 : vector<8x128xf32>
    %614 = arith.mulf %613, %611 : vector<8x128xf32>
    %615 = arith.mulf %605, %539 : vector<8x128xf32>
    %616 = arith.addf %614, %615 : vector<8x128xf32>
    %617 = arith.select %584, %616, %539 : vector<8x128xf32>
    %c1_i32_195 = arith.constant 1 : i32
    %618 = arith.subi %c7_i32, %c1_i32_195 : i32
    %c0_i32_196 = arith.constant 0 : i32
    %619 = arith.cmpi sge, %618, %c0_i32_196 : i32
    %c12_i32_197 = arith.constant 12 : i32
    %620 = arith.cmpi slt, %618, %c12_i32_197 : i32
    %621 = arith.andi %619, %620 : i1
    %cst_198 = arith.constant dense<0.000000e+00> : vector<8x384xf32>
    %622 = tpu.matmul %539, %16, %cst_198 {dimension_numbers = #tpu.dot_dimension_numbers<[1], [0], [0], [1], [0, 0, 1, 1], [], []>} : vector<8x128xf32>, vector<128x384xf32>, vector<8x384xf32> -> vector<8x384xf32>
    %623 = arith.addf %622, %20 : vector<8x384xf32>
    %cst_199 = arith.constant dense<0.000000e+00> : vector<8x384xf32>
    %624 = tpu.matmul %574, %14, %cst_199 {dimension_numbers = #tpu.dot_dimension_numbers<[1], [0], [0], [1], [0, 0, 1, 1], [], []>} : vector<8x128xf32>, vector<128x384xf32>, vector<8x384xf32> -> vector<8x384xf32>
    %625 = vector.extract_strided_slice %623 {offsets = [0, 0], sizes = [8, 128], strides = [1, 1]} : vector<8x384xf32> to vector<8x128xf32>
    %626 = vector.extract_strided_slice %624 {offsets = [0, 0], sizes = [8, 128], strides = [1, 1]} : vector<8x384xf32> to vector<8x128xf32>
    %627 = arith.addf %625, %626 : vector<8x128xf32>
    %628 = arith.negf %627 : vector<8x128xf32>
    %629 = math.exp %628 : vector<8x128xf32>
    %cst_200 = arith.constant 1.000000e+00 : f32
    %630 = vector.broadcast %cst_200 : f32 to vector<8x128xf32>
    %631 = arith.addf %630, %629 : vector<8x128xf32>
    %632 = arith.divf %630, %631 : vector<8x128xf32>
    %633 = vector.extract_strided_slice %623 {offsets = [0, 128], sizes = [8, 128], strides = [1, 1]} : vector<8x384xf32> to vector<8x128xf32>
    %634 = vector.extract_strided_slice %624 {offsets = [0, 128], sizes = [8, 128], strides = [1, 1]} : vector<8x384xf32> to vector<8x128xf32>
    %635 = arith.addf %633, %634 : vector<8x128xf32>
    %636 = arith.negf %635 : vector<8x128xf32>
    %637 = math.exp %636 : vector<8x128xf32>
    %cst_201 = arith.constant 1.000000e+00 : f32
    %638 = vector.broadcast %cst_201 : f32 to vector<8x128xf32>
    %639 = arith.addf %638, %637 : vector<8x128xf32>
    %640 = arith.divf %638, %639 : vector<8x128xf32>
    %641 = vector.extract_strided_slice %623 {offsets = [0, 256], sizes = [8, 128], strides = [1, 1]} : vector<8x384xf32> to vector<8x128xf32>
    %642 = vector.extract_strided_slice %624 {offsets = [0, 256], sizes = [8, 128], strides = [1, 1]} : vector<8x384xf32> to vector<8x128xf32>
    %643 = arith.addf %642, %28 : vector<8x128xf32>
    %644 = arith.mulf %632, %643 : vector<8x128xf32>
    %645 = arith.addf %641, %644 : vector<8x128xf32>
    %646 = math.tanh %645 : vector<8x128xf32>
    %cst_202 = arith.constant 1.000000e+00 : f32
    %647 = vector.broadcast %cst_202 : f32 to vector<8x128xf32>
    %648 = arith.subf %647, %640 : vector<8x128xf32>
    %649 = arith.mulf %648, %646 : vector<8x128xf32>
    %650 = arith.mulf %640, %574 : vector<8x128xf32>
    %651 = arith.addf %649, %650 : vector<8x128xf32>
    %652 = arith.select %621, %651, %574 : vector<8x128xf32>
    %c1_i32_203 = arith.constant 1 : i32
    %653 = arith.subi %c7_i32, %c1_i32_203 : i32
    %c8_i32_204 = arith.constant 8 : i32
    %654 = arith.cmpi sge, %653, %c8_i32_204 : i32
    %c12_i32_205 = arith.constant 12 : i32
    %655 = arith.cmpi slt, %653, %c12_i32_205 : i32
    %656 = arith.andi %654, %655 : i1
    %657 = arith.extui %656 : i1 to i32
    %c0_i32_206 = arith.constant 0 : i32
    %658 = arith.cmpi ne, %657, %c0_i32_206 : i32
    scf.if %658 {
      %cst_320 = arith.constant dense<0.000000e+00> : vector<8x128xf32>
      %1049 = tpu.matmul %652, %29, %cst_320 {dimension_numbers = #tpu.dot_dimension_numbers<[1], [0], [0], [1], [0, 0, 1, 1], [], []>} : vector<8x128xf32>, vector<128x128xf32>, vector<8x128xf32> -> vector<8x128xf32>
      %1050 = arith.addf %1049, %32 : vector<8x128xf32>
      %c8_i32_321 = arith.constant 8 : i32
      %1051 = arith.subi %653, %c8_i32_321 : i32
      %1052 = arith.index_cast %1051 : i32 to index
      %c0_322 = arith.constant 0 : index
      %c0_323 = arith.constant 0 : index
      %1053 = vector.load %arg8[%1052, %c0_322, %c0_323] : memref<4x8x128xf32, #tpu.memory_space<vmem>>, vector<1x8x128xf32>
      %1054 = vector.shape_cast %1053 : vector<1x8x128xf32> to vector<8x128xf32>
      %1055 = vector.shape_cast %1050 : vector<8x128xf32> to vector<1x8x128xf32>
      tpu.vector_store %arg8[%1052, %c0_322, %c0_323], %1055 {strides = array<i32>} : memref<4x8x128xf32, #tpu.memory_space<vmem>>, vector<1x8x128xf32>,
    } else {
    }
    %c8_i32_207 = arith.constant 8 : i32
    %c0_i32_208 = arith.constant 0 : i32
    %659 = arith.subi %c8_i32_207, %c0_i32_208 : i32
    %c0_i32_209 = arith.constant 0 : i32
    %660 = arith.cmpi sge, %659, %c0_i32_209 : i32
    %c12_i32_210 = arith.constant 12 : i32
    %661 = arith.cmpi slt, %659, %c12_i32_210 : i32
    %662 = arith.andi %660, %661 : i1
    %c11_i32_211 = arith.constant 11 : i32
    %663 = arith.minsi %c8_i32_207, %c11_i32_211 : i32
    %664 = arith.index_cast %663 : i32 to index
    %c0_212 = arith.constant 0 : index
    %c0_213 = arith.constant 0 : index
    %665 = vector.load %arg9[%664, %c0_212, %c0_213] : memref<12x8x384xf32, #tpu.memory_space<vmem>>, vector<1x8x384xf32>
    %666 = vector.shape_cast %665 : vector<1x8x384xf32> to vector<8x384xf32>
    %cst_214 = arith.constant dense<0.000000e+00> : vector<8x384xf32>
    %667 = tpu.matmul %617, %12, %cst_214 {dimension_numbers = #tpu.dot_dimension_numbers<[1], [0], [0], [1], [0, 0, 1, 1], [], []>} : vector<8x128xf32>, vector<128x384xf32>, vector<8x384xf32> -> vector<8x384xf32>
    %668 = vector.extract_strided_slice %666 {offsets = [0, 0], sizes = [8, 128], strides = [1, 1]} : vector<8x384xf32> to vector<8x128xf32>
    %669 = vector.extract_strided_slice %667 {offsets = [0, 0], sizes = [8, 128], strides = [1, 1]} : vector<8x384xf32> to vector<8x128xf32>
    %670 = arith.addf %668, %669 : vector<8x128xf32>
    %671 = arith.negf %670 : vector<8x128xf32>
    %672 = math.exp %671 : vector<8x128xf32>
    %cst_215 = arith.constant 1.000000e+00 : f32
    %673 = vector.broadcast %cst_215 : f32 to vector<8x128xf32>
    %674 = arith.addf %673, %672 : vector<8x128xf32>
    %675 = arith.divf %673, %674 : vector<8x128xf32>
    %676 = vector.extract_strided_slice %666 {offsets = [0, 128], sizes = [8, 128], strides = [1, 1]} : vector<8x384xf32> to vector<8x128xf32>
    %677 = vector.extract_strided_slice %667 {offsets = [0, 128], sizes = [8, 128], strides = [1, 1]} : vector<8x384xf32> to vector<8x128xf32>
    %678 = arith.addf %676, %677 : vector<8x128xf32>
    %679 = arith.negf %678 : vector<8x128xf32>
    %680 = math.exp %679 : vector<8x128xf32>
    %cst_216 = arith.constant 1.000000e+00 : f32
    %681 = vector.broadcast %cst_216 : f32 to vector<8x128xf32>
    %682 = arith.addf %681, %680 : vector<8x128xf32>
    %683 = arith.divf %681, %682 : vector<8x128xf32>
    %684 = vector.extract_strided_slice %666 {offsets = [0, 256], sizes = [8, 128], strides = [1, 1]} : vector<8x384xf32> to vector<8x128xf32>
    %685 = vector.extract_strided_slice %667 {offsets = [0, 256], sizes = [8, 128], strides = [1, 1]} : vector<8x384xf32> to vector<8x128xf32>
    %686 = arith.addf %685, %24 : vector<8x128xf32>
    %687 = arith.mulf %675, %686 : vector<8x128xf32>
    %688 = arith.addf %684, %687 : vector<8x128xf32>
    %689 = math.tanh %688 : vector<8x128xf32>
    %cst_217 = arith.constant 1.000000e+00 : f32
    %690 = vector.broadcast %cst_217 : f32 to vector<8x128xf32>
    %691 = arith.subf %690, %683 : vector<8x128xf32>
    %692 = arith.mulf %691, %689 : vector<8x128xf32>
    %693 = arith.mulf %683, %617 : vector<8x128xf32>
    %694 = arith.addf %692, %693 : vector<8x128xf32>
    %695 = arith.select %662, %694, %617 : vector<8x128xf32>
    %c1_i32_218 = arith.constant 1 : i32
    %696 = arith.subi %c8_i32_207, %c1_i32_218 : i32
    %c0_i32_219 = arith.constant 0 : i32
    %697 = arith.cmpi sge, %696, %c0_i32_219 : i32
    %c12_i32_220 = arith.constant 12 : i32
    %698 = arith.cmpi slt, %696, %c12_i32_220 : i32
    %699 = arith.andi %697, %698 : i1
    %cst_221 = arith.constant dense<0.000000e+00> : vector<8x384xf32>
    %700 = tpu.matmul %617, %16, %cst_221 {dimension_numbers = #tpu.dot_dimension_numbers<[1], [0], [0], [1], [0, 0, 1, 1], [], []>} : vector<8x128xf32>, vector<128x384xf32>, vector<8x384xf32> -> vector<8x384xf32>
    %701 = arith.addf %700, %20 : vector<8x384xf32>
    %cst_222 = arith.constant dense<0.000000e+00> : vector<8x384xf32>
    %702 = tpu.matmul %652, %14, %cst_222 {dimension_numbers = #tpu.dot_dimension_numbers<[1], [0], [0], [1], [0, 0, 1, 1], [], []>} : vector<8x128xf32>, vector<128x384xf32>, vector<8x384xf32> -> vector<8x384xf32>
    %703 = vector.extract_strided_slice %701 {offsets = [0, 0], sizes = [8, 128], strides = [1, 1]} : vector<8x384xf32> to vector<8x128xf32>
    %704 = vector.extract_strided_slice %702 {offsets = [0, 0], sizes = [8, 128], strides = [1, 1]} : vector<8x384xf32> to vector<8x128xf32>
    %705 = arith.addf %703, %704 : vector<8x128xf32>
    %706 = arith.negf %705 : vector<8x128xf32>
    %707 = math.exp %706 : vector<8x128xf32>
    %cst_223 = arith.constant 1.000000e+00 : f32
    %708 = vector.broadcast %cst_223 : f32 to vector<8x128xf32>
    %709 = arith.addf %708, %707 : vector<8x128xf32>
    %710 = arith.divf %708, %709 : vector<8x128xf32>
    %711 = vector.extract_strided_slice %701 {offsets = [0, 128], sizes = [8, 128], strides = [1, 1]} : vector<8x384xf32> to vector<8x128xf32>
    %712 = vector.extract_strided_slice %702 {offsets = [0, 128], sizes = [8, 128], strides = [1, 1]} : vector<8x384xf32> to vector<8x128xf32>
    %713 = arith.addf %711, %712 : vector<8x128xf32>
    %714 = arith.negf %713 : vector<8x128xf32>
    %715 = math.exp %714 : vector<8x128xf32>
    %cst_224 = arith.constant 1.000000e+00 : f32
    %716 = vector.broadcast %cst_224 : f32 to vector<8x128xf32>
    %717 = arith.addf %716, %715 : vector<8x128xf32>
    %718 = arith.divf %716, %717 : vector<8x128xf32>
    %719 = vector.extract_strided_slice %701 {offsets = [0, 256], sizes = [8, 128], strides = [1, 1]} : vector<8x384xf32> to vector<8x128xf32>
    %720 = vector.extract_strided_slice %702 {offsets = [0, 256], sizes = [8, 128], strides = [1, 1]} : vector<8x384xf32> to vector<8x128xf32>
    %721 = arith.addf %720, %28 : vector<8x128xf32>
    %722 = arith.mulf %710, %721 : vector<8x128xf32>
    %723 = arith.addf %719, %722 : vector<8x128xf32>
    %724 = math.tanh %723 : vector<8x128xf32>
    %cst_225 = arith.constant 1.000000e+00 : f32
    %725 = vector.broadcast %cst_225 : f32 to vector<8x128xf32>
    %726 = arith.subf %725, %718 : vector<8x128xf32>
    %727 = arith.mulf %726, %724 : vector<8x128xf32>
    %728 = arith.mulf %718, %652 : vector<8x128xf32>
    %729 = arith.addf %727, %728 : vector<8x128xf32>
    %730 = arith.select %699, %729, %652 : vector<8x128xf32>
    %c1_i32_226 = arith.constant 1 : i32
    %731 = arith.subi %c8_i32_207, %c1_i32_226 : i32
    %c8_i32_227 = arith.constant 8 : i32
    %732 = arith.cmpi sge, %731, %c8_i32_227 : i32
    %c12_i32_228 = arith.constant 12 : i32
    %733 = arith.cmpi slt, %731, %c12_i32_228 : i32
    %734 = arith.andi %732, %733 : i1
    %735 = arith.extui %734 : i1 to i32
    %c0_i32_229 = arith.constant 0 : i32
    %736 = arith.cmpi ne, %735, %c0_i32_229 : i32
    scf.if %736 {
      %cst_320 = arith.constant dense<0.000000e+00> : vector<8x128xf32>
      %1049 = tpu.matmul %730, %29, %cst_320 {dimension_numbers = #tpu.dot_dimension_numbers<[1], [0], [0], [1], [0, 0, 1, 1], [], []>} : vector<8x128xf32>, vector<128x128xf32>, vector<8x128xf32> -> vector<8x128xf32>
      %1050 = arith.addf %1049, %32 : vector<8x128xf32>
      %c8_i32_321 = arith.constant 8 : i32
      %1051 = arith.subi %731, %c8_i32_321 : i32
      %1052 = arith.index_cast %1051 : i32 to index
      %c0_322 = arith.constant 0 : index
      %c0_323 = arith.constant 0 : index
      %1053 = vector.load %arg8[%1052, %c0_322, %c0_323] : memref<4x8x128xf32, #tpu.memory_space<vmem>>, vector<1x8x128xf32>
      %1054 = vector.shape_cast %1053 : vector<1x8x128xf32> to vector<8x128xf32>
      %1055 = vector.shape_cast %1050 : vector<8x128xf32> to vector<1x8x128xf32>
      tpu.vector_store %arg8[%1052, %c0_322, %c0_323], %1055 {strides = array<i32>} : memref<4x8x128xf32, #tpu.memory_space<vmem>>, vector<1x8x128xf32>,
    } else {
    }
    %c9_i32 = arith.constant 9 : i32
    %c0_i32_230 = arith.constant 0 : i32
    %737 = arith.subi %c9_i32, %c0_i32_230 : i32
    %c0_i32_231 = arith.constant 0 : i32
    %738 = arith.cmpi sge, %737, %c0_i32_231 : i32
    %c12_i32_232 = arith.constant 12 : i32
    %739 = arith.cmpi slt, %737, %c12_i32_232 : i32
    %740 = arith.andi %738, %739 : i1
    %c11_i32_233 = arith.constant 11 : i32
    %741 = arith.minsi %c9_i32, %c11_i32_233 : i32
    %742 = arith.index_cast %741 : i32 to index
    %c0_234 = arith.constant 0 : index
    %c0_235 = arith.constant 0 : index
    %743 = vector.load %arg9[%742, %c0_234, %c0_235] : memref<12x8x384xf32, #tpu.memory_space<vmem>>, vector<1x8x384xf32>
    %744 = vector.shape_cast %743 : vector<1x8x384xf32> to vector<8x384xf32>
    %cst_236 = arith.constant dense<0.000000e+00> : vector<8x384xf32>
    %745 = tpu.matmul %695, %12, %cst_236 {dimension_numbers = #tpu.dot_dimension_numbers<[1], [0], [0], [1], [0, 0, 1, 1], [], []>} : vector<8x128xf32>, vector<128x384xf32>, vector<8x384xf32> -> vector<8x384xf32>
    %746 = vector.extract_strided_slice %744 {offsets = [0, 0], sizes = [8, 128], strides = [1, 1]} : vector<8x384xf32> to vector<8x128xf32>
    %747 = vector.extract_strided_slice %745 {offsets = [0, 0], sizes = [8, 128], strides = [1, 1]} : vector<8x384xf32> to vector<8x128xf32>
    %748 = arith.addf %746, %747 : vector<8x128xf32>
    %749 = arith.negf %748 : vector<8x128xf32>
    %750 = math.exp %749 : vector<8x128xf32>
    %cst_237 = arith.constant 1.000000e+00 : f32
    %751 = vector.broadcast %cst_237 : f32 to vector<8x128xf32>
    %752 = arith.addf %751, %750 : vector<8x128xf32>
    %753 = arith.divf %751, %752 : vector<8x128xf32>
    %754 = vector.extract_strided_slice %744 {offsets = [0, 128], sizes = [8, 128], strides = [1, 1]} : vector<8x384xf32> to vector<8x128xf32>
    %755 = vector.extract_strided_slice %745 {offsets = [0, 128], sizes = [8, 128], strides = [1, 1]} : vector<8x384xf32> to vector<8x128xf32>
    %756 = arith.addf %754, %755 : vector<8x128xf32>
    %757 = arith.negf %756 : vector<8x128xf32>
    %758 = math.exp %757 : vector<8x128xf32>
    %cst_238 = arith.constant 1.000000e+00 : f32
    %759 = vector.broadcast %cst_238 : f32 to vector<8x128xf32>
    %760 = arith.addf %759, %758 : vector<8x128xf32>
    %761 = arith.divf %759, %760 : vector<8x128xf32>
    %762 = vector.extract_strided_slice %744 {offsets = [0, 256], sizes = [8, 128], strides = [1, 1]} : vector<8x384xf32> to vector<8x128xf32>
    %763 = vector.extract_strided_slice %745 {offsets = [0, 256], sizes = [8, 128], strides = [1, 1]} : vector<8x384xf32> to vector<8x128xf32>
    %764 = arith.addf %763, %24 : vector<8x128xf32>
    %765 = arith.mulf %753, %764 : vector<8x128xf32>
    %766 = arith.addf %762, %765 : vector<8x128xf32>
    %767 = math.tanh %766 : vector<8x128xf32>
    %cst_239 = arith.constant 1.000000e+00 : f32
    %768 = vector.broadcast %cst_239 : f32 to vector<8x128xf32>
    %769 = arith.subf %768, %761 : vector<8x128xf32>
    %770 = arith.mulf %769, %767 : vector<8x128xf32>
    %771 = arith.mulf %761, %695 : vector<8x128xf32>
    %772 = arith.addf %770, %771 : vector<8x128xf32>
    %773 = arith.select %740, %772, %695 : vector<8x128xf32>
    %c1_i32_240 = arith.constant 1 : i32
    %774 = arith.subi %c9_i32, %c1_i32_240 : i32
    %c0_i32_241 = arith.constant 0 : i32
    %775 = arith.cmpi sge, %774, %c0_i32_241 : i32
    %c12_i32_242 = arith.constant 12 : i32
    %776 = arith.cmpi slt, %774, %c12_i32_242 : i32
    %777 = arith.andi %775, %776 : i1
    %cst_243 = arith.constant dense<0.000000e+00> : vector<8x384xf32>
    %778 = tpu.matmul %695, %16, %cst_243 {dimension_numbers = #tpu.dot_dimension_numbers<[1], [0], [0], [1], [0, 0, 1, 1], [], []>} : vector<8x128xf32>, vector<128x384xf32>, vector<8x384xf32> -> vector<8x384xf32>
    %779 = arith.addf %778, %20 : vector<8x384xf32>
    %cst_244 = arith.constant dense<0.000000e+00> : vector<8x384xf32>
    %780 = tpu.matmul %730, %14, %cst_244 {dimension_numbers = #tpu.dot_dimension_numbers<[1], [0], [0], [1], [0, 0, 1, 1], [], []>} : vector<8x128xf32>, vector<128x384xf32>, vector<8x384xf32> -> vector<8x384xf32>
    %781 = vector.extract_strided_slice %779 {offsets = [0, 0], sizes = [8, 128], strides = [1, 1]} : vector<8x384xf32> to vector<8x128xf32>
    %782 = vector.extract_strided_slice %780 {offsets = [0, 0], sizes = [8, 128], strides = [1, 1]} : vector<8x384xf32> to vector<8x128xf32>
    %783 = arith.addf %781, %782 : vector<8x128xf32>
    %784 = arith.negf %783 : vector<8x128xf32>
    %785 = math.exp %784 : vector<8x128xf32>
    %cst_245 = arith.constant 1.000000e+00 : f32
    %786 = vector.broadcast %cst_245 : f32 to vector<8x128xf32>
    %787 = arith.addf %786, %785 : vector<8x128xf32>
    %788 = arith.divf %786, %787 : vector<8x128xf32>
    %789 = vector.extract_strided_slice %779 {offsets = [0, 128], sizes = [8, 128], strides = [1, 1]} : vector<8x384xf32> to vector<8x128xf32>
    %790 = vector.extract_strided_slice %780 {offsets = [0, 128], sizes = [8, 128], strides = [1, 1]} : vector<8x384xf32> to vector<8x128xf32>
    %791 = arith.addf %789, %790 : vector<8x128xf32>
    %792 = arith.negf %791 : vector<8x128xf32>
    %793 = math.exp %792 : vector<8x128xf32>
    %cst_246 = arith.constant 1.000000e+00 : f32
    %794 = vector.broadcast %cst_246 : f32 to vector<8x128xf32>
    %795 = arith.addf %794, %793 : vector<8x128xf32>
    %796 = arith.divf %794, %795 : vector<8x128xf32>
    %797 = vector.extract_strided_slice %779 {offsets = [0, 256], sizes = [8, 128], strides = [1, 1]} : vector<8x384xf32> to vector<8x128xf32>
    %798 = vector.extract_strided_slice %780 {offsets = [0, 256], sizes = [8, 128], strides = [1, 1]} : vector<8x384xf32> to vector<8x128xf32>
    %799 = arith.addf %798, %28 : vector<8x128xf32>
    %800 = arith.mulf %788, %799 : vector<8x128xf32>
    %801 = arith.addf %797, %800 : vector<8x128xf32>
    %802 = math.tanh %801 : vector<8x128xf32>
    %cst_247 = arith.constant 1.000000e+00 : f32
    %803 = vector.broadcast %cst_247 : f32 to vector<8x128xf32>
    %804 = arith.subf %803, %796 : vector<8x128xf32>
    %805 = arith.mulf %804, %802 : vector<8x128xf32>
    %806 = arith.mulf %796, %730 : vector<8x128xf32>
    %807 = arith.addf %805, %806 : vector<8x128xf32>
    %808 = arith.select %777, %807, %730 : vector<8x128xf32>
    %c1_i32_248 = arith.constant 1 : i32
    %809 = arith.subi %c9_i32, %c1_i32_248 : i32
    %c8_i32_249 = arith.constant 8 : i32
    %810 = arith.cmpi sge, %809, %c8_i32_249 : i32
    %c12_i32_250 = arith.constant 12 : i32
    %811 = arith.cmpi slt, %809, %c12_i32_250 : i32
    %812 = arith.andi %810, %811 : i1
    %813 = arith.extui %812 : i1 to i32
    %c0_i32_251 = arith.constant 0 : i32
    %814 = arith.cmpi ne, %813, %c0_i32_251 : i32
    scf.if %814 {
      %cst_320 = arith.constant dense<0.000000e+00> : vector<8x128xf32>
      %1049 = tpu.matmul %808, %29, %cst_320 {dimension_numbers = #tpu.dot_dimension_numbers<[1], [0], [0], [1], [0, 0, 1, 1], [], []>} : vector<8x128xf32>, vector<128x128xf32>, vector<8x128xf32> -> vector<8x128xf32>
      %1050 = arith.addf %1049, %32 : vector<8x128xf32>
      %c8_i32_321 = arith.constant 8 : i32
      %1051 = arith.subi %809, %c8_i32_321 : i32
      %1052 = arith.index_cast %1051 : i32 to index
      %c0_322 = arith.constant 0 : index
      %c0_323 = arith.constant 0 : index
      %1053 = vector.load %arg8[%1052, %c0_322, %c0_323] : memref<4x8x128xf32, #tpu.memory_space<vmem>>, vector<1x8x128xf32>
      %1054 = vector.shape_cast %1053 : vector<1x8x128xf32> to vector<8x128xf32>
      %1055 = vector.shape_cast %1050 : vector<8x128xf32> to vector<1x8x128xf32>
      tpu.vector_store %arg8[%1052, %c0_322, %c0_323], %1055 {strides = array<i32>} : memref<4x8x128xf32, #tpu.memory_space<vmem>>, vector<1x8x128xf32>,
    } else {
    }
    %c10_i32 = arith.constant 10 : i32
    %c0_i32_252 = arith.constant 0 : i32
    %815 = arith.subi %c10_i32, %c0_i32_252 : i32
    %c0_i32_253 = arith.constant 0 : i32
    %816 = arith.cmpi sge, %815, %c0_i32_253 : i32
    %c12_i32_254 = arith.constant 12 : i32
    %817 = arith.cmpi slt, %815, %c12_i32_254 : i32
    %818 = arith.andi %816, %817 : i1
    %c11_i32_255 = arith.constant 11 : i32
    %819 = arith.minsi %c10_i32, %c11_i32_255 : i32
    %820 = arith.index_cast %819 : i32 to index
    %c0_256 = arith.constant 0 : index
    %c0_257 = arith.constant 0 : index
    %821 = vector.load %arg9[%820, %c0_256, %c0_257] : memref<12x8x384xf32, #tpu.memory_space<vmem>>, vector<1x8x384xf32>
    %822 = vector.shape_cast %821 : vector<1x8x384xf32> to vector<8x384xf32>
    %cst_258 = arith.constant dense<0.000000e+00> : vector<8x384xf32>
    %823 = tpu.matmul %773, %12, %cst_258 {dimension_numbers = #tpu.dot_dimension_numbers<[1], [0], [0], [1], [0, 0, 1, 1], [], []>} : vector<8x128xf32>, vector<128x384xf32>, vector<8x384xf32> -> vector<8x384xf32>
    %824 = vector.extract_strided_slice %822 {offsets = [0, 0], sizes = [8, 128], strides = [1, 1]} : vector<8x384xf32> to vector<8x128xf32>
    %825 = vector.extract_strided_slice %823 {offsets = [0, 0], sizes = [8, 128], strides = [1, 1]} : vector<8x384xf32> to vector<8x128xf32>
    %826 = arith.addf %824, %825 : vector<8x128xf32>
    %827 = arith.negf %826 : vector<8x128xf32>
    %828 = math.exp %827 : vector<8x128xf32>
    %cst_259 = arith.constant 1.000000e+00 : f32
    %829 = vector.broadcast %cst_259 : f32 to vector<8x128xf32>
    %830 = arith.addf %829, %828 : vector<8x128xf32>
    %831 = arith.divf %829, %830 : vector<8x128xf32>
    %832 = vector.extract_strided_slice %822 {offsets = [0, 128], sizes = [8, 128], strides = [1, 1]} : vector<8x384xf32> to vector<8x128xf32>
    %833 = vector.extract_strided_slice %823 {offsets = [0, 128], sizes = [8, 128], strides = [1, 1]} : vector<8x384xf32> to vector<8x128xf32>
    %834 = arith.addf %832, %833 : vector<8x128xf32>
    %835 = arith.negf %834 : vector<8x128xf32>
    %836 = math.exp %835 : vector<8x128xf32>
    %cst_260 = arith.constant 1.000000e+00 : f32
    %837 = vector.broadcast %cst_260 : f32 to vector<8x128xf32>
    %838 = arith.addf %837, %836 : vector<8x128xf32>
    %839 = arith.divf %837, %838 : vector<8x128xf32>
    %840 = vector.extract_strided_slice %822 {offsets = [0, 256], sizes = [8, 128], strides = [1, 1]} : vector<8x384xf32> to vector<8x128xf32>
    %841 = vector.extract_strided_slice %823 {offsets = [0, 256], sizes = [8, 128], strides = [1, 1]} : vector<8x384xf32> to vector<8x128xf32>
    %842 = arith.addf %841, %24 : vector<8x128xf32>
    %843 = arith.mulf %831, %842 : vector<8x128xf32>
    %844 = arith.addf %840, %843 : vector<8x128xf32>
    %845 = math.tanh %844 : vector<8x128xf32>
    %cst_261 = arith.constant 1.000000e+00 : f32
    %846 = vector.broadcast %cst_261 : f32 to vector<8x128xf32>
    %847 = arith.subf %846, %839 : vector<8x128xf32>
    %848 = arith.mulf %847, %845 : vector<8x128xf32>
    %849 = arith.mulf %839, %773 : vector<8x128xf32>
    %850 = arith.addf %848, %849 : vector<8x128xf32>
    %851 = arith.select %818, %850, %773 : vector<8x128xf32>
    %c1_i32_262 = arith.constant 1 : i32
    %852 = arith.subi %c10_i32, %c1_i32_262 : i32
    %c0_i32_263 = arith.constant 0 : i32
    %853 = arith.cmpi sge, %852, %c0_i32_263 : i32
    %c12_i32_264 = arith.constant 12 : i32
    %854 = arith.cmpi slt, %852, %c12_i32_264 : i32
    %855 = arith.andi %853, %854 : i1
    %cst_265 = arith.constant dense<0.000000e+00> : vector<8x384xf32>
    %856 = tpu.matmul %773, %16, %cst_265 {dimension_numbers = #tpu.dot_dimension_numbers<[1], [0], [0], [1], [0, 0, 1, 1], [], []>} : vector<8x128xf32>, vector<128x384xf32>, vector<8x384xf32> -> vector<8x384xf32>
    %857 = arith.addf %856, %20 : vector<8x384xf32>
    %cst_266 = arith.constant dense<0.000000e+00> : vector<8x384xf32>
    %858 = tpu.matmul %808, %14, %cst_266 {dimension_numbers = #tpu.dot_dimension_numbers<[1], [0], [0], [1], [0, 0, 1, 1], [], []>} : vector<8x128xf32>, vector<128x384xf32>, vector<8x384xf32> -> vector<8x384xf32>
    %859 = vector.extract_strided_slice %857 {offsets = [0, 0], sizes = [8, 128], strides = [1, 1]} : vector<8x384xf32> to vector<8x128xf32>
    %860 = vector.extract_strided_slice %858 {offsets = [0, 0], sizes = [8, 128], strides = [1, 1]} : vector<8x384xf32> to vector<8x128xf32>
    %861 = arith.addf %859, %860 : vector<8x128xf32>
    %862 = arith.negf %861 : vector<8x128xf32>
    %863 = math.exp %862 : vector<8x128xf32>
    %cst_267 = arith.constant 1.000000e+00 : f32
    %864 = vector.broadcast %cst_267 : f32 to vector<8x128xf32>
    %865 = arith.addf %864, %863 : vector<8x128xf32>
    %866 = arith.divf %864, %865 : vector<8x128xf32>
    %867 = vector.extract_strided_slice %857 {offsets = [0, 128], sizes = [8, 128], strides = [1, 1]} : vector<8x384xf32> to vector<8x128xf32>
    %868 = vector.extract_strided_slice %858 {offsets = [0, 128], sizes = [8, 128], strides = [1, 1]} : vector<8x384xf32> to vector<8x128xf32>
    %869 = arith.addf %867, %868 : vector<8x128xf32>
    %870 = arith.negf %869 : vector<8x128xf32>
    %871 = math.exp %870 : vector<8x128xf32>
    %cst_268 = arith.constant 1.000000e+00 : f32
    %872 = vector.broadcast %cst_268 : f32 to vector<8x128xf32>
    %873 = arith.addf %872, %871 : vector<8x128xf32>
    %874 = arith.divf %872, %873 : vector<8x128xf32>
    %875 = vector.extract_strided_slice %857 {offsets = [0, 256], sizes = [8, 128], strides = [1, 1]} : vector<8x384xf32> to vector<8x128xf32>
    %876 = vector.extract_strided_slice %858 {offsets = [0, 256], sizes = [8, 128], strides = [1, 1]} : vector<8x384xf32> to vector<8x128xf32>
    %877 = arith.addf %876, %28 : vector<8x128xf32>
    %878 = arith.mulf %866, %877 : vector<8x128xf32>
    %879 = arith.addf %875, %878 : vector<8x128xf32>
    %880 = math.tanh %879 : vector<8x128xf32>
    %cst_269 = arith.constant 1.000000e+00 : f32
    %881 = vector.broadcast %cst_269 : f32 to vector<8x128xf32>
    %882 = arith.subf %881, %874 : vector<8x128xf32>
    %883 = arith.mulf %882, %880 : vector<8x128xf32>
    %884 = arith.mulf %874, %808 : vector<8x128xf32>
    %885 = arith.addf %883, %884 : vector<8x128xf32>
    %886 = arith.select %855, %885, %808 : vector<8x128xf32>
    %c1_i32_270 = arith.constant 1 : i32
    %887 = arith.subi %c10_i32, %c1_i32_270 : i32
    %c8_i32_271 = arith.constant 8 : i32
    %888 = arith.cmpi sge, %887, %c8_i32_271 : i32
    %c12_i32_272 = arith.constant 12 : i32
    %889 = arith.cmpi slt, %887, %c12_i32_272 : i32
    %890 = arith.andi %888, %889 : i1
    %891 = arith.extui %890 : i1 to i32
    %c0_i32_273 = arith.constant 0 : i32
    %892 = arith.cmpi ne, %891, %c0_i32_273 : i32
    scf.if %892 {
      %cst_320 = arith.constant dense<0.000000e+00> : vector<8x128xf32>
      %1049 = tpu.matmul %886, %29, %cst_320 {dimension_numbers = #tpu.dot_dimension_numbers<[1], [0], [0], [1], [0, 0, 1, 1], [], []>} : vector<8x128xf32>, vector<128x128xf32>, vector<8x128xf32> -> vector<8x128xf32>
      %1050 = arith.addf %1049, %32 : vector<8x128xf32>
      %c8_i32_321 = arith.constant 8 : i32
      %1051 = arith.subi %887, %c8_i32_321 : i32
      %1052 = arith.index_cast %1051 : i32 to index
      %c0_322 = arith.constant 0 : index
      %c0_323 = arith.constant 0 : index
      %1053 = vector.load %arg8[%1052, %c0_322, %c0_323] : memref<4x8x128xf32, #tpu.memory_space<vmem>>, vector<1x8x128xf32>
      %1054 = vector.shape_cast %1053 : vector<1x8x128xf32> to vector<8x128xf32>
      %1055 = vector.shape_cast %1050 : vector<8x128xf32> to vector<1x8x128xf32>
      tpu.vector_store %arg8[%1052, %c0_322, %c0_323], %1055 {strides = array<i32>} : memref<4x8x128xf32, #tpu.memory_space<vmem>>, vector<1x8x128xf32>,
    } else {
    }
    %c11_i32_274 = arith.constant 11 : i32
    %c0_i32_275 = arith.constant 0 : i32
    %893 = arith.subi %c11_i32_274, %c0_i32_275 : i32
    %c0_i32_276 = arith.constant 0 : i32
    %894 = arith.cmpi sge, %893, %c0_i32_276 : i32
    %c12_i32_277 = arith.constant 12 : i32
    %895 = arith.cmpi slt, %893, %c12_i32_277 : i32
    %896 = arith.andi %894, %895 : i1
    %c11_i32_278 = arith.constant 11 : i32
    %897 = arith.minsi %c11_i32_274, %c11_i32_278 : i32
    %898 = arith.index_cast %897 : i32 to index
    %c0_279 = arith.constant 0 : index
    %c0_280 = arith.constant 0 : index
    %899 = vector.load %arg9[%898, %c0_279, %c0_280] : memref<12x8x384xf32, #tpu.memory_space<vmem>>, vector<1x8x384xf32>
    %900 = vector.shape_cast %899 : vector<1x8x384xf32> to vector<8x384xf32>
    %cst_281 = arith.constant dense<0.000000e+00> : vector<8x384xf32>
    %901 = tpu.matmul %851, %12, %cst_281 {dimension_numbers = #tpu.dot_dimension_numbers<[1], [0], [0], [1], [0, 0, 1, 1], [], []>} : vector<8x128xf32>, vector<128x384xf32>, vector<8x384xf32> -> vector<8x384xf32>
    %902 = vector.extract_strided_slice %900 {offsets = [0, 0], sizes = [8, 128], strides = [1, 1]} : vector<8x384xf32> to vector<8x128xf32>
    %903 = vector.extract_strided_slice %901 {offsets = [0, 0], sizes = [8, 128], strides = [1, 1]} : vector<8x384xf32> to vector<8x128xf32>
    %904 = arith.addf %902, %903 : vector<8x128xf32>
    %905 = arith.negf %904 : vector<8x128xf32>
    %906 = math.exp %905 : vector<8x128xf32>
    %cst_282 = arith.constant 1.000000e+00 : f32
    %907 = vector.broadcast %cst_282 : f32 to vector<8x128xf32>
    %908 = arith.addf %907, %906 : vector<8x128xf32>
    %909 = arith.divf %907, %908 : vector<8x128xf32>
    %910 = vector.extract_strided_slice %900 {offsets = [0, 128], sizes = [8, 128], strides = [1, 1]} : vector<8x384xf32> to vector<8x128xf32>
    %911 = vector.extract_strided_slice %901 {offsets = [0, 128], sizes = [8, 128], strides = [1, 1]} : vector<8x384xf32> to vector<8x128xf32>
    %912 = arith.addf %910, %911 : vector<8x128xf32>
    %913 = arith.negf %912 : vector<8x128xf32>
    %914 = math.exp %913 : vector<8x128xf32>
    %cst_283 = arith.constant 1.000000e+00 : f32
    %915 = vector.broadcast %cst_283 : f32 to vector<8x128xf32>
    %916 = arith.addf %915, %914 : vector<8x128xf32>
    %917 = arith.divf %915, %916 : vector<8x128xf32>
    %918 = vector.extract_strided_slice %900 {offsets = [0, 256], sizes = [8, 128], strides = [1, 1]} : vector<8x384xf32> to vector<8x128xf32>
    %919 = vector.extract_strided_slice %901 {offsets = [0, 256], sizes = [8, 128], strides = [1, 1]} : vector<8x384xf32> to vector<8x128xf32>
    %920 = arith.addf %919, %24 : vector<8x128xf32>
    %921 = arith.mulf %909, %920 : vector<8x128xf32>
    %922 = arith.addf %918, %921 : vector<8x128xf32>
    %923 = math.tanh %922 : vector<8x128xf32>
    %cst_284 = arith.constant 1.000000e+00 : f32
    %924 = vector.broadcast %cst_284 : f32 to vector<8x128xf32>
    %925 = arith.subf %924, %917 : vector<8x128xf32>
    %926 = arith.mulf %925, %923 : vector<8x128xf32>
    %927 = arith.mulf %917, %851 : vector<8x128xf32>
    %928 = arith.addf %926, %927 : vector<8x128xf32>
    %929 = arith.select %896, %928, %851 : vector<8x128xf32>
    %c1_i32_285 = arith.constant 1 : i32
    %930 = arith.subi %c11_i32_274, %c1_i32_285 : i32
    %c0_i32_286 = arith.constant 0 : i32
    %931 = arith.cmpi sge, %930, %c0_i32_286 : i32
    %c12_i32_287 = arith.constant 12 : i32
    %932 = arith.cmpi slt, %930, %c12_i32_287 : i32
    %933 = arith.andi %931, %932 : i1
    %cst_288 = arith.constant dense<0.000000e+00> : vector<8x384xf32>
    %934 = tpu.matmul %851, %16, %cst_288 {dimension_numbers = #tpu.dot_dimension_numbers<[1], [0], [0], [1], [0, 0, 1, 1], [], []>} : vector<8x128xf32>, vector<128x384xf32>, vector<8x384xf32> -> vector<8x384xf32>
    %935 = arith.addf %934, %20 : vector<8x384xf32>
    %cst_289 = arith.constant dense<0.000000e+00> : vector<8x384xf32>
    %936 = tpu.matmul %886, %14, %cst_289 {dimension_numbers = #tpu.dot_dimension_numbers<[1], [0], [0], [1], [0, 0, 1, 1], [], []>} : vector<8x128xf32>, vector<128x384xf32>, vector<8x384xf32> -> vector<8x384xf32>
    %937 = vector.extract_strided_slice %935 {offsets = [0, 0], sizes = [8, 128], strides = [1, 1]} : vector<8x384xf32> to vector<8x128xf32>
    %938 = vector.extract_strided_slice %936 {offsets = [0, 0], sizes = [8, 128], strides = [1, 1]} : vector<8x384xf32> to vector<8x128xf32>
    %939 = arith.addf %937, %938 : vector<8x128xf32>
    %940 = arith.negf %939 : vector<8x128xf32>
    %941 = math.exp %940 : vector<8x128xf32>
    %cst_290 = arith.constant 1.000000e+00 : f32
    %942 = vector.broadcast %cst_290 : f32 to vector<8x128xf32>
    %943 = arith.addf %942, %941 : vector<8x128xf32>
    %944 = arith.divf %942, %943 : vector<8x128xf32>
    %945 = vector.extract_strided_slice %935 {offsets = [0, 128], sizes = [8, 128], strides = [1, 1]} : vector<8x384xf32> to vector<8x128xf32>
    %946 = vector.extract_strided_slice %936 {offsets = [0, 128], sizes = [8, 128], strides = [1, 1]} : vector<8x384xf32> to vector<8x128xf32>
    %947 = arith.addf %945, %946 : vector<8x128xf32>
    %948 = arith.negf %947 : vector<8x128xf32>
    %949 = math.exp %948 : vector<8x128xf32>
    %cst_291 = arith.constant 1.000000e+00 : f32
    %950 = vector.broadcast %cst_291 : f32 to vector<8x128xf32>
    %951 = arith.addf %950, %949 : vector<8x128xf32>
    %952 = arith.divf %950, %951 : vector<8x128xf32>
    %953 = vector.extract_strided_slice %935 {offsets = [0, 256], sizes = [8, 128], strides = [1, 1]} : vector<8x384xf32> to vector<8x128xf32>
    %954 = vector.extract_strided_slice %936 {offsets = [0, 256], sizes = [8, 128], strides = [1, 1]} : vector<8x384xf32> to vector<8x128xf32>
    %955 = arith.addf %954, %28 : vector<8x128xf32>
    %956 = arith.mulf %944, %955 : vector<8x128xf32>
    %957 = arith.addf %953, %956 : vector<8x128xf32>
    %958 = math.tanh %957 : vector<8x128xf32>
    %cst_292 = arith.constant 1.000000e+00 : f32
    %959 = vector.broadcast %cst_292 : f32 to vector<8x128xf32>
    %960 = arith.subf %959, %952 : vector<8x128xf32>
    %961 = arith.mulf %960, %958 : vector<8x128xf32>
    %962 = arith.mulf %952, %886 : vector<8x128xf32>
    %963 = arith.addf %961, %962 : vector<8x128xf32>
    %964 = arith.select %933, %963, %886 : vector<8x128xf32>
    %c1_i32_293 = arith.constant 1 : i32
    %965 = arith.subi %c11_i32_274, %c1_i32_293 : i32
    %c8_i32_294 = arith.constant 8 : i32
    %966 = arith.cmpi sge, %965, %c8_i32_294 : i32
    %c12_i32_295 = arith.constant 12 : i32
    %967 = arith.cmpi slt, %965, %c12_i32_295 : i32
    %968 = arith.andi %966, %967 : i1
    %969 = arith.extui %968 : i1 to i32
    %c0_i32_296 = arith.constant 0 : i32
    %970 = arith.cmpi ne, %969, %c0_i32_296 : i32
    scf.if %970 {
      %cst_320 = arith.constant dense<0.000000e+00> : vector<8x128xf32>
      %1049 = tpu.matmul %964, %29, %cst_320 {dimension_numbers = #tpu.dot_dimension_numbers<[1], [0], [0], [1], [0, 0, 1, 1], [], []>} : vector<8x128xf32>, vector<128x128xf32>, vector<8x128xf32> -> vector<8x128xf32>
      %1050 = arith.addf %1049, %32 : vector<8x128xf32>
      %c8_i32_321 = arith.constant 8 : i32
      %1051 = arith.subi %965, %c8_i32_321 : i32
      %1052 = arith.index_cast %1051 : i32 to index
      %c0_322 = arith.constant 0 : index
      %c0_323 = arith.constant 0 : index
      %1053 = vector.load %arg8[%1052, %c0_322, %c0_323] : memref<4x8x128xf32, #tpu.memory_space<vmem>>, vector<1x8x128xf32>
      %1054 = vector.shape_cast %1053 : vector<1x8x128xf32> to vector<8x128xf32>
      %1055 = vector.shape_cast %1050 : vector<8x128xf32> to vector<1x8x128xf32>
      tpu.vector_store %arg8[%1052, %c0_322, %c0_323], %1055 {strides = array<i32>} : memref<4x8x128xf32, #tpu.memory_space<vmem>>, vector<1x8x128xf32>,
    } else {
    }
    %c12_i32_297 = arith.constant 12 : i32
    %c0_i32_298 = arith.constant 0 : i32
    %971 = arith.subi %c12_i32_297, %c0_i32_298 : i32
    %c0_i32_299 = arith.constant 0 : i32
    %972 = arith.cmpi sge, %971, %c0_i32_299 : i32
    %c12_i32_300 = arith.constant 12 : i32
    %973 = arith.cmpi slt, %971, %c12_i32_300 : i32
    %974 = arith.andi %972, %973 : i1
    %c11_i32_301 = arith.constant 11 : i32
    %975 = arith.minsi %c12_i32_297, %c11_i32_301 : i32
    %976 = arith.index_cast %975 : i32 to index
    %c0_302 = arith.constant 0 : index
    %c0_303 = arith.constant 0 : index
    %977 = vector.load %arg9[%976, %c0_302, %c0_303] : memref<12x8x384xf32, #tpu.memory_space<vmem>>, vector<1x8x384xf32>
    %978 = vector.shape_cast %977 : vector<1x8x384xf32> to vector<8x384xf32>
    %cst_304 = arith.constant dense<0.000000e+00> : vector<8x384xf32>
    %979 = tpu.matmul %929, %12, %cst_304 {dimension_numbers = #tpu.dot_dimension_numbers<[1], [0], [0], [1], [0, 0, 1, 1], [], []>} : vector<8x128xf32>, vector<128x384xf32>, vector<8x384xf32> -> vector<8x384xf32>
    %980 = vector.extract_strided_slice %978 {offsets = [0, 0], sizes = [8, 128], strides = [1, 1]} : vector<8x384xf32> to vector<8x128xf32>
    %981 = vector.extract_strided_slice %979 {offsets = [0, 0], sizes = [8, 128], strides = [1, 1]} : vector<8x384xf32> to vector<8x128xf32>
    %982 = arith.addf %980, %981 : vector<8x128xf32>
    %983 = arith.negf %982 : vector<8x128xf32>
    %984 = math.exp %983 : vector<8x128xf32>
    %cst_305 = arith.constant 1.000000e+00 : f32
    %985 = vector.broadcast %cst_305 : f32 to vector<8x128xf32>
    %986 = arith.addf %985, %984 : vector<8x128xf32>
    %987 = arith.divf %985, %986 : vector<8x128xf32>
    %988 = vector.extract_strided_slice %978 {offsets = [0, 128], sizes = [8, 128], strides = [1, 1]} : vector<8x384xf32> to vector<8x128xf32>
    %989 = vector.extract_strided_slice %979 {offsets = [0, 128], sizes = [8, 128], strides = [1, 1]} : vector<8x384xf32> to vector<8x128xf32>
    %990 = arith.addf %988, %989 : vector<8x128xf32>
    %991 = arith.negf %990 : vector<8x128xf32>
    %992 = math.exp %991 : vector<8x128xf32>
    %cst_306 = arith.constant 1.000000e+00 : f32
    %993 = vector.broadcast %cst_306 : f32 to vector<8x128xf32>
    %994 = arith.addf %993, %992 : vector<8x128xf32>
    %995 = arith.divf %993, %994 : vector<8x128xf32>
    %996 = vector.extract_strided_slice %978 {offsets = [0, 256], sizes = [8, 128], strides = [1, 1]} : vector<8x384xf32> to vector<8x128xf32>
    %997 = vector.extract_strided_slice %979 {offsets = [0, 256], sizes = [8, 128], strides = [1, 1]} : vector<8x384xf32> to vector<8x128xf32>
    %998 = arith.addf %997, %24 : vector<8x128xf32>
    %999 = arith.mulf %987, %998 : vector<8x128xf32>
    %1000 = arith.addf %996, %999 : vector<8x128xf32>
    %1001 = math.tanh %1000 : vector<8x128xf32>
    %cst_307 = arith.constant 1.000000e+00 : f32
    %1002 = vector.broadcast %cst_307 : f32 to vector<8x128xf32>
    %1003 = arith.subf %1002, %995 : vector<8x128xf32>
    %1004 = arith.mulf %1003, %1001 : vector<8x128xf32>
    %1005 = arith.mulf %995, %929 : vector<8x128xf32>
    %1006 = arith.addf %1004, %1005 : vector<8x128xf32>
    %1007 = arith.select %974, %1006, %929 : vector<8x128xf32>
    %c1_i32_308 = arith.constant 1 : i32
    %1008 = arith.subi %c12_i32_297, %c1_i32_308 : i32
    %c0_i32_309 = arith.constant 0 : i32
    %1009 = arith.cmpi sge, %1008, %c0_i32_309 : i32
    %c12_i32_310 = arith.constant 12 : i32
    %1010 = arith.cmpi slt, %1008, %c12_i32_310 : i32
    %1011 = arith.andi %1009, %1010 : i1
    %cst_311 = arith.constant dense<0.000000e+00> : vector<8x384xf32>
    %1012 = tpu.matmul %929, %16, %cst_311 {dimension_numbers = #tpu.dot_dimension_numbers<[1], [0], [0], [1], [0, 0, 1, 1], [], []>} : vector<8x128xf32>, vector<128x384xf32>, vector<8x384xf32> -> vector<8x384xf32>
    %1013 = arith.addf %1012, %20 : vector<8x384xf32>
    %cst_312 = arith.constant dense<0.000000e+00> : vector<8x384xf32>
    %1014 = tpu.matmul %964, %14, %cst_312 {dimension_numbers = #tpu.dot_dimension_numbers<[1], [0], [0], [1], [0, 0, 1, 1], [], []>} : vector<8x128xf32>, vector<128x384xf32>, vector<8x384xf32> -> vector<8x384xf32>
    %1015 = vector.extract_strided_slice %1013 {offsets = [0, 0], sizes = [8, 128], strides = [1, 1]} : vector<8x384xf32> to vector<8x128xf32>
    %1016 = vector.extract_strided_slice %1014 {offsets = [0, 0], sizes = [8, 128], strides = [1, 1]} : vector<8x384xf32> to vector<8x128xf32>
    %1017 = arith.addf %1015, %1016 : vector<8x128xf32>
    %1018 = arith.negf %1017 : vector<8x128xf32>
    %1019 = math.exp %1018 : vector<8x128xf32>
    %cst_313 = arith.constant 1.000000e+00 : f32
    %1020 = vector.broadcast %cst_313 : f32 to vector<8x128xf32>
    %1021 = arith.addf %1020, %1019 : vector<8x128xf32>
    %1022 = arith.divf %1020, %1021 : vector<8x128xf32>
    %1023 = vector.extract_strided_slice %1013 {offsets = [0, 128], sizes = [8, 128], strides = [1, 1]} : vector<8x384xf32> to vector<8x128xf32>
    %1024 = vector.extract_strided_slice %1014 {offsets = [0, 128], sizes = [8, 128], strides = [1, 1]} : vector<8x384xf32> to vector<8x128xf32>
    %1025 = arith.addf %1023, %1024 : vector<8x128xf32>
    %1026 = arith.negf %1025 : vector<8x128xf32>
    %1027 = math.exp %1026 : vector<8x128xf32>
    %cst_314 = arith.constant 1.000000e+00 : f32
    %1028 = vector.broadcast %cst_314 : f32 to vector<8x128xf32>
    %1029 = arith.addf %1028, %1027 : vector<8x128xf32>
    %1030 = arith.divf %1028, %1029 : vector<8x128xf32>
    %1031 = vector.extract_strided_slice %1013 {offsets = [0, 256], sizes = [8, 128], strides = [1, 1]} : vector<8x384xf32> to vector<8x128xf32>
    %1032 = vector.extract_strided_slice %1014 {offsets = [0, 256], sizes = [8, 128], strides = [1, 1]} : vector<8x384xf32> to vector<8x128xf32>
    %1033 = arith.addf %1032, %28 : vector<8x128xf32>
    %1034 = arith.mulf %1022, %1033 : vector<8x128xf32>
    %1035 = arith.addf %1031, %1034 : vector<8x128xf32>
    %1036 = math.tanh %1035 : vector<8x128xf32>
    %cst_315 = arith.constant 1.000000e+00 : f32
    %1037 = vector.broadcast %cst_315 : f32 to vector<8x128xf32>
    %1038 = arith.subf %1037, %1030 : vector<8x128xf32>
    %1039 = arith.mulf %1038, %1036 : vector<8x128xf32>
    %1040 = arith.mulf %1030, %964 : vector<8x128xf32>
    %1041 = arith.addf %1039, %1040 : vector<8x128xf32>
    %1042 = arith.select %1011, %1041, %964 : vector<8x128xf32>
    %c1_i32_316 = arith.constant 1 : i32
    %1043 = arith.subi %c12_i32_297, %c1_i32_316 : i32
    %c8_i32_317 = arith.constant 8 : i32
    %1044 = arith.cmpi sge, %1043, %c8_i32_317 : i32
    %c12_i32_318 = arith.constant 12 : i32
    %1045 = arith.cmpi slt, %1043, %c12_i32_318 : i32
    %1046 = arith.andi %1044, %1045 : i1
    %1047 = arith.extui %1046 : i1 to i32
    %c0_i32_319 = arith.constant 0 : i32
    %1048 = arith.cmpi ne, %1047, %c0_i32_319 : i32
    scf.if %1048 {
      %cst_320 = arith.constant dense<0.000000e+00> : vector<8x128xf32>
      %1049 = tpu.matmul %1042, %29, %cst_320 {dimension_numbers = #tpu.dot_dimension_numbers<[1], [0], [0], [1], [0, 0, 1, 1], [], []>} : vector<8x128xf32>, vector<128x128xf32>, vector<8x128xf32> -> vector<8x128xf32>
      %1050 = arith.addf %1049, %32 : vector<8x128xf32>
      %c8_i32_321 = arith.constant 8 : i32
      %1051 = arith.subi %1043, %c8_i32_321 : i32
      %1052 = arith.index_cast %1051 : i32 to index
      %c0_322 = arith.constant 0 : index
      %c0_323 = arith.constant 0 : index
      %1053 = vector.load %arg8[%1052, %c0_322, %c0_323] : memref<4x8x128xf32, #tpu.memory_space<vmem>>, vector<1x8x128xf32>
      %1054 = vector.shape_cast %1053 : vector<1x8x128xf32> to vector<8x128xf32>
      %1055 = vector.shape_cast %1050 : vector<8x128xf32> to vector<1x8x128xf32>
      tpu.vector_store %arg8[%1052, %c0_322, %c0_323], %1055 {strides = array<i32>} : memref<4x8x128xf32, #tpu.memory_space<vmem>>, vector<1x8x128xf32>,
    } else {
    }
    %c13_i32 = arith.constant 13 : i32
    return
  }
  func.func @transform_0(%arg0: i32) -> (i32, i32, i32) {
    %c0_i32 = arith.constant 0 : i32
    %c0_i32_0 = arith.constant 0 : i32
    %c0_i32_1 = arith.constant 0 : i32
    %c0_i32_2 = arith.constant 0 : i32
    return %c0_i32, %c0_i32_0, %c0_i32_1 : i32, i32, i32
  }
  func.func @transform_1(%arg0: i32) -> (i32, i32, i32) {
    %c0_i32 = arith.constant 0 : i32
    %c0_i32_0 = arith.constant 0 : i32
    %c0_i32_1 = arith.constant 0 : i32
    %c0_i32_2 = arith.constant 0 : i32
    return %c0_i32, %c0_i32_0, %c0_i32_1 : i32, i32, i32
  }
  func.func @transform_2(%arg0: i32) -> (i32, i32, i32) {
    %c0_i32 = arith.constant 0 : i32
    %c0_i32_0 = arith.constant 0 : i32
    %c0_i32_1 = arith.constant 0 : i32
    %c0_i32_2 = arith.constant 0 : i32
    return %c0_i32, %c0_i32_0, %c0_i32_1 : i32, i32, i32
  }
  func.func @transform_3(%arg0: i32) -> (i32, i32, i32) {
    %c0_i32 = arith.constant 0 : i32
    %c0_i32_0 = arith.constant 0 : i32
    %c0_i32_1 = arith.constant 0 : i32
    %c0_i32_2 = arith.constant 0 : i32
    return %c0_i32, %c0_i32_0, %c0_i32_1 : i32, i32, i32
  }
  func.func @transform_4(%arg0: i32) -> (i32, i32, i32) {
    %c0_i32 = arith.constant 0 : i32
    %c0_i32_0 = arith.constant 0 : i32
    %c0_i32_1 = arith.constant 0 : i32
    %c0_i32_2 = arith.constant 0 : i32
    return %c0_i32, %c0_i32_0, %c0_i32_1 : i32, i32, i32
  }
  func.func @transform_5(%arg0: i32) -> (i32, i32) {
    %c0_i32 = arith.constant 0 : i32
    %c0_i32_0 = arith.constant 0 : i32
    %c0_i32_1 = arith.constant 0 : i32
    return %c0_i32, %c0_i32_0 : i32, i32
  }
  func.func @transform_6(%arg0: i32) -> (i32, i32) {
    %c0_i32 = arith.constant 0 : i32
    %c0_i32_0 = arith.constant 0 : i32
    %c0_i32_1 = arith.constant 0 : i32
    return %c0_i32, %c0_i32_0 : i32, i32
  }
  func.func @transform_7(%arg0: i32) -> (i32, i32, i32) {
    %c0_i32 = arith.constant 0 : i32
    %c0_i32_0 = arith.constant 0 : i32
    %c0_i32_1 = arith.constant 0 : i32
    %c0_i32_2 = arith.constant 0 : i32
    return %c0_i32, %c0_i32_0, %c0_i32_1 : i32, i32, i32
  }
}

</mosaic_0001>

<llo_original>
// kernel: tpu_custom_call.1
$region0: #{tpu_custom_call.1}
  #allocation0 [shape = 'u32[]', space=smem, size = 0x4, offset = 0x4, fixed_abs, tag = 'smem constant byte address 0x4 - core index']
  #allocation1 [shape = 'u32[144,128]{1,0:T(1,128)}', space=vmem, size = 0x12000, scoped, tag = 'internal scratch']
  #allocation2 [shape = 'f32[12,8,384]{2,1,0:T(8,128)}', space=vmem, size = 0x24000, scoped, tag = 'scratch operand']
  %s0 = inlined_call_operand.hbm [shape: f32[12,8,128], index: 0, kind: input, shape index: {}]
  %s1 = inlined_call_operand.hbm [shape: f32[2,128,384], index: 1, kind: input, shape index: {}]
  %s2 = inlined_call_operand.hbm [shape: f32[2,128,384], index: 2, kind: input, shape index: {}]
  %s3 = inlined_call_operand.hbm [shape: f32[2,1,384], index: 3, kind: input, shape index: {}]
  %s4 = inlined_call_operand.vmem [shape: f32[2,1,128], index: 4, kind: input, shape index: {}]
  %s5 = inlined_call_operand.hbm [shape: f32[128,128], index: 5, kind: input, shape index: {}]
  %s6 = inlined_call_operand.vmem [shape: f32[1,128], index: 6, kind: input, shape index: {}]
  %s7 = inlined_call_operand.hbm [shape: f32[4,8,128], index: 7, kind: output, shape index: {}]
  %s8 = sld [smem:[#allocation0]]
  $region58: #{tpu_custom_call.1} parent=0
    _
  %s10 = ssub.s32 1, %s8
  %s11 = scalar_select 0, %s10, %s8
  $region1: #{tpu_custom_call.1} parent=0
    #allocation3 [shape = 'u8[49152]{0}', space=vmem, size = 0xc000, scoped, tag = 'input window, operand 0, single buffered']
    #allocation4 [shape = 's32[1]{0}', space=sflag, size = 0x4, scoped, tag = 'scoped memory for tpu_custom_call.1']
    #allocation5 [shape = 's32[1]{0}', space=sflag, size = 0x4, scoped, tag = 'scoped memory for tpu_custom_call.1']
    #allocation6 [shape = 'u8[393216]{0}', space=vmem, size = 0x60000, scoped, tag = 'input window, operand 1, single buffered']
    #allocation7 [shape = 's32[1]{0}', space=sflag, size = 0x4, scoped, tag = 'scoped memory for tpu_custom_call.1']
    #allocation8 [shape = 'u8[393216]{0}', space=vmem, size = 0x60000, scoped, tag = 'input window, operand 2, single buffered']
    #allocation9 [shape = 'u8[3072]{0}', space=vmem, size = 0xc00, scoped, tag = 'input window, operand 3, single buffered']
    #allocation10 [shape = 's32[1]{0}', space=sflag, size = 0x4, scoped, tag = 'scoped memory for tpu_custom_call.1']
    #allocation11 [shape = 'u8[65536]{0}', space=vmem, size = 0x10000, scoped, tag = 'input window, operand 5, single buffered']
    #allocation12 [shape = 'u8[16384]{0}', space=vmem, size = 0x4000, scoped, tag = 'output window, operand 0, single buffered']
    %12 = vsyncpa [#allocation4], 0
    %13 = vsyncpa [#allocation7], 0
    %14 = vsyncpa [#allocation10], 0
    %15 = vsyncpa [#allocation5], 0
    // Predicated region
    $region2: #{tpu_custom_call.1} parent=1 // pred_check
      _
    $region3: #{tpu_custom_call.1} parent=1 // pred_check_branch
      %17 = sbr.rel (0) target = $region5
    $region4: #{tpu_custom_call.1} parent=1 // pred_region
      %s19 = ssub.s32 1536, 1536
      %20 = vsyncadd [#allocation4], %s19
      %s21 = sshll.u32 [#allocation3], 4
      %s22 = int_to_ptr.vmem [resolvable:$true] %s21
      %27 = dma.hbm_to_vmem [thread:$0]  %s0, 1536, %s22, [#allocation4], 128, 128, 8
    $region5: #{tpu_custom_call.1} parent=1 // pred_fallthru
      _
    // Predicated region
    $region6: #{tpu_custom_call.1} parent=1 // pred_check
      _
    $region7: #{tpu_custom_call.1} parent=1 // pred_check_branch
      %29 = sbr.rel (0) target = $region9
    $region8: #{tpu_custom_call.1} parent=1 // pred_region
      %s31 = ssub.s32 12288, 12288
      %32 = vsyncadd [#allocation7], %s31
      %s33 = sshll.u32 [#allocation6], 4
      %s34 = int_to_ptr.vmem [resolvable:$true] %s33
      %39 = dma.hbm_to_vmem [thread:$0]  %s1, 12288, %s34, [#allocation7], 384, 384, 24
    $region9: #{tpu_custom_call.1} parent=1 // pred_fallthru
      _
    // Predicated region
    $region10: #{tpu_custom_call.1} parent=1 // pred_check
      _
    $region11: #{tpu_custom_call.1} parent=1 // pred_check_branch
      %41 = sbr.rel (0) target = $region13
    $region12: #{tpu_custom_call.1} parent=1 // pred_region
      %s43 = ssub.s32 12288, 12288
      %44 = vsyncadd [#allocation7], %s43
      %s45 = sshll.u32 [#allocation8], 4
      %s46 = int_to_ptr.vmem [resolvable:$true] %s45
      %51 = dma.hbm_to_vmem [thread:$0]  %s2, 12288, %s46, [#allocation7], 384, 384, 24
    $region13: #{tpu_custom_call.1} parent=1 // pred_fallthru
      _
    // Predicated region
    $region14: #{tpu_custom_call.1} parent=1 // pred_check
      _
    $region15: #{tpu_custom_call.1} parent=1 // pred_check_branch
      %53 = sbr.rel (0) target = $region17
    $region16: #{tpu_custom_call.1} parent=1 // pred_region
      %s55 = ssub.s32 96, 96
      %56 = vsyncadd [#allocation10], %s55
      %s57 = sshll.u32 [#allocation9], 4
      %s58 = int_to_ptr.vmem [resolvable:$true] %s57
      %63 = dma.hbm_to_vmem [thread:$0]  %s3, 96, %s58, [#allocation10], 48, 48, 3
    $region17: #{tpu_custom_call.1} parent=1 // pred_fallthru
      _
    // Predicated region
    $region18: #{tpu_custom_call.1} parent=1 // pred_check
      _
    $region19: #{tpu_custom_call.1} parent=1 // pred_check_branch
      %65 = sbr.rel (0) target = $region21
    $region20: #{tpu_custom_call.1} parent=1 // pred_region
      _
    $region21: #{tpu_custom_call.1} parent=1 // pred_fallthru
      _
    // Predicated region
    $region22: #{tpu_custom_call.1} parent=1 // pred_check
      _
    $region23: #{tpu_custom_call.1} parent=1 // pred_check_branch
      %67 = sbr.rel (0) target = $region25
    $region24: #{tpu_custom_call.1} parent=1 // pred_region
      %s69 = ssub.s32 2048, 2048
      %70 = vsyncadd [#allocation10], %s69
      %s71 = sshll.u32 [#allocation11], 4
      %s72 = int_to_ptr.vmem [resolvable:$true] %s71
      %77 = dma.hbm_to_vmem [thread:$0]  %s5, 2048, %s72, [#allocation10], 128, 128, 8
    $region25: #{tpu_custom_call.1} parent=1 // pred_fallthru
      _
    // Predicated region
    $region26: #{tpu_custom_call.1} parent=1 // pred_check
      _
    $region27: #{tpu_custom_call.1} parent=1 // pred_check_branch
      %79 = sbr.rel (0) target = $region29
    $region28: #{tpu_custom_call.1} parent=1 // pred_region
      _
    $region29: #{tpu_custom_call.1} parent=1 // pred_fallthru
      _
    // Predicated region
    $region30: #{tpu_custom_call.1} parent=1 // pred_check
      _
    $region31: #{tpu_custom_call.1} parent=1 // pred_check_branch
      %81 = sbr.rel (0) target = $region33
    $region32: #{tpu_custom_call.1} parent=1 // pred_region
      %82 = dma.done [#allocation4], 1536
    $region33: #{tpu_custom_call.1} parent=1 // pred_fallthru
      _
    // Predicated region
    $region34: #{tpu_custom_call.1} parent=1 // pred_check
      _
    $region35: #{tpu_custom_call.1} parent=1 // pred_check_branch
      %84 = sbr.rel (0) target = $region37
    $region36: #{tpu_custom_call.1} parent=1 // pred_region
      %85 = dma.done [#allocation7], 12288
    $region37: #{tpu_custom_call.1} parent=1 // pred_fallthru
      _
    // Predicated region
    $region38: #{tpu_custom_call.1} parent=1 // pred_check
      _
    $region39: #{tpu_custom_call.1} parent=1 // pred_check_branch
      %87 = sbr.rel (0) target = $region41
    $region40: #{tpu_custom_call.1} parent=1 // pred_region
      %88 = dma.done [#allocation7], 12288
    $region41: #{tpu_custom_call.1} parent=1 // pred_fallthru
      _
    // Predicated region
    $region42: #{tpu_custom_call.1} parent=1 // pred_check
      _
    $region43: #{tpu_custom_call.1} parent=1 // pred_check_branch
      %90 = sbr.rel (0) target = $region45
    $region44: #{tpu_custom_call.1} parent=1 // pred_region
      %91 = dma.done [#allocation10], 96
    $region45: #{tpu_custom_call.1} parent=1 // pred_fallthru
      _
    // Predicated region
    $region46: #{tpu_custom_call.1} parent=1 // pred_check
      _
    $region47: #{tpu_custom_call.1} parent=1 // pred_check_branch
      %93 = sbr.rel (0) target = $region49
    $region48: #{tpu_custom_call.1} parent=1 // pred_region
      %94 = dma.done [#allocation10], 2048
    $region49: #{tpu_custom_call.1} parent=1 // pred_fallthru
      _
    %v95 = vld [vmem:[#allocation3] sm:$0xff]
    %v96 = vld [vmem:[#allocation3 + $0x8] sm:$0xff]
    %v97 = vld [vmem:[#allocation3 + $0x10] sm:$0xff]
    %v98 = vld [vmem:[#allocation3 + $0x18] sm:$0xff]
    %v99 = vld [vmem:[#allocation3 + $0x20] sm:$0xff]
    %v100 = vld [vmem:[#allocation3 + $0x28] sm:$0xff]
    %v101 = vld [vmem:[#allocation3 + $0x30] sm:$0xff]
    %v102 = vld [vmem:[#allocation3 + $0x38] sm:$0xff]
    %v103 = vld [vmem:[#allocation3 + $0x40] sm:$0xff]
    %v104 = vld [vmem:[#allocation3 + $0x48] sm:$0xff]
    %v105 = vld [vmem:[#allocation3 + $0x50] sm:$0xff]
    %v106 = vld [vmem:[#allocation3 + $0x58] sm:$0xff]
    %v107 = vld [vmem:[#allocation6] sm:$0xff]
    %v108 = vld [vmem:[#allocation6 + $0x8] sm:$0xff]
    %v109 = vld [vmem:[#allocation6 + $0x10] sm:$0xff]
    %v110 = vld [vmem:[#allocation6 + $0x18] sm:$0xff]
    %v111 = vld [vmem:[#allocation6 + $0x20] sm:$0xff]
    %v112 = vld [vmem:[#allocation6 + $0x28] sm:$0xff]
    %v113 = vld [vmem:[#allocation6 + $0x30] sm:$0xff]
    %v114 = vld [vmem:[#allocation6 + $0x38] sm:$0xff]
    %v115 = vld [vmem:[#allocation6 + $0x40] sm:$0xff]
    %v116 = vld [vmem:[#allocation6 + $0x48] sm:$0xff]
    %v117 = vld [vmem:[#allocation6 + $0x50] sm:$0xff]
    %v118 = vld [vmem:[#allocation6 + $0x58] sm:$0xff]
    %v119 = vld [vmem:[#allocation6 + $0x60] sm:$0xff]
    %v120 = vld [vmem:[#allocation6 + $0x68] sm:$0xff]
    %v121 = vld [vmem:[#allocation6 + $0x70] sm:$0xff]
    %v122 = vld [vmem:[#allocation6 + $0x78] sm:$0xff]
    %v123 = vld [vmem:[#allocation6 + $0x80] sm:$0xff]
    %v124 = vld [vmem:[#allocation6 + $0x88] sm:$0xff]
    %v125 = vld [vmem:[#allocation6 + $0x90] sm:$0xff]
    %v126 = vld [vmem:[#allocation6 + $0x98] sm:$0xff]
    %v127 = vld [vmem:[#allocation6 + $0xa0] sm:$0xff]
    %v128 = vld [vmem:[#allocation6 + $0xa8] sm:$0xff]
    %v129 = vld [vmem:[#allocation6 + $0xb0] sm:$0xff]
    %v130 = vld [vmem:[#allocation6 + $0xb8] sm:$0xff]
    %v131 = vld [vmem:[#allocation6 + $0xc0] sm:$0xff]
    %v132 = vld [vmem:[#allocation6 + $0xc8] sm:$0xff]
    %v133 = vld [vmem:[#allocation6 + $0xd0] sm:$0xff]
    %v134 = vld [vmem:[#allocation6 + $0xd8] sm:$0xff]
    %v135 = vld [vmem:[#allocation6 + $0xe0] sm:$0xff]
    %v136 = vld [vmem:[#allocation6 + $0xe8] sm:$0xff]
    %v137 = vld [vmem:[#allocation6 + $0xf0] sm:$0xff]
    %v138 = vld [vmem:[#allocation6 + $0xf8] sm:$0xff]
    %v139 = vld [vmem:[#allocation6 + $0x100] sm:$0xff]
    %v140 = vld [vmem:[#allocation6 + $0x108] sm:$0xff]
    %v141 = vld [vmem:[#allocation6 + $0x110] sm:$0xff]
    %v142 = vld [vmem:[#allocation6 + $0x118] sm:$0xff]
    %v143 = vld [vmem:[#allocation6 + $0x120] sm:$0xff]
    %v144 = vld [vmem:[#allocation6 + $0x128] sm:$0xff]
    %v145 = vld [vmem:[#allocation6 + $0x130] sm:$0xff]
    %v146 = vld [vmem:[#allocation6 + $0x138] sm:$0xff]
    %v147 = vld [vmem:[#allocation6 + $0x140] sm:$0xff]
    %v148 = vld [vmem:[#allocation6 + $0x148] sm:$0xff]
    %v149 = vld [vmem:[#allocation6 + $0x150] sm:$0xff]
    %v150 = vld [vmem:[#allocation6 + $0x158] sm:$0xff]
    %v151 = vld [vmem:[#allocation6 + $0x160] sm:$0xff]
    %v152 = vld [vmem:[#allocation6 + $0x168] sm:$0xff]
    %v153 = vld [vmem:[#allocation6 + $0x170] sm:$0xff]
    %v154 = vld [vmem:[#allocation6 + $0x178] sm:$0xff]
    %v155 = vld [vmem:[#allocation9] sm:$0x7]
    %v157 = vlaneseq
    %v158 = vshrl.u32 %v157, 7
    %v159 = vsub.s32 0, %v158
    %v160 = vrot.slane %v155, %v159
    %v161 = vlaneseq
    %v162 = vshrl.u32 %v161, 7
    %v163 = vsub.s32 1, %v162
    %v164 = vrot.slane %v155, %v163
    %v165 = vlaneseq
    %v166 = vshrl.u32 %v165, 7
    %v167 = vsub.s32 2, %v166
    %v168 = vrot.slane %v155, %v167
    %172 = vmatprep.subr.mxu0 %v153
    %173 = vmatpush1.msra.mxu0 %v152
    %174 = vmatprep.subr.mxu0 %v150
    %175 = vmatpush1.msra.mxu0 %v149
    %176 = vmatprep.subr.mxu0 %v147
    %177 = vmatpush1.msra.mxu0 %v146
    %178 = vmatprep.subr.mxu0 %v144
    %179 = vmatpush1.msra.mxu0 %v143
    %180 = vmatprep.subr.mxu0 %v141
    %181 = vmatpush1.msra.mxu0 %v140
    %182 = vmatprep.subr.mxu0 %v138
    %183 = vmatpush1.msra.mxu0 %v137
    %184 = vmatprep.subr.mxu0 %v135
    %185 = vmatpush1.msra.mxu0 %v134
    %186 = vmatprep.subr.mxu0 %v132
    %187 = vmatpush1.msra.mxu0 %v131
    %188 = vmatprep.subr.mxu0 %v129
    %189 = vmatpush1.msra.mxu0 %v128
    %190 = vmatprep.subr.mxu0 %v126
    %191 = vmatpush1.msra.mxu0 %v125
    %192 = vmatprep.subr.mxu0 %v123
    %193 = vmatpush1.msra.mxu0 %v122
    %194 = vmatprep.subr.mxu0 %v120
    %195 = vmatpush1.msra.mxu0 %v119
    %196 = vmatprep.subr.mxu0 %v117
    %197 = vmatpush1.msra.mxu0 %v116
    %198 = vmatprep.subr.mxu0 %v114
    %199 = vmatpush1.msra.mxu0 %v113
    %200 = vmatprep.subr.mxu0 %v111
    %201 = vmatpush1.msra.mxu0 %v110
    %202 = vmatprep.subr.mxu0 %v108
    %203 = vmatpush1.msra.mxu0 %v107
    %204 = vmatprep.subr.mxu0 0.0
    %205 = vmatpush2.msra.mxu0 0.0
    %206 = vmatprep.subr.mxu0 0.0
    %207 = vmatpush2.msra.mxu0 0.0
    %208 = vmatprep.subr.mxu0 0.0
    %209 = vmatpush2.msra.mxu0 0.0
    %210 = vmatprep.subr.mxu0 0.0
    %211 = vmatpush2.msra.mxu0 0.0
    %212 = vmatprep.subr.mxu0 0.0
    %213 = vmatpush2.msra.mxu0 0.0
    %214 = vmatprep.subr.mxu0 0.0
    %215 = vmatpush2.msra.mxu0 0.0
    %216 = vmatprep.subr.mxu0 0.0
    %217 = vmatpush2.msra.mxu0 0.0
    %218 = vmatprep.subr.mxu0 0.0
    %219 = vmatpush2.msra.mxu0 0.0
    %220 = vmatprep.subr.mxu0 0.0
    %221 = vmatpush2.msra.mxu0 0.0
    %222 = vmatprep.subr.mxu0 0.0
    %223 = vmatpush2.msra.mxu0 0.0
    %224 = vmatprep.subr.mxu0 0.0
    %225 = vmatpush2.msra.mxu0 0.0
    %226 = vmatprep.subr.mxu0 0.0
    %227 = vmatpush2.msra.mxu0 0.0
    %228 = vmatprep.subr.mxu0 0.0
    %229 = vmatpush2.msra.mxu0 0.0
    %230 = vmatprep.subr.mxu0 0.0
    %231 = vmatpush2.msra.mxu0 0.0
    %232 = vmatprep.subr.mxu0 0.0
    %233 = vmatpush2.msra.mxu0 0.0
    %234 = vmatprep.subr.mxu0 0.0
    %235 = vmatpush2.msra.mxu0 0.0
    %236 = vmatprep.mubr.f32.mxu0 0.0
    %237 = vmatmul.mubr.f32.gmra.mxu0 %v95
    %v238 = vpop.f32.mrf.mxu0
    %v239 = vadd.f32 %v160, %v238
    %v240 = vpop.f32.mrf.mxu0
    %v241 = vadd.f32 %v164, %v240
    %242 = vmatprep.mubr.f32.mxu0 0.0
    %243 = vmatmul.mubr.f32.gmra.mxu0 %v96
    %v244 = vpop.f32.mrf.mxu0
    %v245 = vadd.f32 %v160, %v244
    %v246 = vpop.f32.mrf.mxu0
    %v247 = vadd.f32 %v164, %v246
    %248 = vmatprep.mubr.f32.mxu0 0.0
    %249 = vmatmul.mubr.f32.gmra.mxu0 %v97
    %v250 = vpop.f32.mrf.mxu0
    %v251 = vadd.f32 %v160, %v250
    %v252 = vpop.f32.mrf.mxu0
    %v253 = vadd.f32 %v164, %v252
    %254 = vmatprep.mubr.f32.mxu0 0.0
    %255 = vmatmul.mubr.f32.gmra.mxu0 %v98
    %v256 = vpop.f32.mrf.mxu0
    %v257 = vadd.f32 %v160, %v256
    %v258 = vpop.f32.mrf.mxu0
    %v259 = vadd.f32 %v164, %v258
    %260 = vmatprep.mubr.f32.mxu0 0.0
    %261 = vmatmul.mubr.f32.gmra.mxu0 %v99
    %v262 = vpop.f32.mrf.mxu0
    %v263 = vadd.f32 %v160, %v262
    %v264 = vpop.f32.mrf.mxu0
    %v265 = vadd.f32 %v164, %v264
    %266 = vmatprep.mubr.f32.mxu0 0.0
    %267 = vmatmul.mubr.f32.gmra.mxu0 %v100
    %v268 = vpop.f32.mrf.mxu0
    %v269 = vadd.f32 %v160, %v268
    %v270 = vpop.f32.mrf.mxu0
    %v271 = vadd.f32 %v164, %v270
    %272 = vmatprep.mubr.f32.mxu0 0.0
    %273 = vmatmul.mubr.f32.gmra.mxu0 %v101
    %v274 = vpop.f32.mrf.mxu0
    %v275 = vadd.f32 %v160, %v274
    %v276 = vpop.f32.mrf.mxu0
    %v277 = vadd.f32 %v164, %v276
    %278 = vmatprep.mubr.f32.mxu0 0.0
    %279 = vmatmul.mubr.f32.gmra.mxu0 %v102
    %v280 = vpop.f32.mrf.mxu0
    %v281 = vadd.f32 %v160, %v280
    %v282 = vpop.f32.mrf.mxu0
    %v283 = vadd.f32 %v164, %v282
    %284 = vmatprep.mubr.f32.mxu0 0.0
    %285 = vmatmul.mubr.f32.gmra.mxu0 %v103
    %v286 = vpop.f32.mrf.mxu0
    %v287 = vadd.f32 %v160, %v286
    %v288 = vpop.f32.mrf.mxu0
    %v289 = vadd.f32 %v164, %v288
    %290 = vmatprep.mubr.f32.mxu0 0.0
    %291 = vmatmul.mubr.f32.gmra.mxu0 %v104
    %v292 = vpop.f32.mrf.mxu0
    %v293 = vadd.f32 %v160, %v292
    %v294 = vpop.f32.mrf.mxu0
    %v295 = vadd.f32 %v164, %v294
    %296 = vmatprep.mubr.f32.mxu0 0.0
    %297 = vmatmul.mubr.f32.gmra.mxu0 %v105
    %v298 = vpop.f32.mrf.mxu0
    %v299 = vadd.f32 %v160, %v298
    %v300 = vpop.f32.mrf.mxu0
    %v301 = vadd.f32 %v164, %v300
    %302 = vmatprep.mubr.f32.mxu0 0.0
    %303 = vmatmul.mubr.f32.gmra.mxu0 %v106
    %v304 = vpop.f32.mrf.mxu0
    %v305 = vadd.f32 %v160, %v304
    %v306 = vpop.f32.mrf.mxu0
    %v307 = vadd.f32 %v164, %v306
    %308 = vdwg.mxu0
    %309 = vmatprep.subr.mxu0 0.0
    %310 = vmatpush1.msra.mxu0 %v154
    %311 = vmatprep.subr.mxu0 0.0
    %312 = vmatpush1.msra.mxu0 %v151
    %313 = vmatprep.subr.mxu0 0.0
    %314 = vmatpush1.msra.mxu0 %v148
    %315 = vmatprep.subr.mxu0 0.0
    %316 = vmatpush1.msra.mxu0 %v145
    %317 = vmatprep.subr.mxu0 0.0
    %318 = vmatpush1.msra.mxu0 %v142
    %319 = vmatprep.subr.mxu0 0.0
    %320 = vmatpush1.msra.mxu0 %v139
    %321 = vmatprep.subr.mxu0 0.0
    %322 = vmatpush1.msra.mxu0 %v136
    %323 = vmatprep.subr.mxu0 0.0
    %324 = vmatpush1.msra.mxu0 %v133
    %325 = vmatprep.subr.mxu0 0.0
    %326 = vmatpush1.msra.mxu0 %v130
    %327 = vmatprep.subr.mxu0 0.0
    %328 = vmatpush1.msra.mxu0 %v127
    %329 = vmatprep.subr.mxu0 0.0
    %330 = vmatpush1.msra.mxu0 %v124
    %331 = vmatprep.subr.mxu0 0.0
    %332 = vmatpush1.msra.mxu0 %v121
    %333 = vmatprep.subr.mxu0 0.0
    %334 = vmatpush1.msra.mxu0 %v118
    %335 = vmatprep.subr.mxu0 0.0
    %336 = vmatpush1.msra.mxu0 %v115
    %337 = vmatprep.subr.mxu0 0.0
    %338 = vmatpush1.msra.mxu0 %v112
    %339 = vmatprep.subr.mxu0 0.0
    %340 = vmatpush1.msra.mxu0 %v109
    %341 = vmatprep.subr.mxu0 0.0
    %342 = vmatpush2.msra.mxu0 0.0
    %343 = vmatprep.subr.mxu0 0.0
    %344 = vmatpush2.msra.mxu0 0.0
    %345 = vmatprep.subr.mxu0 0.0
    %346 = vmatpush2.msra.mxu0 0.0
    %347 = vmatprep.subr.mxu0 0.0
    %348 = vmatpush2.msra.mxu0 0.0
    %349 = vmatprep.subr.mxu0 0.0
    %350 = vmatpush2.msra.mxu0 0.0
    %351 = vmatprep.subr.mxu0 0.0
    %352 = vmatpush2.msra.mxu0 0.0
    %353 = vmatprep.subr.mxu0 0.0
    %354 = vmatpush2.msra.mxu0 0.0
    %355 = vmatprep.subr.mxu0 0.0
    %356 = vmatpush2.msra.mxu0 0.0
    %357 = vmatprep.subr.mxu0 0.0
    %358 = vmatpush2.msra.mxu0 0.0
    %359 = vmatprep.subr.mxu0 0.0
    %360 = vmatpush2.msra.mxu0 0.0
    %361 = vmatprep.subr.mxu0 0.0
    %362 = vmatpush2.msra.mxu0 0.0
    %363 = vmatprep.subr.mxu0 0.0
    %364 = vmatpush2.msra.mxu0 0.0
    %365 = vmatprep.subr.mxu0 0.0
    %366 = vmatpush2.msra.mxu0 0.0
    %367 = vmatprep.subr.mxu0 0.0
    %368 = vmatpush2.msra.mxu0 0.0
    %369 = vmatprep.subr.mxu0 0.0
    %370 = vmatpush2.msra.mxu0 0.0
    %371 = vmatprep.subr.mxu0 0.0
    %372 = vmatpush2.msra.mxu0 0.0
    %373 = vmatprep.mubr.f32.mxu0 0.0
    %374 = vmatmul.mubr.f32.gmra.mxu0 %v95
    %v375 = vpop.f32.mrf.mxu0
    %v376 = vadd.f32 %v168, %v375
    %v377 = vpop.f32.mrf.mxu0
    %378 = vmatprep.mubr.f32.mxu0 0.0
    %379 = vmatmul.mubr.f32.gmra.mxu0 %v96
    %v380 = vpop.f32.mrf.mxu0
    %v381 = vadd.f32 %v168, %v380
    %v382 = vpop.f32.mrf.mxu0
    %383 = vmatprep.mubr.f32.mxu0 0.0
    %384 = vmatmul.mubr.f32.gmra.mxu0 %v97
    %v385 = vpop.f32.mrf.mxu0
    %v386 = vadd.f32 %v168, %v385
    %v387 = vpop.f32.mrf.mxu0
    %388 = vmatprep.mubr.f32.mxu0 0.0
    %389 = vmatmul.mubr.f32.gmra.mxu0 %v98
    %v390 = vpop.f32.mrf.mxu0
    %v391 = vadd.f32 %v168, %v390
    %v392 = vpop.f32.mrf.mxu0
    %393 = vmatprep.mubr.f32.mxu0 0.0
    %394 = vmatmul.mubr.f32.gmra.mxu0 %v99
    %v395 = vpop.f32.mrf.mxu0
    %v396 = vadd.f32 %v168, %v395
    %v397 = vpop.f32.mrf.mxu0
    %398 = vmatprep.mubr.f32.mxu0 0.0
    %399 = vmatmul.mubr.f32.gmra.mxu0 %v100
    %v400 = vpop.f32.mrf.mxu0
    %v401 = vadd.f32 %v168, %v400
    %v402 = vpop.f32.mrf.mxu0
    %403 = vmatprep.mubr.f32.mxu0 0.0
    %404 = vmatmul.mubr.f32.gmra.mxu0 %v101
    %v405 = vpop.f32.mrf.mxu0
    %v406 = vadd.f32 %v168, %v405
    %v407 = vpop.f32.mrf.mxu0
    %408 = vmatprep.mubr.f32.mxu0 0.0
    %409 = vmatmul.mubr.f32.gmra.mxu0 %v102
    %v410 = vpop.f32.mrf.mxu0
    %v411 = vadd.f32 %v168, %v410
    %v412 = vpop.f32.mrf.mxu0
    %413 = vmatprep.mubr.f32.mxu0 0.0
    %414 = vmatmul.mubr.f32.gmra.mxu0 %v103
    %v415 = vpop.f32.mrf.mxu0
    %v416 = vadd.f32 %v168, %v415
    %v417 = vpop.f32.mrf.mxu0
    %418 = vmatprep.mubr.f32.mxu0 0.0
    %419 = vmatmul.mubr.f32.gmra.mxu0 %v104
    %v420 = vpop.f32.mrf.mxu0
    %v421 = vadd.f32 %v168, %v420
    %v422 = vpop.f32.mrf.mxu0
    %423 = vmatprep.mubr.f32.mxu0 0.0
    %424 = vmatmul.mubr.f32.gmra.mxu0 %v105
    %v425 = vpop.f32.mrf.mxu0
    %v426 = vadd.f32 %v168, %v425
    %v427 = vpop.f32.mrf.mxu0
    %428 = vmatprep.mubr.f32.mxu0 0.0
    %429 = vmatmul.mubr.f32.gmra.mxu0 %v106
    %v430 = vpop.f32.mrf.mxu0
    %v431 = vadd.f32 %v168, %v430
    %v432 = vpop.f32.mrf.mxu0
    %433 = vdwg.mxu0
    %434 = vst [vmem:[#allocation2] sm:$0xff] %v239
    %435 = vst [vmem:[#allocation2 + $0x8] sm:$0xff] %v241
    %436 = vst [vmem:[#allocation2 + $0x10] sm:$0xff] %v376
    %437 = vst [vmem:[#allocation2 + $0x18] sm:$0xff] %v245
    %438 = vst [vmem:[#allocation2 + $0x20] sm:$0xff] %v247
    %439 = vst [vmem:[#allocation2 + $0x28] sm:$0xff] %v381
    %440 = vst [vmem:[#allocation2 + $0x30] sm:$0xff] %v251
    %441 = vst [vmem:[#allocation2 + $0x38] sm:$0xff] %v253
    %442 = vst [vmem:[#allocation2 + $0x40] sm:$0xff] %v386
    %443 = vst [vmem:[#allocation2 + $0x48] sm:$0xff] %v257
    %444 = vst [vmem:[#allocation2 + $0x50] sm:$0xff] %v259
    %445 = vst [vmem:[#allocation2 + $0x58] sm:$0xff] %v391
    %446 = vst [vmem:[#allocation2 + $0x60] sm:$0xff] %v263
    %447 = vst [vmem:[#allocation2 + $0x68] sm:$0xff] %v265
    %448 = vst [vmem:[#allocation2 + $0x70] sm:$0xff] %v396
    %449 = vst [vmem:[#allocation2 + $0x78] sm:$0xff] %v269
    %450 = vst [vmem:[#allocation2 + $0x80] sm:$0xff] %v271
    %451 = vst [vmem:[#allocation2 + $0x88] sm:$0xff] %v401
    %452 = vst [vmem:[#allocation2 + $0x90] sm:$0xff] %v275
    %453 = vst [vmem:[#allocation2 + $0x98] sm:$0xff] %v277
    %454 = vst [vmem:[#allocation2 + $0xa0] sm:$0xff] %v406
    %455 = vst [vmem:[#allocation2 + $0xa8] sm:$0xff] %v281
    %456 = vst [vmem:[#allocation2 + $0xb0] sm:$0xff] %v283
    %457 = vst [vmem:[#allocation2 + $0xb8] sm:$0xff] %v411
    %458 = vst [vmem:[#allocation2 + $0xc0] sm:$0xff] %v287
    %459 = vst [vmem:[#allocation2 + $0xc8] sm:$0xff] %v289
    %460 = vst [vmem:[#allocation2 + $0xd0] sm:$0xff] %v416
    %461 = vst [vmem:[#allocation2 + $0xd8] sm:$0xff] %v293
    %462 = vst [vmem:[#allocation2 + $0xe0] sm:$0xff] %v295
    %463 = vst [vmem:[#allocation2 + $0xe8] sm:$0xff] %v421
    %464 = vst [vmem:[#allocation2 + $0xf0] sm:$0xff] %v299
    %465 = vst [vmem:[#allocation2 + $0xf8] sm:$0xff] %v301
    %466 = vst [vmem:[#allocation2 + $0x100] sm:$0xff] %v426
    %467 = vst [vmem:[#allocation2 + $0x108] sm:$0xff] %v305
    %468 = vst [vmem:[#allocation2 + $0x110] sm:$0xff] %v307
    %469 = vst [vmem:[#allocation2 + $0x118] sm:$0xff] %v431
    %v470 = vld [vmem:[#allocation8] sm:$0xff]
    %v471 = vld [vmem:[#allocation8 + $0x8] sm:$0xff]
    %v472 = vld [vmem:[#allocation8 + $0x10] sm:$0xff]
    %v473 = vld [vmem:[#allocation8 + $0x18] sm:$0xff]
    %v474 = vld [vmem:[#allocation8 + $0x20] sm:$0xff]
    %v475 = vld [vmem:[#allocation8 + $0x28] sm:$0xff]
    %v476 = vld [vmem:[#allocation8 + $0x30] sm:$0xff]
    %v477 = vld [vmem:[#allocation8 + $0x38] sm:$0xff]
    %v478 = vld [vmem:[#allocation8 + $0x40] sm:$0xff]
    %v479 = vld [vmem:[#allocation8 + $0x48] sm:$0xff]
    %v480 = vld [vmem:[#allocation8 + $0x50] sm:$0xff]
    %v481 = vld [vmem:[#allocation8 + $0x58] sm:$0xff]
    %v482 = vld [vmem:[#allocation8 + $0x60] sm:$0xff]
    %v483 = vld [vmem:[#allocation8 + $0x68] sm:$0xff]
    %v484 = vld [vmem:[#allocation8 + $0x70] sm:$0xff]
    %v485 = vld [vmem:[#allocation8 + $0x78] sm:$0xff]
    %v486 = vld [vmem:[#allocation8 + $0x80] sm:$0xff]
    %v487 = vld [vmem:[#allocation8 + $0x88] sm:$0xff]
    %v488 = vld [vmem:[#allocation8 + $0x90] sm:$0xff]
    %v489 = vld [vmem:[#allocation8 + $0x98] sm:$0xff]
    %v490 = vld [vmem:[#allocation8 + $0xa0] sm:$0xff]
    %v491 = vld [vmem:[#allocation8 + $0xa8] sm:$0xff]
    %v492 = vld [vmem:[#allocation8 + $0xb0] sm:$0xff]
    %v493 = vld [vmem:[#allocation8 + $0xb8] sm:$0xff]
    %v494 = vld [vmem:[#allocation8 + $0xc0] sm:$0xff]
    %v495 = vld [vmem:[#allocation8 + $0xc8] sm:$0xff]
    %v496 = vld [vmem:[#allocation8 + $0xd0] sm:$0xff]
    %v497 = vld [vmem:[#allocation8 + $0xd8] sm:$0xff]
    %v498 = vld [vmem:[#allocation8 + $0xe0] sm:$0xff]
    %v499 = vld [vmem:[#allocation8 + $0xe8] sm:$0xff]
    %v500 = vld [vmem:[#allocation8 + $0xf0] sm:$0xff]
    %v501 = vld [vmem:[#allocation8 + $0xf8] sm:$0xff]
    %v502 = vld [vmem:[#allocation8 + $0x100] sm:$0xff]
    %v503 = vld [vmem:[#allocation8 + $0x108] sm:$0xff]
    %v504 = vld [vmem:[#allocation8 + $0x110] sm:$0xff]
    %v505 = vld [vmem:[#allocation8 + $0x118] sm:$0xff]
    %v506 = vld [vmem:[#allocation8 + $0x120] sm:$0xff]
    %v507 = vld [vmem:[#allocation8 + $0x128] sm:$0xff]
    %v508 = vld [vmem:[#allocation8 + $0x130] sm:$0xff]
    %v509 = vld [vmem:[#allocation8 + $0x138] sm:$0xff]
    %v510 = vld [vmem:[#allocation8 + $0x140] sm:$0xff]
    %v511 = vld [vmem:[#allocation8 + $0x148] sm:$0xff]
    %v512 = vld [vmem:[#allocation8 + $0x150] sm:$0xff]
    %v513 = vld [vmem:[#allocation8 + $0x158] sm:$0xff]
    %v514 = vld [vmem:[#allocation8 + $0x160] sm:$0xff]
    %v515 = vld [vmem:[#allocation8 + $0x168] sm:$0xff]
    %v516 = vld [vmem:[#allocation8 + $0x170] sm:$0xff]
    %v517 = vld [vmem:[#allocation8 + $0x178] sm:$0xff]
    %s518 = scalar_lea.vmem [#allocation8], 384
    %v519 = vld [vmem:[%s518] sm:$0xff]
    %v520 = vld [vmem:[%s518 + $0x8] sm:$0xff]
    %v521 = vld [vmem:[%s518 + $0x10] sm:$0xff]
    %v522 = vld [vmem:[%s518 + $0x18] sm:$0xff]
    %v523 = vld [vmem:[%s518 + $0x20] sm:$0xff]
    %v524 = vld [vmem:[%s518 + $0x28] sm:$0xff]
    %v525 = vld [vmem:[%s518 + $0x30] sm:$0xff]
    %v526 = vld [vmem:[%s518 + $0x38] sm:$0xff]
    %v527 = vld [vmem:[%s518 + $0x40] sm:$0xff]
    %v528 = vld [vmem:[%s518 + $0x48] sm:$0xff]
    %v529 = vld [vmem:[%s518 + $0x50] sm:$0xff]
    %v530 = vld [vmem:[%s518 + $0x58] sm:$0xff]
    %v531 = vld [vmem:[%s518 + $0x60] sm:$0xff]
    %v532 = vld [vmem:[%s518 + $0x68] sm:$0xff]
    %v533 = vld [vmem:[%s518 + $0x70] sm:$0xff]
    %v534 = vld [vmem:[%s518 + $0x78] sm:$0xff]
    %v535 = vld [vmem:[%s518 + $0x80] sm:$0xff]
    %v536 = vld [vmem:[%s518 + $0x88] sm:$0xff]
    %v537 = vld [vmem:[%s518 + $0x90] sm:$0xff]
    %v538 = vld [vmem:[%s518 + $0x98] sm:$0xff]
    %v539 = vld [vmem:[%s518 + $0xa0] sm:$0xff]
    %v540 = vld [vmem:[%s518 + $0xa8] sm:$0xff]
    %v541 = vld [vmem:[%s518 + $0xb0] sm:$0xff]
    %v542 = vld [vmem:[%s518 + $0xb8] sm:$0xff]
    %v543 = vld [vmem:[%s518 + $0xc0] sm:$0xff]
    %v544 = vld [vmem:[%s518 + $0xc8] sm:$0xff]
    %v545 = vld [vmem:[%s518 + $0xd0] sm:$0xff]
    %v546 = vld [vmem:[%s518 + $0xd8] sm:$0xff]
    %v547 = vld [vmem:[%s518 + $0xe0] sm:$0xff]
    %v548 = vld [vmem:[%s518 + $0xe8] sm:$0xff]
    %v549 = vld [vmem:[%s518 + $0xf0] sm:$0xff]
    %v550 = vld [vmem:[%s518 + $0xf8] sm:$0xff]
    %v551 = vld [vmem:[%s518 + $0x100] sm:$0xff]
    %v552 = vld [vmem:[%s518 + $0x108] sm:$0xff]
    %v553 = vld [vmem:[%s518 + $0x110] sm:$0xff]
    %v554 = vld [vmem:[%s518 + $0x118] sm:$0xff]
    %v555 = vld [vmem:[%s518 + $0x120] sm:$0xff]
    %v556 = vld [vmem:[%s518 + $0x128] sm:$0xff]
    %v557 = vld [vmem:[%s518 + $0x130] sm:$0xff]
    %v558 = vld [vmem:[%s518 + $0x138] sm:$0xff]
    %v559 = vld [vmem:[%s518 + $0x140] sm:$0xff]
    %v560 = vld [vmem:[%s518 + $0x148] sm:$0xff]
    %v561 = vld [vmem:[%s518 + $0x150] sm:$0xff]
    %v562 = vld [vmem:[%s518 + $0x158] sm:$0xff]
    %v563 = vld [vmem:[%s518 + $0x160] sm:$0xff]
    %v564 = vld [vmem:[%s518 + $0x168] sm:$0xff]
    %v565 = vld [vmem:[%s518 + $0x170] sm:$0xff]
    %v566 = vld [vmem:[%s518 + $0x178] sm:$0xff]
    %s567 = scalar_lea.vmem [#allocation6], 384
    %v568 = vld [vmem:[%s567] sm:$0xff]
    %v569 = vld [vmem:[%s567 + $0x8] sm:$0xff]
    %v570 = vld [vmem:[%s567 + $0x10] sm:$0xff]
    %v571 = vld [vmem:[%s567 + $0x18] sm:$0xff]
    %v572 = vld [vmem:[%s567 + $0x20] sm:$0xff]
    %v573 = vld [vmem:[%s567 + $0x28] sm:$0xff]
    %v574 = vld [vmem:[%s567 + $0x30] sm:$0xff]
    %v575 = vld [vmem:[%s567 + $0x38] sm:$0xff]
    %v576 = vld [vmem:[%s567 + $0x40] sm:$0xff]
    %v577 = vld [vmem:[%s567 + $0x48] sm:$0xff]
    %v578 = vld [vmem:[%s567 + $0x50] sm:$0xff]
    %v579 = vld [vmem:[%s567 + $0x58] sm:$0xff]
    %v580 = vld [vmem:[%s567 + $0x60] sm:$0xff]
    %v581 = vld [vmem:[%s567 + $0x68] sm:$0xff]
    %v582 = vld [vmem:[%s567 + $0x70] sm:$0xff]
    %v583 = vld [vmem:[%s567 + $0x78] sm:$0xff]
    %v584 = vld [vmem:[%s567 + $0x80] sm:$0xff]
    %v585 = vld [vmem:[%s567 + $0x88] sm:$0xff]
    %v586 = vld [vmem:[%s567 + $0x90] sm:$0xff]
    %v587 = vld [vmem:[%s567 + $0x98] sm:$0xff]
    %v588 = vld [vmem:[%s567 + $0xa0] sm:$0xff]
    %v589 = vld [vmem:[%s567 + $0xa8] sm:$0xff]
    %v590 = vld [vmem:[%s567 + $0xb0] sm:$0xff]
    %v591 = vld [vmem:[%s567 + $0xb8] sm:$0xff]
    %v592 = vld [vmem:[%s567 + $0xc0] sm:$0xff]
    %v593 = vld [vmem:[%s567 + $0xc8] sm:$0xff]
    %v594 = vld [vmem:[%s567 + $0xd0] sm:$0xff]
    %v595 = vld [vmem:[%s567 + $0xd8] sm:$0xff]
    %v596 = vld [vmem:[%s567 + $0xe0] sm:$0xff]
    %v597 = vld [vmem:[%s567 + $0xe8] sm:$0xff]
    %v598 = vld [vmem:[%s567 + $0xf0] sm:$0xff]
    %v599 = vld [vmem:[%s567 + $0xf8] sm:$0xff]
    %v600 = vld [vmem:[%s567 + $0x100] sm:$0xff]
    %v601 = vld [vmem:[%s567 + $0x108] sm:$0xff]
    %v602 = vld [vmem:[%s567 + $0x110] sm:$0xff]
    %v603 = vld [vmem:[%s567 + $0x118] sm:$0xff]
    %v604 = vld [vmem:[%s567 + $0x120] sm:$0xff]
    %v605 = vld [vmem:[%s567 + $0x128] sm:$0xff]
    %v606 = vld [vmem:[%s567 + $0x130] sm:$0xff]
    %v607 = vld [vmem:[%s567 + $0x138] sm:$0xff]
    %v608 = vld [vmem:[%s567 + $0x140] sm:$0xff]
    %v609 = vld [vmem:[%s567 + $0x148] sm:$0xff]
    %v610 = vld [vmem:[%s567 + $0x150] sm:$0xff]
    %v611 = vld [vmem:[%s567 + $0x158] sm:$0xff]
    %v612 = vld [vmem:[%s567 + $0x160] sm:$0xff]
    %v613 = vld [vmem:[%s567 + $0x168] sm:$0xff]
    %v614 = vld [vmem:[%s567 + $0x170] sm:$0xff]
    %v615 = vld [vmem:[%s567 + $0x178] sm:$0xff]
    %s616 = scalar_lea.vmem [#allocation9], 3
    %v617 = vld [vmem:[%s616] sm:$0x7]
    %v619 = vlaneseq
    %v620 = vshrl.u32 %v619, 7
    %v621 = vsub.s32 0, %v620
    %v622 = vrot.slane %v617, %v621
    %v623 = vlaneseq
    %v624 = vshrl.u32 %v623, 7
    %v625 = vsub.s32 1, %v624
    %v626 = vrot.slane %v617, %v625
    %v627 = vlaneseq
    %v628 = vshrl.u32 %v627, 7
    %v629 = vsub.s32 2, %v628
    %v630 = vrot.slane %v617, %v629
    %v634 = vld [vmem:[%s4] sm:$0x1]
    %v636 = vlaneseq
    %v637 = vshrl.u32 %v636, 7
    %v638 = vsub.s32 0, %v637
    %v639 = vrot.slane %v634, %v638
    %s641 = scalar_lea.vmem %s4, 1
    %v642 = vld [vmem:[%s641] sm:$0x1]
    %v644 = vlaneseq
    %v645 = vshrl.u32 %v644, 7
    %v646 = vsub.s32 0, %v645
    %v647 = vrot.slane %v642, %v646
    %v649 = vld [vmem:[#allocation11] sm:$0xff]
    %v650 = vld [vmem:[#allocation11 + $0x8] sm:$0xff]
    %v651 = vld [vmem:[#allocation11 + $0x10] sm:$0xff]
    %v652 = vld [vmem:[#allocation11 + $0x18] sm:$0xff]
    %v653 = vld [vmem:[#allocation11 + $0x20] sm:$0xff]
    %v654 = vld [vmem:[#allocation11 + $0x28] sm:$0xff]
    %v655 = vld [vmem:[#allocation11 + $0x30] sm:$0xff]
    %v656 = vld [vmem:[#allocation11 + $0x38] sm:$0xff]
    %v657 = vld [vmem:[#allocation11 + $0x40] sm:$0xff]
    %v658 = vld [vmem:[#allocation11 + $0x48] sm:$0xff]
    %v659 = vld [vmem:[#allocation11 + $0x50] sm:$0xff]
    %v660 = vld [vmem:[#allocation11 + $0x58] sm:$0xff]
    %v661 = vld [vmem:[#allocation11 + $0x60] sm:$0xff]
    %v662 = vld [vmem:[#allocation11 + $0x68] sm:$0xff]
    %v663 = vld [vmem:[#allocation11 + $0x70] sm:$0xff]
    %v664 = vld [vmem:[#allocation11 + $0x78] sm:$0xff]
    %v665 = vld [vmem:[%s6] sm:$0x1]
    %v667 = vlaneseq
    %v668 = vshrl.u32 %v667, 7
    %v669 = vsub.s32 0, %v668
    %v670 = vrot.slane %v665, %v669
    %v672 = vld [vmem:[#allocation2] sm:$0xff]
    %v673 = vld [vmem:[#allocation2 + $0x8] sm:$0xff]
    %v674 = vld [vmem:[#allocation2 + $0x10] sm:$0xff]
    %675 = vmatprep.subr.mxu0 %v516
    %676 = vmatpush1.msra.mxu0 %v515
    %677 = vmatprep.subr.mxu0 %v513
    %678 = vmatpush1.msra.mxu0 %v512
    %679 = vmatprep.subr.mxu0 %v510
    %680 = vmatpush1.msra.mxu0 %v509
    %681 = vmatprep.subr.mxu0 %v507
    %682 = vmatpush1.msra.mxu0 %v506
    %683 = vmatprep.subr.mxu0 %v504
    %684 = vmatpush1.msra.mxu0 %v503
    %685 = vmatprep.subr.mxu0 %v501
    %686 = vmatpush1.msra.mxu0 %v500
    %687 = vmatprep.subr.mxu0 %v498
    %688 = vmatpush1.msra.mxu0 %v497
    %689 = vmatprep.subr.mxu0 %v495
    %690 = vmatpush1.msra.mxu0 %v494
    %691 = vmatprep.subr.mxu0 %v492
    %692 = vmatpush1.msra.mxu0 %v491
    %693 = vmatprep.subr.mxu0 %v489
    %694 = vmatpush1.msra.mxu0 %v488
    %695 = vmatprep.subr.mxu0 %v486
    %696 = vmatpush1.msra.mxu0 %v485
    %697 = vmatprep.subr.mxu0 %v483
    %698 = vmatpush1.msra.mxu0 %v482
    %699 = vmatprep.subr.mxu0 %v480
    %700 = vmatpush1.msra.mxu0 %v479
    %701 = vmatprep.subr.mxu0 %v477
    %702 = vmatpush1.msra.mxu0 %v476
    %703 = vmatprep.subr.mxu0 %v474
    %704 = vmatpush1.msra.mxu0 %v473
    %705 = vmatprep.subr.mxu0 %v471
    %706 = vmatpush1.msra.mxu0 %v470
    %707 = vmatprep.subr.mxu0 0.0
    %708 = vmatpush2.msra.mxu0 0.0
    %709 = vmatprep.subr.mxu0 0.0
    %710 = vmatpush2.msra.mxu0 0.0
    %711 = vmatprep.subr.mxu0 0.0
    %712 = vmatpush2.msra.mxu0 0.0
    %713 = vmatprep.subr.mxu0 0.0
    %714 = vmatpush2.msra.mxu0 0.0
    %715 = vmatprep.subr.mxu0 0.0
    %716 = vmatpush2.msra.mxu0 0.0
    %717 = vmatprep.subr.mxu0 0.0
    %718 = vmatpush2.msra.mxu0 0.0
    %719 = vmatprep.subr.mxu0 0.0
    %720 = vmatpush2.msra.mxu0 0.0
    %721 = vmatprep.subr.mxu0 0.0
    %722 = vmatpush2.msra.mxu0 0.0
    %723 = vmatprep.subr.mxu0 0.0
    %724 = vmatpush2.msra.mxu0 0.0
    %725 = vmatprep.subr.mxu0 0.0
    %726 = vmatpush2.msra.mxu0 0.0
    %727 = vmatprep.subr.mxu0 0.0
    %728 = vmatpush2.msra.mxu0 0.0
    %729 = vmatprep.subr.mxu0 0.0
    %730 = vmatpush2.msra.mxu0 0.0
    %731 = vmatprep.subr.mxu0 0.0
    %732 = vmatpush2.msra.mxu0 0.0
    %733 = vmatprep.subr.mxu0 0.0
    %734 = vmatpush2.msra.mxu0 0.0
    %735 = vmatprep.subr.mxu0 0.0
    %736 = vmatpush2.msra.mxu0 0.0
    %737 = vmatprep.subr.mxu0 0.0
    %738 = vmatpush2.msra.mxu0 0.0
    %739 = vmatprep.mubr.f32.mxu0 0.0
    %740 = vmatmul.mubr.f32.gmra.mxu0 0.0
    %v741 = vpop.f32.mrf.mxu0
    %v742 = vadd.f32 0.0, %v741
    %v743 = vpop.f32.mrf.mxu0
    %v744 = vadd.f32 0.0, %v743
    %745 = vdwg.mxu0
    %746 = vmatprep.subr.mxu0 0.0
    %747 = vmatpush1.msra.mxu0 %v517
    %748 = vmatprep.subr.mxu0 0.0
    %749 = vmatpush1.msra.mxu0 %v514
    %750 = vmatprep.subr.mxu0 0.0
    %751 = vmatpush1.msra.mxu0 %v511
    %752 = vmatprep.subr.mxu0 0.0
    %753 = vmatpush1.msra.mxu0 %v508
    %754 = vmatprep.subr.mxu0 0.0
    %755 = vmatpush1.msra.mxu0 %v505
    %756 = vmatprep.subr.mxu0 0.0
    %757 = vmatpush1.msra.mxu0 %v502
    %758 = vmatprep.subr.mxu0 0.0
    %759 = vmatpush1.msra.mxu0 %v499
    %760 = vmatprep.subr.mxu0 0.0
    %761 = vmatpush1.msra.mxu0 %v496
    %762 = vmatprep.subr.mxu0 0.0
    %763 = vmatpush1.msra.mxu0 %v493
    %764 = vmatprep.subr.mxu0 0.0
    %765 = vmatpush1.msra.mxu0 %v490
    %766 = vmatprep.subr.mxu0 0.0
    %767 = vmatpush1.msra.mxu0 %v487
    %768 = vmatprep.subr.mxu0 0.0
    %769 = vmatpush1.msra.mxu0 %v484
    %770 = vmatprep.subr.mxu0 0.0
    %771 = vmatpush1.msra.mxu0 %v481
    %772 = vmatprep.subr.mxu0 0.0
    %773 = vmatpush1.msra.mxu0 %v478
    %774 = vmatprep.subr.mxu0 0.0
    %775 = vmatpush1.msra.mxu0 %v475
    %776 = vmatprep.subr.mxu0 0.0
    %777 = vmatpush1.msra.mxu0 %v472
    %778 = vmatprep.subr.mxu0 0.0
    %779 = vmatpush2.msra.mxu0 0.0
    %780 = vmatprep.subr.mxu0 0.0
    %781 = vmatpush2.msra.mxu0 0.0
    %782 = vmatprep.subr.mxu0 0.0
    %783 = vmatpush2.msra.mxu0 0.0
    %784 = vmatprep.subr.mxu0 0.0
    %785 = vmatpush2.msra.mxu0 0.0
    %786 = vmatprep.subr.mxu0 0.0
    %787 = vmatpush2.msra.mxu0 0.0
    %788 = vmatprep.subr.mxu0 0.0
    %789 = vmatpush2.msra.mxu0 0.0
    %790 = vmatprep.subr.mxu0 0.0
    %791 = vmatpush2.msra.mxu0 0.0
    %792 = vmatprep.subr.mxu0 0.0
    %793 = vmatpush2.msra.mxu0 0.0
    %794 = vmatprep.subr.mxu0 0.0
    %795 = vmatpush2.msra.mxu0 0.0
    %796 = vmatprep.subr.mxu0 0.0
    %797 = vmatpush2.msra.mxu0 0.0
    %798 = vmatprep.subr.mxu0 0.0
    %799 = vmatpush2.msra.mxu0 0.0
    %800 = vmatprep.subr.mxu0 0.0
    %801 = vmatpush2.msra.mxu0 0.0
    %802 = vmatprep.subr.mxu0 0.0
    %803 = vmatpush2.msra.mxu0 0.0
    %804 = vmatprep.subr.mxu0 0.0
    %805 = vmatpush2.msra.mxu0 0.0
    %806 = vmatprep.subr.mxu0 0.0
    %807 = vmatpush2.msra.mxu0 0.0
    %808 = vmatprep.subr.mxu0 0.0
    %809 = vmatpush2.msra.mxu0 0.0
    %810 = vmatprep.mubr.f32.mxu0 0.0
    %811 = vmatmul.mubr.f32.gmra.mxu0 0.0
    %v812 = vpop.f32.mrf.mxu0
    %v813 = vadd.f32 0.0, %v812
    %v814 = vpop.f32.mrf.mxu0
    %815 = vdwg.mxu0
    %v816 = vadd.f32 %v672, %v742
    %v817 = vxor.u32 %v816, 2147483648
    %v818 = vmul.f32 %v817, 1.442695
    %v819 = vpow.pop %v818
    %v820 = vadd.f32 %v819, 1.0
    %v821 = vrcp.pop %v820
    %v822 = vmul.f32 1.0, %v821
    %v823 = vadd.f32 %v673, %v744
    %v824 = vxor.u32 %v823, 2147483648
    %v825 = vmul.f32 %v824, 1.442695
    %v826 = vpow.pop %v825
    %v827 = vadd.f32 %v826, 1.0
    %v828 = vrcp.pop %v827
    %v829 = vmul.f32 1.0, %v828
    %v830 = vadd.f32 %v813, %v639
    %v831 = vmul.f32 %v822, %v830
    %v832 = vadd.f32 %v674, %v831
    %v833 = vtanh.pop %v832
    %v834 = vsub.f32 1.0, %v829
    %v835 = vmul.f32 %v834, %v833
    %v836 = vmul.f32 %v829, 0.0
    %v837 = vadd.f32 %v835, %v836
    %s838 = scalar_lea.vmem [#allocation2], 24
    %v839 = vld [vmem:[%s838] sm:$0xff]
    %v840 = vld [vmem:[%s838 + $0x8] sm:$0xff]
    %v841 = vld [vmem:[%s838 + $0x10] sm:$0xff]
    %842 = vmatprep.subr.mxu0 %v516
    %843 = vmatpush1.msra.mxu0 %v515
    %844 = vmatprep.subr.mxu0 %v513
    %845 = vmatpush1.msra.mxu0 %v512
    %846 = vmatprep.subr.mxu0 %v510
    %847 = vmatpush1.msra.mxu0 %v509
    %848 = vmatprep.subr.mxu0 %v507
    %849 = vmatpush1.msra.mxu0 %v506
    %850 = vmatprep.subr.mxu0 %v504
    %851 = vmatpush1.msra.mxu0 %v503
    %852 = vmatprep.subr.mxu0 %v501
    %853 = vmatpush1.msra.mxu0 %v500
    %854 = vmatprep.subr.mxu0 %v498
    %855 = vmatpush1.msra.mxu0 %v497
    %856 = vmatprep.subr.mxu0 %v495
    %857 = vmatpush1.msra.mxu0 %v494
    %858 = vmatprep.subr.mxu0 %v492
    %859 = vmatpush1.msra.mxu0 %v491
    %860 = vmatprep.subr.mxu0 %v489
    %861 = vmatpush1.msra.mxu0 %v488
    %862 = vmatprep.subr.mxu0 %v486
    %863 = vmatpush1.msra.mxu0 %v485
    %864 = vmatprep.subr.mxu0 %v483
    %865 = vmatpush1.msra.mxu0 %v482
    %866 = vmatprep.subr.mxu0 %v480
    %867 = vmatpush1.msra.mxu0 %v479
    %868 = vmatprep.subr.mxu0 %v477
    %869 = vmatpush1.msra.mxu0 %v476
    %870 = vmatprep.subr.mxu0 %v474
    %871 = vmatpush1.msra.mxu0 %v473
    %872 = vmatprep.subr.mxu0 %v471
    %873 = vmatpush1.msra.mxu0 %v470
    %874 = vmatprep.subr.mxu0 0.0
    %875 = vmatpush2.msra.mxu0 0.0
    %876 = vmatprep.subr.mxu0 0.0
    %877 = vmatpush2.msra.mxu0 0.0
    %878 = vmatprep.subr.mxu0 0.0
    %879 = vmatpush2.msra.mxu0 0.0
    %880 = vmatprep.subr.mxu0 0.0
    %881 = vmatpush2.msra.mxu0 0.0
    %882 = vmatprep.subr.mxu0 0.0
    %883 = vmatpush2.msra.mxu0 0.0
    %884 = vmatprep.subr.mxu0 0.0
    %885 = vmatpush2.msra.mxu0 0.0
    %886 = vmatprep.subr.mxu0 0.0
    %887 = vmatpush2.msra.mxu0 0.0
    %888 = vmatprep.subr.mxu0 0.0
    %889 = vmatpush2.msra.mxu0 0.0
    %890 = vmatprep.subr.mxu0 0.0
    %891 = vmatpush2.msra.mxu0 0.0
    %892 = vmatprep.subr.mxu0 0.0
    %893 = vmatpush2.msra.mxu0 0.0
    %894 = vmatprep.subr.mxu0 0.0
    %895 = vmatpush2.msra.mxu0 0.0
    %896 = vmatprep.subr.mxu0 0.0
    %897 = vmatpush2.msra.mxu0 0.0
    %898 = vmatprep.subr.mxu0 0.0
    %899 = vmatpush2.msra.mxu0 0.0
    %900 = vmatprep.subr.mxu0 0.0
    %901 = vmatpush2.msra.mxu0 0.0
    %902 = vmatprep.subr.mxu0 0.0
    %903 = vmatpush2.msra.mxu0 0.0
    %904 = vmatprep.subr.mxu0 0.0
    %905 = vmatpush2.msra.mxu0 0.0
    %906 = vmatprep.mubr.f32.mxu0 0.0
    %907 = vmatmul.mubr.f32.gmra.mxu0 %v837
    %v908 = vpop.f32.mrf.mxu0
    %v909 = vadd.f32 0.0, %v908
    %v910 = vpop.f32.mrf.mxu0
    %v911 = vadd.f32 0.0, %v910
    %912 = vdwg.mxu0
    %913 = vmatprep.subr.mxu0 0.0
    %914 = vmatpush1.msra.mxu0 %v517
    %915 = vmatprep.subr.mxu0 0.0
    %916 = vmatpush1.msra.mxu0 %v514
    %917 = vmatprep.subr.mxu0 0.0
    %918 = vmatpush1.msra.mxu0 %v511
    %919 = vmatprep.subr.mxu0 0.0
    %920 = vmatpush1.msra.mxu0 %v508
    %921 = vmatprep.subr.mxu0 0.0
    %922 = vmatpush1.msra.mxu0 %v505
    %923 = vmatprep.subr.mxu0 0.0
    %924 = vmatpush1.msra.mxu0 %v502
    %925 = vmatprep.subr.mxu0 0.0
    %926 = vmatpush1.msra.mxu0 %v499
    %927 = vmatprep.subr.mxu0 0.0
    %928 = vmatpush1.msra.mxu0 %v496
    %929 = vmatprep.subr.mxu0 0.0
    %930 = vmatpush1.msra.mxu0 %v493
    %931 = vmatprep.subr.mxu0 0.0
    %932 = vmatpush1.msra.mxu0 %v490
    %933 = vmatprep.subr.mxu0 0.0
    %934 = vmatpush1.msra.mxu0 %v487
    %935 = vmatprep.subr.mxu0 0.0
    %936 = vmatpush1.msra.mxu0 %v484
    %937 = vmatprep.subr.mxu0 0.0
    %938 = vmatpush1.msra.mxu0 %v481
    %939 = vmatprep.subr.mxu0 0.0
    %940 = vmatpush1.msra.mxu0 %v478
    %941 = vmatprep.subr.mxu0 0.0
    %942 = vmatpush1.msra.mxu0 %v475
    %943 = vmatprep.subr.mxu0 0.0
    %944 = vmatpush1.msra.mxu0 %v472
    %945 = vmatprep.subr.mxu0 0.0
    %946 = vmatpush2.msra.mxu0 0.0
    %947 = vmatprep.subr.mxu0 0.0
    %948 = vmatpush2.msra.mxu0 0.0
    %949 = vmatprep.subr.mxu0 0.0
    %950 = vmatpush2.msra.mxu0 0.0
    %951 = vmatprep.subr.mxu0 0.0
    %952 = vmatpush2.msra.mxu0 0.0
    %953 = vmatprep.subr.mxu0 0.0
    %954 = vmatpush2.msra.mxu0 0.0
    %955 = vmatprep.subr.mxu0 0.0
    %956 = vmatpush2.msra.mxu0 0.0
    %957 = vmatprep.subr.mxu0 0.0
    %958 = vmatpush2.msra.mxu0 0.0
    %959 = vmatprep.subr.mxu0 0.0
    %960 = vmatpush2.msra.mxu0 0.0
    %961 = vmatprep.subr.mxu0 0.0
    %962 = vmatpush2.msra.mxu0 0.0
    %963 = vmatprep.subr.mxu0 0.0
    %964 = vmatpush2.msra.mxu0 0.0
    %965 = vmatprep.subr.mxu0 0.0
    %966 = vmatpush2.msra.mxu0 0.0
    %967 = vmatprep.subr.mxu0 0.0
    %968 = vmatpush2.msra.mxu0 0.0
    %969 = vmatprep.subr.mxu0 0.0
    %970 = vmatpush2.msra.mxu0 0.0
    %971 = vmatprep.subr.mxu0 0.0
    %972 = vmatpush2.msra.mxu0 0.0
    %973 = vmatprep.subr.mxu0 0.0
    %974 = vmatpush2.msra.mxu0 0.0
    %975 = vmatprep.subr.mxu0 0.0
    %976 = vmatpush2.msra.mxu0 0.0
    %977 = vmatprep.mubr.f32.mxu0 0.0
    %978 = vmatmul.mubr.f32.gmra.mxu0 %v837
    %v979 = vpop.f32.mrf.mxu0
    %v980 = vadd.f32 0.0, %v979
    %v981 = vpop.f32.mrf.mxu0
    %982 = vdwg.mxu0
    %v983 = vadd.f32 %v839, %v909
    %v984 = vxor.u32 %v983, 2147483648
    %v985 = vmul.f32 %v984, 1.442695
    %v986 = vpow.pop %v985
    %v987 = vadd.f32 %v986, 1.0
    %v988 = vrcp.pop %v987
    %v989 = vmul.f32 1.0, %v988
    %v990 = vadd.f32 %v840, %v911
    %v991 = vxor.u32 %v990, 2147483648
    %v992 = vmul.f32 %v991, 1.442695
    %v993 = vpow.pop %v992
    %v994 = vadd.f32 %v993, 1.0
    %v995 = vrcp.pop %v994
    %v996 = vmul.f32 1.0, %v995
    %v997 = vadd.f32 %v980, %v639
    %v998 = vmul.f32 %v989, %v997
    %v999 = vadd.f32 %v841, %v998
    %v1000 = vtanh.pop %v999
    %v1001 = vsub.f32 1.0, %v996
    %v1002 = vmul.f32 %v1001, %v1000
    %v1003 = vmul.f32 %v996, %v837
    %v1004 = vadd.f32 %v1002, %v1003
    %1005 = vmatprep.subr.mxu0 %v614
    %1006 = vmatpush1.msra.mxu0 %v613
    %1007 = vmatprep.subr.mxu0 %v611
    %1008 = vmatpush1.msra.mxu0 %v610
    %1009 = vmatprep.subr.mxu0 %v608
    %1010 = vmatpush1.msra.mxu0 %v607
    %1011 = vmatprep.subr.mxu0 %v605
    %1012 = vmatpush1.msra.mxu0 %v604
    %1013 = vmatprep.subr.mxu0 %v602
    %1014 = vmatpush1.msra.mxu0 %v601
    %1015 = vmatprep.subr.mxu0 %v599
    %1016 = vmatpush1.msra.mxu0 %v598
    %1017 = vmatprep.subr.mxu0 %v596
    %1018 = vmatpush1.msra.mxu0 %v595
    %1019 = vmatprep.subr.mxu0 %v593
    %1020 = vmatpush1.msra.mxu0 %v592
    %1021 = vmatprep.subr.mxu0 %v590
    %1022 = vmatpush1.msra.mxu0 %v589
    %1023 = vmatprep.subr.mxu0 %v587
    %1024 = vmatpush1.msra.mxu0 %v586
    %1025 = vmatprep.subr.mxu0 %v584
    %1026 = vmatpush1.msra.mxu0 %v583
    %1027 = vmatprep.subr.mxu0 %v581
    %1028 = vmatpush1.msra.mxu0 %v580
    %1029 = vmatprep.subr.mxu0 %v578
    %1030 = vmatpush1.msra.mxu0 %v577
    %1031 = vmatprep.subr.mxu0 %v575
    %1032 = vmatpush1.msra.mxu0 %v574
    %1033 = vmatprep.subr.mxu0 %v572
    %1034 = vmatpush1.msra.mxu0 %v571
    %1035 = vmatprep.subr.mxu0 %v569
    %1036 = vmatpush1.msra.mxu0 %v568
    %1037 = vmatprep.subr.mxu0 0.0
    %1038 = vmatpush2.msra.mxu0 0.0
    %1039 = vmatprep.subr.mxu0 0.0
    %1040 = vmatpush2.msra.mxu0 0.0
    %1041 = vmatprep.subr.mxu0 0.0
    %1042 = vmatpush2.msra.mxu0 0.0
    %1043 = vmatprep.subr.mxu0 0.0
    %1044 = vmatpush2.msra.mxu0 0.0
    %1045 = vmatprep.subr.mxu0 0.0
    %1046 = vmatpush2.msra.mxu0 0.0
    %1047 = vmatprep.subr.mxu0 0.0
    %1048 = vmatpush2.msra.mxu0 0.0
    %1049 = vmatprep.subr.mxu0 0.0
    %1050 = vmatpush2.msra.mxu0 0.0
    %1051 = vmatprep.subr.mxu0 0.0
    %1052 = vmatpush2.msra.mxu0 0.0
    %1053 = vmatprep.subr.mxu0 0.0
    %1054 = vmatpush2.msra.mxu0 0.0
    %1055 = vmatprep.subr.mxu0 0.0
    %1056 = vmatpush2.msra.mxu0 0.0
    %1057 = vmatprep.subr.mxu0 0.0
    %1058 = vmatpush2.msra.mxu0 0.0
    %1059 = vmatprep.subr.mxu0 0.0
    %1060 = vmatpush2.msra.mxu0 0.0
    %1061 = vmatprep.subr.mxu0 0.0
    %1062 = vmatpush2.msra.mxu0 0.0
    %1063 = vmatprep.subr.mxu0 0.0
    %1064 = vmatpush2.msra.mxu0 0.0
    %1065 = vmatprep.subr.mxu0 0.0
    %1066 = vmatpush2.msra.mxu0 0.0
    %1067 = vmatprep.subr.mxu0 0.0
    %1068 = vmatpush2.msra.mxu0 0.0
    %1069 = vmatprep.mubr.f32.mxu0 0.0
    %1070 = vmatmul.mubr.f32.gmra.mxu0 %v837
    %v1071 = vpop.f32.mrf.mxu0
    %v1072 = vadd.f32 %v622, %v1071
    %v1073 = vpop.f32.mrf.mxu0
    %v1074 = vadd.f32 %v626, %v1073
    %1075 = vdwg.mxu0
    %1076 = vmatprep.subr.mxu0 0.0
    %1077 = vmatpush1.msra.mxu0 %v615
    %1078 = vmatprep.subr.mxu0 0.0
    %1079 = vmatpush1.msra.mxu0 %v612
    %1080 = vmatprep.subr.mxu0 0.0
    %1081 = vmatpush1.msra.mxu0 %v609
    %1082 = vmatprep.subr.mxu0 0.0
    %1083 = vmatpush1.msra.mxu0 %v606
    %1084 = vmatprep.subr.mxu0 0.0
    %1085 = vmatpush1.msra.mxu0 %v603
    %1086 = vmatprep.subr.mxu0 0.0
    %1087 = vmatpush1.msra.mxu0 %v600
    %1088 = vmatprep.subr.mxu0 0.0
    %1089 = vmatpush1.msra.mxu0 %v597
    %1090 = vmatprep.subr.mxu0 0.0
    %1091 = vmatpush1.msra.mxu0 %v594
    %1092 = vmatprep.subr.mxu0 0.0
    %1093 = vmatpush1.msra.mxu0 %v591
    %1094 = vmatprep.subr.mxu0 0.0
    %1095 = vmatpush1.msra.mxu0 %v588
    %1096 = vmatprep.subr.mxu0 0.0
    %1097 = vmatpush1.msra.mxu0 %v585
    %1098 = vmatprep.subr.mxu0 0.0
    %1099 = vmatpush1.msra.mxu0 %v582
    %1100 = vmatprep.subr.mxu0 0.0
    %1101 = vmatpush1.msra.mxu0 %v579
    %1102 = vmatprep.subr.mxu0 0.0
    %1103 = vmatpush1.msra.mxu0 %v576
    %1104 = vmatprep.subr.mxu0 0.0
    %1105 = vmatpush1.msra.mxu0 %v573
    %1106 = vmatprep.subr.mxu0 0.0
    %1107 = vmatpush1.msra.mxu0 %v570
    %1108 = vmatprep.subr.mxu0 0.0
    %1109 = vmatpush2.msra.mxu0 0.0
    %1110 = vmatprep.subr.mxu0 0.0
    %1111 = vmatpush2.msra.mxu0 0.0
    %1112 = vmatprep.subr.mxu0 0.0
    %1113 = vmatpush2.msra.mxu0 0.0
    %1114 = vmatprep.subr.mxu0 0.0
    %1115 = vmatpush2.msra.mxu0 0.0
    %1116 = vmatprep.subr.mxu0 0.0
    %1117 = vmatpush2.msra.mxu0 0.0
    %1118 = vmatprep.subr.mxu0 0.0
    %1119 = vmatpush2.msra.mxu0 0.0
    %1120 = vmatprep.subr.mxu0 0.0
    %1121 = vmatpush2.msra.mxu0 0.0
    %1122 = vmatprep.subr.mxu0 0.0
    %1123 = vmatpush2.msra.mxu0 0.0
    %1124 = vmatprep.subr.mxu0 0.0
    %1125 = vmatpush2.msra.mxu0 0.0
    %1126 = vmatprep.subr.mxu0 0.0
    %1127 = vmatpush2.msra.mxu0 0.0
    %1128 = vmatprep.subr.mxu0 0.0
    %1129 = vmatpush2.msra.mxu0 0.0
    %1130 = vmatprep.subr.mxu0 0.0
    %1131 = vmatpush2.msra.mxu0 0.0
    %1132 = vmatprep.subr.mxu0 0.0
    %1133 = vmatpush2.msra.mxu0 0.0
    %1134 = vmatprep.subr.mxu0 0.0
    %1135 = vmatpush2.msra.mxu0 0.0
    %1136 = vmatprep.subr.mxu0 0.0
    %1137 = vmatpush2.msra.mxu0 0.0
    %1138 = vmatprep.subr.mxu0 0.0
    %1139 = vmatpush2.msra.mxu0 0.0
    %1140 = vmatprep.mubr.f32.mxu0 0.0
    %1141 = vmatmul.mubr.f32.gmra.mxu0 %v837
    %v1142 = vpop.f32.mrf.mxu0
    %v1143 = vadd.f32 %v630, %v1142
    %v1144 = vpop.f32.mrf.mxu0
    %1145 = vdwg.mxu0
    %1146 = vmatprep.subr.mxu0 %v565
    %1147 = vmatpush1.msra.mxu0 %v564
    %1148 = vmatprep.subr.mxu0 %v562
    %1149 = vmatpush1.msra.mxu0 %v561
    %1150 = vmatprep.subr.mxu0 %v559
    %1151 = vmatpush1.msra.mxu0 %v558
    %1152 = vmatprep.subr.mxu0 %v556
    %1153 = vmatpush1.msra.mxu0 %v555
    %1154 = vmatprep.subr.mxu0 %v553
    %1155 = vmatpush1.msra.mxu0 %v552
    %1156 = vmatprep.subr.mxu0 %v550
    %1157 = vmatpush1.msra.mxu0 %v549
    %1158 = vmatprep.subr.mxu0 %v547
    %1159 = vmatpush1.msra.mxu0 %v546
    %1160 = vmatprep.subr.mxu0 %v544
    %1161 = vmatpush1.msra.mxu0 %v543
    %1162 = vmatprep.subr.mxu0 %v541
    %1163 = vmatpush1.msra.mxu0 %v540
    %1164 = vmatprep.subr.mxu0 %v538
    %1165 = vmatpush1.msra.mxu0 %v537
    %1166 = vmatprep.subr.mxu0 %v535
    %1167 = vmatpush1.msra.mxu0 %v534
    %1168 = vmatprep.subr.mxu0 %v532
    %1169 = vmatpush1.msra.mxu0 %v531
    %1170 = vmatprep.subr.mxu0 %v529
    %1171 = vmatpush1.msra.mxu0 %v528
    %1172 = vmatprep.subr.mxu0 %v526
    %1173 = vmatpush1.msra.mxu0 %v525
    %1174 = vmatprep.subr.mxu0 %v523
    %1175 = vmatpush1.msra.mxu0 %v522
    %1176 = vmatprep.subr.mxu0 %v520
    %1177 = vmatpush1.msra.mxu0 %v519
    %1178 = vmatprep.subr.mxu0 0.0
    %1179 = vmatpush2.msra.mxu0 0.0
    %1180 = vmatprep.subr.mxu0 0.0
    %1181 = vmatpush2.msra.mxu0 0.0
    %1182 = vmatprep.subr.mxu0 0.0
    %1183 = vmatpush2.msra.mxu0 0.0
    %1184 = vmatprep.subr.mxu0 0.0
    %1185 = vmatpush2.msra.mxu0 0.0
    %1186 = vmatprep.subr.mxu0 0.0
    %1187 = vmatpush2.msra.mxu0 0.0
    %1188 = vmatprep.subr.mxu0 0.0
    %1189 = vmatpush2.msra.mxu0 0.0
    %1190 = vmatprep.subr.mxu0 0.0
    %1191 = vmatpush2.msra.mxu0 0.0
    %1192 = vmatprep.subr.mxu0 0.0
    %1193 = vmatpush2.msra.mxu0 0.0
    %1194 = vmatprep.subr.mxu0 0.0
    %1195 = vmatpush2.msra.mxu0 0.0
    %1196 = vmatprep.subr.mxu0 0.0
    %1197 = vmatpush2.msra.mxu0 0.0
    %1198 = vmatprep.subr.mxu0 0.0
    %1199 = vmatpush2.msra.mxu0 0.0
    %1200 = vmatprep.subr.mxu0 0.0
    %1201 = vmatpush2.msra.mxu0 0.0
    %1202 = vmatprep.subr.mxu0 0.0
    %1203 = vmatpush2.msra.mxu0 0.0
    %1204 = vmatprep.subr.mxu0 0.0
    %1205 = vmatpush2.msra.mxu0 0.0
    %1206 = vmatprep.subr.mxu0 0.0
    %1207 = vmatpush2.msra.mxu0 0.0
    %1208 = vmatprep.subr.mxu0 0.0
    %1209 = vmatpush2.msra.mxu0 0.0
    %1210 = vmatprep.mubr.f32.mxu0 0.0
    %1211 = vmatmul.mubr.f32.gmra.mxu0 0.0
    %v1212 = vpop.f32.mrf.mxu0
    %v1213 = vadd.f32 0.0, %v1212
    %v1214 = vpop.f32.mrf.mxu0
    %v1215 = vadd.f32 0.0, %v1214
    %1216 = vdwg.mxu0
    %1217 = vmatprep.subr.mxu0 0.0
    %1218 = vmatpush1.msra.mxu0 %v566
    %1219 = vmatprep.subr.mxu0 0.0
    %1220 = vmatpush1.msra.mxu0 %v563
    %1221 = vmatprep.subr.mxu0 0.0
    %1222 = vmatpush1.msra.mxu0 %v560
    %1223 = vmatprep.subr.mxu0 0.0
    %1224 = vmatpush1.msra.mxu0 %v557
    %1225 = vmatprep.subr.mxu0 0.0
    %1226 = vmatpush1.msra.mxu0 %v554
    %1227 = vmatprep.subr.mxu0 0.0
    %1228 = vmatpush1.msra.mxu0 %v551
    %1229 = vmatprep.subr.mxu0 0.0
    %1230 = vmatpush1.msra.mxu0 %v548
    %1231 = vmatprep.subr.mxu0 0.0
    %1232 = vmatpush1.msra.mxu0 %v545
    %1233 = vmatprep.subr.mxu0 0.0
    %1234 = vmatpush1.msra.mxu0 %v542
    %1235 = vmatprep.subr.mxu0 0.0
    %1236 = vmatpush1.msra.mxu0 %v539
    %1237 = vmatprep.subr.mxu0 0.0
    %1238 = vmatpush1.msra.mxu0 %v536
    %1239 = vmatprep.subr.mxu0 0.0
    %1240 = vmatpush1.msra.mxu0 %v533
    %1241 = vmatprep.subr.mxu0 0.0
    %1242 = vmatpush1.msra.mxu0 %v530
    %1243 = vmatprep.subr.mxu0 0.0
    %1244 = vmatpush1.msra.mxu0 %v527
    %1245 = vmatprep.subr.mxu0 0.0
    %1246 = vmatpush1.msra.mxu0 %v524
    %1247 = vmatprep.subr.mxu0 0.0
    %1248 = vmatpush1.msra.mxu0 %v521
    %1249 = vmatprep.subr.mxu0 0.0
    %1250 = vmatpush2.msra.mxu0 0.0
    %1251 = vmatprep.subr.mxu0 0.0
    %1252 = vmatpush2.msra.mxu0 0.0
    %1253 = vmatprep.subr.mxu0 0.0
    %1254 = vmatpush2.msra.mxu0 0.0
    %1255 = vmatprep.subr.mxu0 0.0
    %1256 = vmatpush2.msra.mxu0 0.0
    %1257 = vmatprep.subr.mxu0 0.0
    %1258 = vmatpush2.msra.mxu0 0.0
    %1259 = vmatprep.subr.mxu0 0.0
    %1260 = vmatpush2.msra.mxu0 0.0
    %1261 = vmatprep.subr.mxu0 0.0
    %1262 = vmatpush2.msra.mxu0 0.0
    %1263 = vmatprep.subr.mxu0 0.0
    %1264 = vmatpush2.msra.mxu0 0.0
    %1265 = vmatprep.subr.mxu0 0.0
    %1266 = vmatpush2.msra.mxu0 0.0
    %1267 = vmatprep.subr.mxu0 0.0
    %1268 = vmatpush2.msra.mxu0 0.0
    %1269 = vmatprep.subr.mxu0 0.0
    %1270 = vmatpush2.msra.mxu0 0.0
    %1271 = vmatprep.subr.mxu0 0.0
    %1272 = vmatpush2.msra.mxu0 0.0
    %1273 = vmatprep.subr.mxu0 0.0
    %1274 = vmatpush2.msra.mxu0 0.0
    %1275 = vmatprep.subr.mxu0 0.0
    %1276 = vmatpush2.msra.mxu0 0.0
    %1277 = vmatprep.subr.mxu0 0.0
    %1278 = vmatpush2.msra.mxu0 0.0
    %1279 = vmatprep.subr.mxu0 0.0
    %1280 = vmatpush2.msra.mxu0 0.0
    %1281 = vmatprep.mubr.f32.mxu0 0.0
    %1282 = vmatmul.mubr.f32.gmra.mxu0 0.0
    %v1283 = vpop.f32.mrf.mxu0
    %v1284 = vadd.f32 0.0, %v1283
    %v1285 = vpop.f32.mrf.mxu0
    %1286 = vdwg.mxu0
    %v1287 = vadd.f32 %v1072, %v1213
    %v1288 = vxor.u32 %v1287, 2147483648
    %v1289 = vmul.f32 %v1288, 1.442695
    %v1290 = vpow.pop %v1289
    %v1291 = vadd.f32 %v1290, 1.0
    %v1292 = vrcp.pop %v1291
    %v1293 = vmul.f32 1.0, %v1292
    %v1294 = vadd.f32 %v1074, %v1215
    %v1295 = vxor.u32 %v1294, 2147483648
    %v1296 = vmul.f32 %v1295, 1.442695
    %v1297 = vpow.pop %v1296
    %v1298 = vadd.f32 %v1297, 1.0
    %v1299 = vrcp.pop %v1298
    %v1300 = vmul.f32 1.0, %v1299
    %v1301 = vadd.f32 %v1284, %v647
    %v1302 = vmul.f32 %v1293, %v1301
    %v1303 = vadd.f32 %v1143, %v1302
    %v1304 = vtanh.pop %v1303
    %v1305 = vsub.f32 1.0, %v1300
    %v1306 = vmul.f32 %v1305, %v1304
    %v1307 = vmul.f32 %v1300, 0.0
    %v1308 = vadd.f32 %v1306, %v1307
    %s1309 = scalar_lea.vmem [#allocation2], 48
    %v1310 = vld [vmem:[%s1309] sm:$0xff]
    %v1311 = vld [vmem:[%s1309 + $0x8] sm:$0xff]
    %v1312 = vld [vmem:[%s1309 + $0x10] sm:$0xff]
    %1313 = vmatprep.subr.mxu0 %v516
    %1314 = vmatpush1.msra.mxu0 %v515
    %1315 = vmatprep.subr.mxu0 %v513
    %1316 = vmatpush1.msra.mxu0 %v512
    %1317 = vmatprep.subr.mxu0 %v510
    %1318 = vmatpush1.msra.mxu0 %v509
    %1319 = vmatprep.subr.mxu0 %v507
    %1320 = vmatpush1.msra.mxu0 %v506
    %1321 = vmatprep.subr.mxu0 %v504
    %1322 = vmatpush1.msra.mxu0 %v503
    %1323 = vmatprep.subr.mxu0 %v501
    %1324 = vmatpush1.msra.mxu0 %v500
    %1325 = vmatprep.subr.mxu0 %v498
    %1326 = vmatpush1.msra.mxu0 %v497
    %1327 = vmatprep.subr.mxu0 %v495
    %1328 = vmatpush1.msra.mxu0 %v494
    %1329 = vmatprep.subr.mxu0 %v492
    %1330 = vmatpush1.msra.mxu0 %v491
    %1331 = vmatprep.subr.mxu0 %v489
    %1332 = vmatpush1.msra.mxu0 %v488
    %1333 = vmatprep.subr.mxu0 %v486
    %1334 = vmatpush1.msra.mxu0 %v485
    %1335 = vmatprep.subr.mxu0 %v483
    %1336 = vmatpush1.msra.mxu0 %v482
    %1337 = vmatprep.subr.mxu0 %v480
    %1338 = vmatpush1.msra.mxu0 %v479
    %1339 = vmatprep.subr.mxu0 %v477
    %1340 = vmatpush1.msra.mxu0 %v476
    %1341 = vmatprep.subr.mxu0 %v474
    %1342 = vmatpush1.msra.mxu0 %v473
    %1343 = vmatprep.subr.mxu0 %v471
    %1344 = vmatpush1.msra.mxu0 %v470
    %1345 = vmatprep.subr.mxu0 0.0
    %1346 = vmatpush2.msra.mxu0 0.0
    %1347 = vmatprep.subr.mxu0 0.0
    %1348 = vmatpush2.msra.mxu0 0.0
    %1349 = vmatprep.subr.mxu0 0.0
    %1350 = vmatpush2.msra.mxu0 0.0
    %1351 = vmatprep.subr.mxu0 0.0
    %1352 = vmatpush2.msra.mxu0 0.0
    %1353 = vmatprep.subr.mxu0 0.0
    %1354 = vmatpush2.msra.mxu0 0.0
    %1355 = vmatprep.subr.mxu0 0.0
    %1356 = vmatpush2.msra.mxu0 0.0
    %1357 = vmatprep.subr.mxu0 0.0
    %1358 = vmatpush2.msra.mxu0 0.0
    %1359 = vmatprep.subr.mxu0 0.0
    %1360 = vmatpush2.msra.mxu0 0.0
    %1361 = vmatprep.subr.mxu0 0.0
    %1362 = vmatpush2.msra.mxu0 0.0
    %1363 = vmatprep.subr.mxu0 0.0
    %1364 = vmatpush2.msra.mxu0 0.0
    %1365 = vmatprep.subr.mxu0 0.0
    %1366 = vmatpush2.msra.mxu0 0.0
    %1367 = vmatprep.subr.mxu0 0.0
    %1368 = vmatpush2.msra.mxu0 0.0
    %1369 = vmatprep.subr.mxu0 0.0
    %1370 = vmatpush2.msra.mxu0 0.0
    %1371 = vmatprep.subr.mxu0 0.0
    %1372 = vmatpush2.msra.mxu0 0.0
    %1373 = vmatprep.subr.mxu0 0.0
    %1374 = vmatpush2.msra.mxu0 0.0
    %1375 = vmatprep.subr.mxu0 0.0
    %1376 = vmatpush2.msra.mxu0 0.0
    %1377 = vmatprep.mubr.f32.mxu0 0.0
    %1378 = vmatmul.mubr.f32.gmra.mxu0 %v1004
    %v1379 = vpop.f32.mrf.mxu0
    %v1380 = vadd.f32 0.0, %v1379
    %v1381 = vpop.f32.mrf.mxu0
    %v1382 = vadd.f32 0.0, %v1381
    %1383 = vdwg.mxu0
    %1384 = vmatprep.subr.mxu0 0.0
    %1385 = vmatpush1.msra.mxu0 %v517
    %1386 = vmatprep.subr.mxu0 0.0
    %1387 = vmatpush1.msra.mxu0 %v514
    %1388 = vmatprep.subr.mxu0 0.0
    %1389 = vmatpush1.msra.mxu0 %v511
    %1390 = vmatprep.subr.mxu0 0.0
    %1391 = vmatpush1.msra.mxu0 %v508
    %1392 = vmatprep.subr.mxu0 0.0
    %1393 = vmatpush1.msra.mxu0 %v505
    %1394 = vmatprep.subr.mxu0 0.0
    %1395 = vmatpush1.msra.mxu0 %v502
    %1396 = vmatprep.subr.mxu0 0.0
    %1397 = vmatpush1.msra.mxu0 %v499
    %1398 = vmatprep.subr.mxu0 0.0
    %1399 = vmatpush1.msra.mxu0 %v496
    %1400 = vmatprep.subr.mxu0 0.0
    %1401 = vmatpush1.msra.mxu0 %v493
    %1402 = vmatprep.subr.mxu0 0.0
    %1403 = vmatpush1.msra.mxu0 %v490
    %1404 = vmatprep.subr.mxu0 0.0
    %1405 = vmatpush1.msra.mxu0 %v487
    %1406 = vmatprep.subr.mxu0 0.0
    %1407 = vmatpush1.msra.mxu0 %v484
    %1408 = vmatprep.subr.mxu0 0.0
    %1409 = vmatpush1.msra.mxu0 %v481
    %1410 = vmatprep.subr.mxu0 0.0
    %1411 = vmatpush1.msra.mxu0 %v478
    %1412 = vmatprep.subr.mxu0 0.0
    %1413 = vmatpush1.msra.mxu0 %v475
    %1414 = vmatprep.subr.mxu0 0.0
    %1415 = vmatpush1.msra.mxu0 %v472
    %1416 = vmatprep.subr.mxu0 0.0
    %1417 = vmatpush2.msra.mxu0 0.0
    %1418 = vmatprep.subr.mxu0 0.0
    %1419 = vmatpush2.msra.mxu0 0.0
    %1420 = vmatprep.subr.mxu0 0.0
    %1421 = vmatpush2.msra.mxu0 0.0
    %1422 = vmatprep.subr.mxu0 0.0
    %1423 = vmatpush2.msra.mxu0 0.0
    %1424 = vmatprep.subr.mxu0 0.0
    %1425 = vmatpush2.msra.mxu0 0.0
    %1426 = vmatprep.subr.mxu0 0.0
    %1427 = vmatpush2.msra.mxu0 0.0
    %1428 = vmatprep.subr.mxu0 0.0
    %1429 = vmatpush2.msra.mxu0 0.0
    %1430 = vmatprep.subr.mxu0 0.0
    %1431 = vmatpush2.msra.mxu0 0.0
    %1432 = vmatprep.subr.mxu0 0.0
    %1433 = vmatpush2.msra.mxu0 0.0
    %1434 = vmatprep.subr.mxu0 0.0
    %1435 = vmatpush2.msra.mxu0 0.0
    %1436 = vmatprep.subr.mxu0 0.0
    %1437 = vmatpush2.msra.mxu0 0.0
    %1438 = vmatprep.subr.mxu0 0.0
    %1439 = vmatpush2.msra.mxu0 0.0
    %1440 = vmatprep.subr.mxu0 0.0
    %1441 = vmatpush2.msra.mxu0 0.0
    %1442 = vmatprep.subr.mxu0 0.0
    %1443 = vmatpush2.msra.mxu0 0.0
    %1444 = vmatprep.subr.mxu0 0.0
    %1445 = vmatpush2.msra.mxu0 0.0
    %1446 = vmatprep.subr.mxu0 0.0
    %1447 = vmatpush2.msra.mxu0 0.0
    %1448 = vmatprep.mubr.f32.mxu0 0.0
    %1449 = vmatmul.mubr.f32.gmra.mxu0 %v1004
    %v1450 = vpop.f32.mrf.mxu0
    %v1451 = vadd.f32 0.0, %v1450
    %v1452 = vpop.f32.mrf.mxu0
    %1453 = vdwg.mxu0
    %v1454 = vadd.f32 %v1310, %v1380
    %v1455 = vxor.u32 %v1454, 2147483648
    %v1456 = vmul.f32 %v1455, 1.442695
    %v1457 = vpow.pop %v1456
    %v1458 = vadd.f32 %v1457, 1.0
    %v1459 = vrcp.pop %v1458
    %v1460 = vmul.f32 1.0, %v1459
    %v1461 = vadd.f32 %v1311, %v1382
    %v1462 = vxor.u32 %v1461, 2147483648
    %v1463 = vmul.f32 %v1462, 1.442695
    %v1464 = vpow.pop %v1463
    %v1465 = vadd.f32 %v1464, 1.0
    %v1466 = vrcp.pop %v1465
    %v1467 = vmul.f32 1.0, %v1466
    %v1468 = vadd.f32 %v1451, %v639
    %v1469 = vmul.f32 %v1460, %v1468
    %v1470 = vadd.f32 %v1312, %v1469
    %v1471 = vtanh.pop %v1470
    %v1472 = vsub.f32 1.0, %v1467
    %v1473 = vmul.f32 %v1472, %v1471
    %v1474 = vmul.f32 %v1467, %v1004
    %v1475 = vadd.f32 %v1473, %v1474
    %1476 = vmatprep.subr.mxu0 %v614
    %1477 = vmatpush1.msra.mxu0 %v613
    %1478 = vmatprep.subr.mxu0 %v611
    %1479 = vmatpush1.msra.mxu0 %v610
    %1480 = vmatprep.subr.mxu0 %v608
    %1481 = vmatpush1.msra.mxu0 %v607
    %1482 = vmatprep.subr.mxu0 %v605
    %1483 = vmatpush1.msra.mxu0 %v604
    %1484 = vmatprep.subr.mxu0 %v602
    %1485 = vmatpush1.msra.mxu0 %v601
    %1486 = vmatprep.subr.mxu0 %v599
    %1487 = vmatpush1.msra.mxu0 %v598
    %1488 = vmatprep.subr.mxu0 %v596
    %1489 = vmatpush1.msra.mxu0 %v595
    %1490 = vmatprep.subr.mxu0 %v593
    %1491 = vmatpush1.msra.mxu0 %v592
    %1492 = vmatprep.subr.mxu0 %v590
    %1493 = vmatpush1.msra.mxu0 %v589
    %1494 = vmatprep.subr.mxu0 %v587
    %1495 = vmatpush1.msra.mxu0 %v586
    %1496 = vmatprep.subr.mxu0 %v584
    %1497 = vmatpush1.msra.mxu0 %v583
    %1498 = vmatprep.subr.mxu0 %v581
    %1499 = vmatpush1.msra.mxu0 %v580
    %1500 = vmatprep.subr.mxu0 %v578
    %1501 = vmatpush1.msra.mxu0 %v577
    %1502 = vmatprep.subr.mxu0 %v575
    %1503 = vmatpush1.msra.mxu0 %v574
    %1504 = vmatprep.subr.mxu0 %v572
    %1505 = vmatpush1.msra.mxu0 %v571
    %1506 = vmatprep.subr.mxu0 %v569
    %1507 = vmatpush1.msra.mxu0 %v568
    %1508 = vmatprep.subr.mxu0 0.0
    %1509 = vmatpush2.msra.mxu0 0.0
    %1510 = vmatprep.subr.mxu0 0.0
    %1511 = vmatpush2.msra.mxu0 0.0
    %1512 = vmatprep.subr.mxu0 0.0
    %1513 = vmatpush2.msra.mxu0 0.0
    %1514 = vmatprep.subr.mxu0 0.0
    %1515 = vmatpush2.msra.mxu0 0.0
    %1516 = vmatprep.subr.mxu0 0.0
    %1517 = vmatpush2.msra.mxu0 0.0
    %1518 = vmatprep.subr.mxu0 0.0
    %1519 = vmatpush2.msra.mxu0 0.0
    %1520 = vmatprep.subr.mxu0 0.0
    %1521 = vmatpush2.msra.mxu0 0.0
    %1522 = vmatprep.subr.mxu0 0.0
    %1523 = vmatpush2.msra.mxu0 0.0
    %1524 = vmatprep.subr.mxu0 0.0
    %1525 = vmatpush2.msra.mxu0 0.0
    %1526 = vmatprep.subr.mxu0 0.0
    %1527 = vmatpush2.msra.mxu0 0.0
    %1528 = vmatprep.subr.mxu0 0.0
    %1529 = vmatpush2.msra.mxu0 0.0
    %1530 = vmatprep.subr.mxu0 0.0
    %1531 = vmatpush2.msra.mxu0 0.0
    %1532 = vmatprep.subr.mxu0 0.0
    %1533 = vmatpush2.msra.mxu0 0.0
    %1534 = vmatprep.subr.mxu0 0.0
    %1535 = vmatpush2.msra.mxu0 0.0
    %1536 = vmatprep.subr.mxu0 0.0
    %1537 = vmatpush2.msra.mxu0 0.0
    %1538 = vmatprep.subr.mxu0 0.0
    %1539 = vmatpush2.msra.mxu0 0.0
    %1540 = vmatprep.mubr.f32.mxu0 0.0
    %1541 = vmatmul.mubr.f32.gmra.mxu0 %v1004
    %v1542 = vpop.f32.mrf.mxu0
    %v1543 = vadd.f32 %v622, %v1542
    %v1544 = vpop.f32.mrf.mxu0
    %v1545 = vadd.f32 %v626, %v1544
    %1546 = vdwg.mxu0
    %1547 = vmatprep.subr.mxu0 0.0
    %1548 = vmatpush1.msra.mxu0 %v615
    %1549 = vmatprep.subr.mxu0 0.0
    %1550 = vmatpush1.msra.mxu0 %v612
    %1551 = vmatprep.subr.mxu0 0.0
    %1552 = vmatpush1.msra.mxu0 %v609
    %1553 = vmatprep.subr.mxu0 0.0
    %1554 = vmatpush1.msra.mxu0 %v606
    %1555 = vmatprep.subr.mxu0 0.0
    %1556 = vmatpush1.msra.mxu0 %v603
    %1557 = vmatprep.subr.mxu0 0.0
    %1558 = vmatpush1.msra.mxu0 %v600
    %1559 = vmatprep.subr.mxu0 0.0
    %1560 = vmatpush1.msra.mxu0 %v597
    %1561 = vmatprep.subr.mxu0 0.0
    %1562 = vmatpush1.msra.mxu0 %v594
    %1563 = vmatprep.subr.mxu0 0.0
    %1564 = vmatpush1.msra.mxu0 %v591
    %1565 = vmatprep.subr.mxu0 0.0
    %1566 = vmatpush1.msra.mxu0 %v588
    %1567 = vmatprep.subr.mxu0 0.0
    %1568 = vmatpush1.msra.mxu0 %v585
    %1569 = vmatprep.subr.mxu0 0.0
    %1570 = vmatpush1.msra.mxu0 %v582
    %1571 = vmatprep.subr.mxu0 0.0
    %1572 = vmatpush1.msra.mxu0 %v579
    %1573 = vmatprep.subr.mxu0 0.0
    %1574 = vmatpush1.msra.mxu0 %v576
    %1575 = vmatprep.subr.mxu0 0.0
    %1576 = vmatpush1.msra.mxu0 %v573
    %1577 = vmatprep.subr.mxu0 0.0
    %1578 = vmatpush1.msra.mxu0 %v570
    %1579 = vmatprep.subr.mxu0 0.0
    %1580 = vmatpush2.msra.mxu0 0.0
    %1581 = vmatprep.subr.mxu0 0.0
    %1582 = vmatpush2.msra.mxu0 0.0
    %1583 = vmatprep.subr.mxu0 0.0
    %1584 = vmatpush2.msra.mxu0 0.0
    %1585 = vmatprep.subr.mxu0 0.0
    %1586 = vmatpush2.msra.mxu0 0.0
    %1587 = vmatprep.subr.mxu0 0.0
    %1588 = vmatpush2.msra.mxu0 0.0
    %1589 = vmatprep.subr.mxu0 0.0
    %1590 = vmatpush2.msra.mxu0 0.0
    %1591 = vmatprep.subr.mxu0 0.0
    %1592 = vmatpush2.msra.mxu0 0.0
    %1593 = vmatprep.subr.mxu0 0.0
    %1594 = vmatpush2.msra.mxu0 0.0
    %1595 = vmatprep.subr.mxu0 0.0
    %1596 = vmatpush2.msra.mxu0 0.0
    %1597 = vmatprep.subr.mxu0 0.0
    %1598 = vmatpush2.msra.mxu0 0.0
    %1599 = vmatprep.subr.mxu0 0.0
    %1600 = vmatpush2.msra.mxu0 0.0
    %1601 = vmatprep.subr.mxu0 0.0
    %1602 = vmatpush2.msra.mxu0 0.0
    %1603 = vmatprep.subr.mxu0 0.0
    %1604 = vmatpush2.msra.mxu0 0.0
    %1605 = vmatprep.subr.mxu0 0.0
    %1606 = vmatpush2.msra.mxu0 0.0
    %1607 = vmatprep.subr.mxu0 0.0
    %1608 = vmatpush2.msra.mxu0 0.0
    %1609 = vmatprep.subr.mxu0 0.0
    %1610 = vmatpush2.msra.mxu0 0.0
    %1611 = vmatprep.mubr.f32.mxu0 0.0
    %1612 = vmatmul.mubr.f32.gmra.mxu0 %v1004
    %v1613 = vpop.f32.mrf.mxu0
    %v1614 = vadd.f32 %v630, %v1613
    %v1615 = vpop.f32.mrf.mxu0
    %1616 = vdwg.mxu0
    %1617 = vmatprep.subr.mxu0 %v565
    %1618 = vmatpush1.msra.mxu0 %v564
    %1619 = vmatprep.subr.mxu0 %v562
    %1620 = vmatpush1.msra.mxu0 %v561
    %1621 = vmatprep.subr.mxu0 %v559
    %1622 = vmatpush1.msra.mxu0 %v558
    %1623 = vmatprep.subr.mxu0 %v556
    %1624 = vmatpush1.msra.mxu0 %v555
    %1625 = vmatprep.subr.mxu0 %v553
    %1626 = vmatpush1.msra.mxu0 %v552
    %1627 = vmatprep.subr.mxu0 %v550
    %1628 = vmatpush1.msra.mxu0 %v549
    %1629 = vmatprep.subr.mxu0 %v547
    %1630 = vmatpush1.msra.mxu0 %v546
    %1631 = vmatprep.subr.mxu0 %v544
    %1632 = vmatpush1.msra.mxu0 %v543
    %1633 = vmatprep.subr.mxu0 %v541
    %1634 = vmatpush1.msra.mxu0 %v540
    %1635 = vmatprep.subr.mxu0 %v538
    %1636 = vmatpush1.msra.mxu0 %v537
    %1637 = vmatprep.subr.mxu0 %v535
    %1638 = vmatpush1.msra.mxu0 %v534
    %1639 = vmatprep.subr.mxu0 %v532
    %1640 = vmatpush1.msra.mxu0 %v531
    %1641 = vmatprep.subr.mxu0 %v529
    %1642 = vmatpush1.msra.mxu0 %v528
    %1643 = vmatprep.subr.mxu0 %v526
    %1644 = vmatpush1.msra.mxu0 %v525
    %1645 = vmatprep.subr.mxu0 %v523
    %1646 = vmatpush1.msra.mxu0 %v522
    %1647 = vmatprep.subr.mxu0 %v520
    %1648 = vmatpush1.msra.mxu0 %v519
    %1649 = vmatprep.subr.mxu0 0.0
    %1650 = vmatpush2.msra.mxu0 0.0
    %1651 = vmatprep.subr.mxu0 0.0
    %1652 = vmatpush2.msra.mxu0 0.0
    %1653 = vmatprep.subr.mxu0 0.0
    %1654 = vmatpush2.msra.mxu0 0.0
    %1655 = vmatprep.subr.mxu0 0.0
    %1656 = vmatpush2.msra.mxu0 0.0
    %1657 = vmatprep.subr.mxu0 0.0
    %1658 = vmatpush2.msra.mxu0 0.0
    %1659 = vmatprep.subr.mxu0 0.0
    %1660 = vmatpush2.msra.mxu0 0.0
    %1661 = vmatprep.subr.mxu0 0.0
    %1662 = vmatpush2.msra.mxu0 0.0
    %1663 = vmatprep.subr.mxu0 0.0
    %1664 = vmatpush2.msra.mxu0 0.0
    %1665 = vmatprep.subr.mxu0 0.0
    %1666 = vmatpush2.msra.mxu0 0.0
    %1667 = vmatprep.subr.mxu0 0.0
    %1668 = vmatpush2.msra.mxu0 0.0
    %1669 = vmatprep.subr.mxu0 0.0
    %1670 = vmatpush2.msra.mxu0 0.0
    %1671 = vmatprep.subr.mxu0 0.0
    %1672 = vmatpush2.msra.mxu0 0.0
    %1673 = vmatprep.subr.mxu0 0.0
    %1674 = vmatpush2.msra.mxu0 0.0
    %1675 = vmatprep.subr.mxu0 0.0
    %1676 = vmatpush2.msra.mxu0 0.0
    %1677 = vmatprep.subr.mxu0 0.0
    %1678 = vmatpush2.msra.mxu0 0.0
    %1679 = vmatprep.subr.mxu0 0.0
    %1680 = vmatpush2.msra.mxu0 0.0
    %1681 = vmatprep.mubr.f32.mxu0 0.0
    %1682 = vmatmul.mubr.f32.gmra.mxu0 %v1308
    %v1683 = vpop.f32.mrf.mxu0
    %v1684 = vadd.f32 0.0, %v1683
    %v1685 = vpop.f32.mrf.mxu0
    %v1686 = vadd.f32 0.0, %v1685
    %1687 = vdwg.mxu0
    %1688 = vmatprep.subr.mxu0 0.0
    %1689 = vmatpush1.msra.mxu0 %v566
    %1690 = vmatprep.subr.mxu0 0.0
    %1691 = vmatpush1.msra.mxu0 %v563
    %1692 = vmatprep.subr.mxu0 0.0
    %1693 = vmatpush1.msra.mxu0 %v560
    %1694 = vmatprep.subr.mxu0 0.0
    %1695 = vmatpush1.msra.mxu0 %v557
    %1696 = vmatprep.subr.mxu0 0.0
    %1697 = vmatpush1.msra.mxu0 %v554
    %1698 = vmatprep.subr.mxu0 0.0
    %1699 = vmatpush1.msra.mxu0 %v551
    %1700 = vmatprep.subr.mxu0 0.0
    %1701 = vmatpush1.msra.mxu0 %v548
    %1702 = vmatprep.subr.mxu0 0.0
    %1703 = vmatpush1.msra.mxu0 %v545
    %1704 = vmatprep.subr.mxu0 0.0
    %1705 = vmatpush1.msra.mxu0 %v542
    %1706 = vmatprep.subr.mxu0 0.0
    %1707 = vmatpush1.msra.mxu0 %v539
    %1708 = vmatprep.subr.mxu0 0.0
    %1709 = vmatpush1.msra.mxu0 %v536
    %1710 = vmatprep.subr.mxu0 0.0
    %1711 = vmatpush1.msra.mxu0 %v533
    %1712 = vmatprep.subr.mxu0 0.0
    %1713 = vmatpush1.msra.mxu0 %v530
    %1714 = vmatprep.subr.mxu0 0.0
    %1715 = vmatpush1.msra.mxu0 %v527
    %1716 = vmatprep.subr.mxu0 0.0
    %1717 = vmatpush1.msra.mxu0 %v524
    %1718 = vmatprep.subr.mxu0 0.0
    %1719 = vmatpush1.msra.mxu0 %v521
    %1720 = vmatprep.subr.mxu0 0.0
    %1721 = vmatpush2.msra.mxu0 0.0
    %1722 = vmatprep.subr.mxu0 0.0
    %1723 = vmatpush2.msra.mxu0 0.0
    %1724 = vmatprep.subr.mxu0 0.0
    %1725 = vmatpush2.msra.mxu0 0.0
    %1726 = vmatprep.subr.mxu0 0.0
    %1727 = vmatpush2.msra.mxu0 0.0
    %1728 = vmatprep.subr.mxu0 0.0
    %1729 = vmatpush2.msra.mxu0 0.0
    %1730 = vmatprep.subr.mxu0 0.0
    %1731 = vmatpush2.msra.mxu0 0.0
    %1732 = vmatprep.subr.mxu0 0.0
    %1733 = vmatpush2.msra.mxu0 0.0
    %1734 = vmatprep.subr.mxu0 0.0
    %1735 = vmatpush2.msra.mxu0 0.0
    %1736 = vmatprep.subr.mxu0 0.0
    %1737 = vmatpush2.msra.mxu0 0.0
    %1738 = vmatprep.subr.mxu0 0.0
    %1739 = vmatpush2.msra.mxu0 0.0
    %1740 = vmatprep.subr.mxu0 0.0
    %1741 = vmatpush2.msra.mxu0 0.0
    %1742 = vmatprep.subr.mxu0 0.0
    %1743 = vmatpush2.msra.mxu0 0.0
    %1744 = vmatprep.subr.mxu0 0.0
    %1745 = vmatpush2.msra.mxu0 0.0
    %1746 = vmatprep.subr.mxu0 0.0
    %1747 = vmatpush2.msra.mxu0 0.0
    %1748 = vmatprep.subr.mxu0 0.0
    %1749 = vmatpush2.msra.mxu0 0.0
    %1750 = vmatprep.subr.mxu0 0.0
    %1751 = vmatpush2.msra.mxu0 0.0
    %1752 = vmatprep.mubr.f32.mxu0 0.0
    %1753 = vmatmul.mubr.f32.gmra.mxu0 %v1308
    %v1754 = vpop.f32.mrf.mxu0
    %v1755 = vadd.f32 0.0, %v1754
    %v1756 = vpop.f32.mrf.mxu0
    %1757 = vdwg.mxu0
    %v1758 = vadd.f32 %v1543, %v1684
    %v1759 = vxor.u32 %v1758, 2147483648
    %v1760 = vmul.f32 %v1759, 1.442695
    %v1761 = vpow.pop %v1760
    %v1762 = vadd.f32 %v1761, 1.0
    %v1763 = vrcp.pop %v1762
    %v1764 = vmul.f32 1.0, %v1763
    %v1765 = vadd.f32 %v1545, %v1686
    %v1766 = vxor.u32 %v1765, 2147483648
    %v1767 = vmul.f32 %v1766, 1.442695
    %v1768 = vpow.pop %v1767
    %v1769 = vadd.f32 %v1768, 1.0
    %v1770 = vrcp.pop %v1769
    %v1771 = vmul.f32 1.0, %v1770
    %v1772 = vadd.f32 %v1755, %v647
    %v1773 = vmul.f32 %v1764, %v1772
    %v1774 = vadd.f32 %v1614, %v1773
    %v1775 = vtanh.pop %v1774
    %v1776 = vsub.f32 1.0, %v1771
    %v1777 = vmul.f32 %v1776, %v1775
    %v1778 = vmul.f32 %v1771, %v1308
    %v1779 = vadd.f32 %v1777, %v1778
    %s1780 = scalar_lea.vmem [#allocation2], 72
    %v1781 = vld [vmem:[%s1780] sm:$0xff]
    %v1782 = vld [vmem:[%s1780 + $0x8] sm:$0xff]
    %v1783 = vld [vmem:[%s1780 + $0x10] sm:$0xff]
    %1784 = vmatprep.subr.mxu0 %v516
    %1785 = vmatpush1.msra.mxu0 %v515
    %1786 = vmatprep.subr.mxu0 %v513
    %1787 = vmatpush1.msra.mxu0 %v512
    %1788 = vmatprep.subr.mxu0 %v510
    %1789 = vmatpush1.msra.mxu0 %v509
    %1790 = vmatprep.subr.mxu0 %v507
    %1791 = vmatpush1.msra.mxu0 %v506
    %1792 = vmatprep.subr.mxu0 %v504
    %1793 = vmatpush1.msra.mxu0 %v503
    %1794 = vmatprep.subr.mxu0 %v501
    %1795 = vmatpush1.msra.mxu0 %v500
    %1796 = vmatprep.subr.mxu0 %v498
    %1797 = vmatpush1.msra.mxu0 %v497
    %1798 = vmatprep.subr.mxu0 %v495
    %1799 = vmatpush1.msra.mxu0 %v494
    %1800 = vmatprep.subr.mxu0 %v492
    %1801 = vmatpush1.msra.mxu0 %v491
    %1802 = vmatprep.subr.mxu0 %v489
    %1803 = vmatpush1.msra.mxu0 %v488
    %1804 = vmatprep.subr.mxu0 %v486
    %1805 = vmatpush1.msra.mxu0 %v485
    %1806 = vmatprep.subr.mxu0 %v483
    %1807 = vmatpush1.msra.mxu0 %v482
    %1808 = vmatprep.subr.mxu0 %v480
    %1809 = vmatpush1.msra.mxu0 %v479
    %1810 = vmatprep.subr.mxu0 %v477
    %1811 = vmatpush1.msra.mxu0 %v476
    %1812 = vmatprep.subr.mxu0 %v474
    %1813 = vmatpush1.msra.mxu0 %v473
    %1814 = vmatprep.subr.mxu0 %v471
    %1815 = vmatpush1.msra.mxu0 %v470
    %1816 = vmatprep.subr.mxu0 0.0
    %1817 = vmatpush2.msra.mxu0 0.0
    %1818 = vmatprep.subr.mxu0 0.0
    %1819 = vmatpush2.msra.mxu0 0.0
    %1820 = vmatprep.subr.mxu0 0.0
    %1821 = vmatpush2.msra.mxu0 0.0
    %1822 = vmatprep.subr.mxu0 0.0
    %1823 = vmatpush2.msra.mxu0 0.0
    %1824 = vmatprep.subr.mxu0 0.0
    %1825 = vmatpush2.msra.mxu0 0.0
    %1826 = vmatprep.subr.mxu0 0.0
    %1827 = vmatpush2.msra.mxu0 0.0
    %1828 = vmatprep.subr.mxu0 0.0
    %1829 = vmatpush2.msra.mxu0 0.0
    %1830 = vmatprep.subr.mxu0 0.0
    %1831 = vmatpush2.msra.mxu0 0.0
    %1832 = vmatprep.subr.mxu0 0.0
    %1833 = vmatpush2.msra.mxu0 0.0
    %1834 = vmatprep.subr.mxu0 0.0
    %1835 = vmatpush2.msra.mxu0 0.0
    %1836 = vmatprep.subr.mxu0 0.0
    %1837 = vmatpush2.msra.mxu0 0.0
    %1838 = vmatprep.subr.mxu0 0.0
    %1839 = vmatpush2.msra.mxu0 0.0
    %1840 = vmatprep.subr.mxu0 0.0
    %1841 = vmatpush2.msra.mxu0 0.0
    %1842 = vmatprep.subr.mxu0 0.0
    %1843 = vmatpush2.msra.mxu0 0.0
    %1844 = vmatprep.subr.mxu0 0.0
    %1845 = vmatpush2.msra.mxu0 0.0
    %1846 = vmatprep.subr.mxu0 0.0
    %1847 = vmatpush2.msra.mxu0 0.0
    %1848 = vmatprep.mubr.f32.mxu0 0.0
    %1849 = vmatmul.mubr.f32.gmra.mxu0 %v1475
    %v1850 = vpop.f32.mrf.mxu0
    %v1851 = vadd.f32 0.0, %v1850
    %v1852 = vpop.f32.mrf.mxu0
    %v1853 = vadd.f32 0.0, %v1852
    %1854 = vdwg.mxu0
    %1855 = vmatprep.subr.mxu0 0.0
    %1856 = vmatpush1.msra.mxu0 %v517
    %1857 = vmatprep.subr.mxu0 0.0
    %1858 = vmatpush1.msra.mxu0 %v514
    %1859 = vmatprep.subr.mxu0 0.0
    %1860 = vmatpush1.msra.mxu0 %v511
    %1861 = vmatprep.subr.mxu0 0.0
    %1862 = vmatpush1.msra.mxu0 %v508
    %1863 = vmatprep.subr.mxu0 0.0
    %1864 = vmatpush1.msra.mxu0 %v505
    %1865 = vmatprep.subr.mxu0 0.0
    %1866 = vmatpush1.msra.mxu0 %v502
    %1867 = vmatprep.subr.mxu0 0.0
    %1868 = vmatpush1.msra.mxu0 %v499
    %1869 = vmatprep.subr.mxu0 0.0
    %1870 = vmatpush1.msra.mxu0 %v496
    %1871 = vmatprep.subr.mxu0 0.0
    %1872 = vmatpush1.msra.mxu0 %v493
    %1873 = vmatprep.subr.mxu0 0.0
    %1874 = vmatpush1.msra.mxu0 %v490
    %1875 = vmatprep.subr.mxu0 0.0
    %1876 = vmatpush1.msra.mxu0 %v487
    %1877 = vmatprep.subr.mxu0 0.0
    %1878 = vmatpush1.msra.mxu0 %v484
    %1879 = vmatprep.subr.mxu0 0.0
    %1880 = vmatpush1.msra.mxu0 %v481
    %1881 = vmatprep.subr.mxu0 0.0
    %1882 = vmatpush1.msra.mxu0 %v478
    %1883 = vmatprep.subr.mxu0 0.0
    %1884 = vmatpush1.msra.mxu0 %v475
    %1885 = vmatprep.subr.mxu0 0.0
    %1886 = vmatpush1.msra.mxu0 %v472
    %1887 = vmatprep.subr.mxu0 0.0
    %1888 = vmatpush2.msra.mxu0 0.0
    %1889 = vmatprep.subr.mxu0 0.0
    %1890 = vmatpush2.msra.mxu0 0.0
    %1891 = vmatprep.subr.mxu0 0.0
    %1892 = vmatpush2.msra.mxu0 0.0
    %1893 = vmatprep.subr.mxu0 0.0
    %1894 = vmatpush2.msra.mxu0 0.0
    %1895 = vmatprep.subr.mxu0 0.0
    %1896 = vmatpush2.msra.mxu0 0.0
    %1897 = vmatprep.subr.mxu0 0.0
    %1898 = vmatpush2.msra.mxu0 0.0
    %1899 = vmatprep.subr.mxu0 0.0
    %1900 = vmatpush2.msra.mxu0 0.0
    %1901 = vmatprep.subr.mxu0 0.0
    %1902 = vmatpush2.msra.mxu0 0.0
    %1903 = vmatprep.subr.mxu0 0.0
    %1904 = vmatpush2.msra.mxu0 0.0
    %1905 = vmatprep.subr.mxu0 0.0
    %1906 = vmatpush2.msra.mxu0 0.0
    %1907 = vmatprep.subr.mxu0 0.0
    %1908 = vmatpush2.msra.mxu0 0.0
    %1909 = vmatprep.subr.mxu0 0.0
    %1910 = vmatpush2.msra.mxu0 0.0
    %1911 = vmatprep.subr.mxu0 0.0
    %1912 = vmatpush2.msra.mxu0 0.0
    %1913 = vmatprep.subr.mxu0 0.0
    %1914 = vmatpush2.msra.mxu0 0.0
    %1915 = vmatprep.subr.mxu0 0.0
    %1916 = vmatpush2.msra.mxu0 0.0
    %1917 = vmatprep.subr.mxu0 0.0
    %1918 = vmatpush2.msra.mxu0 0.0
    %1919 = vmatprep.mubr.f32.mxu0 0.0
    %1920 = vmatmul.mubr.f32.gmra.mxu0 %v1475
    %v1921 = vpop.f32.mrf.mxu0
    %v1922 = vadd.f32 0.0, %v1921
    %v1923 = vpop.f32.mrf.mxu0
    %1924 = vdwg.mxu0
    %v1925 = vadd.f32 %v1781, %v1851
    %v1926 = vxor.u32 %v1925, 2147483648
    %v1927 = vmul.f32 %v1926, 1.442695
    %v1928 = vpow.pop %v1927
    %v1929 = vadd.f32 %v1928, 1.0
    %v1930 = vrcp.pop %v1929
    %v1931 = vmul.f32 1.0, %v1930
    %v1932 = vadd.f32 %v1782, %v1853
    %v1933 = vxor.u32 %v1932, 2147483648
    %v1934 = vmul.f32 %v1933, 1.442695
    %v1935 = vpow.pop %v1934
    %v1936 = vadd.f32 %v1935, 1.0
    %v1937 = vrcp.pop %v1936
    %v1938 = vmul.f32 1.0, %v1937
    %v1939 = vadd.f32 %v1922, %v639
    %v1940 = vmul.f32 %v1931, %v1939
    %v1941 = vadd.f32 %v1783, %v1940
    %v1942 = vtanh.pop %v1941
    %v1943 = vsub.f32 1.0, %v1938
    %v1944 = vmul.f32 %v1943, %v1942
    %v1945 = vmul.f32 %v1938, %v1475
    %v1946 = vadd.f32 %v1944, %v1945
    %1947 = vmatprep.subr.mxu0 %v614
    %1948 = vmatpush1.msra.mxu0 %v613
    %1949 = vmatprep.subr.mxu0 %v611
    %1950 = vmatpush1.msra.mxu0 %v610
    %1951 = vmatprep.subr.mxu0 %v608
    %1952 = vmatpush1.msra.mxu0 %v607
    %1953 = vmatprep.subr.mxu0 %v605
    %1954 = vmatpush1.msra.mxu0 %v604
    %1955 = vmatprep.subr.mxu0 %v602
    %1956 = vmatpush1.msra.mxu0 %v601
    %1957 = vmatprep.subr.mxu0 %v599
    %1958 = vmatpush1.msra.mxu0 %v598
    %1959 = vmatprep.subr.mxu0 %v596
    %1960 = vmatpush1.msra.mxu0 %v595
    %1961 = vmatprep.subr.mxu0 %v593
    %1962 = vmatpush1.msra.mxu0 %v592
    %1963 = vmatprep.subr.mxu0 %v590
    %1964 = vmatpush1.msra.mxu0 %v589
    %1965 = vmatprep.subr.mxu0 %v587
    %1966 = vmatpush1.msra.mxu0 %v586
    %1967 = vmatprep.subr.mxu0 %v584
    %1968 = vmatpush1.msra.mxu0 %v583
    %1969 = vmatprep.subr.mxu0 %v581
    %1970 = vmatpush1.msra.mxu0 %v580
    %1971 = vmatprep.subr.mxu0 %v578
    %1972 = vmatpush1.msra.mxu0 %v577
    %1973 = vmatprep.subr.mxu0 %v575
    %1974 = vmatpush1.msra.mxu0 %v574
    %1975 = vmatprep.subr.mxu0 %v572
    %1976 = vmatpush1.msra.mxu0 %v571
    %1977 = vmatprep.subr.mxu0 %v569
    %1978 = vmatpush1.msra.mxu0 %v568
    %1979 = vmatprep.subr.mxu0 0.0
    %1980 = vmatpush2.msra.mxu0 0.0
    %1981 = vmatprep.subr.mxu0 0.0
    %1982 = vmatpush2.msra.mxu0 0.0
    %1983 = vmatprep.subr.mxu0 0.0
    %1984 = vmatpush2.msra.mxu0 0.0
    %1985 = vmatprep.subr.mxu0 0.0
    %1986 = vmatpush2.msra.mxu0 0.0
    %1987 = vmatprep.subr.mxu0 0.0
    %1988 = vmatpush2.msra.mxu0 0.0
    %1989 = vmatprep.subr.mxu0 0.0
    %1990 = vmatpush2.msra.mxu0 0.0
    %1991 = vmatprep.subr.mxu0 0.0
    %1992 = vmatpush2.msra.mxu0 0.0
    %1993 = vmatprep.subr.mxu0 0.0
    %1994 = vmatpush2.msra.mxu0 0.0
    %1995 = vmatprep.subr.mxu0 0.0
    %1996 = vmatpush2.msra.mxu0 0.0
    %1997 = vmatprep.subr.mxu0 0.0
    %1998 = vmatpush2.msra.mxu0 0.0
    %1999 = vmatprep.subr.mxu0 0.0
    %2000 = vmatpush2.msra.mxu0 0.0
    %2001 = vmatprep.subr.mxu0 0.0
    %2002 = vmatpush2.msra.mxu0 0.0
    %2003 = vmatprep.subr.mxu0 0.0
    %2004 = vmatpush2.msra.mxu0 0.0
    %2005 = vmatprep.subr.mxu0 0.0
    %2006 = vmatpush2.msra.mxu0 0.0
    %2007 = vmatprep.subr.mxu0 0.0
    %2008 = vmatpush2.msra.mxu0 0.0
    %2009 = vmatprep.subr.mxu0 0.0
    %2010 = vmatpush2.msra.mxu0 0.0
    %2011 = vmatprep.mubr.f32.mxu0 0.0
    %2012 = vmatmul.mubr.f32.gmra.mxu0 %v1475
    %v2013 = vpop.f32.mrf.mxu0
    %v2014 = vadd.f32 %v622, %v2013
    %v2015 = vpop.f32.mrf.mxu0
    %v2016 = vadd.f32 %v626, %v2015
    %2017 = vdwg.mxu0
    %2018 = vmatprep.subr.mxu0 0.0
    %2019 = vmatpush1.msra.mxu0 %v615
    %2020 = vmatprep.subr.mxu0 0.0
    %2021 = vmatpush1.msra.mxu0 %v612
    %2022 = vmatprep.subr.mxu0 0.0
    %2023 = vmatpush1.msra.mxu0 %v609
    %2024 = vmatprep.subr.mxu0 0.0
    %2025 = vmatpush1.msra.mxu0 %v606
    %2026 = vmatprep.subr.mxu0 0.0
    %2027 = vmatpush1.msra.mxu0 %v603
    %2028 = vmatprep.subr.mxu0 0.0
    %2029 = vmatpush1.msra.mxu0 %v600
    %2030 = vmatprep.subr.mxu0 0.0
    %2031 = vmatpush1.msra.mxu0 %v597
    %2032 = vmatprep.subr.mxu0 0.0
    %2033 = vmatpush1.msra.mxu0 %v594
    %2034 = vmatprep.subr.mxu0 0.0
    %2035 = vmatpush1.msra.mxu0 %v591
    %2036 = vmatprep.subr.mxu0 0.0
    %2037 = vmatpush1.msra.mxu0 %v588
    %2038 = vmatprep.subr.mxu0 0.0
    %2039 = vmatpush1.msra.mxu0 %v585
    %2040 = vmatprep.subr.mxu0 0.0
    %2041 = vmatpush1.msra.mxu0 %v582
    %2042 = vmatprep.subr.mxu0 0.0
    %2043 = vmatpush1.msra.mxu0 %v579
    %2044 = vmatprep.subr.mxu0 0.0
    %2045 = vmatpush1.msra.mxu0 %v576
    %2046 = vmatprep.subr.mxu0 0.0
    %2047 = vmatpush1.msra.mxu0 %v573
    %2048 = vmatprep.subr.mxu0 0.0
    %2049 = vmatpush1.msra.mxu0 %v570
    %2050 = vmatprep.subr.mxu0 0.0
    %2051 = vmatpush2.msra.mxu0 0.0
    %2052 = vmatprep.subr.mxu0 0.0
    %2053 = vmatpush2.msra.mxu0 0.0
    %2054 = vmatprep.subr.mxu0 0.0
    %2055 = vmatpush2.msra.mxu0 0.0
    %2056 = vmatprep.subr.mxu0 0.0
    %2057 = vmatpush2.msra.mxu0 0.0
    %2058 = vmatprep.subr.mxu0 0.0
    %2059 = vmatpush2.msra.mxu0 0.0
    %2060 = vmatprep.subr.mxu0 0.0
    %2061 = vmatpush2.msra.mxu0 0.0
    %2062 = vmatprep.subr.mxu0 0.0
    %2063 = vmatpush2.msra.mxu0 0.0
    %2064 = vmatprep.subr.mxu0 0.0
    %2065 = vmatpush2.msra.mxu0 0.0
    %2066 = vmatprep.subr.mxu0 0.0
    %2067 = vmatpush2.msra.mxu0 0.0
    %2068 = vmatprep.subr.mxu0 0.0
    %2069 = vmatpush2.msra.mxu0 0.0
    %2070 = vmatprep.subr.mxu0 0.0
    %2071 = vmatpush2.msra.mxu0 0.0
    %2072 = vmatprep.subr.mxu0 0.0
    %2073 = vmatpush2.msra.mxu0 0.0
    %2074 = vmatprep.subr.mxu0 0.0
    %2075 = vmatpush2.msra.mxu0 0.0
    %2076 = vmatprep.subr.mxu0 0.0
    %2077 = vmatpush2.msra.mxu0 0.0
    %2078 = vmatprep.subr.mxu0 0.0
    %2079 = vmatpush2.msra.mxu0 0.0
    %2080 = vmatprep.subr.mxu0 0.0
    %2081 = vmatpush2.msra.mxu0 0.0
    %2082 = vmatprep.mubr.f32.mxu0 0.0
    %2083 = vmatmul.mubr.f32.gmra.mxu0 %v1475
    %v2084 = vpop.f32.mrf.mxu0
    %v2085 = vadd.f32 %v630, %v2084
    %v2086 = vpop.f32.mrf.mxu0
    %2087 = vdwg.mxu0
    %2088 = vmatprep.subr.mxu0 %v565
    %2089 = vmatpush1.msra.mxu0 %v564
    %2090 = vmatprep.subr.mxu0 %v562
    %2091 = vmatpush1.msra.mxu0 %v561
    %2092 = vmatprep.subr.mxu0 %v559
    %2093 = vmatpush1.msra.mxu0 %v558
    %2094 = vmatprep.subr.mxu0 %v556
    %2095 = vmatpush1.msra.mxu0 %v555
    %2096 = vmatprep.subr.mxu0 %v553
    %2097 = vmatpush1.msra.mxu0 %v552
    %2098 = vmatprep.subr.mxu0 %v550
    %2099 = vmatpush1.msra.mxu0 %v549
    %2100 = vmatprep.subr.mxu0 %v547
    %2101 = vmatpush1.msra.mxu0 %v546
    %2102 = vmatprep.subr.mxu0 %v544
    %2103 = vmatpush1.msra.mxu0 %v543
    %2104 = vmatprep.subr.mxu0 %v541
    %2105 = vmatpush1.msra.mxu0 %v540
    %2106 = vmatprep.subr.mxu0 %v538
    %2107 = vmatpush1.msra.mxu0 %v537
    %2108 = vmatprep.subr.mxu0 %v535
    %2109 = vmatpush1.msra.mxu0 %v534
    %2110 = vmatprep.subr.mxu0 %v532
    %2111 = vmatpush1.msra.mxu0 %v531
    %2112 = vmatprep.subr.mxu0 %v529
    %2113 = vmatpush1.msra.mxu0 %v528
    %2114 = vmatprep.subr.mxu0 %v526
    %2115 = vmatpush1.msra.mxu0 %v525
    %2116 = vmatprep.subr.mxu0 %v523
    %2117 = vmatpush1.msra.mxu0 %v522
    %2118 = vmatprep.subr.mxu0 %v520
    %2119 = vmatpush1.msra.mxu0 %v519
    %2120 = vmatprep.subr.mxu0 0.0
    %2121 = vmatpush2.msra.mxu0 0.0
    %2122 = vmatprep.subr.mxu0 0.0
    %2123 = vmatpush2.msra.mxu0 0.0
    %2124 = vmatprep.subr.mxu0 0.0
    %2125 = vmatpush2.msra.mxu0 0.0
    %2126 = vmatprep.subr.mxu0 0.0
    %2127 = vmatpush2.msra.mxu0 0.0
    %2128 = vmatprep.subr.mxu0 0.0
    %2129 = vmatpush2.msra.mxu0 0.0
    %2130 = vmatprep.subr.mxu0 0.0
    %2131 = vmatpush2.msra.mxu0 0.0
    %2132 = vmatprep.subr.mxu0 0.0
    %2133 = vmatpush2.msra.mxu0 0.0
    %2134 = vmatprep.subr.mxu0 0.0
    %2135 = vmatpush2.msra.mxu0 0.0
    %2136 = vmatprep.subr.mxu0 0.0
    %2137 = vmatpush2.msra.mxu0 0.0
    %2138 = vmatprep.subr.mxu0 0.0
    %2139 = vmatpush2.msra.mxu0 0.0
    %2140 = vmatprep.subr.mxu0 0.0
    %2141 = vmatpush2.msra.mxu0 0.0
    %2142 = vmatprep.subr.mxu0 0.0
    %2143 = vmatpush2.msra.mxu0 0.0
    %2144 = vmatprep.subr.mxu0 0.0
    %2145 = vmatpush2.msra.mxu0 0.0
    %2146 = vmatprep.subr.mxu0 0.0
    %2147 = vmatpush2.msra.mxu0 0.0
    %2148 = vmatprep.subr.mxu0 0.0
    %2149 = vmatpush2.msra.mxu0 0.0
    %2150 = vmatprep.subr.mxu0 0.0
    %2151 = vmatpush2.msra.mxu0 0.0
    %2152 = vmatprep.mubr.f32.mxu0 0.0
    %2153 = vmatmul.mubr.f32.gmra.mxu0 %v1779
    %v2154 = vpop.f32.mrf.mxu0
    %v2155 = vadd.f32 0.0, %v2154
    %v2156 = vpop.f32.mrf.mxu0
    %v2157 = vadd.f32 0.0, %v2156
    %2158 = vdwg.mxu0
    %2159 = vmatprep.subr.mxu0 0.0
    %2160 = vmatpush1.msra.mxu0 %v566
    %2161 = vmatprep.subr.mxu0 0.0
    %2162 = vmatpush1.msra.mxu0 %v563
    %2163 = vmatprep.subr.mxu0 0.0
    %2164 = vmatpush1.msra.mxu0 %v560
    %2165 = vmatprep.subr.mxu0 0.0
    %2166 = vmatpush1.msra.mxu0 %v557
    %2167 = vmatprep.subr.mxu0 0.0
    %2168 = vmatpush1.msra.mxu0 %v554
    %2169 = vmatprep.subr.mxu0 0.0
    %2170 = vmatpush1.msra.mxu0 %v551
    %2171 = vmatprep.subr.mxu0 0.0
    %2172 = vmatpush1.msra.mxu0 %v548
    %2173 = vmatprep.subr.mxu0 0.0
    %2174 = vmatpush1.msra.mxu0 %v545
    %2175 = vmatprep.subr.mxu0 0.0
    %2176 = vmatpush1.msra.mxu0 %v542
    %2177 = vmatprep.subr.mxu0 0.0
    %2178 = vmatpush1.msra.mxu0 %v539
    %2179 = vmatprep.subr.mxu0 0.0
    %2180 = vmatpush1.msra.mxu0 %v536
    %2181 = vmatprep.subr.mxu0 0.0
    %2182 = vmatpush1.msra.mxu0 %v533
    %2183 = vmatprep.subr.mxu0 0.0
    %2184 = vmatpush1.msra.mxu0 %v530
    %2185 = vmatprep.subr.mxu0 0.0
    %2186 = vmatpush1.msra.mxu0 %v527
    %2187 = vmatprep.subr.mxu0 0.0
    %2188 = vmatpush1.msra.mxu0 %v524
    %2189 = vmatprep.subr.mxu0 0.0
    %2190 = vmatpush1.msra.mxu0 %v521
    %2191 = vmatprep.subr.mxu0 0.0
    %2192 = vmatpush2.msra.mxu0 0.0
    %2193 = vmatprep.subr.mxu0 0.0
    %2194 = vmatpush2.msra.mxu0 0.0
    %2195 = vmatprep.subr.mxu0 0.0
    %2196 = vmatpush2.msra.mxu0 0.0
    %2197 = vmatprep.subr.mxu0 0.0
    %2198 = vmatpush2.msra.mxu0 0.0
    %2199 = vmatprep.subr.mxu0 0.0
    %2200 = vmatpush2.msra.mxu0 0.0
    %2201 = vmatprep.subr.mxu0 0.0
    %2202 = vmatpush2.msra.mxu0 0.0
    %2203 = vmatprep.subr.mxu0 0.0
    %2204 = vmatpush2.msra.mxu0 0.0
    %2205 = vmatprep.subr.mxu0 0.0
    %2206 = vmatpush2.msra.mxu0 0.0
    %2207 = vmatprep.subr.mxu0 0.0
    %2208 = vmatpush2.msra.mxu0 0.0
    %2209 = vmatprep.subr.mxu0 0.0
    %2210 = vmatpush2.msra.mxu0 0.0
    %2211 = vmatprep.subr.mxu0 0.0
    %2212 = vmatpush2.msra.mxu0 0.0
    %2213 = vmatprep.subr.mxu0 0.0
    %2214 = vmatpush2.msra.mxu0 0.0
    %2215 = vmatprep.subr.mxu0 0.0
    %2216 = vmatpush2.msra.mxu0 0.0
    %2217 = vmatprep.subr.mxu0 0.0
    %2218 = vmatpush2.msra.mxu0 0.0
    %2219 = vmatprep.subr.mxu0 0.0
    %2220 = vmatpush2.msra.mxu0 0.0
    %2221 = vmatprep.subr.mxu0 0.0
    %2222 = vmatpush2.msra.mxu0 0.0
    %2223 = vmatprep.mubr.f32.mxu0 0.0
    %2224 = vmatmul.mubr.f32.gmra.mxu0 %v1779
    %v2225 = vpop.f32.mrf.mxu0
    %v2226 = vadd.f32 0.0, %v2225
    %v2227 = vpop.f32.mrf.mxu0
    %2228 = vdwg.mxu0
    %v2229 = vadd.f32 %v2014, %v2155
    %v2230 = vxor.u32 %v2229, 2147483648
    %v2231 = vmul.f32 %v2230, 1.442695
    %v2232 = vpow.pop %v2231
    %v2233 = vadd.f32 %v2232, 1.0
    %v2234 = vrcp.pop %v2233
    %v2235 = vmul.f32 1.0, %v2234
    %v2236 = vadd.f32 %v2016, %v2157
    %v2237 = vxor.u32 %v2236, 2147483648
    %v2238 = vmul.f32 %v2237, 1.442695
    %v2239 = vpow.pop %v2238
    %v2240 = vadd.f32 %v2239, 1.0
    %v2241 = vrcp.pop %v2240
    %v2242 = vmul.f32 1.0, %v2241
    %v2243 = vadd.f32 %v2226, %v647
    %v2244 = vmul.f32 %v2235, %v2243
    %v2245 = vadd.f32 %v2085, %v2244
    %v2246 = vtanh.pop %v2245
    %v2247 = vsub.f32 1.0, %v2242
    %v2248 = vmul.f32 %v2247, %v2246
    %v2249 = vmul.f32 %v2242, %v1779
    %v2250 = vadd.f32 %v2248, %v2249
    %s2251 = scalar_lea.vmem [#allocation2], 96
    %v2252 = vld [vmem:[%s2251] sm:$0xff]
    %v2253 = vld [vmem:[%s2251 + $0x8] sm:$0xff]
    %v2254 = vld [vmem:[%s2251 + $0x10] sm:$0xff]
    %2255 = vmatprep.subr.mxu0 %v516
    %2256 = vmatpush1.msra.mxu0 %v515
    %2257 = vmatprep.subr.mxu0 %v513
    %2258 = vmatpush1.msra.mxu0 %v512
    %2259 = vmatprep.subr.mxu0 %v510
    %2260 = vmatpush1.msra.mxu0 %v509
    %2261 = vmatprep.subr.mxu0 %v507
    %2262 = vmatpush1.msra.mxu0 %v506
    %2263 = vmatprep.subr.mxu0 %v504
    %2264 = vmatpush1.msra.mxu0 %v503
    %2265 = vmatprep.subr.mxu0 %v501
    %2266 = vmatpush1.msra.mxu0 %v500
    %2267 = vmatprep.subr.mxu0 %v498
    %2268 = vmatpush1.msra.mxu0 %v497
    %2269 = vmatprep.subr.mxu0 %v495
    %2270 = vmatpush1.msra.mxu0 %v494
    %2271 = vmatprep.subr.mxu0 %v492
    %2272 = vmatpush1.msra.mxu0 %v491
    %2273 = vmatprep.subr.mxu0 %v489
    %2274 = vmatpush1.msra.mxu0 %v488
    %2275 = vmatprep.subr.mxu0 %v486
    %2276 = vmatpush1.msra.mxu0 %v485
    %2277 = vmatprep.subr.mxu0 %v483
    %2278 = vmatpush1.msra.mxu0 %v482
    %2279 = vmatprep.subr.mxu0 %v480
    %2280 = vmatpush1.msra.mxu0 %v479
    %2281 = vmatprep.subr.mxu0 %v477
    %2282 = vmatpush1.msra.mxu0 %v476
    %2283 = vmatprep.subr.mxu0 %v474
    %2284 = vmatpush1.msra.mxu0 %v473
    %2285 = vmatprep.subr.mxu0 %v471
    %2286 = vmatpush1.msra.mxu0 %v470
    %2287 = vmatprep.subr.mxu0 0.0
    %2288 = vmatpush2.msra.mxu0 0.0
    %2289 = vmatprep.subr.mxu0 0.0
    %2290 = vmatpush2.msra.mxu0 0.0
    %2291 = vmatprep.subr.mxu0 0.0
    %2292 = vmatpush2.msra.mxu0 0.0
    %2293 = vmatprep.subr.mxu0 0.0
    %2294 = vmatpush2.msra.mxu0 0.0
    %2295 = vmatprep.subr.mxu0 0.0
    %2296 = vmatpush2.msra.mxu0 0.0
    %2297 = vmatprep.subr.mxu0 0.0
    %2298 = vmatpush2.msra.mxu0 0.0
    %2299 = vmatprep.subr.mxu0 0.0
    %2300 = vmatpush2.msra.mxu0 0.0
    %2301 = vmatprep.subr.mxu0 0.0
    %2302 = vmatpush2.msra.mxu0 0.0
    %2303 = vmatprep.subr.mxu0 0.0
    %2304 = vmatpush2.msra.mxu0 0.0
    %2305 = vmatprep.subr.mxu0 0.0
    %2306 = vmatpush2.msra.mxu0 0.0
    %2307 = vmatprep.subr.mxu0 0.0
    %2308 = vmatpush2.msra.mxu0 0.0
    %2309 = vmatprep.subr.mxu0 0.0
    %2310 = vmatpush2.msra.mxu0 0.0
    %2311 = vmatprep.subr.mxu0 0.0
    %2312 = vmatpush2.msra.mxu0 0.0
    %2313 = vmatprep.subr.mxu0 0.0
    %2314 = vmatpush2.msra.mxu0 0.0
    %2315 = vmatprep.subr.mxu0 0.0
    %2316 = vmatpush2.msra.mxu0 0.0
    %2317 = vmatprep.subr.mxu0 0.0
    %2318 = vmatpush2.msra.mxu0 0.0
    %2319 = vmatprep.mubr.f32.mxu0 0.0
    %2320 = vmatmul.mubr.f32.gmra.mxu0 %v1946
    %v2321 = vpop.f32.mrf.mxu0
    %v2322 = vadd.f32 0.0, %v2321
    %v2323 = vpop.f32.mrf.mxu0
    %v2324 = vadd.f32 0.0, %v2323
    %2325 = vdwg.mxu0
    %2326 = vmatprep.subr.mxu0 0.0
    %2327 = vmatpush1.msra.mxu0 %v517
    %2328 = vmatprep.subr.mxu0 0.0
    %2329 = vmatpush1.msra.mxu0 %v514
    %2330 = vmatprep.subr.mxu0 0.0
    %2331 = vmatpush1.msra.mxu0 %v511
    %2332 = vmatprep.subr.mxu0 0.0
    %2333 = vmatpush1.msra.mxu0 %v508
    %2334 = vmatprep.subr.mxu0 0.0
    %2335 = vmatpush1.msra.mxu0 %v505
    %2336 = vmatprep.subr.mxu0 0.0
    %2337 = vmatpush1.msra.mxu0 %v502
    %2338 = vmatprep.subr.mxu0 0.0
    %2339 = vmatpush1.msra.mxu0 %v499
    %2340 = vmatprep.subr.mxu0 0.0
    %2341 = vmatpush1.msra.mxu0 %v496
    %2342 = vmatprep.subr.mxu0 0.0
    %2343 = vmatpush1.msra.mxu0 %v493
    %2344 = vmatprep.subr.mxu0 0.0
    %2345 = vmatpush1.msra.mxu0 %v490
    %2346 = vmatprep.subr.mxu0 0.0
    %2347 = vmatpush1.msra.mxu0 %v487
    %2348 = vmatprep.subr.mxu0 0.0
    %2349 = vmatpush1.msra.mxu0 %v484
    %2350 = vmatprep.subr.mxu0 0.0
    %2351 = vmatpush1.msra.mxu0 %v481
    %2352 = vmatprep.subr.mxu0 0.0
    %2353 = vmatpush1.msra.mxu0 %v478
    %2354 = vmatprep.subr.mxu0 0.0
    %2355 = vmatpush1.msra.mxu0 %v475
    %2356 = vmatprep.subr.mxu0 0.0
    %2357 = vmatpush1.msra.mxu0 %v472
    %2358 = vmatprep.subr.mxu0 0.0
    %2359 = vmatpush2.msra.mxu0 0.0
    %2360 = vmatprep.subr.mxu0 0.0
    %2361 = vmatpush2.msra.mxu0 0.0
    %2362 = vmatprep.subr.mxu0 0.0
    %2363 = vmatpush2.msra.mxu0 0.0
    %2364 = vmatprep.subr.mxu0 0.0
    %2365 = vmatpush2.msra.mxu0 0.0
    %2366 = vmatprep.subr.mxu0 0.0
    %2367 = vmatpush2.msra.mxu0 0.0
    %2368 = vmatprep.subr.mxu0 0.0
    %2369 = vmatpush2.msra.mxu0 0.0
    %2370 = vmatprep.subr.mxu0 0.0
    %2371 = vmatpush2.msra.mxu0 0.0
    %2372 = vmatprep.subr.mxu0 0.0
    %2373 = vmatpush2.msra.mxu0 0.0
    %2374 = vmatprep.subr.mxu0 0.0
    %2375 = vmatpush2.msra.mxu0 0.0
    %2376 = vmatprep.subr.mxu0 0.0
    %2377 = vmatpush2.msra.mxu0 0.0
    %2378 = vmatprep.subr.mxu0 0.0
    %2379 = vmatpush2.msra.mxu0 0.0
    %2380 = vmatprep.subr.mxu0 0.0
    %2381 = vmatpush2.msra.mxu0 0.0
    %2382 = vmatprep.subr.mxu0 0.0
    %2383 = vmatpush2.msra.mxu0 0.0
    %2384 = vmatprep.subr.mxu0 0.0
    %2385 = vmatpush2.msra.mxu0 0.0
    %2386 = vmatprep.subr.mxu0 0.0
    %2387 = vmatpush2.msra.mxu0 0.0
    %2388 = vmatprep.subr.mxu0 0.0
    %2389 = vmatpush2.msra.mxu0 0.0
    %2390 = vmatprep.mubr.f32.mxu0 0.0
    %2391 = vmatmul.mubr.f32.gmra.mxu0 %v1946
    %v2392 = vpop.f32.mrf.mxu0
    %v2393 = vadd.f32 0.0, %v2392
    %v2394 = vpop.f32.mrf.mxu0
    %2395 = vdwg.mxu0
    %v2396 = vadd.f32 %v2252, %v2322
    %v2397 = vxor.u32 %v2396, 2147483648
    %v2398 = vmul.f32 %v2397, 1.442695
    %v2399 = vpow.pop %v2398
    %v2400 = vadd.f32 %v2399, 1.0
    %v2401 = vrcp.pop %v2400
    %v2402 = vmul.f32 1.0, %v2401
    %v2403 = vadd.f32 %v2253, %v2324
    %v2404 = vxor.u32 %v2403, 2147483648
    %v2405 = vmul.f32 %v2404, 1.442695
    %v2406 = vpow.pop %v2405
    %v2407 = vadd.f32 %v2406, 1.0
    %v2408 = vrcp.pop %v2407
    %v2409 = vmul.f32 1.0, %v2408
    %v2410 = vadd.f32 %v2393, %v639
    %v2411 = vmul.f32 %v2402, %v2410
    %v2412 = vadd.f32 %v2254, %v2411
    %v2413 = vtanh.pop %v2412
    %v2414 = vsub.f32 1.0, %v2409
    %v2415 = vmul.f32 %v2414, %v2413
    %v2416 = vmul.f32 %v2409, %v1946
    %v2417 = vadd.f32 %v2415, %v2416
    %2418 = vmatprep.subr.mxu0 %v614
    %2419 = vmatpush1.msra.mxu0 %v613
    %2420 = vmatprep.subr.mxu0 %v611
    %2421 = vmatpush1.msra.mxu0 %v610
    %2422 = vmatprep.subr.mxu0 %v608
    %2423 = vmatpush1.msra.mxu0 %v607
    %2424 = vmatprep.subr.mxu0 %v605
    %2425 = vmatpush1.msra.mxu0 %v604
    %2426 = vmatprep.subr.mxu0 %v602
    %2427 = vmatpush1.msra.mxu0 %v601
    %2428 = vmatprep.subr.mxu0 %v599
    %2429 = vmatpush1.msra.mxu0 %v598
    %2430 = vmatprep.subr.mxu0 %v596
    %2431 = vmatpush1.msra.mxu0 %v595
    %2432 = vmatprep.subr.mxu0 %v593
    %2433 = vmatpush1.msra.mxu0 %v592
    %2434 = vmatprep.subr.mxu0 %v590
    %2435 = vmatpush1.msra.mxu0 %v589
    %2436 = vmatprep.subr.mxu0 %v587
    %2437 = vmatpush1.msra.mxu0 %v586
    %2438 = vmatprep.subr.mxu0 %v584
    %2439 = vmatpush1.msra.mxu0 %v583
    %2440 = vmatprep.subr.mxu0 %v581
    %2441 = vmatpush1.msra.mxu0 %v580
    %2442 = vmatprep.subr.mxu0 %v578
    %2443 = vmatpush1.msra.mxu0 %v577
    %2444 = vmatprep.subr.mxu0 %v575
    %2445 = vmatpush1.msra.mxu0 %v574
    %2446 = vmatprep.subr.mxu0 %v572
    %2447 = vmatpush1.msra.mxu0 %v571
    %2448 = vmatprep.subr.mxu0 %v569
    %2449 = vmatpush1.msra.mxu0 %v568
    %2450 = vmatprep.subr.mxu0 0.0
    %2451 = vmatpush2.msra.mxu0 0.0
    %2452 = vmatprep.subr.mxu0 0.0
    %2453 = vmatpush2.msra.mxu0 0.0
    %2454 = vmatprep.subr.mxu0 0.0
    %2455 = vmatpush2.msra.mxu0 0.0
    %2456 = vmatprep.subr.mxu0 0.0
    %2457 = vmatpush2.msra.mxu0 0.0
    %2458 = vmatprep.subr.mxu0 0.0
    %2459 = vmatpush2.msra.mxu0 0.0
    %2460 = vmatprep.subr.mxu0 0.0
    %2461 = vmatpush2.msra.mxu0 0.0
    %2462 = vmatprep.subr.mxu0 0.0
    %2463 = vmatpush2.msra.mxu0 0.0
    %2464 = vmatprep.subr.mxu0 0.0
    %2465 = vmatpush2.msra.mxu0 0.0
    %2466 = vmatprep.subr.mxu0 0.0
    %2467 = vmatpush2.msra.mxu0 0.0
    %2468 = vmatprep.subr.mxu0 0.0
    %2469 = vmatpush2.msra.mxu0 0.0
    %2470 = vmatprep.subr.mxu0 0.0
    %2471 = vmatpush2.msra.mxu0 0.0
    %2472 = vmatprep.subr.mxu0 0.0
    %2473 = vmatpush2.msra.mxu0 0.0
    %2474 = vmatprep.subr.mxu0 0.0
    %2475 = vmatpush2.msra.mxu0 0.0
    %2476 = vmatprep.subr.mxu0 0.0
    %2477 = vmatpush2.msra.mxu0 0.0
    %2478 = vmatprep.subr.mxu0 0.0
    %2479 = vmatpush2.msra.mxu0 0.0
    %2480 = vmatprep.subr.mxu0 0.0
    %2481 = vmatpush2.msra.mxu0 0.0
    %2482 = vmatprep.mubr.f32.mxu0 0.0
    %2483 = vmatmul.mubr.f32.gmra.mxu0 %v1946
    %v2484 = vpop.f32.mrf.mxu0
    %v2485 = vadd.f32 %v622, %v2484
    %v2486 = vpop.f32.mrf.mxu0
    %v2487 = vadd.f32 %v626, %v2486
    %2488 = vdwg.mxu0
    %2489 = vmatprep.subr.mxu0 0.0
    %2490 = vmatpush1.msra.mxu0 %v615
    %2491 = vmatprep.subr.mxu0 0.0
    %2492 = vmatpush1.msra.mxu0 %v612
    %2493 = vmatprep.subr.mxu0 0.0
    %2494 = vmatpush1.msra.mxu0 %v609
    %2495 = vmatprep.subr.mxu0 0.0
    %2496 = vmatpush1.msra.mxu0 %v606
    %2497 = vmatprep.subr.mxu0 0.0
    %2498 = vmatpush1.msra.mxu0 %v603
    %2499 = vmatprep.subr.mxu0 0.0
    %2500 = vmatpush1.msra.mxu0 %v600
    %2501 = vmatprep.subr.mxu0 0.0
    %2502 = vmatpush1.msra.mxu0 %v597
    %2503 = vmatprep.subr.mxu0 0.0
    %2504 = vmatpush1.msra.mxu0 %v594
    %2505 = vmatprep.subr.mxu0 0.0
    %2506 = vmatpush1.msra.mxu0 %v591
    %2507 = vmatprep.subr.mxu0 0.0
    %2508 = vmatpush1.msra.mxu0 %v588
    %2509 = vmatprep.subr.mxu0 0.0
    %2510 = vmatpush1.msra.mxu0 %v585
    %2511 = vmatprep.subr.mxu0 0.0
    %2512 = vmatpush1.msra.mxu0 %v582
    %2513 = vmatprep.subr.mxu0 0.0
    %2514 = vmatpush1.msra.mxu0 %v579
    %2515 = vmatprep.subr.mxu0 0.0
    %2516 = vmatpush1.msra.mxu0 %v576
    %2517 = vmatprep.subr.mxu0 0.0
    %2518 = vmatpush1.msra.mxu0 %v573
    %2519 = vmatprep.subr.mxu0 0.0
    %2520 = vmatpush1.msra.mxu0 %v570
    %2521 = vmatprep.subr.mxu0 0.0
    %2522 = vmatpush2.msra.mxu0 0.0
    %2523 = vmatprep.subr.mxu0 0.0
    %2524 = vmatpush2.msra.mxu0 0.0
    %2525 = vmatprep.subr.mxu0 0.0
    %2526 = vmatpush2.msra.mxu0 0.0
    %2527 = vmatprep.subr.mxu0 0.0
    %2528 = vmatpush2.msra.mxu0 0.0
    %2529 = vmatprep.subr.mxu0 0.0
    %2530 = vmatpush2.msra.mxu0 0.0
    %2531 = vmatprep.subr.mxu0 0.0
    %2532 = vmatpush2.msra.mxu0 0.0
    %2533 = vmatprep.subr.mxu0 0.0
    %2534 = vmatpush2.msra.mxu0 0.0
    %2535 = vmatprep.subr.mxu0 0.0
    %2536 = vmatpush2.msra.mxu0 0.0
    %2537 = vmatprep.subr.mxu0 0.0
    %2538 = vmatpush2.msra.mxu0 0.0
    %2539 = vmatprep.subr.mxu0 0.0
    %2540 = vmatpush2.msra.mxu0 0.0
    %2541 = vmatprep.subr.mxu0 0.0
    %2542 = vmatpush2.msra.mxu0 0.0
    %2543 = vmatprep.subr.mxu0 0.0
    %2544 = vmatpush2.msra.mxu0 0.0
    %2545 = vmatprep.subr.mxu0 0.0
    %2546 = vmatpush2.msra.mxu0 0.0
    %2547 = vmatprep.subr.mxu0 0.0
    %2548 = vmatpush2.msra.mxu0 0.0
    %2549 = vmatprep.subr.mxu0 0.0
    %2550 = vmatpush2.msra.mxu0 0.0
    %2551 = vmatprep.subr.mxu0 0.0
    %2552 = vmatpush2.msra.mxu0 0.0
    %2553 = vmatprep.mubr.f32.mxu0 0.0
    %2554 = vmatmul.mubr.f32.gmra.mxu0 %v1946
    %v2555 = vpop.f32.mrf.mxu0
    %v2556 = vadd.f32 %v630, %v2555
    %v2557 = vpop.f32.mrf.mxu0
    %2558 = vdwg.mxu0
    %2559 = vmatprep.subr.mxu0 %v565
    %2560 = vmatpush1.msra.mxu0 %v564
    %2561 = vmatprep.subr.mxu0 %v562
    %2562 = vmatpush1.msra.mxu0 %v561
    %2563 = vmatprep.subr.mxu0 %v559
    %2564 = vmatpush1.msra.mxu0 %v558
    %2565 = vmatprep.subr.mxu0 %v556
    %2566 = vmatpush1.msra.mxu0 %v555
    %2567 = vmatprep.subr.mxu0 %v553
    %2568 = vmatpush1.msra.mxu0 %v552
    %2569 = vmatprep.subr.mxu0 %v550
    %2570 = vmatpush1.msra.mxu0 %v549
    %2571 = vmatprep.subr.mxu0 %v547
    %2572 = vmatpush1.msra.mxu0 %v546
    %2573 = vmatprep.subr.mxu0 %v544
    %2574 = vmatpush1.msra.mxu0 %v543
    %2575 = vmatprep.subr.mxu0 %v541
    %2576 = vmatpush1.msra.mxu0 %v540
    %2577 = vmatprep.subr.mxu0 %v538
    %2578 = vmatpush1.msra.mxu0 %v537
    %2579 = vmatprep.subr.mxu0 %v535
    %2580 = vmatpush1.msra.mxu0 %v534
    %2581 = vmatprep.subr.mxu0 %v532
    %2582 = vmatpush1.msra.mxu0 %v531
    %2583 = vmatprep.subr.mxu0 %v529
    %2584 = vmatpush1.msra.mxu0 %v528
    %2585 = vmatprep.subr.mxu0 %v526
    %2586 = vmatpush1.msra.mxu0 %v525
    %2587 = vmatprep.subr.mxu0 %v523
    %2588 = vmatpush1.msra.mxu0 %v522
    %2589 = vmatprep.subr.mxu0 %v520
    %2590 = vmatpush1.msra.mxu0 %v519
    %2591 = vmatprep.subr.mxu0 0.0
    %2592 = vmatpush2.msra.mxu0 0.0
    %2593 = vmatprep.subr.mxu0 0.0
    %2594 = vmatpush2.msra.mxu0 0.0
    %2595 = vmatprep.subr.mxu0 0.0
    %2596 = vmatpush2.msra.mxu0 0.0
    %2597 = vmatprep.subr.mxu0 0.0
    %2598 = vmatpush2.msra.mxu0 0.0
    %2599 = vmatprep.subr.mxu0 0.0
    %2600 = vmatpush2.msra.mxu0 0.0
    %2601 = vmatprep.subr.mxu0 0.0
    %2602 = vmatpush2.msra.mxu0 0.0
    %2603 = vmatprep.subr.mxu0 0.0
    %2604 = vmatpush2.msra.mxu0 0.0
    %2605 = vmatprep.subr.mxu0 0.0
    %2606 = vmatpush2.msra.mxu0 0.0
    %2607 = vmatprep.subr.mxu0 0.0
    %2608 = vmatpush2.msra.mxu0 0.0
    %2609 = vmatprep.subr.mxu0 0.0
    %2610 = vmatpush2.msra.mxu0 0.0
    %2611 = vmatprep.subr.mxu0 0.0
    %2612 = vmatpush2.msra.mxu0 0.0
    %2613 = vmatprep.subr.mxu0 0.0
    %2614 = vmatpush2.msra.mxu0 0.0
    %2615 = vmatprep.subr.mxu0 0.0
    %2616 = vmatpush2.msra.mxu0 0.0
    %2617 = vmatprep.subr.mxu0 0.0
    %2618 = vmatpush2.msra.mxu0 0.0
    %2619 = vmatprep.subr.mxu0 0.0
    %2620 = vmatpush2.msra.mxu0 0.0
    %2621 = vmatprep.subr.mxu0 0.0
    %2622 = vmatpush2.msra.mxu0 0.0
    %2623 = vmatprep.mubr.f32.mxu0 0.0
    %2624 = vmatmul.mubr.f32.gmra.mxu0 %v2250
    %v2625 = vpop.f32.mrf.mxu0
    %v2626 = vadd.f32 0.0, %v2625
    %v2627 = vpop.f32.mrf.mxu0
    %v2628 = vadd.f32 0.0, %v2627
    %2629 = vdwg.mxu0
    %2630 = vmatprep.subr.mxu0 0.0
    %2631 = vmatpush1.msra.mxu0 %v566
    %2632 = vmatprep.subr.mxu0 0.0
    %2633 = vmatpush1.msra.mxu0 %v563
    %2634 = vmatprep.subr.mxu0 0.0
    %2635 = vmatpush1.msra.mxu0 %v560
    %2636 = vmatprep.subr.mxu0 0.0
    %2637 = vmatpush1.msra.mxu0 %v557
    %2638 = vmatprep.subr.mxu0 0.0
    %2639 = vmatpush1.msra.mxu0 %v554
    %2640 = vmatprep.subr.mxu0 0.0
    %2641 = vmatpush1.msra.mxu0 %v551
    %2642 = vmatprep.subr.mxu0 0.0
    %2643 = vmatpush1.msra.mxu0 %v548
    %2644 = vmatprep.subr.mxu0 0.0
    %2645 = vmatpush1.msra.mxu0 %v545
    %2646 = vmatprep.subr.mxu0 0.0
    %2647 = vmatpush1.msra.mxu0 %v542
    %2648 = vmatprep.subr.mxu0 0.0
    %2649 = vmatpush1.msra.mxu0 %v539
    %2650 = vmatprep.subr.mxu0 0.0
    %2651 = vmatpush1.msra.mxu0 %v536
    %2652 = vmatprep.subr.mxu0 0.0
    %2653 = vmatpush1.msra.mxu0 %v533
    %2654 = vmatprep.subr.mxu0 0.0
    %2655 = vmatpush1.msra.mxu0 %v530
    %2656 = vmatprep.subr.mxu0 0.0
    %2657 = vmatpush1.msra.mxu0 %v527
    %2658 = vmatprep.subr.mxu0 0.0
    %2659 = vmatpush1.msra.mxu0 %v524
    %2660 = vmatprep.subr.mxu0 0.0
    %2661 = vmatpush1.msra.mxu0 %v521
    %2662 = vmatprep.subr.mxu0 0.0
    %2663 = vmatpush2.msra.mxu0 0.0
    %2664 = vmatprep.subr.mxu0 0.0
    %2665 = vmatpush2.msra.mxu0 0.0
    %2666 = vmatprep.subr.mxu0 0.0
    %2667 = vmatpush2.msra.mxu0 0.0
    %2668 = vmatprep.subr.mxu0 0.0
    %2669 = vmatpush2.msra.mxu0 0.0
    %2670 = vmatprep.subr.mxu0 0.0
    %2671 = vmatpush2.msra.mxu0 0.0
    %2672 = vmatprep.subr.mxu0 0.0
    %2673 = vmatpush2.msra.mxu0 0.0
    %2674 = vmatprep.subr.mxu0 0.0
    %2675 = vmatpush2.msra.mxu0 0.0
    %2676 = vmatprep.subr.mxu0 0.0
    %2677 = vmatpush2.msra.mxu0 0.0
    %2678 = vmatprep.subr.mxu0 0.0
    %2679 = vmatpush2.msra.mxu0 0.0
    %2680 = vmatprep.subr.mxu0 0.0
    %2681 = vmatpush2.msra.mxu0 0.0
    %2682 = vmatprep.subr.mxu0 0.0
    %2683 = vmatpush2.msra.mxu0 0.0
    %2684 = vmatprep.subr.mxu0 0.0
    %2685 = vmatpush2.msra.mxu0 0.0
    %2686 = vmatprep.subr.mxu0 0.0
    %2687 = vmatpush2.msra.mxu0 0.0
    %2688 = vmatprep.subr.mxu0 0.0
    %2689 = vmatpush2.msra.mxu0 0.0
    %2690 = vmatprep.subr.mxu0 0.0
    %2691 = vmatpush2.msra.mxu0 0.0
    %2692 = vmatprep.subr.mxu0 0.0
    %2693 = vmatpush2.msra.mxu0 0.0
    %2694 = vmatprep.mubr.f32.mxu0 0.0
    %2695 = vmatmul.mubr.f32.gmra.mxu0 %v2250
    %v2696 = vpop.f32.mrf.mxu0
    %v2697 = vadd.f32 0.0, %v2696
    %v2698 = vpop.f32.mrf.mxu0
    %2699 = vdwg.mxu0
    %v2700 = vadd.f32 %v2485, %v2626
    %v2701 = vxor.u32 %v2700, 2147483648
    %v2702 = vmul.f32 %v2701, 1.442695
    %v2703 = vpow.pop %v2702
    %v2704 = vadd.f32 %v2703, 1.0
    %v2705 = vrcp.pop %v2704
    %v2706 = vmul.f32 1.0, %v2705
    %v2707 = vadd.f32 %v2487, %v2628
    %v2708 = vxor.u32 %v2707, 2147483648
    %v2709 = vmul.f32 %v2708, 1.442695
    %v2710 = vpow.pop %v2709
    %v2711 = vadd.f32 %v2710, 1.0
    %v2712 = vrcp.pop %v2711
    %v2713 = vmul.f32 1.0, %v2712
    %v2714 = vadd.f32 %v2697, %v647
    %v2715 = vmul.f32 %v2706, %v2714
    %v2716 = vadd.f32 %v2556, %v2715
    %v2717 = vtanh.pop %v2716
    %v2718 = vsub.f32 1.0, %v2713
    %v2719 = vmul.f32 %v2718, %v2717
    %v2720 = vmul.f32 %v2713, %v2250
    %v2721 = vadd.f32 %v2719, %v2720
    %s2722 = scalar_lea.vmem [#allocation2], 120
    %v2723 = vld [vmem:[%s2722] sm:$0xff]
    %v2724 = vld [vmem:[%s2722 + $0x8] sm:$0xff]
    %v2725 = vld [vmem:[%s2722 + $0x10] sm:$0xff]
    %2726 = vmatprep.subr.mxu0 %v516
    %2727 = vmatpush1.msra.mxu0 %v515
    %2728 = vmatprep.subr.mxu0 %v513
    %2729 = vmatpush1.msra.mxu0 %v512
    %2730 = vmatprep.subr.mxu0 %v510
    %2731 = vmatpush1.msra.mxu0 %v509
    %2732 = vmatprep.subr.mxu0 %v507
    %2733 = vmatpush1.msra.mxu0 %v506
    %2734 = vmatprep.subr.mxu0 %v504
    %2735 = vmatpush1.msra.mxu0 %v503
    %2736 = vmatprep.subr.mxu0 %v501
    %2737 = vmatpush1.msra.mxu0 %v500
    %2738 = vmatprep.subr.mxu0 %v498
    %2739 = vmatpush1.msra.mxu0 %v497
    %2740 = vmatprep.subr.mxu0 %v495
    %2741 = vmatpush1.msra.mxu0 %v494
    %2742 = vmatprep.subr.mxu0 %v492
    %2743 = vmatpush1.msra.mxu0 %v491
    %2744 = vmatprep.subr.mxu0 %v489
    %2745 = vmatpush1.msra.mxu0 %v488
    %2746 = vmatprep.subr.mxu0 %v486
    %2747 = vmatpush1.msra.mxu0 %v485
    %2748 = vmatprep.subr.mxu0 %v483
    %2749 = vmatpush1.msra.mxu0 %v482
    %2750 = vmatprep.subr.mxu0 %v480
    %2751 = vmatpush1.msra.mxu0 %v479
    %2752 = vmatprep.subr.mxu0 %v477
    %2753 = vmatpush1.msra.mxu0 %v476
    %2754 = vmatprep.subr.mxu0 %v474
    %2755 = vmatpush1.msra.mxu0 %v473
    %2756 = vmatprep.subr.mxu0 %v471
    %2757 = vmatpush1.msra.mxu0 %v470
    %2758 = vmatprep.subr.mxu0 0.0
    %2759 = vmatpush2.msra.mxu0 0.0
    %2760 = vmatprep.subr.mxu0 0.0
    %2761 = vmatpush2.msra.mxu0 0.0
    %2762 = vmatprep.subr.mxu0 0.0
    %2763 = vmatpush2.msra.mxu0 0.0
    %2764 = vmatprep.subr.mxu0 0.0
    %2765 = vmatpush2.msra.mxu0 0.0
    %2766 = vmatprep.subr.mxu0 0.0
    %2767 = vmatpush2.msra.mxu0 0.0
    %2768 = vmatprep.subr.mxu0 0.0
    %2769 = vmatpush2.msra.mxu0 0.0
    %2770 = vmatprep.subr.mxu0 0.0
    %2771 = vmatpush2.msra.mxu0 0.0
    %2772 = vmatprep.subr.mxu0 0.0
    %2773 = vmatpush2.msra.mxu0 0.0
    %2774 = vmatprep.subr.mxu0 0.0
    %2775 = vmatpush2.msra.mxu0 0.0
    %2776 = vmatprep.subr.mxu0 0.0
    %2777 = vmatpush2.msra.mxu0 0.0
    %2778 = vmatprep.subr.mxu0 0.0
    %2779 = vmatpush2.msra.mxu0 0.0
    %2780 = vmatprep.subr.mxu0 0.0
    %2781 = vmatpush2.msra.mxu0 0.0
    %2782 = vmatprep.subr.mxu0 0.0
    %2783 = vmatpush2.msra.mxu0 0.0
    %2784 = vmatprep.subr.mxu0 0.0
    %2785 = vmatpush2.msra.mxu0 0.0
    %2786 = vmatprep.subr.mxu0 0.0
    %2787 = vmatpush2.msra.mxu0 0.0
    %2788 = vmatprep.subr.mxu0 0.0
    %2789 = vmatpush2.msra.mxu0 0.0
    %2790 = vmatprep.mubr.f32.mxu0 0.0
    %2791 = vmatmul.mubr.f32.gmra.mxu0 %v2417
    %v2792 = vpop.f32.mrf.mxu0
    %v2793 = vadd.f32 0.0, %v2792
    %v2794 = vpop.f32.mrf.mxu0
    %v2795 = vadd.f32 0.0, %v2794
    %2796 = vdwg.mxu0
    %2797 = vmatprep.subr.mxu0 0.0
    %2798 = vmatpush1.msra.mxu0 %v517
    %2799 = vmatprep.subr.mxu0 0.0
    %2800 = vmatpush1.msra.mxu0 %v514
    %2801 = vmatprep.subr.mxu0 0.0
    %2802 = vmatpush1.msra.mxu0 %v511
    %2803 = vmatprep.subr.mxu0 0.0
    %2804 = vmatpush1.msra.mxu0 %v508
    %2805 = vmatprep.subr.mxu0 0.0
    %2806 = vmatpush1.msra.mxu0 %v505
    %2807 = vmatprep.subr.mxu0 0.0
    %2808 = vmatpush1.msra.mxu0 %v502
    %2809 = vmatprep.subr.mxu0 0.0
    %2810 = vmatpush1.msra.mxu0 %v499
    %2811 = vmatprep.subr.mxu0 0.0
    %2812 = vmatpush1.msra.mxu0 %v496
    %2813 = vmatprep.subr.mxu0 0.0
    %2814 = vmatpush1.msra.mxu0 %v493
    %2815 = vmatprep.subr.mxu0 0.0
    %2816 = vmatpush1.msra.mxu0 %v490
    %2817 = vmatprep.subr.mxu0 0.0
    %2818 = vmatpush1.msra.mxu0 %v487
    %2819 = vmatprep.subr.mxu0 0.0
    %2820 = vmatpush1.msra.mxu0 %v484
    %2821 = vmatprep.subr.mxu0 0.0
    %2822 = vmatpush1.msra.mxu0 %v481
    %2823 = vmatprep.subr.mxu0 0.0
    %2824 = vmatpush1.msra.mxu0 %v478
    %2825 = vmatprep.subr.mxu0 0.0
    %2826 = vmatpush1.msra.mxu0 %v475
    %2827 = vmatprep.subr.mxu0 0.0
    %2828 = vmatpush1.msra.mxu0 %v472
    %2829 = vmatprep.subr.mxu0 0.0
    %2830 = vmatpush2.msra.mxu0 0.0
    %2831 = vmatprep.subr.mxu0 0.0
    %2832 = vmatpush2.msra.mxu0 0.0
    %2833 = vmatprep.subr.mxu0 0.0
    %2834 = vmatpush2.msra.mxu0 0.0
    %2835 = vmatprep.subr.mxu0 0.0
    %2836 = vmatpush2.msra.mxu0 0.0
    %2837 = vmatprep.subr.mxu0 0.0
    %2838 = vmatpush2.msra.mxu0 0.0
    %2839 = vmatprep.subr.mxu0 0.0
    %2840 = vmatpush2.msra.mxu0 0.0
    %2841 = vmatprep.subr.mxu0 0.0
    %2842 = vmatpush2.msra.mxu0 0.0
    %2843 = vmatprep.subr.mxu0 0.0
    %2844 = vmatpush2.msra.mxu0 0.0
    %2845 = vmatprep.subr.mxu0 0.0
    %2846 = vmatpush2.msra.mxu0 0.0
    %2847 = vmatprep.subr.mxu0 0.0
    %2848 = vmatpush2.msra.mxu0 0.0
    %2849 = vmatprep.subr.mxu0 0.0
    %2850 = vmatpush2.msra.mxu0 0.0
    %2851 = vmatprep.subr.mxu0 0.0
    %2852 = vmatpush2.msra.mxu0 0.0
    %2853 = vmatprep.subr.mxu0 0.0
    %2854 = vmatpush2.msra.mxu0 0.0
    %2855 = vmatprep.subr.mxu0 0.0
    %2856 = vmatpush2.msra.mxu0 0.0
    %2857 = vmatprep.subr.mxu0 0.0
    %2858 = vmatpush2.msra.mxu0 0.0
    %2859 = vmatprep.subr.mxu0 0.0
    %2860 = vmatpush2.msra.mxu0 0.0
    %2861 = vmatprep.mubr.f32.mxu0 0.0
    %2862 = vmatmul.mubr.f32.gmra.mxu0 %v2417
    %v2863 = vpop.f32.mrf.mxu0
    %v2864 = vadd.f32 0.0, %v2863
    %v2865 = vpop.f32.mrf.mxu0
    %2866 = vdwg.mxu0
    %v2867 = vadd.f32 %v2723, %v2793
    %v2868 = vxor.u32 %v2867, 2147483648
    %v2869 = vmul.f32 %v2868, 1.442695
    %v2870 = vpow.pop %v2869
    %v2871 = vadd.f32 %v2870, 1.0
    %v2872 = vrcp.pop %v2871
    %v2873 = vmul.f32 1.0, %v2872
    %v2874 = vadd.f32 %v2724, %v2795
    %v2875 = vxor.u32 %v2874, 2147483648
    %v2876 = vmul.f32 %v2875, 1.442695
    %v2877 = vpow.pop %v2876
    %v2878 = vadd.f32 %v2877, 1.0
    %v2879 = vrcp.pop %v2878
    %v2880 = vmul.f32 1.0, %v2879
    %v2881 = vadd.f32 %v2864, %v639
    %v2882 = vmul.f32 %v2873, %v2881
    %v2883 = vadd.f32 %v2725, %v2882
    %v2884 = vtanh.pop %v2883
    %v2885 = vsub.f32 1.0, %v2880
    %v2886 = vmul.f32 %v2885, %v2884
    %v2887 = vmul.f32 %v2880, %v2417
    %v2888 = vadd.f32 %v2886, %v2887
    %2889 = vmatprep.subr.mxu0 %v614
    %2890 = vmatpush1.msra.mxu0 %v613
    %2891 = vmatprep.subr.mxu0 %v611
    %2892 = vmatpush1.msra.mxu0 %v610
    %2893 = vmatprep.subr.mxu0 %v608
    %2894 = vmatpush1.msra.mxu0 %v607
    %2895 = vmatprep.subr.mxu0 %v605
    %2896 = vmatpush1.msra.mxu0 %v604
    %2897 = vmatprep.subr.mxu0 %v602
    %2898 = vmatpush1.msra.mxu0 %v601
    %2899 = vmatprep.subr.mxu0 %v599
    %2900 = vmatpush1.msra.mxu0 %v598
    %2901 = vmatprep.subr.mxu0 %v596
    %2902 = vmatpush1.msra.mxu0 %v595
    %2903 = vmatprep.subr.mxu0 %v593
    %2904 = vmatpush1.msra.mxu0 %v592
    %2905 = vmatprep.subr.mxu0 %v590
    %2906 = vmatpush1.msra.mxu0 %v589
    %2907 = vmatprep.subr.mxu0 %v587
    %2908 = vmatpush1.msra.mxu0 %v586
    %2909 = vmatprep.subr.mxu0 %v584
    %2910 = vmatpush1.msra.mxu0 %v583
    %2911 = vmatprep.subr.mxu0 %v581
    %2912 = vmatpush1.msra.mxu0 %v580
    %2913 = vmatprep.subr.mxu0 %v578
    %2914 = vmatpush1.msra.mxu0 %v577
    %2915 = vmatprep.subr.mxu0 %v575
    %2916 = vmatpush1.msra.mxu0 %v574
    %2917 = vmatprep.subr.mxu0 %v572
    %2918 = vmatpush1.msra.mxu0 %v571
    %2919 = vmatprep.subr.mxu0 %v569
    %2920 = vmatpush1.msra.mxu0 %v568
    %2921 = vmatprep.subr.mxu0 0.0
    %2922 = vmatpush2.msra.mxu0 0.0
    %2923 = vmatprep.subr.mxu0 0.0
    %2924 = vmatpush2.msra.mxu0 0.0
    %2925 = vmatprep.subr.mxu0 0.0
    %2926 = vmatpush2.msra.mxu0 0.0
    %2927 = vmatprep.subr.mxu0 0.0
    %2928 = vmatpush2.msra.mxu0 0.0
    %2929 = vmatprep.subr.mxu0 0.0
    %2930 = vmatpush2.msra.mxu0 0.0
    %2931 = vmatprep.subr.mxu0 0.0
    %2932 = vmatpush2.msra.mxu0 0.0
    %2933 = vmatprep.subr.mxu0 0.0
    %2934 = vmatpush2.msra.mxu0 0.0
    %2935 = vmatprep.subr.mxu0 0.0
    %2936 = vmatpush2.msra.mxu0 0.0
    %2937 = vmatprep.subr.mxu0 0.0
    %2938 = vmatpush2.msra.mxu0 0.0
    %2939 = vmatprep.subr.mxu0 0.0
    %2940 = vmatpush2.msra.mxu0 0.0
    %2941 = vmatprep.subr.mxu0 0.0
    %2942 = vmatpush2.msra.mxu0 0.0
    %2943 = vmatprep.subr.mxu0 0.0
    %2944 = vmatpush2.msra.mxu0 0.0
    %2945 = vmatprep.subr.mxu0 0.0
    %2946 = vmatpush2.msra.mxu0 0.0
    %2947 = vmatprep.subr.mxu0 0.0
    %2948 = vmatpush2.msra.mxu0 0.0
    %2949 = vmatprep.subr.mxu0 0.0
    %2950 = vmatpush2.msra.mxu0 0.0
    %2951 = vmatprep.subr.mxu0 0.0
    %2952 = vmatpush2.msra.mxu0 0.0
    %2953 = vmatprep.mubr.f32.mxu0 0.0
    %2954 = vmatmul.mubr.f32.gmra.mxu0 %v2417
    %v2955 = vpop.f32.mrf.mxu0
    %v2956 = vadd.f32 %v622, %v2955
    %v2957 = vpop.f32.mrf.mxu0
    %v2958 = vadd.f32 %v626, %v2957
    %2959 = vdwg.mxu0
    %2960 = vmatprep.subr.mxu0 0.0
    %2961 = vmatpush1.msra.mxu0 %v615
    %2962 = vmatprep.subr.mxu0 0.0
    %2963 = vmatpush1.msra.mxu0 %v612
    %2964 = vmatprep.subr.mxu0 0.0
    %2965 = vmatpush1.msra.mxu0 %v609
    %2966 = vmatprep.subr.mxu0 0.0
    %2967 = vmatpush1.msra.mxu0 %v606
    %2968 = vmatprep.subr.mxu0 0.0
    %2969 = vmatpush1.msra.mxu0 %v603
    %2970 = vmatprep.subr.mxu0 0.0
    %2971 = vmatpush1.msra.mxu0 %v600
    %2972 = vmatprep.subr.mxu0 0.0
    %2973 = vmatpush1.msra.mxu0 %v597
    %2974 = vmatprep.subr.mxu0 0.0
    %2975 = vmatpush1.msra.mxu0 %v594
    %2976 = vmatprep.subr.mxu0 0.0
    %2977 = vmatpush1.msra.mxu0 %v591
    %2978 = vmatprep.subr.mxu0 0.0
    %2979 = vmatpush1.msra.mxu0 %v588
    %2980 = vmatprep.subr.mxu0 0.0
    %2981 = vmatpush1.msra.mxu0 %v585
    %2982 = vmatprep.subr.mxu0 0.0
    %2983 = vmatpush1.msra.mxu0 %v582
    %2984 = vmatprep.subr.mxu0 0.0
    %2985 = vmatpush1.msra.mxu0 %v579
    %2986 = vmatprep.subr.mxu0 0.0
    %2987 = vmatpush1.msra.mxu0 %v576
    %2988 = vmatprep.subr.mxu0 0.0
    %2989 = vmatpush1.msra.mxu0 %v573
    %2990 = vmatprep.subr.mxu0 0.0
    %2991 = vmatpush1.msra.mxu0 %v570
    %2992 = vmatprep.subr.mxu0 0.0
    %2993 = vmatpush2.msra.mxu0 0.0
    %2994 = vmatprep.subr.mxu0 0.0
    %2995 = vmatpush2.msra.mxu0 0.0
    %2996 = vmatprep.subr.mxu0 0.0
    %2997 = vmatpush2.msra.mxu0 0.0
    %2998 = vmatprep.subr.mxu0 0.0
    %2999 = vmatpush2.msra.mxu0 0.0
    %3000 = vmatprep.subr.mxu0 0.0
    %3001 = vmatpush2.msra.mxu0 0.0
    %3002 = vmatprep.subr.mxu0 0.0
    %3003 = vmatpush2.msra.mxu0 0.0
    %3004 = vmatprep.subr.mxu0 0.0
    %3005 = vmatpush2.msra.mxu0 0.0
    %3006 = vmatprep.subr.mxu0 0.0
    %3007 = vmatpush2.msra.mxu0 0.0
    %3008 = vmatprep.subr.mxu0 0.0
    %3009 = vmatpush2.msra.mxu0 0.0
    %3010 = vmatprep.subr.mxu0 0.0
    %3011 = vmatpush2.msra.mxu0 0.0
    %3012 = vmatprep.subr.mxu0 0.0
    %3013 = vmatpush2.msra.mxu0 0.0
    %3014 = vmatprep.subr.mxu0 0.0
    %3015 = vmatpush2.msra.mxu0 0.0
    %3016 = vmatprep.subr.mxu0 0.0
    %3017 = vmatpush2.msra.mxu0 0.0
    %3018 = vmatprep.subr.mxu0 0.0
    %3019 = vmatpush2.msra.mxu0 0.0
    %3020 = vmatprep.subr.mxu0 0.0
    %3021 = vmatpush2.msra.mxu0 0.0
    %3022 = vmatprep.subr.mxu0 0.0
    %3023 = vmatpush2.msra.mxu0 0.0
    %3024 = vmatprep.mubr.f32.mxu0 0.0
    %3025 = vmatmul.mubr.f32.gmra.mxu0 %v2417
    %v3026 = vpop.f32.mrf.mxu0
    %v3027 = vadd.f32 %v630, %v3026
    %v3028 = vpop.f32.mrf.mxu0
    %3029 = vdwg.mxu0
    %3030 = vmatprep.subr.mxu0 %v565
    %3031 = vmatpush1.msra.mxu0 %v564
    %3032 = vmatprep.subr.mxu0 %v562
    %3033 = vmatpush1.msra.mxu0 %v561
    %3034 = vmatprep.subr.mxu0 %v559
    %3035 = vmatpush1.msra.mxu0 %v558
    %3036 = vmatprep.subr.mxu0 %v556
    %3037 = vmatpush1.msra.mxu0 %v555
    %3038 = vmatprep.subr.mxu0 %v553
    %3039 = vmatpush1.msra.mxu0 %v552
    %3040 = vmatprep.subr.mxu0 %v550
    %3041 = vmatpush1.msra.mxu0 %v549
    %3042 = vmatprep.subr.mxu0 %v547
    %3043 = vmatpush1.msra.mxu0 %v546
    %3044 = vmatprep.subr.mxu0 %v544
    %3045 = vmatpush1.msra.mxu0 %v543
    %3046 = vmatprep.subr.mxu0 %v541
    %3047 = vmatpush1.msra.mxu0 %v540
    %3048 = vmatprep.subr.mxu0 %v538
    %3049 = vmatpush1.msra.mxu0 %v537
    %3050 = vmatprep.subr.mxu0 %v535
    %3051 = vmatpush1.msra.mxu0 %v534
    %3052 = vmatprep.subr.mxu0 %v532
    %3053 = vmatpush1.msra.mxu0 %v531
    %3054 = vmatprep.subr.mxu0 %v529
    %3055 = vmatpush1.msra.mxu0 %v528
    %3056 = vmatprep.subr.mxu0 %v526
    %3057 = vmatpush1.msra.mxu0 %v525
    %3058 = vmatprep.subr.mxu0 %v523
    %3059 = vmatpush1.msra.mxu0 %v522
    %3060 = vmatprep.subr.mxu0 %v520
    %3061 = vmatpush1.msra.mxu0 %v519
    %3062 = vmatprep.subr.mxu0 0.0
    %3063 = vmatpush2.msra.mxu0 0.0
    %3064 = vmatprep.subr.mxu0 0.0
    %3065 = vmatpush2.msra.mxu0 0.0
    %3066 = vmatprep.subr.mxu0 0.0
    %3067 = vmatpush2.msra.mxu0 0.0
    %3068 = vmatprep.subr.mxu0 0.0
    %3069 = vmatpush2.msra.mxu0 0.0
    %3070 = vmatprep.subr.mxu0 0.0
    %3071 = vmatpush2.msra.mxu0 0.0
    %3072 = vmatprep.subr.mxu0 0.0
    %3073 = vmatpush2.msra.mxu0 0.0
    %3074 = vmatprep.subr.mxu0 0.0
    %3075 = vmatpush2.msra.mxu0 0.0
    %3076 = vmatprep.subr.mxu0 0.0
    %3077 = vmatpush2.msra.mxu0 0.0
    %3078 = vmatprep.subr.mxu0 0.0
    %3079 = vmatpush2.msra.mxu0 0.0
    %3080 = vmatprep.subr.mxu0 0.0
    %3081 = vmatpush2.msra.mxu0 0.0
    %3082 = vmatprep.subr.mxu0 0.0
    %3083 = vmatpush2.msra.mxu0 0.0
    %3084 = vmatprep.subr.mxu0 0.0
    %3085 = vmatpush2.msra.mxu0 0.0
    %3086 = vmatprep.subr.mxu0 0.0
    %3087 = vmatpush2.msra.mxu0 0.0
    %3088 = vmatprep.subr.mxu0 0.0
    %3089 = vmatpush2.msra.mxu0 0.0
    %3090 = vmatprep.subr.mxu0 0.0
    %3091 = vmatpush2.msra.mxu0 0.0
    %3092 = vmatprep.subr.mxu0 0.0
    %3093 = vmatpush2.msra.mxu0 0.0
    %3094 = vmatprep.mubr.f32.mxu0 0.0
    %3095 = vmatmul.mubr.f32.gmra.mxu0 %v2721
    %v3096 = vpop.f32.mrf.mxu0
    %v3097 = vadd.f32 0.0, %v3096
    %v3098 = vpop.f32.mrf.mxu0
    %v3099 = vadd.f32 0.0, %v3098
    %3100 = vdwg.mxu0
    %3101 = vmatprep.subr.mxu0 0.0
    %3102 = vmatpush1.msra.mxu0 %v566
    %3103 = vmatprep.subr.mxu0 0.0
    %3104 = vmatpush1.msra.mxu0 %v563
    %3105 = vmatprep.subr.mxu0 0.0
    %3106 = vmatpush1.msra.mxu0 %v560
    %3107 = vmatprep.subr.mxu0 0.0
    %3108 = vmatpush1.msra.mxu0 %v557
    %3109 = vmatprep.subr.mxu0 0.0
    %3110 = vmatpush1.msra.mxu0 %v554
    %3111 = vmatprep.subr.mxu0 0.0
    %3112 = vmatpush1.msra.mxu0 %v551
    %3113 = vmatprep.subr.mxu0 0.0
    %3114 = vmatpush1.msra.mxu0 %v548
    %3115 = vmatprep.subr.mxu0 0.0
    %3116 = vmatpush1.msra.mxu0 %v545
    %3117 = vmatprep.subr.mxu0 0.0
    %3118 = vmatpush1.msra.mxu0 %v542
    %3119 = vmatprep.subr.mxu0 0.0
    %3120 = vmatpush1.msra.mxu0 %v539
    %3121 = vmatprep.subr.mxu0 0.0
    %3122 = vmatpush1.msra.mxu0 %v536
    %3123 = vmatprep.subr.mxu0 0.0
    %3124 = vmatpush1.msra.mxu0 %v533
    %3125 = vmatprep.subr.mxu0 0.0
    %3126 = vmatpush1.msra.mxu0 %v530
    %3127 = vmatprep.subr.mxu0 0.0
    %3128 = vmatpush1.msra.mxu0 %v527
    %3129 = vmatprep.subr.mxu0 0.0
    %3130 = vmatpush1.msra.mxu0 %v524
    %3131 = vmatprep.subr.mxu0 0.0
    %3132 = vmatpush1.msra.mxu0 %v521
    %3133 = vmatprep.subr.mxu0 0.0
    %3134 = vmatpush2.msra.mxu0 0.0
    %3135 = vmatprep.subr.mxu0 0.0
    %3136 = vmatpush2.msra.mxu0 0.0
    %3137 = vmatprep.subr.mxu0 0.0
    %3138 = vmatpush2.msra.mxu0 0.0
    %3139 = vmatprep.subr.mxu0 0.0
    %3140 = vmatpush2.msra.mxu0 0.0
    %3141 = vmatprep.subr.mxu0 0.0
    %3142 = vmatpush2.msra.mxu0 0.0
    %3143 = vmatprep.subr.mxu0 0.0
    %3144 = vmatpush2.msra.mxu0 0.0
    %3145 = vmatprep.subr.mxu0 0.0
    %3146 = vmatpush2.msra.mxu0 0.0
    %3147 = vmatprep.subr.mxu0 0.0
    %3148 = vmatpush2.msra.mxu0 0.0
    %3149 = vmatprep.subr.mxu0 0.0
    %3150 = vmatpush2.msra.mxu0 0.0
    %3151 = vmatprep.subr.mxu0 0.0
    %3152 = vmatpush2.msra.mxu0 0.0
    %3153 = vmatprep.subr.mxu0 0.0
    %3154 = vmatpush2.msra.mxu0 0.0
    %3155 = vmatprep.subr.mxu0 0.0
    %3156 = vmatpush2.msra.mxu0 0.0
    %3157 = vmatprep.subr.mxu0 0.0
    %3158 = vmatpush2.msra.mxu0 0.0
    %3159 = vmatprep.subr.mxu0 0.0
    %3160 = vmatpush2.msra.mxu0 0.0
    %3161 = vmatprep.subr.mxu0 0.0
    %3162 = vmatpush2.msra.mxu0 0.0
    %3163 = vmatprep.subr.mxu0 0.0
    %3164 = vmatpush2.msra.mxu0 0.0
    %3165 = vmatprep.mubr.f32.mxu0 0.0
    %3166 = vmatmul.mubr.f32.gmra.mxu0 %v2721
    %v3167 = vpop.f32.mrf.mxu0
    %v3168 = vadd.f32 0.0, %v3167
    %v3169 = vpop.f32.mrf.mxu0
    %3170 = vdwg.mxu0
    %v3171 = vadd.f32 %v2956, %v3097
    %v3172 = vxor.u32 %v3171, 2147483648
    %v3173 = vmul.f32 %v3172, 1.442695
    %v3174 = vpow.pop %v3173
    %v3175 = vadd.f32 %v3174, 1.0
    %v3176 = vrcp.pop %v3175
    %v3177 = vmul.f32 1.0, %v3176
    %v3178 = vadd.f32 %v2958, %v3099
    %v3179 = vxor.u32 %v3178, 2147483648
    %v3180 = vmul.f32 %v3179, 1.442695
    %v3181 = vpow.pop %v3180
    %v3182 = vadd.f32 %v3181, 1.0
    %v3183 = vrcp.pop %v3182
    %v3184 = vmul.f32 1.0, %v3183
    %v3185 = vadd.f32 %v3168, %v647
    %v3186 = vmul.f32 %v3177, %v3185
    %v3187 = vadd.f32 %v3027, %v3186
    %v3188 = vtanh.pop %v3187
    %v3189 = vsub.f32 1.0, %v3184
    %v3190 = vmul.f32 %v3189, %v3188
    %v3191 = vmul.f32 %v3184, %v2721
    %v3192 = vadd.f32 %v3190, %v3191
    %s3193 = scalar_lea.vmem [#allocation2], 144
    %v3194 = vld [vmem:[%s3193] sm:$0xff]
    %v3195 = vld [vmem:[%s3193 + $0x8] sm:$0xff]
    %v3196 = vld [vmem:[%s3193 + $0x10] sm:$0xff]
    %3197 = vmatprep.subr.mxu0 %v516
    %3198 = vmatpush1.msra.mxu0 %v515
    %3199 = vmatprep.subr.mxu0 %v513
    %3200 = vmatpush1.msra.mxu0 %v512
    %3201 = vmatprep.subr.mxu0 %v510
    %3202 = vmatpush1.msra.mxu0 %v509
    %3203 = vmatprep.subr.mxu0 %v507
    %3204 = vmatpush1.msra.mxu0 %v506
    %3205 = vmatprep.subr.mxu0 %v504
    %3206 = vmatpush1.msra.mxu0 %v503
    %3207 = vmatprep.subr.mxu0 %v501
    %3208 = vmatpush1.msra.mxu0 %v500
    %3209 = vmatprep.subr.mxu0 %v498
    %3210 = vmatpush1.msra.mxu0 %v497
    %3211 = vmatprep.subr.mxu0 %v495
    %3212 = vmatpush1.msra.mxu0 %v494
    %3213 = vmatprep.subr.mxu0 %v492
    %3214 = vmatpush1.msra.mxu0 %v491
    %3215 = vmatprep.subr.mxu0 %v489
    %3216 = vmatpush1.msra.mxu0 %v488
    %3217 = vmatprep.subr.mxu0 %v486
    %3218 = vmatpush1.msra.mxu0 %v485
    %3219 = vmatprep.subr.mxu0 %v483
    %3220 = vmatpush1.msra.mxu0 %v482
    %3221 = vmatprep.subr.mxu0 %v480
    %3222 = vmatpush1.msra.mxu0 %v479
    %3223 = vmatprep.subr.mxu0 %v477
    %3224 = vmatpush1.msra.mxu0 %v476
    %3225 = vmatprep.subr.mxu0 %v474
    %3226 = vmatpush1.msra.mxu0 %v473
    %3227 = vmatprep.subr.mxu0 %v471
    %3228 = vmatpush1.msra.mxu0 %v470
    %3229 = vmatprep.subr.mxu0 0.0
    %3230 = vmatpush2.msra.mxu0 0.0
    %3231 = vmatprep.subr.mxu0 0.0
    %3232 = vmatpush2.msra.mxu0 0.0
    %3233 = vmatprep.subr.mxu0 0.0
    %3234 = vmatpush2.msra.mxu0 0.0
    %3235 = vmatprep.subr.mxu0 0.0
    %3236 = vmatpush2.msra.mxu0 0.0
    %3237 = vmatprep.subr.mxu0 0.0
    %3238 = vmatpush2.msra.mxu0 0.0
    %3239 = vmatprep.subr.mxu0 0.0
    %3240 = vmatpush2.msra.mxu0 0.0
    %3241 = vmatprep.subr.mxu0 0.0
    %3242 = vmatpush2.msra.mxu0 0.0
    %3243 = vmatprep.subr.mxu0 0.0
    %3244 = vmatpush2.msra.mxu0 0.0
    %3245 = vmatprep.subr.mxu0 0.0
    %3246 = vmatpush2.msra.mxu0 0.0
    %3247 = vmatprep.subr.mxu0 0.0
    %3248 = vmatpush2.msra.mxu0 0.0
    %3249 = vmatprep.subr.mxu0 0.0
    %3250 = vmatpush2.msra.mxu0 0.0
    %3251 = vmatprep.subr.mxu0 0.0
    %3252 = vmatpush2.msra.mxu0 0.0
    %3253 = vmatprep.subr.mxu0 0.0
    %3254 = vmatpush2.msra.mxu0 0.0
    %3255 = vmatprep.subr.mxu0 0.0
    %3256 = vmatpush2.msra.mxu0 0.0
    %3257 = vmatprep.subr.mxu0 0.0
    %3258 = vmatpush2.msra.mxu0 0.0
    %3259 = vmatprep.subr.mxu0 0.0
    %3260 = vmatpush2.msra.mxu0 0.0
    %3261 = vmatprep.mubr.f32.mxu0 0.0
    %3262 = vmatmul.mubr.f32.gmra.mxu0 %v2888
    %v3263 = vpop.f32.mrf.mxu0
    %v3264 = vadd.f32 0.0, %v3263
    %v3265 = vpop.f32.mrf.mxu0
    %v3266 = vadd.f32 0.0, %v3265
    %3267 = vdwg.mxu0
    %3268 = vmatprep.subr.mxu0 0.0
    %3269 = vmatpush1.msra.mxu0 %v517
    %3270 = vmatprep.subr.mxu0 0.0
    %3271 = vmatpush1.msra.mxu0 %v514
    %3272 = vmatprep.subr.mxu0 0.0
    %3273 = vmatpush1.msra.mxu0 %v511
    %3274 = vmatprep.subr.mxu0 0.0
    %3275 = vmatpush1.msra.mxu0 %v508
    %3276 = vmatprep.subr.mxu0 0.0
    %3277 = vmatpush1.msra.mxu0 %v505
    %3278 = vmatprep.subr.mxu0 0.0
    %3279 = vmatpush1.msra.mxu0 %v502
    %3280 = vmatprep.subr.mxu0 0.0
    %3281 = vmatpush1.msra.mxu0 %v499
    %3282 = vmatprep.subr.mxu0 0.0
    %3283 = vmatpush1.msra.mxu0 %v496
    %3284 = vmatprep.subr.mxu0 0.0
    %3285 = vmatpush1.msra.mxu0 %v493
    %3286 = vmatprep.subr.mxu0 0.0
    %3287 = vmatpush1.msra.mxu0 %v490
    %3288 = vmatprep.subr.mxu0 0.0
    %3289 = vmatpush1.msra.mxu0 %v487
    %3290 = vmatprep.subr.mxu0 0.0
    %3291 = vmatpush1.msra.mxu0 %v484
    %3292 = vmatprep.subr.mxu0 0.0
    %3293 = vmatpush1.msra.mxu0 %v481
    %3294 = vmatprep.subr.mxu0 0.0
    %3295 = vmatpush1.msra.mxu0 %v478
    %3296 = vmatprep.subr.mxu0 0.0
    %3297 = vmatpush1.msra.mxu0 %v475
    %3298 = vmatprep.subr.mxu0 0.0
    %3299 = vmatpush1.msra.mxu0 %v472
    %3300 = vmatprep.subr.mxu0 0.0
    %3301 = vmatpush2.msra.mxu0 0.0
    %3302 = vmatprep.subr.mxu0 0.0
    %3303 = vmatpush2.msra.mxu0 0.0
    %3304 = vmatprep.subr.mxu0 0.0
    %3305 = vmatpush2.msra.mxu0 0.0
    %3306 = vmatprep.subr.mxu0 0.0
    %3307 = vmatpush2.msra.mxu0 0.0
    %3308 = vmatprep.subr.mxu0 0.0
    %3309 = vmatpush2.msra.mxu0 0.0
    %3310 = vmatprep.subr.mxu0 0.0
    %3311 = vmatpush2.msra.mxu0 0.0
    %3312 = vmatprep.subr.mxu0 0.0
    %3313 = vmatpush2.msra.mxu0 0.0
    %3314 = vmatprep.subr.mxu0 0.0
    %3315 = vmatpush2.msra.mxu0 0.0
    %3316 = vmatprep.subr.mxu0 0.0
    %3317 = vmatpush2.msra.mxu0 0.0
    %3318 = vmatprep.subr.mxu0 0.0
    %3319 = vmatpush2.msra.mxu0 0.0
    %3320 = vmatprep.subr.mxu0 0.0
    %3321 = vmatpush2.msra.mxu0 0.0
    %3322 = vmatprep.subr.mxu0 0.0
    %3323 = vmatpush2.msra.mxu0 0.0
    %3324 = vmatprep.subr.mxu0 0.0
    %3325 = vmatpush2.msra.mxu0 0.0
    %3326 = vmatprep.subr.mxu0 0.0
    %3327 = vmatpush2.msra.mxu0 0.0
    %3328 = vmatprep.subr.mxu0 0.0
    %3329 = vmatpush2.msra.mxu0 0.0
    %3330 = vmatprep.subr.mxu0 0.0
    %3331 = vmatpush2.msra.mxu0 0.0
    %3332 = vmatprep.mubr.f32.mxu0 0.0
    %3333 = vmatmul.mubr.f32.gmra.mxu0 %v2888
    %v3334 = vpop.f32.mrf.mxu0
    %v3335 = vadd.f32 0.0, %v3334
    %v3336 = vpop.f32.mrf.mxu0
    %3337 = vdwg.mxu0
    %v3338 = vadd.f32 %v3194, %v3264
    %v3339 = vxor.u32 %v3338, 2147483648
    %v3340 = vmul.f32 %v3339, 1.442695
    %v3341 = vpow.pop %v3340
    %v3342 = vadd.f32 %v3341, 1.0
    %v3343 = vrcp.pop %v3342
    %v3344 = vmul.f32 1.0, %v3343
    %v3345 = vadd.f32 %v3195, %v3266
    %v3346 = vxor.u32 %v3345, 2147483648
    %v3347 = vmul.f32 %v3346, 1.442695
    %v3348 = vpow.pop %v3347
    %v3349 = vadd.f32 %v3348, 1.0
    %v3350 = vrcp.pop %v3349
    %v3351 = vmul.f32 1.0, %v3350
    %v3352 = vadd.f32 %v3335, %v639
    %v3353 = vmul.f32 %v3344, %v3352
    %v3354 = vadd.f32 %v3196, %v3353
    %v3355 = vtanh.pop %v3354
    %v3356 = vsub.f32 1.0, %v3351
    %v3357 = vmul.f32 %v3356, %v3355
    %v3358 = vmul.f32 %v3351, %v2888
    %v3359 = vadd.f32 %v3357, %v3358
    %3360 = vmatprep.subr.mxu0 %v614
    %3361 = vmatpush1.msra.mxu0 %v613
    %3362 = vmatprep.subr.mxu0 %v611
    %3363 = vmatpush1.msra.mxu0 %v610
    %3364 = vmatprep.subr.mxu0 %v608
    %3365 = vmatpush1.msra.mxu0 %v607
    %3366 = vmatprep.subr.mxu0 %v605
    %3367 = vmatpush1.msra.mxu0 %v604
    %3368 = vmatprep.subr.mxu0 %v602
    %3369 = vmatpush1.msra.mxu0 %v601
    %3370 = vmatprep.subr.mxu0 %v599
    %3371 = vmatpush1.msra.mxu0 %v598
    %3372 = vmatprep.subr.mxu0 %v596
    %3373 = vmatpush1.msra.mxu0 %v595
    %3374 = vmatprep.subr.mxu0 %v593
    %3375 = vmatpush1.msra.mxu0 %v592
    %3376 = vmatprep.subr.mxu0 %v590
    %3377 = vmatpush1.msra.mxu0 %v589
    %3378 = vmatprep.subr.mxu0 %v587
    %3379 = vmatpush1.msra.mxu0 %v586
    %3380 = vmatprep.subr.mxu0 %v584
    %3381 = vmatpush1.msra.mxu0 %v583
    %3382 = vmatprep.subr.mxu0 %v581
    %3383 = vmatpush1.msra.mxu0 %v580
    %3384 = vmatprep.subr.mxu0 %v578
    %3385 = vmatpush1.msra.mxu0 %v577
    %3386 = vmatprep.subr.mxu0 %v575
    %3387 = vmatpush1.msra.mxu0 %v574
    %3388 = vmatprep.subr.mxu0 %v572
    %3389 = vmatpush1.msra.mxu0 %v571
    %3390 = vmatprep.subr.mxu0 %v569
    %3391 = vmatpush1.msra.mxu0 %v568
    %3392 = vmatprep.subr.mxu0 0.0
    %3393 = vmatpush2.msra.mxu0 0.0
    %3394 = vmatprep.subr.mxu0 0.0
    %3395 = vmatpush2.msra.mxu0 0.0
    %3396 = vmatprep.subr.mxu0 0.0
    %3397 = vmatpush2.msra.mxu0 0.0
    %3398 = vmatprep.subr.mxu0 0.0
    %3399 = vmatpush2.msra.mxu0 0.0
    %3400 = vmatprep.subr.mxu0 0.0
    %3401 = vmatpush2.msra.mxu0 0.0
    %3402 = vmatprep.subr.mxu0 0.0
    %3403 = vmatpush2.msra.mxu0 0.0
    %3404 = vmatprep.subr.mxu0 0.0
    %3405 = vmatpush2.msra.mxu0 0.0
    %3406 = vmatprep.subr.mxu0 0.0
    %3407 = vmatpush2.msra.mxu0 0.0
    %3408 = vmatprep.subr.mxu0 0.0
    %3409 = vmatpush2.msra.mxu0 0.0
    %3410 = vmatprep.subr.mxu0 0.0
    %3411 = vmatpush2.msra.mxu0 0.0
    %3412 = vmatprep.subr.mxu0 0.0
    %3413 = vmatpush2.msra.mxu0 0.0
    %3414 = vmatprep.subr.mxu0 0.0
    %3415 = vmatpush2.msra.mxu0 0.0
    %3416 = vmatprep.subr.mxu0 0.0
    %3417 = vmatpush2.msra.mxu0 0.0
    %3418 = vmatprep.subr.mxu0 0.0
    %3419 = vmatpush2.msra.mxu0 0.0
    %3420 = vmatprep.subr.mxu0 0.0
    %3421 = vmatpush2.msra.mxu0 0.0
    %3422 = vmatprep.subr.mxu0 0.0
    %3423 = vmatpush2.msra.mxu0 0.0
    %3424 = vmatprep.mubr.f32.mxu0 0.0
    %3425 = vmatmul.mubr.f32.gmra.mxu0 %v2888
    %v3426 = vpop.f32.mrf.mxu0
    %v3427 = vadd.f32 %v622, %v3426
    %v3428 = vpop.f32.mrf.mxu0
    %v3429 = vadd.f32 %v626, %v3428
    %3430 = vdwg.mxu0
    %3431 = vmatprep.subr.mxu0 0.0
    %3432 = vmatpush1.msra.mxu0 %v615
    %3433 = vmatprep.subr.mxu0 0.0
    %3434 = vmatpush1.msra.mxu0 %v612
    %3435 = vmatprep.subr.mxu0 0.0
    %3436 = vmatpush1.msra.mxu0 %v609
    %3437 = vmatprep.subr.mxu0 0.0
    %3438 = vmatpush1.msra.mxu0 %v606
    %3439 = vmatprep.subr.mxu0 0.0
    %3440 = vmatpush1.msra.mxu0 %v603
    %3441 = vmatprep.subr.mxu0 0.0
    %3442 = vmatpush1.msra.mxu0 %v600
    %3443 = vmatprep.subr.mxu0 0.0
    %3444 = vmatpush1.msra.mxu0 %v597
    %3445 = vmatprep.subr.mxu0 0.0
    %3446 = vmatpush1.msra.mxu0 %v594
    %3447 = vmatprep.subr.mxu0 0.0
    %3448 = vmatpush1.msra.mxu0 %v591
    %3449 = vmatprep.subr.mxu0 0.0
    %3450 = vmatpush1.msra.mxu0 %v588
    %3451 = vmatprep.subr.mxu0 0.0
    %3452 = vmatpush1.msra.mxu0 %v585
    %3453 = vmatprep.subr.mxu0 0.0
    %3454 = vmatpush1.msra.mxu0 %v582
    %3455 = vmatprep.subr.mxu0 0.0
    %3456 = vmatpush1.msra.mxu0 %v579
    %3457 = vmatprep.subr.mxu0 0.0
    %3458 = vmatpush1.msra.mxu0 %v576
    %3459 = vmatprep.subr.mxu0 0.0
    %3460 = vmatpush1.msra.mxu0 %v573
    %3461 = vmatprep.subr.mxu0 0.0
    %3462 = vmatpush1.msra.mxu0 %v570
    %3463 = vmatprep.subr.mxu0 0.0
    %3464 = vmatpush2.msra.mxu0 0.0
    %3465 = vmatprep.subr.mxu0 0.0
    %3466 = vmatpush2.msra.mxu0 0.0
    %3467 = vmatprep.subr.mxu0 0.0
    %3468 = vmatpush2.msra.mxu0 0.0
    %3469 = vmatprep.subr.mxu0 0.0
    %3470 = vmatpush2.msra.mxu0 0.0
    %3471 = vmatprep.subr.mxu0 0.0
    %3472 = vmatpush2.msra.mxu0 0.0
    %3473 = vmatprep.subr.mxu0 0.0
    %3474 = vmatpush2.msra.mxu0 0.0
    %3475 = vmatprep.subr.mxu0 0.0
    %3476 = vmatpush2.msra.mxu0 0.0
    %3477 = vmatprep.subr.mxu0 0.0
    %3478 = vmatpush2.msra.mxu0 0.0
    %3479 = vmatprep.subr.mxu0 0.0
    %3480 = vmatpush2.msra.mxu0 0.0
    %3481 = vmatprep.subr.mxu0 0.0
    %3482 = vmatpush2.msra.mxu0 0.0
    %3483 = vmatprep.subr.mxu0 0.0
    %3484 = vmatpush2.msra.mxu0 0.0
    %3485 = vmatprep.subr.mxu0 0.0
    %3486 = vmatpush2.msra.mxu0 0.0
    %3487 = vmatprep.subr.mxu0 0.0
    %3488 = vmatpush2.msra.mxu0 0.0
    %3489 = vmatprep.subr.mxu0 0.0
    %3490 = vmatpush2.msra.mxu0 0.0
    %3491 = vmatprep.subr.mxu0 0.0
    %3492 = vmatpush2.msra.mxu0 0.0
    %3493 = vmatprep.subr.mxu0 0.0
    %3494 = vmatpush2.msra.mxu0 0.0
    %3495 = vmatprep.mubr.f32.mxu0 0.0
    %3496 = vmatmul.mubr.f32.gmra.mxu0 %v2888
    %v3497 = vpop.f32.mrf.mxu0
    %v3498 = vadd.f32 %v630, %v3497
    %v3499 = vpop.f32.mrf.mxu0
    %3500 = vdwg.mxu0
    %3501 = vmatprep.subr.mxu0 %v565
    %3502 = vmatpush1.msra.mxu0 %v564
    %3503 = vmatprep.subr.mxu0 %v562
    %3504 = vmatpush1.msra.mxu0 %v561
    %3505 = vmatprep.subr.mxu0 %v559
    %3506 = vmatpush1.msra.mxu0 %v558
    %3507 = vmatprep.subr.mxu0 %v556
    %3508 = vmatpush1.msra.mxu0 %v555
    %3509 = vmatprep.subr.mxu0 %v553
    %3510 = vmatpush1.msra.mxu0 %v552
    %3511 = vmatprep.subr.mxu0 %v550
    %3512 = vmatpush1.msra.mxu0 %v549
    %3513 = vmatprep.subr.mxu0 %v547
    %3514 = vmatpush1.msra.mxu0 %v546
    %3515 = vmatprep.subr.mxu0 %v544
    %3516 = vmatpush1.msra.mxu0 %v543
    %3517 = vmatprep.subr.mxu0 %v541
    %3518 = vmatpush1.msra.mxu0 %v540
    %3519 = vmatprep.subr.mxu0 %v538
    %3520 = vmatpush1.msra.mxu0 %v537
    %3521 = vmatprep.subr.mxu0 %v535
    %3522 = vmatpush1.msra.mxu0 %v534
    %3523 = vmatprep.subr.mxu0 %v532
    %3524 = vmatpush1.msra.mxu0 %v531
    %3525 = vmatprep.subr.mxu0 %v529
    %3526 = vmatpush1.msra.mxu0 %v528
    %3527 = vmatprep.subr.mxu0 %v526
    %3528 = vmatpush1.msra.mxu0 %v525
    %3529 = vmatprep.subr.mxu0 %v523
    %3530 = vmatpush1.msra.mxu0 %v522
    %3531 = vmatprep.subr.mxu0 %v520
    %3532 = vmatpush1.msra.mxu0 %v519
    %3533 = vmatprep.subr.mxu0 0.0
    %3534 = vmatpush2.msra.mxu0 0.0
    %3535 = vmatprep.subr.mxu0 0.0
    %3536 = vmatpush2.msra.mxu0 0.0
    %3537 = vmatprep.subr.mxu0 0.0
    %3538 = vmatpush2.msra.mxu0 0.0
    %3539 = vmatprep.subr.mxu0 0.0
    %3540 = vmatpush2.msra.mxu0 0.0
    %3541 = vmatprep.subr.mxu0 0.0
    %3542 = vmatpush2.msra.mxu0 0.0
    %3543 = vmatprep.subr.mxu0 0.0
    %3544 = vmatpush2.msra.mxu0 0.0
    %3545 = vmatprep.subr.mxu0 0.0
    %3546 = vmatpush2.msra.mxu0 0.0
    %3547 = vmatprep.subr.mxu0 0.0
    %3548 = vmatpush2.msra.mxu0 0.0
    %3549 = vmatprep.subr.mxu0 0.0
    %3550 = vmatpush2.msra.mxu0 0.0
    %3551 = vmatprep.subr.mxu0 0.0
    %3552 = vmatpush2.msra.mxu0 0.0
    %3553 = vmatprep.subr.mxu0 0.0
    %3554 = vmatpush2.msra.mxu0 0.0
    %3555 = vmatprep.subr.mxu0 0.0
    %3556 = vmatpush2.msra.mxu0 0.0
    %3557 = vmatprep.subr.mxu0 0.0
    %3558 = vmatpush2.msra.mxu0 0.0
    %3559 = vmatprep.subr.mxu0 0.0
    %3560 = vmatpush2.msra.mxu0 0.0
    %3561 = vmatprep.subr.mxu0 0.0
    %3562 = vmatpush2.msra.mxu0 0.0
    %3563 = vmatprep.subr.mxu0 0.0
    %3564 = vmatpush2.msra.mxu0 0.0
    %3565 = vmatprep.mubr.f32.mxu0 0.0
    %3566 = vmatmul.mubr.f32.gmra.mxu0 %v3192
    %v3567 = vpop.f32.mrf.mxu0
    %v3568 = vadd.f32 0.0, %v3567
    %v3569 = vpop.f32.mrf.mxu0
    %v3570 = vadd.f32 0.0, %v3569
    %3571 = vdwg.mxu0
    %3572 = vmatprep.subr.mxu0 0.0
    %3573 = vmatpush1.msra.mxu0 %v566
    %3574 = vmatprep.subr.mxu0 0.0
    %3575 = vmatpush1.msra.mxu0 %v563
    %3576 = vmatprep.subr.mxu0 0.0
    %3577 = vmatpush1.msra.mxu0 %v560
    %3578 = vmatprep.subr.mxu0 0.0
    %3579 = vmatpush1.msra.mxu0 %v557
    %3580 = vmatprep.subr.mxu0 0.0
    %3581 = vmatpush1.msra.mxu0 %v554
    %3582 = vmatprep.subr.mxu0 0.0
    %3583 = vmatpush1.msra.mxu0 %v551
    %3584 = vmatprep.subr.mxu0 0.0
    %3585 = vmatpush1.msra.mxu0 %v548
    %3586 = vmatprep.subr.mxu0 0.0
    %3587 = vmatpush1.msra.mxu0 %v545
    %3588 = vmatprep.subr.mxu0 0.0
    %3589 = vmatpush1.msra.mxu0 %v542
    %3590 = vmatprep.subr.mxu0 0.0
    %3591 = vmatpush1.msra.mxu0 %v539
    %3592 = vmatprep.subr.mxu0 0.0
    %3593 = vmatpush1.msra.mxu0 %v536
    %3594 = vmatprep.subr.mxu0 0.0
    %3595 = vmatpush1.msra.mxu0 %v533
    %3596 = vmatprep.subr.mxu0 0.0
    %3597 = vmatpush1.msra.mxu0 %v530
    %3598 = vmatprep.subr.mxu0 0.0
    %3599 = vmatpush1.msra.mxu0 %v527
    %3600 = vmatprep.subr.mxu0 0.0
    %3601 = vmatpush1.msra.mxu0 %v524
    %3602 = vmatprep.subr.mxu0 0.0
    %3603 = vmatpush1.msra.mxu0 %v521
    %3604 = vmatprep.subr.mxu0 0.0
    %3605 = vmatpush2.msra.mxu0 0.0
    %3606 = vmatprep.subr.mxu0 0.0
    %3607 = vmatpush2.msra.mxu0 0.0
    %3608 = vmatprep.subr.mxu0 0.0
    %3609 = vmatpush2.msra.mxu0 0.0
    %3610 = vmatprep.subr.mxu0 0.0
    %3611 = vmatpush2.msra.mxu0 0.0
    %3612 = vmatprep.subr.mxu0 0.0
    %3613 = vmatpush2.msra.mxu0 0.0
    %3614 = vmatprep.subr.mxu0 0.0
    %3615 = vmatpush2.msra.mxu0 0.0
    %3616 = vmatprep.subr.mxu0 0.0
    %3617 = vmatpush2.msra.mxu0 0.0
    %3618 = vmatprep.subr.mxu0 0.0
    %3619 = vmatpush2.msra.mxu0 0.0
    %3620 = vmatprep.subr.mxu0 0.0
    %3621 = vmatpush2.msra.mxu0 0.0
    %3622 = vmatprep.subr.mxu0 0.0
    %3623 = vmatpush2.msra.mxu0 0.0
    %3624 = vmatprep.subr.mxu0 0.0
    %3625 = vmatpush2.msra.mxu0 0.0
    %3626 = vmatprep.subr.mxu0 0.0
    %3627 = vmatpush2.msra.mxu0 0.0
    %3628 = vmatprep.subr.mxu0 0.0
    %3629 = vmatpush2.msra.mxu0 0.0
    %3630 = vmatprep.subr.mxu0 0.0
    %3631 = vmatpush2.msra.mxu0 0.0
    %3632 = vmatprep.subr.mxu0 0.0
    %3633 = vmatpush2.msra.mxu0 0.0
    %3634 = vmatprep.subr.mxu0 0.0
    %3635 = vmatpush2.msra.mxu0 0.0
    %3636 = vmatprep.mubr.f32.mxu0 0.0
    %3637 = vmatmul.mubr.f32.gmra.mxu0 %v3192
    %v3638 = vpop.f32.mrf.mxu0
    %v3639 = vadd.f32 0.0, %v3638
    %v3640 = vpop.f32.mrf.mxu0
    %3641 = vdwg.mxu0
    %v3642 = vadd.f32 %v3427, %v3568
    %v3643 = vxor.u32 %v3642, 2147483648
    %v3644 = vmul.f32 %v3643, 1.442695
    %v3645 = vpow.pop %v3644
    %v3646 = vadd.f32 %v3645, 1.0
    %v3647 = vrcp.pop %v3646
    %v3648 = vmul.f32 1.0, %v3647
    %v3649 = vadd.f32 %v3429, %v3570
    %v3650 = vxor.u32 %v3649, 2147483648
    %v3651 = vmul.f32 %v3650, 1.442695
    %v3652 = vpow.pop %v3651
    %v3653 = vadd.f32 %v3652, 1.0
    %v3654 = vrcp.pop %v3653
    %v3655 = vmul.f32 1.0, %v3654
    %v3656 = vadd.f32 %v3639, %v647
    %v3657 = vmul.f32 %v3648, %v3656
    %v3658 = vadd.f32 %v3498, %v3657
    %v3659 = vtanh.pop %v3658
    %v3660 = vsub.f32 1.0, %v3655
    %v3661 = vmul.f32 %v3660, %v3659
    %v3662 = vmul.f32 %v3655, %v3192
    %v3663 = vadd.f32 %v3661, %v3662
    %s3664 = scalar_lea.vmem [#allocation2], 168
    %v3665 = vld [vmem:[%s3664] sm:$0xff]
    %v3666 = vld [vmem:[%s3664 + $0x8] sm:$0xff]
    %v3667 = vld [vmem:[%s3664 + $0x10] sm:$0xff]
    %3668 = vmatprep.subr.mxu0 %v516
    %3669 = vmatpush1.msra.mxu0 %v515
    %3670 = vmatprep.subr.mxu0 %v513
    %3671 = vmatpush1.msra.mxu0 %v512
    %3672 = vmatprep.subr.mxu0 %v510
    %3673 = vmatpush1.msra.mxu0 %v509
    %3674 = vmatprep.subr.mxu0 %v507
    %3675 = vmatpush1.msra.mxu0 %v506
    %3676 = vmatprep.subr.mxu0 %v504
    %3677 = vmatpush1.msra.mxu0 %v503
    %3678 = vmatprep.subr.mxu0 %v501
    %3679 = vmatpush1.msra.mxu0 %v500
    %3680 = vmatprep.subr.mxu0 %v498
    %3681 = vmatpush1.msra.mxu0 %v497
    %3682 = vmatprep.subr.mxu0 %v495
    %3683 = vmatpush1.msra.mxu0 %v494
    %3684 = vmatprep.subr.mxu0 %v492
    %3685 = vmatpush1.msra.mxu0 %v491
    %3686 = vmatprep.subr.mxu0 %v489
    %3687 = vmatpush1.msra.mxu0 %v488
    %3688 = vmatprep.subr.mxu0 %v486
    %3689 = vmatpush1.msra.mxu0 %v485
    %3690 = vmatprep.subr.mxu0 %v483
    %3691 = vmatpush1.msra.mxu0 %v482
    %3692 = vmatprep.subr.mxu0 %v480
    %3693 = vmatpush1.msra.mxu0 %v479
    %3694 = vmatprep.subr.mxu0 %v477
    %3695 = vmatpush1.msra.mxu0 %v476
    %3696 = vmatprep.subr.mxu0 %v474
    %3697 = vmatpush1.msra.mxu0 %v473
    %3698 = vmatprep.subr.mxu0 %v471
    %3699 = vmatpush1.msra.mxu0 %v470
    %3700 = vmatprep.subr.mxu0 0.0
    %3701 = vmatpush2.msra.mxu0 0.0
    %3702 = vmatprep.subr.mxu0 0.0
    %3703 = vmatpush2.msra.mxu0 0.0
    %3704 = vmatprep.subr.mxu0 0.0
    %3705 = vmatpush2.msra.mxu0 0.0
    %3706 = vmatprep.subr.mxu0 0.0
    %3707 = vmatpush2.msra.mxu0 0.0
    %3708 = vmatprep.subr.mxu0 0.0
    %3709 = vmatpush2.msra.mxu0 0.0
    %3710 = vmatprep.subr.mxu0 0.0
    %3711 = vmatpush2.msra.mxu0 0.0
    %3712 = vmatprep.subr.mxu0 0.0
    %3713 = vmatpush2.msra.mxu0 0.0
    %3714 = vmatprep.subr.mxu0 0.0
    %3715 = vmatpush2.msra.mxu0 0.0
    %3716 = vmatprep.subr.mxu0 0.0
    %3717 = vmatpush2.msra.mxu0 0.0
    %3718 = vmatprep.subr.mxu0 0.0
    %3719 = vmatpush2.msra.mxu0 0.0
    %3720 = vmatprep.subr.mxu0 0.0
    %3721 = vmatpush2.msra.mxu0 0.0
    %3722 = vmatprep.subr.mxu0 0.0
    %3723 = vmatpush2.msra.mxu0 0.0
    %3724 = vmatprep.subr.mxu0 0.0
    %3725 = vmatpush2.msra.mxu0 0.0
    %3726 = vmatprep.subr.mxu0 0.0
    %3727 = vmatpush2.msra.mxu0 0.0
    %3728 = vmatprep.subr.mxu0 0.0
    %3729 = vmatpush2.msra.mxu0 0.0
    %3730 = vmatprep.subr.mxu0 0.0
    %3731 = vmatpush2.msra.mxu0 0.0
    %3732 = vmatprep.mubr.f32.mxu0 0.0
    %3733 = vmatmul.mubr.f32.gmra.mxu0 %v3359
    %v3734 = vpop.f32.mrf.mxu0
    %v3735 = vadd.f32 0.0, %v3734
    %v3736 = vpop.f32.mrf.mxu0
    %v3737 = vadd.f32 0.0, %v3736
    %3738 = vdwg.mxu0
    %3739 = vmatprep.subr.mxu0 0.0
    %3740 = vmatpush1.msra.mxu0 %v517
    %3741 = vmatprep.subr.mxu0 0.0
    %3742 = vmatpush1.msra.mxu0 %v514
    %3743 = vmatprep.subr.mxu0 0.0
    %3744 = vmatpush1.msra.mxu0 %v511
    %3745 = vmatprep.subr.mxu0 0.0
    %3746 = vmatpush1.msra.mxu0 %v508
    %3747 = vmatprep.subr.mxu0 0.0
    %3748 = vmatpush1.msra.mxu0 %v505
    %3749 = vmatprep.subr.mxu0 0.0
    %3750 = vmatpush1.msra.mxu0 %v502
    %3751 = vmatprep.subr.mxu0 0.0
    %3752 = vmatpush1.msra.mxu0 %v499
    %3753 = vmatprep.subr.mxu0 0.0
    %3754 = vmatpush1.msra.mxu0 %v496
    %3755 = vmatprep.subr.mxu0 0.0
    %3756 = vmatpush1.msra.mxu0 %v493
    %3757 = vmatprep.subr.mxu0 0.0
    %3758 = vmatpush1.msra.mxu0 %v490
    %3759 = vmatprep.subr.mxu0 0.0
    %3760 = vmatpush1.msra.mxu0 %v487
    %3761 = vmatprep.subr.mxu0 0.0
    %3762 = vmatpush1.msra.mxu0 %v484
    %3763 = vmatprep.subr.mxu0 0.0
    %3764 = vmatpush1.msra.mxu0 %v481
    %3765 = vmatprep.subr.mxu0 0.0
    %3766 = vmatpush1.msra.mxu0 %v478
    %3767 = vmatprep.subr.mxu0 0.0
    %3768 = vmatpush1.msra.mxu0 %v475
    %3769 = vmatprep.subr.mxu0 0.0
    %3770 = vmatpush1.msra.mxu0 %v472
    %3771 = vmatprep.subr.mxu0 0.0
    %3772 = vmatpush2.msra.mxu0 0.0
    %3773 = vmatprep.subr.mxu0 0.0
    %3774 = vmatpush2.msra.mxu0 0.0
    %3775 = vmatprep.subr.mxu0 0.0
    %3776 = vmatpush2.msra.mxu0 0.0
    %3777 = vmatprep.subr.mxu0 0.0
    %3778 = vmatpush2.msra.mxu0 0.0
    %3779 = vmatprep.subr.mxu0 0.0
    %3780 = vmatpush2.msra.mxu0 0.0
    %3781 = vmatprep.subr.mxu0 0.0
    %3782 = vmatpush2.msra.mxu0 0.0
    %3783 = vmatprep.subr.mxu0 0.0
    %3784 = vmatpush2.msra.mxu0 0.0
    %3785 = vmatprep.subr.mxu0 0.0
    %3786 = vmatpush2.msra.mxu0 0.0
    %3787 = vmatprep.subr.mxu0 0.0
    %3788 = vmatpush2.msra.mxu0 0.0
    %3789 = vmatprep.subr.mxu0 0.0
    %3790 = vmatpush2.msra.mxu0 0.0
    %3791 = vmatprep.subr.mxu0 0.0
    %3792 = vmatpush2.msra.mxu0 0.0
    %3793 = vmatprep.subr.mxu0 0.0
    %3794 = vmatpush2.msra.mxu0 0.0
    %3795 = vmatprep.subr.mxu0 0.0
    %3796 = vmatpush2.msra.mxu0 0.0
    %3797 = vmatprep.subr.mxu0 0.0
    %3798 = vmatpush2.msra.mxu0 0.0
    %3799 = vmatprep.subr.mxu0 0.0
    %3800 = vmatpush2.msra.mxu0 0.0
    %3801 = vmatprep.subr.mxu0 0.0
    %3802 = vmatpush2.msra.mxu0 0.0
    %3803 = vmatprep.mubr.f32.mxu0 0.0
    %3804 = vmatmul.mubr.f32.gmra.mxu0 %v3359
    %v3805 = vpop.f32.mrf.mxu0
    %v3806 = vadd.f32 0.0, %v3805
    %v3807 = vpop.f32.mrf.mxu0
    %3808 = vdwg.mxu0
    %v3809 = vadd.f32 %v3665, %v3735
    %v3810 = vxor.u32 %v3809, 2147483648
    %v3811 = vmul.f32 %v3810, 1.442695
    %v3812 = vpow.pop %v3811
    %v3813 = vadd.f32 %v3812, 1.0
    %v3814 = vrcp.pop %v3813
    %v3815 = vmul.f32 1.0, %v3814
    %v3816 = vadd.f32 %v3666, %v3737
    %v3817 = vxor.u32 %v3816, 2147483648
    %v3818 = vmul.f32 %v3817, 1.442695
    %v3819 = vpow.pop %v3818
    %v3820 = vadd.f32 %v3819, 1.0
    %v3821 = vrcp.pop %v3820
    %v3822 = vmul.f32 1.0, %v3821
    %v3823 = vadd.f32 %v3806, %v639
    %v3824 = vmul.f32 %v3815, %v3823
    %v3825 = vadd.f32 %v3667, %v3824
    %v3826 = vtanh.pop %v3825
    %v3827 = vsub.f32 1.0, %v3822
    %v3828 = vmul.f32 %v3827, %v3826
    %v3829 = vmul.f32 %v3822, %v3359
    %v3830 = vadd.f32 %v3828, %v3829
    %3831 = vmatprep.subr.mxu0 %v614
    %3832 = vmatpush1.msra.mxu0 %v613
    %3833 = vmatprep.subr.mxu0 %v611
    %3834 = vmatpush1.msra.mxu0 %v610
    %3835 = vmatprep.subr.mxu0 %v608
    %3836 = vmatpush1.msra.mxu0 %v607
    %3837 = vmatprep.subr.mxu0 %v605
    %3838 = vmatpush1.msra.mxu0 %v604
    %3839 = vmatprep.subr.mxu0 %v602
    %3840 = vmatpush1.msra.mxu0 %v601
    %3841 = vmatprep.subr.mxu0 %v599
    %3842 = vmatpush1.msra.mxu0 %v598
    %3843 = vmatprep.subr.mxu0 %v596
    %3844 = vmatpush1.msra.mxu0 %v595
    %3845 = vmatprep.subr.mxu0 %v593
    %3846 = vmatpush1.msra.mxu0 %v592
    %3847 = vmatprep.subr.mxu0 %v590
    %3848 = vmatpush1.msra.mxu0 %v589
    %3849 = vmatprep.subr.mxu0 %v587
    %3850 = vmatpush1.msra.mxu0 %v586
    %3851 = vmatprep.subr.mxu0 %v584
    %3852 = vmatpush1.msra.mxu0 %v583
    %3853 = vmatprep.subr.mxu0 %v581
    %3854 = vmatpush1.msra.mxu0 %v580
    %3855 = vmatprep.subr.mxu0 %v578
    %3856 = vmatpush1.msra.mxu0 %v577
    %3857 = vmatprep.subr.mxu0 %v575
    %3858 = vmatpush1.msra.mxu0 %v574
    %3859 = vmatprep.subr.mxu0 %v572
    %3860 = vmatpush1.msra.mxu0 %v571
    %3861 = vmatprep.subr.mxu0 %v569
    %3862 = vmatpush1.msra.mxu0 %v568
    %3863 = vmatprep.subr.mxu0 0.0
    %3864 = vmatpush2.msra.mxu0 0.0
    %3865 = vmatprep.subr.mxu0 0.0
    %3866 = vmatpush2.msra.mxu0 0.0
    %3867 = vmatprep.subr.mxu0 0.0
    %3868 = vmatpush2.msra.mxu0 0.0
    %3869 = vmatprep.subr.mxu0 0.0
    %3870 = vmatpush2.msra.mxu0 0.0
    %3871 = vmatprep.subr.mxu0 0.0
    %3872 = vmatpush2.msra.mxu0 0.0
    %3873 = vmatprep.subr.mxu0 0.0
    %3874 = vmatpush2.msra.mxu0 0.0
    %3875 = vmatprep.subr.mxu0 0.0
    %3876 = vmatpush2.msra.mxu0 0.0
    %3877 = vmatprep.subr.mxu0 0.0
    %3878 = vmatpush2.msra.mxu0 0.0
    %3879 = vmatprep.subr.mxu0 0.0
    %3880 = vmatpush2.msra.mxu0 0.0
    %3881 = vmatprep.subr.mxu0 0.0
    %3882 = vmatpush2.msra.mxu0 0.0
    %3883 = vmatprep.subr.mxu0 0.0
    %3884 = vmatpush2.msra.mxu0 0.0
    %3885 = vmatprep.subr.mxu0 0.0
    %3886 = vmatpush2.msra.mxu0 0.0
    %3887 = vmatprep.subr.mxu0 0.0
    %3888 = vmatpush2.msra.mxu0 0.0
    %3889 = vmatprep.subr.mxu0 0.0
    %3890 = vmatpush2.msra.mxu0 0.0
    %3891 = vmatprep.subr.mxu0 0.0
    %3892 = vmatpush2.msra.mxu0 0.0
    %3893 = vmatprep.subr.mxu0 0.0
    %3894 = vmatpush2.msra.mxu0 0.0
    %3895 = vmatprep.mubr.f32.mxu0 0.0
    %3896 = vmatmul.mubr.f32.gmra.mxu0 %v3359
    %v3897 = vpop.f32.mrf.mxu0
    %v3898 = vadd.f32 %v622, %v3897
    %v3899 = vpop.f32.mrf.mxu0
    %v3900 = vadd.f32 %v626, %v3899
    %3901 = vdwg.mxu0
    %3902 = vmatprep.subr.mxu0 0.0
    %3903 = vmatpush1.msra.mxu0 %v615
    %3904 = vmatprep.subr.mxu0 0.0
    %3905 = vmatpush1.msra.mxu0 %v612
    %3906 = vmatprep.subr.mxu0 0.0
    %3907 = vmatpush1.msra.mxu0 %v609
    %3908 = vmatprep.subr.mxu0 0.0
    %3909 = vmatpush1.msra.mxu0 %v606
    %3910 = vmatprep.subr.mxu0 0.0
    %3911 = vmatpush1.msra.mxu0 %v603
    %3912 = vmatprep.subr.mxu0 0.0
    %3913 = vmatpush1.msra.mxu0 %v600
    %3914 = vmatprep.subr.mxu0 0.0
    %3915 = vmatpush1.msra.mxu0 %v597
    %3916 = vmatprep.subr.mxu0 0.0
    %3917 = vmatpush1.msra.mxu0 %v594
    %3918 = vmatprep.subr.mxu0 0.0
    %3919 = vmatpush1.msra.mxu0 %v591
    %3920 = vmatprep.subr.mxu0 0.0
    %3921 = vmatpush1.msra.mxu0 %v588
    %3922 = vmatprep.subr.mxu0 0.0
    %3923 = vmatpush1.msra.mxu0 %v585
    %3924 = vmatprep.subr.mxu0 0.0
    %3925 = vmatpush1.msra.mxu0 %v582
    %3926 = vmatprep.subr.mxu0 0.0
    %3927 = vmatpush1.msra.mxu0 %v579
    %3928 = vmatprep.subr.mxu0 0.0
    %3929 = vmatpush1.msra.mxu0 %v576
    %3930 = vmatprep.subr.mxu0 0.0
    %3931 = vmatpush1.msra.mxu0 %v573
    %3932 = vmatprep.subr.mxu0 0.0
    %3933 = vmatpush1.msra.mxu0 %v570
    %3934 = vmatprep.subr.mxu0 0.0
    %3935 = vmatpush2.msra.mxu0 0.0
    %3936 = vmatprep.subr.mxu0 0.0
    %3937 = vmatpush2.msra.mxu0 0.0
    %3938 = vmatprep.subr.mxu0 0.0
    %3939 = vmatpush2.msra.mxu0 0.0
    %3940 = vmatprep.subr.mxu0 0.0
    %3941 = vmatpush2.msra.mxu0 0.0
    %3942 = vmatprep.subr.mxu0 0.0
    %3943 = vmatpush2.msra.mxu0 0.0
    %3944 = vmatprep.subr.mxu0 0.0
    %3945 = vmatpush2.msra.mxu0 0.0
    %3946 = vmatprep.subr.mxu0 0.0
    %3947 = vmatpush2.msra.mxu0 0.0
    %3948 = vmatprep.subr.mxu0 0.0
    %3949 = vmatpush2.msra.mxu0 0.0
    %3950 = vmatprep.subr.mxu0 0.0
    %3951 = vmatpush2.msra.mxu0 0.0
    %3952 = vmatprep.subr.mxu0 0.0
    %3953 = vmatpush2.msra.mxu0 0.0
    %3954 = vmatprep.subr.mxu0 0.0
    %3955 = vmatpush2.msra.mxu0 0.0
    %3956 = vmatprep.subr.mxu0 0.0
    %3957 = vmatpush2.msra.mxu0 0.0
    %3958 = vmatprep.subr.mxu0 0.0
    %3959 = vmatpush2.msra.mxu0 0.0
    %3960 = vmatprep.subr.mxu0 0.0
    %3961 = vmatpush2.msra.mxu0 0.0
    %3962 = vmatprep.subr.mxu0 0.0
    %3963 = vmatpush2.msra.mxu0 0.0
    %3964 = vmatprep.subr.mxu0 0.0
    %3965 = vmatpush2.msra.mxu0 0.0
    %3966 = vmatprep.mubr.f32.mxu0 0.0
    %3967 = vmatmul.mubr.f32.gmra.mxu0 %v3359
    %v3968 = vpop.f32.mrf.mxu0
    %v3969 = vadd.f32 %v630, %v3968
    %v3970 = vpop.f32.mrf.mxu0
    %3971 = vdwg.mxu0
    %3972 = vmatprep.subr.mxu0 %v565
    %3973 = vmatpush1.msra.mxu0 %v564
    %3974 = vmatprep.subr.mxu0 %v562
    %3975 = vmatpush1.msra.mxu0 %v561
    %3976 = vmatprep.subr.mxu0 %v559
    %3977 = vmatpush1.msra.mxu0 %v558
    %3978 = vmatprep.subr.mxu0 %v556
    %3979 = vmatpush1.msra.mxu0 %v555
    %3980 = vmatprep.subr.mxu0 %v553
    %3981 = vmatpush1.msra.mxu0 %v552
    %3982 = vmatprep.subr.mxu0 %v550
    %3983 = vmatpush1.msra.mxu0 %v549
    %3984 = vmatprep.subr.mxu0 %v547
    %3985 = vmatpush1.msra.mxu0 %v546
    %3986 = vmatprep.subr.mxu0 %v544
    %3987 = vmatpush1.msra.mxu0 %v543
    %3988 = vmatprep.subr.mxu0 %v541
    %3989 = vmatpush1.msra.mxu0 %v540
    %3990 = vmatprep.subr.mxu0 %v538
    %3991 = vmatpush1.msra.mxu0 %v537
    %3992 = vmatprep.subr.mxu0 %v535
    %3993 = vmatpush1.msra.mxu0 %v534
    %3994 = vmatprep.subr.mxu0 %v532
    %3995 = vmatpush1.msra.mxu0 %v531
    %3996 = vmatprep.subr.mxu0 %v529
    %3997 = vmatpush1.msra.mxu0 %v528
    %3998 = vmatprep.subr.mxu0 %v526
    %3999 = vmatpush1.msra.mxu0 %v525
    %4000 = vmatprep.subr.mxu0 %v523
    %4001 = vmatpush1.msra.mxu0 %v522
    %4002 = vmatprep.subr.mxu0 %v520
    %4003 = vmatpush1.msra.mxu0 %v519
    %4004 = vmatprep.subr.mxu0 0.0
    %4005 = vmatpush2.msra.mxu0 0.0
    %4006 = vmatprep.subr.mxu0 0.0
    %4007 = vmatpush2.msra.mxu0 0.0
    %4008 = vmatprep.subr.mxu0 0.0
    %4009 = vmatpush2.msra.mxu0 0.0
    %4010 = vmatprep.subr.mxu0 0.0
    %4011 = vmatpush2.msra.mxu0 0.0
    %4012 = vmatprep.subr.mxu0 0.0
    %4013 = vmatpush2.msra.mxu0 0.0
    %4014 = vmatprep.subr.mxu0 0.0
    %4015 = vmatpush2.msra.mxu0 0.0
    %4016 = vmatprep.subr.mxu0 0.0
    %4017 = vmatpush2.msra.mxu0 0.0
    %4018 = vmatprep.subr.mxu0 0.0
    %4019 = vmatpush2.msra.mxu0 0.0
    %4020 = vmatprep.subr.mxu0 0.0
    %4021 = vmatpush2.msra.mxu0 0.0
    %4022 = vmatprep.subr.mxu0 0.0
    %4023 = vmatpush2.msra.mxu0 0.0
    %4024 = vmatprep.subr.mxu0 0.0
    %4025 = vmatpush2.msra.mxu0 0.0
    %4026 = vmatprep.subr.mxu0 0.0
    %4027 = vmatpush2.msra.mxu0 0.0
    %4028 = vmatprep.subr.mxu0 0.0
    %4029 = vmatpush2.msra.mxu0 0.0
    %4030 = vmatprep.subr.mxu0 0.0
    %4031 = vmatpush2.msra.mxu0 0.0
    %4032 = vmatprep.subr.mxu0 0.0
    %4033 = vmatpush2.msra.mxu0 0.0
    %4034 = vmatprep.subr.mxu0 0.0
    %4035 = vmatpush2.msra.mxu0 0.0
    %4036 = vmatprep.mubr.f32.mxu0 0.0
    %4037 = vmatmul.mubr.f32.gmra.mxu0 %v3663
    %v4038 = vpop.f32.mrf.mxu0
    %v4039 = vadd.f32 0.0, %v4038
    %v4040 = vpop.f32.mrf.mxu0
    %v4041 = vadd.f32 0.0, %v4040
    %4042 = vdwg.mxu0
    %4043 = vmatprep.subr.mxu0 0.0
    %4044 = vmatpush1.msra.mxu0 %v566
    %4045 = vmatprep.subr.mxu0 0.0
    %4046 = vmatpush1.msra.mxu0 %v563
    %4047 = vmatprep.subr.mxu0 0.0
    %4048 = vmatpush1.msra.mxu0 %v560
    %4049 = vmatprep.subr.mxu0 0.0
    %4050 = vmatpush1.msra.mxu0 %v557
    %4051 = vmatprep.subr.mxu0 0.0
    %4052 = vmatpush1.msra.mxu0 %v554
    %4053 = vmatprep.subr.mxu0 0.0
    %4054 = vmatpush1.msra.mxu0 %v551
    %4055 = vmatprep.subr.mxu0 0.0
    %4056 = vmatpush1.msra.mxu0 %v548
    %4057 = vmatprep.subr.mxu0 0.0
    %4058 = vmatpush1.msra.mxu0 %v545
    %4059 = vmatprep.subr.mxu0 0.0
    %4060 = vmatpush1.msra.mxu0 %v542
    %4061 = vmatprep.subr.mxu0 0.0
    %4062 = vmatpush1.msra.mxu0 %v539
    %4063 = vmatprep.subr.mxu0 0.0
    %4064 = vmatpush1.msra.mxu0 %v536
    %4065 = vmatprep.subr.mxu0 0.0
    %4066 = vmatpush1.msra.mxu0 %v533
    %4067 = vmatprep.subr.mxu0 0.0
    %4068 = vmatpush1.msra.mxu0 %v530
    %4069 = vmatprep.subr.mxu0 0.0
    %4070 = vmatpush1.msra.mxu0 %v527
    %4071 = vmatprep.subr.mxu0 0.0
    %4072 = vmatpush1.msra.mxu0 %v524
    %4073 = vmatprep.subr.mxu0 0.0
    %4074 = vmatpush1.msra.mxu0 %v521
    %4075 = vmatprep.subr.mxu0 0.0
    %4076 = vmatpush2.msra.mxu0 0.0
    %4077 = vmatprep.subr.mxu0 0.0
    %4078 = vmatpush2.msra.mxu0 0.0
    %4079 = vmatprep.subr.mxu0 0.0
    %4080 = vmatpush2.msra.mxu0 0.0
    %4081 = vmatprep.subr.mxu0 0.0
    %4082 = vmatpush2.msra.mxu0 0.0
    %4083 = vmatprep.subr.mxu0 0.0
    %4084 = vmatpush2.msra.mxu0 0.0
    %4085 = vmatprep.subr.mxu0 0.0
    %4086 = vmatpush2.msra.mxu0 0.0
    %4087 = vmatprep.subr.mxu0 0.0
    %4088 = vmatpush2.msra.mxu0 0.0
    %4089 = vmatprep.subr.mxu0 0.0
    %4090 = vmatpush2.msra.mxu0 0.0
    %4091 = vmatprep.subr.mxu0 0.0
    %4092 = vmatpush2.msra.mxu0 0.0
    %4093 = vmatprep.subr.mxu0 0.0
    %4094 = vmatpush2.msra.mxu0 0.0
    %4095 = vmatprep.subr.mxu0 0.0
    %4096 = vmatpush2.msra.mxu0 0.0
    %4097 = vmatprep.subr.mxu0 0.0
    %4098 = vmatpush2.msra.mxu0 0.0
    %4099 = vmatprep.subr.mxu0 0.0
    %4100 = vmatpush2.msra.mxu0 0.0
    %4101 = vmatprep.subr.mxu0 0.0
    %4102 = vmatpush2.msra.mxu0 0.0
    %4103 = vmatprep.subr.mxu0 0.0
    %4104 = vmatpush2.msra.mxu0 0.0
    %4105 = vmatprep.subr.mxu0 0.0
    %4106 = vmatpush2.msra.mxu0 0.0
    %4107 = vmatprep.mubr.f32.mxu0 0.0
    %4108 = vmatmul.mubr.f32.gmra.mxu0 %v3663
    %v4109 = vpop.f32.mrf.mxu0
    %v4110 = vadd.f32 0.0, %v4109
    %v4111 = vpop.f32.mrf.mxu0
    %4112 = vdwg.mxu0
    %v4113 = vadd.f32 %v3898, %v4039
    %v4114 = vxor.u32 %v4113, 2147483648
    %v4115 = vmul.f32 %v4114, 1.442695
    %v4116 = vpow.pop %v4115
    %v4117 = vadd.f32 %v4116, 1.0
    %v4118 = vrcp.pop %v4117
    %v4119 = vmul.f32 1.0, %v4118
    %v4120 = vadd.f32 %v3900, %v4041
    %v4121 = vxor.u32 %v4120, 2147483648
    %v4122 = vmul.f32 %v4121, 1.442695
    %v4123 = vpow.pop %v4122
    %v4124 = vadd.f32 %v4123, 1.0
    %v4125 = vrcp.pop %v4124
    %v4126 = vmul.f32 1.0, %v4125
    %v4127 = vadd.f32 %v4110, %v647
    %v4128 = vmul.f32 %v4119, %v4127
    %v4129 = vadd.f32 %v3969, %v4128
    %v4130 = vtanh.pop %v4129
    %v4131 = vsub.f32 1.0, %v4126
    %v4132 = vmul.f32 %v4131, %v4130
    %v4133 = vmul.f32 %v4126, %v3663
    %v4134 = vadd.f32 %v4132, %v4133
    %s4135 = scalar_lea.vmem [#allocation2], 192
    %v4136 = vld [vmem:[%s4135] sm:$0xff]
    %v4137 = vld [vmem:[%s4135 + $0x8] sm:$0xff]
    %v4138 = vld [vmem:[%s4135 + $0x10] sm:$0xff]
    %4139 = vmatprep.subr.mxu0 %v516
    %4140 = vmatpush1.msra.mxu0 %v515
    %4141 = vmatprep.subr.mxu0 %v513
    %4142 = vmatpush1.msra.mxu0 %v512
    %4143 = vmatprep.subr.mxu0 %v510
    %4144 = vmatpush1.msra.mxu0 %v509
    %4145 = vmatprep.subr.mxu0 %v507
    %4146 = vmatpush1.msra.mxu0 %v506
    %4147 = vmatprep.subr.mxu0 %v504
    %4148 = vmatpush1.msra.mxu0 %v503
    %4149 = vmatprep.subr.mxu0 %v501
    %4150 = vmatpush1.msra.mxu0 %v500
    %4151 = vmatprep.subr.mxu0 %v498
    %4152 = vmatpush1.msra.mxu0 %v497
    %4153 = vmatprep.subr.mxu0 %v495
    %4154 = vmatpush1.msra.mxu0 %v494
    %4155 = vmatprep.subr.mxu0 %v492
    %4156 = vmatpush1.msra.mxu0 %v491
    %4157 = vmatprep.subr.mxu0 %v489
    %4158 = vmatpush1.msra.mxu0 %v488
    %4159 = vmatprep.subr.mxu0 %v486
    %4160 = vmatpush1.msra.mxu0 %v485
    %4161 = vmatprep.subr.mxu0 %v483
    %4162 = vmatpush1.msra.mxu0 %v482
    %4163 = vmatprep.subr.mxu0 %v480
    %4164 = vmatpush1.msra.mxu0 %v479
    %4165 = vmatprep.subr.mxu0 %v477
    %4166 = vmatpush1.msra.mxu0 %v476
    %4167 = vmatprep.subr.mxu0 %v474
    %4168 = vmatpush1.msra.mxu0 %v473
    %4169 = vmatprep.subr.mxu0 %v471
    %4170 = vmatpush1.msra.mxu0 %v470
    %4171 = vmatprep.subr.mxu0 0.0
    %4172 = vmatpush2.msra.mxu0 0.0
    %4173 = vmatprep.subr.mxu0 0.0
    %4174 = vmatpush2.msra.mxu0 0.0
    %4175 = vmatprep.subr.mxu0 0.0
    %4176 = vmatpush2.msra.mxu0 0.0
    %4177 = vmatprep.subr.mxu0 0.0
    %4178 = vmatpush2.msra.mxu0 0.0
    %4179 = vmatprep.subr.mxu0 0.0
    %4180 = vmatpush2.msra.mxu0 0.0
    %4181 = vmatprep.subr.mxu0 0.0
    %4182 = vmatpush2.msra.mxu0 0.0
    %4183 = vmatprep.subr.mxu0 0.0
    %4184 = vmatpush2.msra.mxu0 0.0
    %4185 = vmatprep.subr.mxu0 0.0
    %4186 = vmatpush2.msra.mxu0 0.0
    %4187 = vmatprep.subr.mxu0 0.0
    %4188 = vmatpush2.msra.mxu0 0.0
    %4189 = vmatprep.subr.mxu0 0.0
    %4190 = vmatpush2.msra.mxu0 0.0
    %4191 = vmatprep.subr.mxu0 0.0
    %4192 = vmatpush2.msra.mxu0 0.0
    %4193 = vmatprep.subr.mxu0 0.0
    %4194 = vmatpush2.msra.mxu0 0.0
    %4195 = vmatprep.subr.mxu0 0.0
    %4196 = vmatpush2.msra.mxu0 0.0
    %4197 = vmatprep.subr.mxu0 0.0
    %4198 = vmatpush2.msra.mxu0 0.0
    %4199 = vmatprep.subr.mxu0 0.0
    %4200 = vmatpush2.msra.mxu0 0.0
    %4201 = vmatprep.subr.mxu0 0.0
    %4202 = vmatpush2.msra.mxu0 0.0
    %4203 = vmatprep.mubr.f32.mxu0 0.0
    %4204 = vmatmul.mubr.f32.gmra.mxu0 %v3830
    %v4205 = vpop.f32.mrf.mxu0
    %v4206 = vadd.f32 0.0, %v4205
    %v4207 = vpop.f32.mrf.mxu0
    %v4208 = vadd.f32 0.0, %v4207
    %4209 = vdwg.mxu0
    %4210 = vmatprep.subr.mxu0 0.0
    %4211 = vmatpush1.msra.mxu0 %v517
    %4212 = vmatprep.subr.mxu0 0.0
    %4213 = vmatpush1.msra.mxu0 %v514
    %4214 = vmatprep.subr.mxu0 0.0
    %4215 = vmatpush1.msra.mxu0 %v511
    %4216 = vmatprep.subr.mxu0 0.0
    %4217 = vmatpush1.msra.mxu0 %v508
    %4218 = vmatprep.subr.mxu0 0.0
    %4219 = vmatpush1.msra.mxu0 %v505
    %4220 = vmatprep.subr.mxu0 0.0
    %4221 = vmatpush1.msra.mxu0 %v502
    %4222 = vmatprep.subr.mxu0 0.0
    %4223 = vmatpush1.msra.mxu0 %v499
    %4224 = vmatprep.subr.mxu0 0.0
    %4225 = vmatpush1.msra.mxu0 %v496
    %4226 = vmatprep.subr.mxu0 0.0
    %4227 = vmatpush1.msra.mxu0 %v493
    %4228 = vmatprep.subr.mxu0 0.0
    %4229 = vmatpush1.msra.mxu0 %v490
    %4230 = vmatprep.subr.mxu0 0.0
    %4231 = vmatpush1.msra.mxu0 %v487
    %4232 = vmatprep.subr.mxu0 0.0
    %4233 = vmatpush1.msra.mxu0 %v484
    %4234 = vmatprep.subr.mxu0 0.0
    %4235 = vmatpush1.msra.mxu0 %v481
    %4236 = vmatprep.subr.mxu0 0.0
    %4237 = vmatpush1.msra.mxu0 %v478
    %4238 = vmatprep.subr.mxu0 0.0
    %4239 = vmatpush1.msra.mxu0 %v475
    %4240 = vmatprep.subr.mxu0 0.0
    %4241 = vmatpush1.msra.mxu0 %v472
    %4242 = vmatprep.subr.mxu0 0.0
    %4243 = vmatpush2.msra.mxu0 0.0
    %4244 = vmatprep.subr.mxu0 0.0
    %4245 = vmatpush2.msra.mxu0 0.0
    %4246 = vmatprep.subr.mxu0 0.0
    %4247 = vmatpush2.msra.mxu0 0.0
    %4248 = vmatprep.subr.mxu0 0.0
    %4249 = vmatpush2.msra.mxu0 0.0
    %4250 = vmatprep.subr.mxu0 0.0
    %4251 = vmatpush2.msra.mxu0 0.0
    %4252 = vmatprep.subr.mxu0 0.0
    %4253 = vmatpush2.msra.mxu0 0.0
    %4254 = vmatprep.subr.mxu0 0.0
    %4255 = vmatpush2.msra.mxu0 0.0
    %4256 = vmatprep.subr.mxu0 0.0
    %4257 = vmatpush2.msra.mxu0 0.0
    %4258 = vmatprep.subr.mxu0 0.0
    %4259 = vmatpush2.msra.mxu0 0.0
    %4260 = vmatprep.subr.mxu0 0.0
    %4261 = vmatpush2.msra.mxu0 0.0
    %4262 = vmatprep.subr.mxu0 0.0
    %4263 = vmatpush2.msra.mxu0 0.0
    %4264 = vmatprep.subr.mxu0 0.0
    %4265 = vmatpush2.msra.mxu0 0.0
    %4266 = vmatprep.subr.mxu0 0.0
    %4267 = vmatpush2.msra.mxu0 0.0
    %4268 = vmatprep.subr.mxu0 0.0
    %4269 = vmatpush2.msra.mxu0 0.0
    %4270 = vmatprep.subr.mxu0 0.0
    %4271 = vmatpush2.msra.mxu0 0.0
    %4272 = vmatprep.subr.mxu0 0.0
    %4273 = vmatpush2.msra.mxu0 0.0
    %4274 = vmatprep.mubr.f32.mxu0 0.0
    %4275 = vmatmul.mubr.f32.gmra.mxu0 %v3830
    %v4276 = vpop.f32.mrf.mxu0
    %v4277 = vadd.f32 0.0, %v4276
    %v4278 = vpop.f32.mrf.mxu0
    %4279 = vdwg.mxu0
    %v4280 = vadd.f32 %v4136, %v4206
    %v4281 = vxor.u32 %v4280, 2147483648
    %v4282 = vmul.f32 %v4281, 1.442695
    %v4283 = vpow.pop %v4282
    %v4284 = vadd.f32 %v4283, 1.0
    %v4285 = vrcp.pop %v4284
    %v4286 = vmul.f32 1.0, %v4285
    %v4287 = vadd.f32 %v4137, %v4208
    %v4288 = vxor.u32 %v4287, 2147483648
    %v4289 = vmul.f32 %v4288, 1.442695
    %v4290 = vpow.pop %v4289
    %v4291 = vadd.f32 %v4290, 1.0
    %v4292 = vrcp.pop %v4291
    %v4293 = vmul.f32 1.0, %v4292
    %v4294 = vadd.f32 %v4277, %v639
    %v4295 = vmul.f32 %v4286, %v4294
    %v4296 = vadd.f32 %v4138, %v4295
    %v4297 = vtanh.pop %v4296
    %v4298 = vsub.f32 1.0, %v4293
    %v4299 = vmul.f32 %v4298, %v4297
    %v4300 = vmul.f32 %v4293, %v3830
    %v4301 = vadd.f32 %v4299, %v4300
    %4302 = vmatprep.subr.mxu0 %v614
    %4303 = vmatpush1.msra.mxu0 %v613
    %4304 = vmatprep.subr.mxu0 %v611
    %4305 = vmatpush1.msra.mxu0 %v610
    %4306 = vmatprep.subr.mxu0 %v608
    %4307 = vmatpush1.msra.mxu0 %v607
    %4308 = vmatprep.subr.mxu0 %v605
    %4309 = vmatpush1.msra.mxu0 %v604
    %4310 = vmatprep.subr.mxu0 %v602
    %4311 = vmatpush1.msra.mxu0 %v601
    %4312 = vmatprep.subr.mxu0 %v599
    %4313 = vmatpush1.msra.mxu0 %v598
    %4314 = vmatprep.subr.mxu0 %v596
    %4315 = vmatpush1.msra.mxu0 %v595
    %4316 = vmatprep.subr.mxu0 %v593
    %4317 = vmatpush1.msra.mxu0 %v592
    %4318 = vmatprep.subr.mxu0 %v590
    %4319 = vmatpush1.msra.mxu0 %v589
    %4320 = vmatprep.subr.mxu0 %v587
    %4321 = vmatpush1.msra.mxu0 %v586
    %4322 = vmatprep.subr.mxu0 %v584
    %4323 = vmatpush1.msra.mxu0 %v583
    %4324 = vmatprep.subr.mxu0 %v581
    %4325 = vmatpush1.msra.mxu0 %v580
    %4326 = vmatprep.subr.mxu0 %v578
    %4327 = vmatpush1.msra.mxu0 %v577
    %4328 = vmatprep.subr.mxu0 %v575
    %4329 = vmatpush1.msra.mxu0 %v574
    %4330 = vmatprep.subr.mxu0 %v572
    %4331 = vmatpush1.msra.mxu0 %v571
    %4332 = vmatprep.subr.mxu0 %v569
    %4333 = vmatpush1.msra.mxu0 %v568
    %4334 = vmatprep.subr.mxu0 0.0
    %4335 = vmatpush2.msra.mxu0 0.0
    %4336 = vmatprep.subr.mxu0 0.0
    %4337 = vmatpush2.msra.mxu0 0.0
    %4338 = vmatprep.subr.mxu0 0.0
    %4339 = vmatpush2.msra.mxu0 0.0
    %4340 = vmatprep.subr.mxu0 0.0
    %4341 = vmatpush2.msra.mxu0 0.0
    %4342 = vmatprep.subr.mxu0 0.0
    %4343 = vmatpush2.msra.mxu0 0.0
    %4344 = vmatprep.subr.mxu0 0.0
    %4345 = vmatpush2.msra.mxu0 0.0
    %4346 = vmatprep.subr.mxu0 0.0
    %4347 = vmatpush2.msra.mxu0 0.0
    %4348 = vmatprep.subr.mxu0 0.0
    %4349 = vmatpush2.msra.mxu0 0.0
    %4350 = vmatprep.subr.mxu0 0.0
    %4351 = vmatpush2.msra.mxu0 0.0
    %4352 = vmatprep.subr.mxu0 0.0
    %4353 = vmatpush2.msra.mxu0 0.0
    %4354 = vmatprep.subr.mxu0 0.0
    %4355 = vmatpush2.msra.mxu0 0.0
    %4356 = vmatprep.subr.mxu0 0.0
    %4357 = vmatpush2.msra.mxu0 0.0
    %4358 = vmatprep.subr.mxu0 0.0
    %4359 = vmatpush2.msra.mxu0 0.0
    %4360 = vmatprep.subr.mxu0 0.0
    %4361 = vmatpush2.msra.mxu0 0.0
    %4362 = vmatprep.subr.mxu0 0.0
    %4363 = vmatpush2.msra.mxu0 0.0
    %4364 = vmatprep.subr.mxu0 0.0
    %4365 = vmatpush2.msra.mxu0 0.0
    %4366 = vmatprep.mubr.f32.mxu0 0.0
    %4367 = vmatmul.mubr.f32.gmra.mxu0 %v3830
    %v4368 = vpop.f32.mrf.mxu0
    %v4369 = vadd.f32 %v622, %v4368
    %v4370 = vpop.f32.mrf.mxu0
    %v4371 = vadd.f32 %v626, %v4370
    %4372 = vdwg.mxu0
    %4373 = vmatprep.subr.mxu0 0.0
    %4374 = vmatpush1.msra.mxu0 %v615
    %4375 = vmatprep.subr.mxu0 0.0
    %4376 = vmatpush1.msra.mxu0 %v612
    %4377 = vmatprep.subr.mxu0 0.0
    %4378 = vmatpush1.msra.mxu0 %v609
    %4379 = vmatprep.subr.mxu0 0.0
    %4380 = vmatpush1.msra.mxu0 %v606
    %4381 = vmatprep.subr.mxu0 0.0
    %4382 = vmatpush1.msra.mxu0 %v603
    %4383 = vmatprep.subr.mxu0 0.0
    %4384 = vmatpush1.msra.mxu0 %v600
    %4385 = vmatprep.subr.mxu0 0.0
    %4386 = vmatpush1.msra.mxu0 %v597
    %4387 = vmatprep.subr.mxu0 0.0
    %4388 = vmatpush1.msra.mxu0 %v594
    %4389 = vmatprep.subr.mxu0 0.0
    %4390 = vmatpush1.msra.mxu0 %v591
    %4391 = vmatprep.subr.mxu0 0.0
    %4392 = vmatpush1.msra.mxu0 %v588
    %4393 = vmatprep.subr.mxu0 0.0
    %4394 = vmatpush1.msra.mxu0 %v585
    %4395 = vmatprep.subr.mxu0 0.0
    %4396 = vmatpush1.msra.mxu0 %v582
    %4397 = vmatprep.subr.mxu0 0.0
    %4398 = vmatpush1.msra.mxu0 %v579
    %4399 = vmatprep.subr.mxu0 0.0
    %4400 = vmatpush1.msra.mxu0 %v576
    %4401 = vmatprep.subr.mxu0 0.0
    %4402 = vmatpush1.msra.mxu0 %v573
    %4403 = vmatprep.subr.mxu0 0.0
    %4404 = vmatpush1.msra.mxu0 %v570
    %4405 = vmatprep.subr.mxu0 0.0
    %4406 = vmatpush2.msra.mxu0 0.0
    %4407 = vmatprep.subr.mxu0 0.0
    %4408 = vmatpush2.msra.mxu0 0.0
    %4409 = vmatprep.subr.mxu0 0.0
    %4410 = vmatpush2.msra.mxu0 0.0
    %4411 = vmatprep.subr.mxu0 0.0
    %4412 = vmatpush2.msra.mxu0 0.0
    %4413 = vmatprep.subr.mxu0 0.0
    %4414 = vmatpush2.msra.mxu0 0.0
    %4415 = vmatprep.subr.mxu0 0.0
    %4416 = vmatpush2.msra.mxu0 0.0
    %4417 = vmatprep.subr.mxu0 0.0
    %4418 = vmatpush2.msra.mxu0 0.0
    %4419 = vmatprep.subr.mxu0 0.0
    %4420 = vmatpush2.msra.mxu0 0.0
    %4421 = vmatprep.subr.mxu0 0.0
    %4422 = vmatpush2.msra.mxu0 0.0
    %4423 = vmatprep.subr.mxu0 0.0
    %4424 = vmatpush2.msra.mxu0 0.0
    %4425 = vmatprep.subr.mxu0 0.0
    %4426 = vmatpush2.msra.mxu0 0.0
    %4427 = vmatprep.subr.mxu0 0.0
    %4428 = vmatpush2.msra.mxu0 0.0
    %4429 = vmatprep.subr.mxu0 0.0
    %4430 = vmatpush2.msra.mxu0 0.0
    %4431 = vmatprep.subr.mxu0 0.0
    %4432 = vmatpush2.msra.mxu0 0.0
    %4433 = vmatprep.subr.mxu0 0.0
    %4434 = vmatpush2.msra.mxu0 0.0
    %4435 = vmatprep.subr.mxu0 0.0
    %4436 = vmatpush2.msra.mxu0 0.0
    %4437 = vmatprep.mubr.f32.mxu0 0.0
    %4438 = vmatmul.mubr.f32.gmra.mxu0 %v3830
    %v4439 = vpop.f32.mrf.mxu0
    %v4440 = vadd.f32 %v630, %v4439
    %v4441 = vpop.f32.mrf.mxu0
    %4442 = vdwg.mxu0
    %4443 = vmatprep.subr.mxu0 %v565
    %4444 = vmatpush1.msra.mxu0 %v564
    %4445 = vmatprep.subr.mxu0 %v562
    %4446 = vmatpush1.msra.mxu0 %v561
    %4447 = vmatprep.subr.mxu0 %v559
    %4448 = vmatpush1.msra.mxu0 %v558
    %4449 = vmatprep.subr.mxu0 %v556
    %4450 = vmatpush1.msra.mxu0 %v555
    %4451 = vmatprep.subr.mxu0 %v553
    %4452 = vmatpush1.msra.mxu0 %v552
    %4453 = vmatprep.subr.mxu0 %v550
    %4454 = vmatpush1.msra.mxu0 %v549
    %4455 = vmatprep.subr.mxu0 %v547
    %4456 = vmatpush1.msra.mxu0 %v546
    %4457 = vmatprep.subr.mxu0 %v544
    %4458 = vmatpush1.msra.mxu0 %v543
    %4459 = vmatprep.subr.mxu0 %v541
    %4460 = vmatpush1.msra.mxu0 %v540
    %4461 = vmatprep.subr.mxu0 %v538
    %4462 = vmatpush1.msra.mxu0 %v537
    %4463 = vmatprep.subr.mxu0 %v535
    %4464 = vmatpush1.msra.mxu0 %v534
    %4465 = vmatprep.subr.mxu0 %v532
    %4466 = vmatpush1.msra.mxu0 %v531
    %4467 = vmatprep.subr.mxu0 %v529
    %4468 = vmatpush1.msra.mxu0 %v528
    %4469 = vmatprep.subr.mxu0 %v526
    %4470 = vmatpush1.msra.mxu0 %v525
    %4471 = vmatprep.subr.mxu0 %v523
    %4472 = vmatpush1.msra.mxu0 %v522
    %4473 = vmatprep.subr.mxu0 %v520
    %4474 = vmatpush1.msra.mxu0 %v519
    %4475 = vmatprep.subr.mxu0 0.0
    %4476 = vmatpush2.msra.mxu0 0.0
    %4477 = vmatprep.subr.mxu0 0.0
    %4478 = vmatpush2.msra.mxu0 0.0
    %4479 = vmatprep.subr.mxu0 0.0
    %4480 = vmatpush2.msra.mxu0 0.0
    %4481 = vmatprep.subr.mxu0 0.0
    %4482 = vmatpush2.msra.mxu0 0.0
    %4483 = vmatprep.subr.mxu0 0.0
    %4484 = vmatpush2.msra.mxu0 0.0
    %4485 = vmatprep.subr.mxu0 0.0
    %4486 = vmatpush2.msra.mxu0 0.0
    %4487 = vmatprep.subr.mxu0 0.0
    %4488 = vmatpush2.msra.mxu0 0.0
    %4489 = vmatprep.subr.mxu0 0.0
    %4490 = vmatpush2.msra.mxu0 0.0
    %4491 = vmatprep.subr.mxu0 0.0
    %4492 = vmatpush2.msra.mxu0 0.0
    %4493 = vmatprep.subr.mxu0 0.0
    %4494 = vmatpush2.msra.mxu0 0.0
    %4495 = vmatprep.subr.mxu0 0.0
    %4496 = vmatpush2.msra.mxu0 0.0
    %4497 = vmatprep.subr.mxu0 0.0
    %4498 = vmatpush2.msra.mxu0 0.0
    %4499 = vmatprep.subr.mxu0 0.0
    %4500 = vmatpush2.msra.mxu0 0.0
    %4501 = vmatprep.subr.mxu0 0.0
    %4502 = vmatpush2.msra.mxu0 0.0
    %4503 = vmatprep.subr.mxu0 0.0
    %4504 = vmatpush2.msra.mxu0 0.0
    %4505 = vmatprep.subr.mxu0 0.0
    %4506 = vmatpush2.msra.mxu0 0.0
    %4507 = vmatprep.mubr.f32.mxu0 0.0
    %4508 = vmatmul.mubr.f32.gmra.mxu0 %v4134
    %v4509 = vpop.f32.mrf.mxu0
    %v4510 = vadd.f32 0.0, %v4509
    %v4511 = vpop.f32.mrf.mxu0
    %v4512 = vadd.f32 0.0, %v4511
    %4513 = vdwg.mxu0
    %4514 = vmatprep.subr.mxu0 0.0
    %4515 = vmatpush1.msra.mxu0 %v566
    %4516 = vmatprep.subr.mxu0 0.0
    %4517 = vmatpush1.msra.mxu0 %v563
    %4518 = vmatprep.subr.mxu0 0.0
    %4519 = vmatpush1.msra.mxu0 %v560
    %4520 = vmatprep.subr.mxu0 0.0
    %4521 = vmatpush1.msra.mxu0 %v557
    %4522 = vmatprep.subr.mxu0 0.0
    %4523 = vmatpush1.msra.mxu0 %v554
    %4524 = vmatprep.subr.mxu0 0.0
    %4525 = vmatpush1.msra.mxu0 %v551
    %4526 = vmatprep.subr.mxu0 0.0
    %4527 = vmatpush1.msra.mxu0 %v548
    %4528 = vmatprep.subr.mxu0 0.0
    %4529 = vmatpush1.msra.mxu0 %v545
    %4530 = vmatprep.subr.mxu0 0.0
    %4531 = vmatpush1.msra.mxu0 %v542
    %4532 = vmatprep.subr.mxu0 0.0
    %4533 = vmatpush1.msra.mxu0 %v539
    %4534 = vmatprep.subr.mxu0 0.0
    %4535 = vmatpush1.msra.mxu0 %v536
    %4536 = vmatprep.subr.mxu0 0.0
    %4537 = vmatpush1.msra.mxu0 %v533
    %4538 = vmatprep.subr.mxu0 0.0
    %4539 = vmatpush1.msra.mxu0 %v530
    %4540 = vmatprep.subr.mxu0 0.0
    %4541 = vmatpush1.msra.mxu0 %v527
    %4542 = vmatprep.subr.mxu0 0.0
    %4543 = vmatpush1.msra.mxu0 %v524
    %4544 = vmatprep.subr.mxu0 0.0
    %4545 = vmatpush1.msra.mxu0 %v521
    %4546 = vmatprep.subr.mxu0 0.0
    %4547 = vmatpush2.msra.mxu0 0.0
    %4548 = vmatprep.subr.mxu0 0.0
    %4549 = vmatpush2.msra.mxu0 0.0
    %4550 = vmatprep.subr.mxu0 0.0
    %4551 = vmatpush2.msra.mxu0 0.0
    %4552 = vmatprep.subr.mxu0 0.0
    %4553 = vmatpush2.msra.mxu0 0.0
    %4554 = vmatprep.subr.mxu0 0.0
    %4555 = vmatpush2.msra.mxu0 0.0
    %4556 = vmatprep.subr.mxu0 0.0
    %4557 = vmatpush2.msra.mxu0 0.0
    %4558 = vmatprep.subr.mxu0 0.0
    %4559 = vmatpush2.msra.mxu0 0.0
    %4560 = vmatprep.subr.mxu0 0.0
    %4561 = vmatpush2.msra.mxu0 0.0
    %4562 = vmatprep.subr.mxu0 0.0
    %4563 = vmatpush2.msra.mxu0 0.0
    %4564 = vmatprep.subr.mxu0 0.0
    %4565 = vmatpush2.msra.mxu0 0.0
    %4566 = vmatprep.subr.mxu0 0.0
    %4567 = vmatpush2.msra.mxu0 0.0
    %4568 = vmatprep.subr.mxu0 0.0
    %4569 = vmatpush2.msra.mxu0 0.0
    %4570 = vmatprep.subr.mxu0 0.0
    %4571 = vmatpush2.msra.mxu0 0.0
    %4572 = vmatprep.subr.mxu0 0.0
    %4573 = vmatpush2.msra.mxu0 0.0
    %4574 = vmatprep.subr.mxu0 0.0
    %4575 = vmatpush2.msra.mxu0 0.0
    %4576 = vmatprep.subr.mxu0 0.0
    %4577 = vmatpush2.msra.mxu0 0.0
    %4578 = vmatprep.mubr.f32.mxu0 0.0
    %4579 = vmatmul.mubr.f32.gmra.mxu0 %v4134
    %v4580 = vpop.f32.mrf.mxu0
    %v4581 = vadd.f32 0.0, %v4580
    %v4582 = vpop.f32.mrf.mxu0
    %4583 = vdwg.mxu0
    %v4584 = vadd.f32 %v4369, %v4510
    %v4585 = vxor.u32 %v4584, 2147483648
    %v4586 = vmul.f32 %v4585, 1.442695
    %v4587 = vpow.pop %v4586
    %v4588 = vadd.f32 %v4587, 1.0
    %v4589 = vrcp.pop %v4588
    %v4590 = vmul.f32 1.0, %v4589
    %v4591 = vadd.f32 %v4371, %v4512
    %v4592 = vxor.u32 %v4591, 2147483648
    %v4593 = vmul.f32 %v4592, 1.442695
    %v4594 = vpow.pop %v4593
    %v4595 = vadd.f32 %v4594, 1.0
    %v4596 = vrcp.pop %v4595
    %v4597 = vmul.f32 1.0, %v4596
    %v4598 = vadd.f32 %v4581, %v647
    %v4599 = vmul.f32 %v4590, %v4598
    %v4600 = vadd.f32 %v4440, %v4599
    %v4601 = vtanh.pop %v4600
    %v4602 = vsub.f32 1.0, %v4597
    %v4603 = vmul.f32 %v4602, %v4601
    %v4604 = vmul.f32 %v4597, %v4134
    %v4605 = vadd.f32 %v4603, %v4604
    %s4606 = scalar_lea.vmem [#allocation2], 216
    %v4607 = vld [vmem:[%s4606] sm:$0xff]
    %v4608 = vld [vmem:[%s4606 + $0x8] sm:$0xff]
    %v4609 = vld [vmem:[%s4606 + $0x10] sm:$0xff]
    %4610 = vmatprep.subr.mxu0 %v516
    %4611 = vmatpush1.msra.mxu0 %v515
    %4612 = vmatprep.subr.mxu0 %v513
    %4613 = vmatpush1.msra.mxu0 %v512
    %4614 = vmatprep.subr.mxu0 %v510
    %4615 = vmatpush1.msra.mxu0 %v509
    %4616 = vmatprep.subr.mxu0 %v507
    %4617 = vmatpush1.msra.mxu0 %v506
    %4618 = vmatprep.subr.mxu0 %v504
    %4619 = vmatpush1.msra.mxu0 %v503
    %4620 = vmatprep.subr.mxu0 %v501
    %4621 = vmatpush1.msra.mxu0 %v500
    %4622 = vmatprep.subr.mxu0 %v498
    %4623 = vmatpush1.msra.mxu0 %v497
    %4624 = vmatprep.subr.mxu0 %v495
    %4625 = vmatpush1.msra.mxu0 %v494
    %4626 = vmatprep.subr.mxu0 %v492
    %4627 = vmatpush1.msra.mxu0 %v491
    %4628 = vmatprep.subr.mxu0 %v489
    %4629 = vmatpush1.msra.mxu0 %v488
    %4630 = vmatprep.subr.mxu0 %v486
    %4631 = vmatpush1.msra.mxu0 %v485
    %4632 = vmatprep.subr.mxu0 %v483
    %4633 = vmatpush1.msra.mxu0 %v482
    %4634 = vmatprep.subr.mxu0 %v480
    %4635 = vmatpush1.msra.mxu0 %v479
    %4636 = vmatprep.subr.mxu0 %v477
    %4637 = vmatpush1.msra.mxu0 %v476
    %4638 = vmatprep.subr.mxu0 %v474
    %4639 = vmatpush1.msra.mxu0 %v473
    %4640 = vmatprep.subr.mxu0 %v471
    %4641 = vmatpush1.msra.mxu0 %v470
    %4642 = vmatprep.subr.mxu0 0.0
    %4643 = vmatpush2.msra.mxu0 0.0
    %4644 = vmatprep.subr.mxu0 0.0
    %4645 = vmatpush2.msra.mxu0 0.0
    %4646 = vmatprep.subr.mxu0 0.0
    %4647 = vmatpush2.msra.mxu0 0.0
    %4648 = vmatprep.subr.mxu0 0.0
    %4649 = vmatpush2.msra.mxu0 0.0
    %4650 = vmatprep.subr.mxu0 0.0
    %4651 = vmatpush2.msra.mxu0 0.0
    %4652 = vmatprep.subr.mxu0 0.0
    %4653 = vmatpush2.msra.mxu0 0.0
    %4654 = vmatprep.subr.mxu0 0.0
    %4655 = vmatpush2.msra.mxu0 0.0
    %4656 = vmatprep.subr.mxu0 0.0
    %4657 = vmatpush2.msra.mxu0 0.0
    %4658 = vmatprep.subr.mxu0 0.0
    %4659 = vmatpush2.msra.mxu0 0.0
    %4660 = vmatprep.subr.mxu0 0.0
    %4661 = vmatpush2.msra.mxu0 0.0
    %4662 = vmatprep.subr.mxu0 0.0
    %4663 = vmatpush2.msra.mxu0 0.0
    %4664 = vmatprep.subr.mxu0 0.0
    %4665 = vmatpush2.msra.mxu0 0.0
    %4666 = vmatprep.subr.mxu0 0.0
    %4667 = vmatpush2.msra.mxu0 0.0
    %4668 = vmatprep.subr.mxu0 0.0
    %4669 = vmatpush2.msra.mxu0 0.0
    %4670 = vmatprep.subr.mxu0 0.0
    %4671 = vmatpush2.msra.mxu0 0.0
    %4672 = vmatprep.subr.mxu0 0.0
    %4673 = vmatpush2.msra.mxu0 0.0
    %4674 = vmatprep.mubr.f32.mxu0 0.0
    %4675 = vmatmul.mubr.f32.gmra.mxu0 %v4301
    %v4676 = vpop.f32.mrf.mxu0
    %v4677 = vadd.f32 0.0, %v4676
    %v4678 = vpop.f32.mrf.mxu0
    %v4679 = vadd.f32 0.0, %v4678
    %4680 = vdwg.mxu0
    %4681 = vmatprep.subr.mxu0 0.0
    %4682 = vmatpush1.msra.mxu0 %v517
    %4683 = vmatprep.subr.mxu0 0.0
    %4684 = vmatpush1.msra.mxu0 %v514
    %4685 = vmatprep.subr.mxu0 0.0
    %4686 = vmatpush1.msra.mxu0 %v511
    %4687 = vmatprep.subr.mxu0 0.0
    %4688 = vmatpush1.msra.mxu0 %v508
    %4689 = vmatprep.subr.mxu0 0.0
    %4690 = vmatpush1.msra.mxu0 %v505
    %4691 = vmatprep.subr.mxu0 0.0
    %4692 = vmatpush1.msra.mxu0 %v502
    %4693 = vmatprep.subr.mxu0 0.0
    %4694 = vmatpush1.msra.mxu0 %v499
    %4695 = vmatprep.subr.mxu0 0.0
    %4696 = vmatpush1.msra.mxu0 %v496
    %4697 = vmatprep.subr.mxu0 0.0
    %4698 = vmatpush1.msra.mxu0 %v493
    %4699 = vmatprep.subr.mxu0 0.0
    %4700 = vmatpush1.msra.mxu0 %v490
    %4701 = vmatprep.subr.mxu0 0.0
    %4702 = vmatpush1.msra.mxu0 %v487
    %4703 = vmatprep.subr.mxu0 0.0
    %4704 = vmatpush1.msra.mxu0 %v484
    %4705 = vmatprep.subr.mxu0 0.0
    %4706 = vmatpush1.msra.mxu0 %v481
    %4707 = vmatprep.subr.mxu0 0.0
    %4708 = vmatpush1.msra.mxu0 %v478
    %4709 = vmatprep.subr.mxu0 0.0
    %4710 = vmatpush1.msra.mxu0 %v475
    %4711 = vmatprep.subr.mxu0 0.0
    %4712 = vmatpush1.msra.mxu0 %v472
    %4713 = vmatprep.subr.mxu0 0.0
    %4714 = vmatpush2.msra.mxu0 0.0
    %4715 = vmatprep.subr.mxu0 0.0
    %4716 = vmatpush2.msra.mxu0 0.0
    %4717 = vmatprep.subr.mxu0 0.0
    %4718 = vmatpush2.msra.mxu0 0.0
    %4719 = vmatprep.subr.mxu0 0.0
    %4720 = vmatpush2.msra.mxu0 0.0
    %4721 = vmatprep.subr.mxu0 0.0
    %4722 = vmatpush2.msra.mxu0 0.0
    %4723 = vmatprep.subr.mxu0 0.0
    %4724 = vmatpush2.msra.mxu0 0.0
    %4725 = vmatprep.subr.mxu0 0.0
    %4726 = vmatpush2.msra.mxu0 0.0
    %4727 = vmatprep.subr.mxu0 0.0
    %4728 = vmatpush2.msra.mxu0 0.0
    %4729 = vmatprep.subr.mxu0 0.0
    %4730 = vmatpush2.msra.mxu0 0.0
    %4731 = vmatprep.subr.mxu0 0.0
    %4732 = vmatpush2.msra.mxu0 0.0
    %4733 = vmatprep.subr.mxu0 0.0
    %4734 = vmatpush2.msra.mxu0 0.0
    %4735 = vmatprep.subr.mxu0 0.0
    %4736 = vmatpush2.msra.mxu0 0.0
    %4737 = vmatprep.subr.mxu0 0.0
    %4738 = vmatpush2.msra.mxu0 0.0
    %4739 = vmatprep.subr.mxu0 0.0
    %4740 = vmatpush2.msra.mxu0 0.0
    %4741 = vmatprep.subr.mxu0 0.0
    %4742 = vmatpush2.msra.mxu0 0.0
    %4743 = vmatprep.subr.mxu0 0.0
    %4744 = vmatpush2.msra.mxu0 0.0
    %4745 = vmatprep.mubr.f32.mxu0 0.0
    %4746 = vmatmul.mubr.f32.gmra.mxu0 %v4301
    %v4747 = vpop.f32.mrf.mxu0
    %v4748 = vadd.f32 0.0, %v4747
    %v4749 = vpop.f32.mrf.mxu0
    %4750 = vdwg.mxu0
    %v4751 = vadd.f32 %v4607, %v4677
    %v4752 = vxor.u32 %v4751, 2147483648
    %v4753 = vmul.f32 %v4752, 1.442695
    %v4754 = vpow.pop %v4753
    %v4755 = vadd.f32 %v4754, 1.0
    %v4756 = vrcp.pop %v4755
    %v4757 = vmul.f32 1.0, %v4756
    %v4758 = vadd.f32 %v4608, %v4679
    %v4759 = vxor.u32 %v4758, 2147483648
    %v4760 = vmul.f32 %v4759, 1.442695
    %v4761 = vpow.pop %v4760
    %v4762 = vadd.f32 %v4761, 1.0
    %v4763 = vrcp.pop %v4762
    %v4764 = vmul.f32 1.0, %v4763
    %v4765 = vadd.f32 %v4748, %v639
    %v4766 = vmul.f32 %v4757, %v4765
    %v4767 = vadd.f32 %v4609, %v4766
    %v4768 = vtanh.pop %v4767
    %v4769 = vsub.f32 1.0, %v4764
    %v4770 = vmul.f32 %v4769, %v4768
    %v4771 = vmul.f32 %v4764, %v4301
    %v4772 = vadd.f32 %v4770, %v4771
    %4773 = vmatprep.subr.mxu0 %v614
    %4774 = vmatpush1.msra.mxu0 %v613
    %4775 = vmatprep.subr.mxu0 %v611
    %4776 = vmatpush1.msra.mxu0 %v610
    %4777 = vmatprep.subr.mxu0 %v608
    %4778 = vmatpush1.msra.mxu0 %v607
    %4779 = vmatprep.subr.mxu0 %v605
    %4780 = vmatpush1.msra.mxu0 %v604
    %4781 = vmatprep.subr.mxu0 %v602
    %4782 = vmatpush1.msra.mxu0 %v601
    %4783 = vmatprep.subr.mxu0 %v599
    %4784 = vmatpush1.msra.mxu0 %v598
    %4785 = vmatprep.subr.mxu0 %v596
    %4786 = vmatpush1.msra.mxu0 %v595
    %4787 = vmatprep.subr.mxu0 %v593
    %4788 = vmatpush1.msra.mxu0 %v592
    %4789 = vmatprep.subr.mxu0 %v590
    %4790 = vmatpush1.msra.mxu0 %v589
    %4791 = vmatprep.subr.mxu0 %v587
    %4792 = vmatpush1.msra.mxu0 %v586
    %4793 = vmatprep.subr.mxu0 %v584
    %4794 = vmatpush1.msra.mxu0 %v583
    %4795 = vmatprep.subr.mxu0 %v581
    %4796 = vmatpush1.msra.mxu0 %v580
    %4797 = vmatprep.subr.mxu0 %v578
    %4798 = vmatpush1.msra.mxu0 %v577
    %4799 = vmatprep.subr.mxu0 %v575
    %4800 = vmatpush1.msra.mxu0 %v574
    %4801 = vmatprep.subr.mxu0 %v572
    %4802 = vmatpush1.msra.mxu0 %v571
    %4803 = vmatprep.subr.mxu0 %v569
    %4804 = vmatpush1.msra.mxu0 %v568
    %4805 = vmatprep.subr.mxu0 0.0
    %4806 = vmatpush2.msra.mxu0 0.0
    %4807 = vmatprep.subr.mxu0 0.0
    %4808 = vmatpush2.msra.mxu0 0.0
    %4809 = vmatprep.subr.mxu0 0.0
    %4810 = vmatpush2.msra.mxu0 0.0
    %4811 = vmatprep.subr.mxu0 0.0
    %4812 = vmatpush2.msra.mxu0 0.0
    %4813 = vmatprep.subr.mxu0 0.0
    %4814 = vmatpush2.msra.mxu0 0.0
    %4815 = vmatprep.subr.mxu0 0.0
    %4816 = vmatpush2.msra.mxu0 0.0
    %4817 = vmatprep.subr.mxu0 0.0
    %4818 = vmatpush2.msra.mxu0 0.0
    %4819 = vmatprep.subr.mxu0 0.0
    %4820 = vmatpush2.msra.mxu0 0.0
    %4821 = vmatprep.subr.mxu0 0.0
    %4822 = vmatpush2.msra.mxu0 0.0
    %4823 = vmatprep.subr.mxu0 0.0
    %4824 = vmatpush2.msra.mxu0 0.0
    %4825 = vmatprep.subr.mxu0 0.0
    %4826 = vmatpush2.msra.mxu0 0.0
    %4827 = vmatprep.subr.mxu0 0.0
    %4828 = vmatpush2.msra.mxu0 0.0
    %4829 = vmatprep.subr.mxu0 0.0
    %4830 = vmatpush2.msra.mxu0 0.0
    %4831 = vmatprep.subr.mxu0 0.0
    %4832 = vmatpush2.msra.mxu0 0.0
    %4833 = vmatprep.subr.mxu0 0.0
    %4834 = vmatpush2.msra.mxu0 0.0
    %4835 = vmatprep.subr.mxu0 0.0
    %4836 = vmatpush2.msra.mxu0 0.0
    %4837 = vmatprep.mubr.f32.mxu0 0.0
    %4838 = vmatmul.mubr.f32.gmra.mxu0 %v4301
    %v4839 = vpop.f32.mrf.mxu0
    %v4840 = vadd.f32 %v622, %v4839
    %v4841 = vpop.f32.mrf.mxu0
    %v4842 = vadd.f32 %v626, %v4841
    %4843 = vdwg.mxu0
    %4844 = vmatprep.subr.mxu0 0.0
    %4845 = vmatpush1.msra.mxu0 %v615
    %4846 = vmatprep.subr.mxu0 0.0
    %4847 = vmatpush1.msra.mxu0 %v612
    %4848 = vmatprep.subr.mxu0 0.0
    %4849 = vmatpush1.msra.mxu0 %v609
    %4850 = vmatprep.subr.mxu0 0.0
    %4851 = vmatpush1.msra.mxu0 %v606
    %4852 = vmatprep.subr.mxu0 0.0
    %4853 = vmatpush1.msra.mxu0 %v603
    %4854 = vmatprep.subr.mxu0 0.0
    %4855 = vmatpush1.msra.mxu0 %v600
    %4856 = vmatprep.subr.mxu0 0.0
    %4857 = vmatpush1.msra.mxu0 %v597
    %4858 = vmatprep.subr.mxu0 0.0
    %4859 = vmatpush1.msra.mxu0 %v594
    %4860 = vmatprep.subr.mxu0 0.0
    %4861 = vmatpush1.msra.mxu0 %v591
    %4862 = vmatprep.subr.mxu0 0.0
    %4863 = vmatpush1.msra.mxu0 %v588
    %4864 = vmatprep.subr.mxu0 0.0
    %4865 = vmatpush1.msra.mxu0 %v585
    %4866 = vmatprep.subr.mxu0 0.0
    %4867 = vmatpush1.msra.mxu0 %v582
    %4868 = vmatprep.subr.mxu0 0.0
    %4869 = vmatpush1.msra.mxu0 %v579
    %4870 = vmatprep.subr.mxu0 0.0
    %4871 = vmatpush1.msra.mxu0 %v576
    %4872 = vmatprep.subr.mxu0 0.0
    %4873 = vmatpush1.msra.mxu0 %v573
    %4874 = vmatprep.subr.mxu0 0.0
    %4875 = vmatpush1.msra.mxu0 %v570
    %4876 = vmatprep.subr.mxu0 0.0
    %4877 = vmatpush2.msra.mxu0 0.0
    %4878 = vmatprep.subr.mxu0 0.0
    %4879 = vmatpush2.msra.mxu0 0.0
    %4880 = vmatprep.subr.mxu0 0.0
    %4881 = vmatpush2.msra.mxu0 0.0
    %4882 = vmatprep.subr.mxu0 0.0
    %4883 = vmatpush2.msra.mxu0 0.0
    %4884 = vmatprep.subr.mxu0 0.0
    %4885 = vmatpush2.msra.mxu0 0.0
    %4886 = vmatprep.subr.mxu0 0.0
    %4887 = vmatpush2.msra.mxu0 0.0
    %4888 = vmatprep.subr.mxu0 0.0
    %4889 = vmatpush2.msra.mxu0 0.0
    %4890 = vmatprep.subr.mxu0 0.0
    %4891 = vmatpush2.msra.mxu0 0.0
    %4892 = vmatprep.subr.mxu0 0.0
    %4893 = vmatpush2.msra.mxu0 0.0
    %4894 = vmatprep.subr.mxu0 0.0
    %4895 = vmatpush2.msra.mxu0 0.0
    %4896 = vmatprep.subr.mxu0 0.0
    %4897 = vmatpush2.msra.mxu0 0.0
    %4898 = vmatprep.subr.mxu0 0.0
    %4899 = vmatpush2.msra.mxu0 0.0
    %4900 = vmatprep.subr.mxu0 0.0
    %4901 = vmatpush2.msra.mxu0 0.0
    %4902 = vmatprep.subr.mxu0 0.0
    %4903 = vmatpush2.msra.mxu0 0.0
    %4904 = vmatprep.subr.mxu0 0.0
    %4905 = vmatpush2.msra.mxu0 0.0
    %4906 = vmatprep.subr.mxu0 0.0
    %4907 = vmatpush2.msra.mxu0 0.0
    %4908 = vmatprep.mubr.f32.mxu0 0.0
    %4909 = vmatmul.mubr.f32.gmra.mxu0 %v4301
    %v4910 = vpop.f32.mrf.mxu0
    %v4911 = vadd.f32 %v630, %v4910
    %v4912 = vpop.f32.mrf.mxu0
    %4913 = vdwg.mxu0
    %4914 = vmatprep.subr.mxu0 %v565
    %4915 = vmatpush1.msra.mxu0 %v564
    %4916 = vmatprep.subr.mxu0 %v562
    %4917 = vmatpush1.msra.mxu0 %v561
    %4918 = vmatprep.subr.mxu0 %v559
    %4919 = vmatpush1.msra.mxu0 %v558
    %4920 = vmatprep.subr.mxu0 %v556
    %4921 = vmatpush1.msra.mxu0 %v555
    %4922 = vmatprep.subr.mxu0 %v553
    %4923 = vmatpush1.msra.mxu0 %v552
    %4924 = vmatprep.subr.mxu0 %v550
    %4925 = vmatpush1.msra.mxu0 %v549
    %4926 = vmatprep.subr.mxu0 %v547
    %4927 = vmatpush1.msra.mxu0 %v546
    %4928 = vmatprep.subr.mxu0 %v544
    %4929 = vmatpush1.msra.mxu0 %v543
    %4930 = vmatprep.subr.mxu0 %v541
    %4931 = vmatpush1.msra.mxu0 %v540
    %4932 = vmatprep.subr.mxu0 %v538
    %4933 = vmatpush1.msra.mxu0 %v537
    %4934 = vmatprep.subr.mxu0 %v535
    %4935 = vmatpush1.msra.mxu0 %v534
    %4936 = vmatprep.subr.mxu0 %v532
    %4937 = vmatpush1.msra.mxu0 %v531
    %4938 = vmatprep.subr.mxu0 %v529
    %4939 = vmatpush1.msra.mxu0 %v528
    %4940 = vmatprep.subr.mxu0 %v526
    %4941 = vmatpush1.msra.mxu0 %v525
    %4942 = vmatprep.subr.mxu0 %v523
    %4943 = vmatpush1.msra.mxu0 %v522
    %4944 = vmatprep.subr.mxu0 %v520
    %4945 = vmatpush1.msra.mxu0 %v519
    %4946 = vmatprep.subr.mxu0 0.0
    %4947 = vmatpush2.msra.mxu0 0.0
    %4948 = vmatprep.subr.mxu0 0.0
    %4949 = vmatpush2.msra.mxu0 0.0
    %4950 = vmatprep.subr.mxu0 0.0
    %4951 = vmatpush2.msra.mxu0 0.0
    %4952 = vmatprep.subr.mxu0 0.0
    %4953 = vmatpush2.msra.mxu0 0.0
    %4954 = vmatprep.subr.mxu0 0.0
    %4955 = vmatpush2.msra.mxu0 0.0
    %4956 = vmatprep.subr.mxu0 0.0
    %4957 = vmatpush2.msra.mxu0 0.0
    %4958 = vmatprep.subr.mxu0 0.0
    %4959 = vmatpush2.msra.mxu0 0.0
    %4960 = vmatprep.subr.mxu0 0.0
    %4961 = vmatpush2.msra.mxu0 0.0
    %4962 = vmatprep.subr.mxu0 0.0
    %4963 = vmatpush2.msra.mxu0 0.0
    %4964 = vmatprep.subr.mxu0 0.0
    %4965 = vmatpush2.msra.mxu0 0.0
    %4966 = vmatprep.subr.mxu0 0.0
    %4967 = vmatpush2.msra.mxu0 0.0
    %4968 = vmatprep.subr.mxu0 0.0
    %4969 = vmatpush2.msra.mxu0 0.0
    %4970 = vmatprep.subr.mxu0 0.0
    %4971 = vmatpush2.msra.mxu0 0.0
    %4972 = vmatprep.subr.mxu0 0.0
    %4973 = vmatpush2.msra.mxu0 0.0
    %4974 = vmatprep.subr.mxu0 0.0
    %4975 = vmatpush2.msra.mxu0 0.0
    %4976 = vmatprep.subr.mxu0 0.0
    %4977 = vmatpush2.msra.mxu0 0.0
    %4978 = vmatprep.mubr.f32.mxu0 0.0
    %4979 = vmatmul.mubr.f32.gmra.mxu0 %v4605
    %v4980 = vpop.f32.mrf.mxu0
    %v4981 = vadd.f32 0.0, %v4980
    %v4982 = vpop.f32.mrf.mxu0
    %v4983 = vadd.f32 0.0, %v4982
    %4984 = vdwg.mxu0
    %4985 = vmatprep.subr.mxu0 0.0
    %4986 = vmatpush1.msra.mxu0 %v566
    %4987 = vmatprep.subr.mxu0 0.0
    %4988 = vmatpush1.msra.mxu0 %v563
    %4989 = vmatprep.subr.mxu0 0.0
    %4990 = vmatpush1.msra.mxu0 %v560
    %4991 = vmatprep.subr.mxu0 0.0
    %4992 = vmatpush1.msra.mxu0 %v557
    %4993 = vmatprep.subr.mxu0 0.0
    %4994 = vmatpush1.msra.mxu0 %v554
    %4995 = vmatprep.subr.mxu0 0.0
    %4996 = vmatpush1.msra.mxu0 %v551
    %4997 = vmatprep.subr.mxu0 0.0
    %4998 = vmatpush1.msra.mxu0 %v548
    %4999 = vmatprep.subr.mxu0 0.0
    %5000 = vmatpush1.msra.mxu0 %v545
    %5001 = vmatprep.subr.mxu0 0.0
    %5002 = vmatpush1.msra.mxu0 %v542
    %5003 = vmatprep.subr.mxu0 0.0
    %5004 = vmatpush1.msra.mxu0 %v539
    %5005 = vmatprep.subr.mxu0 0.0
    %5006 = vmatpush1.msra.mxu0 %v536
    %5007 = vmatprep.subr.mxu0 0.0
    %5008 = vmatpush1.msra.mxu0 %v533
    %5009 = vmatprep.subr.mxu0 0.0
    %5010 = vmatpush1.msra.mxu0 %v530
    %5011 = vmatprep.subr.mxu0 0.0
    %5012 = vmatpush1.msra.mxu0 %v527
    %5013 = vmatprep.subr.mxu0 0.0
    %5014 = vmatpush1.msra.mxu0 %v524
    %5015 = vmatprep.subr.mxu0 0.0
    %5016 = vmatpush1.msra.mxu0 %v521
    %5017 = vmatprep.subr.mxu0 0.0
    %5018 = vmatpush2.msra.mxu0 0.0
    %5019 = vmatprep.subr.mxu0 0.0
    %5020 = vmatpush2.msra.mxu0 0.0
    %5021 = vmatprep.subr.mxu0 0.0
    %5022 = vmatpush2.msra.mxu0 0.0
    %5023 = vmatprep.subr.mxu0 0.0
    %5024 = vmatpush2.msra.mxu0 0.0
    %5025 = vmatprep.subr.mxu0 0.0
    %5026 = vmatpush2.msra.mxu0 0.0
    %5027 = vmatprep.subr.mxu0 0.0
    %5028 = vmatpush2.msra.mxu0 0.0
    %5029 = vmatprep.subr.mxu0 0.0
    %5030 = vmatpush2.msra.mxu0 0.0
    %5031 = vmatprep.subr.mxu0 0.0
    %5032 = vmatpush2.msra.mxu0 0.0
    %5033 = vmatprep.subr.mxu0 0.0
    %5034 = vmatpush2.msra.mxu0 0.0
    %5035 = vmatprep.subr.mxu0 0.0
    %5036 = vmatpush2.msra.mxu0 0.0
    %5037 = vmatprep.subr.mxu0 0.0
    %5038 = vmatpush2.msra.mxu0 0.0
    %5039 = vmatprep.subr.mxu0 0.0
    %5040 = vmatpush2.msra.mxu0 0.0
    %5041 = vmatprep.subr.mxu0 0.0
    %5042 = vmatpush2.msra.mxu0 0.0
    %5043 = vmatprep.subr.mxu0 0.0
    %5044 = vmatpush2.msra.mxu0 0.0
    %5045 = vmatprep.subr.mxu0 0.0
    %5046 = vmatpush2.msra.mxu0 0.0
    %5047 = vmatprep.subr.mxu0 0.0
    %5048 = vmatpush2.msra.mxu0 0.0
    %5049 = vmatprep.mubr.f32.mxu0 0.0
    %5050 = vmatmul.mubr.f32.gmra.mxu0 %v4605
    %v5051 = vpop.f32.mrf.mxu0
    %v5052 = vadd.f32 0.0, %v5051
    %v5053 = vpop.f32.mrf.mxu0
    %5054 = vdwg.mxu0
    %v5055 = vadd.f32 %v4840, %v4981
    %v5056 = vxor.u32 %v5055, 2147483648
    %v5057 = vmul.f32 %v5056, 1.442695
    %v5058 = vpow.pop %v5057
    %v5059 = vadd.f32 %v5058, 1.0
    %v5060 = vrcp.pop %v5059
    %v5061 = vmul.f32 1.0, %v5060
    %v5062 = vadd.f32 %v4842, %v4983
    %v5063 = vxor.u32 %v5062, 2147483648
    %v5064 = vmul.f32 %v5063, 1.442695
    %v5065 = vpow.pop %v5064
    %v5066 = vadd.f32 %v5065, 1.0
    %v5067 = vrcp.pop %v5066
    %v5068 = vmul.f32 1.0, %v5067
    %v5069 = vadd.f32 %v5052, %v647
    %v5070 = vmul.f32 %v5061, %v5069
    %v5071 = vadd.f32 %v4911, %v5070
    %v5072 = vtanh.pop %v5071
    %v5073 = vsub.f32 1.0, %v5068
    %v5074 = vmul.f32 %v5073, %v5072
    %v5075 = vmul.f32 %v5068, %v4605
    %v5076 = vadd.f32 %v5074, %v5075
    %5077 = vmatprep.subr.mxu0 0.0
    %5078 = vmatpush1.msra.mxu0 %v664
    %5079 = vmatprep.subr.mxu0 0.0
    %5080 = vmatpush1.msra.mxu0 %v663
    %5081 = vmatprep.subr.mxu0 0.0
    %5082 = vmatpush1.msra.mxu0 %v662
    %5083 = vmatprep.subr.mxu0 0.0
    %5084 = vmatpush1.msra.mxu0 %v661
    %5085 = vmatprep.subr.mxu0 0.0
    %5086 = vmatpush1.msra.mxu0 %v660
    %5087 = vmatprep.subr.mxu0 0.0
    %5088 = vmatpush1.msra.mxu0 %v659
    %5089 = vmatprep.subr.mxu0 0.0
    %5090 = vmatpush1.msra.mxu0 %v658
    %5091 = vmatprep.subr.mxu0 0.0
    %5092 = vmatpush1.msra.mxu0 %v657
    %5093 = vmatprep.subr.mxu0 0.0
    %5094 = vmatpush1.msra.mxu0 %v656
    %5095 = vmatprep.subr.mxu0 0.0
    %5096 = vmatpush1.msra.mxu0 %v655
    %5097 = vmatprep.subr.mxu0 0.0
    %5098 = vmatpush1.msra.mxu0 %v654
    %5099 = vmatprep.subr.mxu0 0.0
    %5100 = vmatpush1.msra.mxu0 %v653
    %5101 = vmatprep.subr.mxu0 0.0
    %5102 = vmatpush1.msra.mxu0 %v652
    %5103 = vmatprep.subr.mxu0 0.0
    %5104 = vmatpush1.msra.mxu0 %v651
    %5105 = vmatprep.subr.mxu0 0.0
    %5106 = vmatpush1.msra.mxu0 %v650
    %5107 = vmatprep.subr.mxu0 0.0
    %5108 = vmatpush1.msra.mxu0 %v649
    %5109 = vmatprep.subr.mxu0 0.0
    %5110 = vmatpush2.msra.mxu0 0.0
    %5111 = vmatprep.subr.mxu0 0.0
    %5112 = vmatpush2.msra.mxu0 0.0
    %5113 = vmatprep.subr.mxu0 0.0
    %5114 = vmatpush2.msra.mxu0 0.0
    %5115 = vmatprep.subr.mxu0 0.0
    %5116 = vmatpush2.msra.mxu0 0.0
    %5117 = vmatprep.subr.mxu0 0.0
    %5118 = vmatpush2.msra.mxu0 0.0
    %5119 = vmatprep.subr.mxu0 0.0
    %5120 = vmatpush2.msra.mxu0 0.0
    %5121 = vmatprep.subr.mxu0 0.0
    %5122 = vmatpush2.msra.mxu0 0.0
    %5123 = vmatprep.subr.mxu0 0.0
    %5124 = vmatpush2.msra.mxu0 0.0
    %5125 = vmatprep.subr.mxu0 0.0
    %5126 = vmatpush2.msra.mxu0 0.0
    %5127 = vmatprep.subr.mxu0 0.0
    %5128 = vmatpush2.msra.mxu0 0.0
    %5129 = vmatprep.subr.mxu0 0.0
    %5130 = vmatpush2.msra.mxu0 0.0
    %5131 = vmatprep.subr.mxu0 0.0
    %5132 = vmatpush2.msra.mxu0 0.0
    %5133 = vmatprep.subr.mxu0 0.0
    %5134 = vmatpush2.msra.mxu0 0.0
    %5135 = vmatprep.subr.mxu0 0.0
    %5136 = vmatpush2.msra.mxu0 0.0
    %5137 = vmatprep.subr.mxu0 0.0
    %5138 = vmatpush2.msra.mxu0 0.0
    %5139 = vmatprep.subr.mxu0 0.0
    %5140 = vmatpush2.msra.mxu0 0.0
    %5141 = vmatprep.mubr.f32.mxu0 0.0
    %5142 = vmatmul.mubr.f32.gmra.mxu0 %v5076
    %v5143 = vpop.f32.mrf.mxu0
    %v5144 = vadd.f32 %v670, %v5143
    %v5145 = vpop.f32.mrf.mxu0
    %5146 = vdwg.mxu0
    %5147 = vst [vmem:[#allocation12] sm:$0xff] %v5144
    %s5148 = scalar_lea.vmem [#allocation2], 240
    %v5149 = vld [vmem:[%s5148] sm:$0xff]
    %v5150 = vld [vmem:[%s5148 + $0x8] sm:$0xff]
    %v5151 = vld [vmem:[%s5148 + $0x10] sm:$0xff]
    %5152 = vmatprep.subr.mxu0 %v516
    %5153 = vmatpush1.msra.mxu0 %v515
    %5154 = vmatprep.subr.mxu0 %v513
    %5155 = vmatpush1.msra.mxu0 %v512
    %5156 = vmatprep.subr.mxu0 %v510
    %5157 = vmatpush1.msra.mxu0 %v509
    %5158 = vmatprep.subr.mxu0 %v507
    %5159 = vmatpush1.msra.mxu0 %v506
    %5160 = vmatprep.subr.mxu0 %v504
    %5161 = vmatpush1.msra.mxu0 %v503
    %5162 = vmatprep.subr.mxu0 %v501
    %5163 = vmatpush1.msra.mxu0 %v500
    %5164 = vmatprep.subr.mxu0 %v498
    %5165 = vmatpush1.msra.mxu0 %v497
    %5166 = vmatprep.subr.mxu0 %v495
    %5167 = vmatpush1.msra.mxu0 %v494
    %5168 = vmatprep.subr.mxu0 %v492
    %5169 = vmatpush1.msra.mxu0 %v491
    %5170 = vmatprep.subr.mxu0 %v489
    %5171 = vmatpush1.msra.mxu0 %v488
    %5172 = vmatprep.subr.mxu0 %v486
    %5173 = vmatpush1.msra.mxu0 %v485
    %5174 = vmatprep.subr.mxu0 %v483
    %5175 = vmatpush1.msra.mxu0 %v482
    %5176 = vmatprep.subr.mxu0 %v480
    %5177 = vmatpush1.msra.mxu0 %v479
    %5178 = vmatprep.subr.mxu0 %v477
    %5179 = vmatpush1.msra.mxu0 %v476
    %5180 = vmatprep.subr.mxu0 %v474
    %5181 = vmatpush1.msra.mxu0 %v473
    %5182 = vmatprep.subr.mxu0 %v471
    %5183 = vmatpush1.msra.mxu0 %v470
    %5184 = vmatprep.subr.mxu0 0.0
    %5185 = vmatpush2.msra.mxu0 0.0
    %5186 = vmatprep.subr.mxu0 0.0
    %5187 = vmatpush2.msra.mxu0 0.0
    %5188 = vmatprep.subr.mxu0 0.0
    %5189 = vmatpush2.msra.mxu0 0.0
    %5190 = vmatprep.subr.mxu0 0.0
    %5191 = vmatpush2.msra.mxu0 0.0
    %5192 = vmatprep.subr.mxu0 0.0
    %5193 = vmatpush2.msra.mxu0 0.0
    %5194 = vmatprep.subr.mxu0 0.0
    %5195 = vmatpush2.msra.mxu0 0.0
    %5196 = vmatprep.subr.mxu0 0.0
    %5197 = vmatpush2.msra.mxu0 0.0
    %5198 = vmatprep.subr.mxu0 0.0
    %5199 = vmatpush2.msra.mxu0 0.0
    %5200 = vmatprep.subr.mxu0 0.0
    %5201 = vmatpush2.msra.mxu0 0.0
    %5202 = vmatprep.subr.mxu0 0.0
    %5203 = vmatpush2.msra.mxu0 0.0
    %5204 = vmatprep.subr.mxu0 0.0
    %5205 = vmatpush2.msra.mxu0 0.0
    %5206 = vmatprep.subr.mxu0 0.0
    %5207 = vmatpush2.msra.mxu0 0.0
    %5208 = vmatprep.subr.mxu0 0.0
    %5209 = vmatpush2.msra.mxu0 0.0
    %5210 = vmatprep.subr.mxu0 0.0
    %5211 = vmatpush2.msra.mxu0 0.0
    %5212 = vmatprep.subr.mxu0 0.0
    %5213 = vmatpush2.msra.mxu0 0.0
    %5214 = vmatprep.subr.mxu0 0.0
    %5215 = vmatpush2.msra.mxu0 0.0
    %5216 = vmatprep.mubr.f32.mxu0 0.0
    %5217 = vmatmul.mubr.f32.gmra.mxu0 %v4772
    %v5218 = vpop.f32.mrf.mxu0
    %v5219 = vadd.f32 0.0, %v5218
    %v5220 = vpop.f32.mrf.mxu0
    %v5221 = vadd.f32 0.0, %v5220
    %5222 = vdwg.mxu0
    %5223 = vmatprep.subr.mxu0 0.0
    %5224 = vmatpush1.msra.mxu0 %v517
    %5225 = vmatprep.subr.mxu0 0.0
    %5226 = vmatpush1.msra.mxu0 %v514
    %5227 = vmatprep.subr.mxu0 0.0
    %5228 = vmatpush1.msra.mxu0 %v511
    %5229 = vmatprep.subr.mxu0 0.0
    %5230 = vmatpush1.msra.mxu0 %v508
    %5231 = vmatprep.subr.mxu0 0.0
    %5232 = vmatpush1.msra.mxu0 %v505
    %5233 = vmatprep.subr.mxu0 0.0
    %5234 = vmatpush1.msra.mxu0 %v502
    %5235 = vmatprep.subr.mxu0 0.0
    %5236 = vmatpush1.msra.mxu0 %v499
    %5237 = vmatprep.subr.mxu0 0.0
    %5238 = vmatpush1.msra.mxu0 %v496
    %5239 = vmatprep.subr.mxu0 0.0
    %5240 = vmatpush1.msra.mxu0 %v493
    %5241 = vmatprep.subr.mxu0 0.0
    %5242 = vmatpush1.msra.mxu0 %v490
    %5243 = vmatprep.subr.mxu0 0.0
    %5244 = vmatpush1.msra.mxu0 %v487
    %5245 = vmatprep.subr.mxu0 0.0
    %5246 = vmatpush1.msra.mxu0 %v484
    %5247 = vmatprep.subr.mxu0 0.0
    %5248 = vmatpush1.msra.mxu0 %v481
    %5249 = vmatprep.subr.mxu0 0.0
    %5250 = vmatpush1.msra.mxu0 %v478
    %5251 = vmatprep.subr.mxu0 0.0
    %5252 = vmatpush1.msra.mxu0 %v475
    %5253 = vmatprep.subr.mxu0 0.0
    %5254 = vmatpush1.msra.mxu0 %v472
    %5255 = vmatprep.subr.mxu0 0.0
    %5256 = vmatpush2.msra.mxu0 0.0
    %5257 = vmatprep.subr.mxu0 0.0
    %5258 = vmatpush2.msra.mxu0 0.0
    %5259 = vmatprep.subr.mxu0 0.0
    %5260 = vmatpush2.msra.mxu0 0.0
    %5261 = vmatprep.subr.mxu0 0.0
    %5262 = vmatpush2.msra.mxu0 0.0
    %5263 = vmatprep.subr.mxu0 0.0
    %5264 = vmatpush2.msra.mxu0 0.0
    %5265 = vmatprep.subr.mxu0 0.0
    %5266 = vmatpush2.msra.mxu0 0.0
    %5267 = vmatprep.subr.mxu0 0.0
    %5268 = vmatpush2.msra.mxu0 0.0
    %5269 = vmatprep.subr.mxu0 0.0
    %5270 = vmatpush2.msra.mxu0 0.0
    %5271 = vmatprep.subr.mxu0 0.0
    %5272 = vmatpush2.msra.mxu0 0.0
    %5273 = vmatprep.subr.mxu0 0.0
    %5274 = vmatpush2.msra.mxu0 0.0
    %5275 = vmatprep.subr.mxu0 0.0
    %5276 = vmatpush2.msra.mxu0 0.0
    %5277 = vmatprep.subr.mxu0 0.0
    %5278 = vmatpush2.msra.mxu0 0.0
    %5279 = vmatprep.subr.mxu0 0.0
    %5280 = vmatpush2.msra.mxu0 0.0
    %5281 = vmatprep.subr.mxu0 0.0
    %5282 = vmatpush2.msra.mxu0 0.0
    %5283 = vmatprep.subr.mxu0 0.0
    %5284 = vmatpush2.msra.mxu0 0.0
    %5285 = vmatprep.subr.mxu0 0.0
    %5286 = vmatpush2.msra.mxu0 0.0
    %5287 = vmatprep.mubr.f32.mxu0 0.0
    %5288 = vmatmul.mubr.f32.gmra.mxu0 %v4772
    %v5289 = vpop.f32.mrf.mxu0
    %v5290 = vadd.f32 0.0, %v5289
    %v5291 = vpop.f32.mrf.mxu0
    %5292 = vdwg.mxu0
    %v5293 = vadd.f32 %v5149, %v5219
    %v5294 = vxor.u32 %v5293, 2147483648
    %v5295 = vmul.f32 %v5294, 1.442695
    %v5296 = vpow.pop %v5295
    %v5297 = vadd.f32 %v5296, 1.0
    %v5298 = vrcp.pop %v5297
    %v5299 = vmul.f32 1.0, %v5298
    %v5300 = vadd.f32 %v5150, %v5221
    %v5301 = vxor.u32 %v5300, 2147483648
    %v5302 = vmul.f32 %v5301, 1.442695
    %v5303 = vpow.pop %v5302
    %v5304 = vadd.f32 %v5303, 1.0
    %v5305 = vrcp.pop %v5304
    %v5306 = vmul.f32 1.0, %v5305
    %v5307 = vadd.f32 %v5290, %v639
    %v5308 = vmul.f32 %v5299, %v5307
    %v5309 = vadd.f32 %v5151, %v5308
    %v5310 = vtanh.pop %v5309
    %v5311 = vsub.f32 1.0, %v5306
    %v5312 = vmul.f32 %v5311, %v5310
    %v5313 = vmul.f32 %v5306, %v4772
    %v5314 = vadd.f32 %v5312, %v5313
    %5315 = vmatprep.subr.mxu0 %v614
    %5316 = vmatpush1.msra.mxu0 %v613
    %5317 = vmatprep.subr.mxu0 %v611
    %5318 = vmatpush1.msra.mxu0 %v610
    %5319 = vmatprep.subr.mxu0 %v608
    %5320 = vmatpush1.msra.mxu0 %v607
    %5321 = vmatprep.subr.mxu0 %v605
    %5322 = vmatpush1.msra.mxu0 %v604
    %5323 = vmatprep.subr.mxu0 %v602
    %5324 = vmatpush1.msra.mxu0 %v601
    %5325 = vmatprep.subr.mxu0 %v599
    %5326 = vmatpush1.msra.mxu0 %v598
    %5327 = vmatprep.subr.mxu0 %v596
    %5328 = vmatpush1.msra.mxu0 %v595
    %5329 = vmatprep.subr.mxu0 %v593
    %5330 = vmatpush1.msra.mxu0 %v592
    %5331 = vmatprep.subr.mxu0 %v590
    %5332 = vmatpush1.msra.mxu0 %v589
    %5333 = vmatprep.subr.mxu0 %v587
    %5334 = vmatpush1.msra.mxu0 %v586
    %5335 = vmatprep.subr.mxu0 %v584
    %5336 = vmatpush1.msra.mxu0 %v583
    %5337 = vmatprep.subr.mxu0 %v581
    %5338 = vmatpush1.msra.mxu0 %v580
    %5339 = vmatprep.subr.mxu0 %v578
    %5340 = vmatpush1.msra.mxu0 %v577
    %5341 = vmatprep.subr.mxu0 %v575
    %5342 = vmatpush1.msra.mxu0 %v574
    %5343 = vmatprep.subr.mxu0 %v572
    %5344 = vmatpush1.msra.mxu0 %v571
    %5345 = vmatprep.subr.mxu0 %v569
    %5346 = vmatpush1.msra.mxu0 %v568
    %5347 = vmatprep.subr.mxu0 0.0
    %5348 = vmatpush2.msra.mxu0 0.0
    %5349 = vmatprep.subr.mxu0 0.0
    %5350 = vmatpush2.msra.mxu0 0.0
    %5351 = vmatprep.subr.mxu0 0.0
    %5352 = vmatpush2.msra.mxu0 0.0
    %5353 = vmatprep.subr.mxu0 0.0
    %5354 = vmatpush2.msra.mxu0 0.0
    %5355 = vmatprep.subr.mxu0 0.0
    %5356 = vmatpush2.msra.mxu0 0.0
    %5357 = vmatprep.subr.mxu0 0.0
    %5358 = vmatpush2.msra.mxu0 0.0
    %5359 = vmatprep.subr.mxu0 0.0
    %5360 = vmatpush2.msra.mxu0 0.0
    %5361 = vmatprep.subr.mxu0 0.0
    %5362 = vmatpush2.msra.mxu0 0.0
    %5363 = vmatprep.subr.mxu0 0.0
    %5364 = vmatpush2.msra.mxu0 0.0
    %5365 = vmatprep.subr.mxu0 0.0
    %5366 = vmatpush2.msra.mxu0 0.0
    %5367 = vmatprep.subr.mxu0 0.0
    %5368 = vmatpush2.msra.mxu0 0.0
    %5369 = vmatprep.subr.mxu0 0.0
    %5370 = vmatpush2.msra.mxu0 0.0
    %5371 = vmatprep.subr.mxu0 0.0
    %5372 = vmatpush2.msra.mxu0 0.0
    %5373 = vmatprep.subr.mxu0 0.0
    %5374 = vmatpush2.msra.mxu0 0.0
    %5375 = vmatprep.subr.mxu0 0.0
    %5376 = vmatpush2.msra.mxu0 0.0
    %5377 = vmatprep.subr.mxu0 0.0
    %5378 = vmatpush2.msra.mxu0 0.0
    %5379 = vmatprep.mubr.f32.mxu0 0.0
    %5380 = vmatmul.mubr.f32.gmra.mxu0 %v4772
    %v5381 = vpop.f32.mrf.mxu0
    %v5382 = vadd.f32 %v622, %v5381
    %v5383 = vpop.f32.mrf.mxu0
    %v5384 = vadd.f32 %v626, %v5383
    %5385 = vdwg.mxu0
    %5386 = vmatprep.subr.mxu0 0.0
    %5387 = vmatpush1.msra.mxu0 %v615
    %5388 = vmatprep.subr.mxu0 0.0
    %5389 = vmatpush1.msra.mxu0 %v612
    %5390 = vmatprep.subr.mxu0 0.0
    %5391 = vmatpush1.msra.mxu0 %v609
    %5392 = vmatprep.subr.mxu0 0.0
    %5393 = vmatpush1.msra.mxu0 %v606
    %5394 = vmatprep.subr.mxu0 0.0
    %5395 = vmatpush1.msra.mxu0 %v603
    %5396 = vmatprep.subr.mxu0 0.0
    %5397 = vmatpush1.msra.mxu0 %v600
    %5398 = vmatprep.subr.mxu0 0.0
    %5399 = vmatpush1.msra.mxu0 %v597
    %5400 = vmatprep.subr.mxu0 0.0
    %5401 = vmatpush1.msra.mxu0 %v594
    %5402 = vmatprep.subr.mxu0 0.0
    %5403 = vmatpush1.msra.mxu0 %v591
    %5404 = vmatprep.subr.mxu0 0.0
    %5405 = vmatpush1.msra.mxu0 %v588
    %5406 = vmatprep.subr.mxu0 0.0
    %5407 = vmatpush1.msra.mxu0 %v585
    %5408 = vmatprep.subr.mxu0 0.0
    %5409 = vmatpush1.msra.mxu0 %v582
    %5410 = vmatprep.subr.mxu0 0.0
    %5411 = vmatpush1.msra.mxu0 %v579
    %5412 = vmatprep.subr.mxu0 0.0
    %5413 = vmatpush1.msra.mxu0 %v576
    %5414 = vmatprep.subr.mxu0 0.0
    %5415 = vmatpush1.msra.mxu0 %v573
    %5416 = vmatprep.subr.mxu0 0.0
    %5417 = vmatpush1.msra.mxu0 %v570
    %5418 = vmatprep.subr.mxu0 0.0
    %5419 = vmatpush2.msra.mxu0 0.0
    %5420 = vmatprep.subr.mxu0 0.0
    %5421 = vmatpush2.msra.mxu0 0.0
    %5422 = vmatprep.subr.mxu0 0.0
    %5423 = vmatpush2.msra.mxu0 0.0
    %5424 = vmatprep.subr.mxu0 0.0
    %5425 = vmatpush2.msra.mxu0 0.0
    %5426 = vmatprep.subr.mxu0 0.0
    %5427 = vmatpush2.msra.mxu0 0.0
    %5428 = vmatprep.subr.mxu0 0.0
    %5429 = vmatpush2.msra.mxu0 0.0
    %5430 = vmatprep.subr.mxu0 0.0
    %5431 = vmatpush2.msra.mxu0 0.0
    %5432 = vmatprep.subr.mxu0 0.0
    %5433 = vmatpush2.msra.mxu0 0.0
    %5434 = vmatprep.subr.mxu0 0.0
    %5435 = vmatpush2.msra.mxu0 0.0
    %5436 = vmatprep.subr.mxu0 0.0
    %5437 = vmatpush2.msra.mxu0 0.0
    %5438 = vmatprep.subr.mxu0 0.0
    %5439 = vmatpush2.msra.mxu0 0.0
    %5440 = vmatprep.subr.mxu0 0.0
    %5441 = vmatpush2.msra.mxu0 0.0
    %5442 = vmatprep.subr.mxu0 0.0
    %5443 = vmatpush2.msra.mxu0 0.0
    %5444 = vmatprep.subr.mxu0 0.0
    %5445 = vmatpush2.msra.mxu0 0.0
    %5446 = vmatprep.subr.mxu0 0.0
    %5447 = vmatpush2.msra.mxu0 0.0
    %5448 = vmatprep.subr.mxu0 0.0
    %5449 = vmatpush2.msra.mxu0 0.0
    %5450 = vmatprep.mubr.f32.mxu0 0.0
    %5451 = vmatmul.mubr.f32.gmra.mxu0 %v4772
    %v5452 = vpop.f32.mrf.mxu0
    %v5453 = vadd.f32 %v630, %v5452
    %v5454 = vpop.f32.mrf.mxu0
    %5455 = vdwg.mxu0
    %5456 = vmatprep.subr.mxu0 %v565
    %5457 = vmatpush1.msra.mxu0 %v564
    %5458 = vmatprep.subr.mxu0 %v562
    %5459 = vmatpush1.msra.mxu0 %v561
    %5460 = vmatprep.subr.mxu0 %v559
    %5461 = vmatpush1.msra.mxu0 %v558
    %5462 = vmatprep.subr.mxu0 %v556
    %5463 = vmatpush1.msra.mxu0 %v555
    %5464 = vmatprep.subr.mxu0 %v553
    %5465 = vmatpush1.msra.mxu0 %v552
    %5466 = vmatprep.subr.mxu0 %v550
    %5467 = vmatpush1.msra.mxu0 %v549
    %5468 = vmatprep.subr.mxu0 %v547
    %5469 = vmatpush1.msra.mxu0 %v546
    %5470 = vmatprep.subr.mxu0 %v544
    %5471 = vmatpush1.msra.mxu0 %v543
    %5472 = vmatprep.subr.mxu0 %v541
    %5473 = vmatpush1.msra.mxu0 %v540
    %5474 = vmatprep.subr.mxu0 %v538
    %5475 = vmatpush1.msra.mxu0 %v537
    %5476 = vmatprep.subr.mxu0 %v535
    %5477 = vmatpush1.msra.mxu0 %v534
    %5478 = vmatprep.subr.mxu0 %v532
    %5479 = vmatpush1.msra.mxu0 %v531
    %5480 = vmatprep.subr.mxu0 %v529
    %5481 = vmatpush1.msra.mxu0 %v528
    %5482 = vmatprep.subr.mxu0 %v526
    %5483 = vmatpush1.msra.mxu0 %v525
    %5484 = vmatprep.subr.mxu0 %v523
    %5485 = vmatpush1.msra.mxu0 %v522
    %5486 = vmatprep.subr.mxu0 %v520
    %5487 = vmatpush1.msra.mxu0 %v519
    %5488 = vmatprep.subr.mxu0 0.0
    %5489 = vmatpush2.msra.mxu0 0.0
    %5490 = vmatprep.subr.mxu0 0.0
    %5491 = vmatpush2.msra.mxu0 0.0
    %5492 = vmatprep.subr.mxu0 0.0
    %5493 = vmatpush2.msra.mxu0 0.0
    %5494 = vmatprep.subr.mxu0 0.0
    %5495 = vmatpush2.msra.mxu0 0.0
    %5496 = vmatprep.subr.mxu0 0.0
    %5497 = vmatpush2.msra.mxu0 0.0
    %5498 = vmatprep.subr.mxu0 0.0
    %5499 = vmatpush2.msra.mxu0 0.0
    %5500 = vmatprep.subr.mxu0 0.0
    %5501 = vmatpush2.msra.mxu0 0.0
    %5502 = vmatprep.subr.mxu0 0.0
    %5503 = vmatpush2.msra.mxu0 0.0
    %5504 = vmatprep.subr.mxu0 0.0
    %5505 = vmatpush2.msra.mxu0 0.0
    %5506 = vmatprep.subr.mxu0 0.0
    %5507 = vmatpush2.msra.mxu0 0.0
    %5508 = vmatprep.subr.mxu0 0.0
    %5509 = vmatpush2.msra.mxu0 0.0
    %5510 = vmatprep.subr.mxu0 0.0
    %5511 = vmatpush2.msra.mxu0 0.0
    %5512 = vmatprep.subr.mxu0 0.0
    %5513 = vmatpush2.msra.mxu0 0.0
    %5514 = vmatprep.subr.mxu0 0.0
    %5515 = vmatpush2.msra.mxu0 0.0
    %5516 = vmatprep.subr.mxu0 0.0
    %5517 = vmatpush2.msra.mxu0 0.0
    %5518 = vmatprep.subr.mxu0 0.0
    %5519 = vmatpush2.msra.mxu0 0.0
    %5520 = vmatprep.mubr.f32.mxu0 0.0
    %5521 = vmatmul.mubr.f32.gmra.mxu0 %v5076
    %v5522 = vpop.f32.mrf.mxu0
    %v5523 = vadd.f32 0.0, %v5522
    %v5524 = vpop.f32.mrf.mxu0
    %v5525 = vadd.f32 0.0, %v5524
    %5526 = vdwg.mxu0
    %5527 = vmatprep.subr.mxu0 0.0
    %5528 = vmatpush1.msra.mxu0 %v566
    %5529 = vmatprep.subr.mxu0 0.0
    %5530 = vmatpush1.msra.mxu0 %v563
    %5531 = vmatprep.subr.mxu0 0.0
    %5532 = vmatpush1.msra.mxu0 %v560
    %5533 = vmatprep.subr.mxu0 0.0
    %5534 = vmatpush1.msra.mxu0 %v557
    %5535 = vmatprep.subr.mxu0 0.0
    %5536 = vmatpush1.msra.mxu0 %v554
    %5537 = vmatprep.subr.mxu0 0.0
    %5538 = vmatpush1.msra.mxu0 %v551
    %5539 = vmatprep.subr.mxu0 0.0
    %5540 = vmatpush1.msra.mxu0 %v548
    %5541 = vmatprep.subr.mxu0 0.0
    %5542 = vmatpush1.msra.mxu0 %v545
    %5543 = vmatprep.subr.mxu0 0.0
    %5544 = vmatpush1.msra.mxu0 %v542
    %5545 = vmatprep.subr.mxu0 0.0
    %5546 = vmatpush1.msra.mxu0 %v539
    %5547 = vmatprep.subr.mxu0 0.0
    %5548 = vmatpush1.msra.mxu0 %v536
    %5549 = vmatprep.subr.mxu0 0.0
    %5550 = vmatpush1.msra.mxu0 %v533
    %5551 = vmatprep.subr.mxu0 0.0
    %5552 = vmatpush1.msra.mxu0 %v530
    %5553 = vmatprep.subr.mxu0 0.0
    %5554 = vmatpush1.msra.mxu0 %v527
    %5555 = vmatprep.subr.mxu0 0.0
    %5556 = vmatpush1.msra.mxu0 %v524
    %5557 = vmatprep.subr.mxu0 0.0
    %5558 = vmatpush1.msra.mxu0 %v521
    %5559 = vmatprep.subr.mxu0 0.0
    %5560 = vmatpush2.msra.mxu0 0.0
    %5561 = vmatprep.subr.mxu0 0.0
    %5562 = vmatpush2.msra.mxu0 0.0
    %5563 = vmatprep.subr.mxu0 0.0
    %5564 = vmatpush2.msra.mxu0 0.0
    %5565 = vmatprep.subr.mxu0 0.0
    %5566 = vmatpush2.msra.mxu0 0.0
    %5567 = vmatprep.subr.mxu0 0.0
    %5568 = vmatpush2.msra.mxu0 0.0
    %5569 = vmatprep.subr.mxu0 0.0
    %5570 = vmatpush2.msra.mxu0 0.0
    %5571 = vmatprep.subr.mxu0 0.0
    %5572 = vmatpush2.msra.mxu0 0.0
    %5573 = vmatprep.subr.mxu0 0.0
    %5574 = vmatpush2.msra.mxu0 0.0
    %5575 = vmatprep.subr.mxu0 0.0
    %5576 = vmatpush2.msra.mxu0 0.0
    %5577 = vmatprep.subr.mxu0 0.0
    %5578 = vmatpush2.msra.mxu0 0.0
    %5579 = vmatprep.subr.mxu0 0.0
    %5580 = vmatpush2.msra.mxu0 0.0
    %5581 = vmatprep.subr.mxu0 0.0
    %5582 = vmatpush2.msra.mxu0 0.0
    %5583 = vmatprep.subr.mxu0 0.0
    %5584 = vmatpush2.msra.mxu0 0.0
    %5585 = vmatprep.subr.mxu0 0.0
    %5586 = vmatpush2.msra.mxu0 0.0
    %5587 = vmatprep.subr.mxu0 0.0
    %5588 = vmatpush2.msra.mxu0 0.0
    %5589 = vmatprep.subr.mxu0 0.0
    %5590 = vmatpush2.msra.mxu0 0.0
    %5591 = vmatprep.mubr.f32.mxu0 0.0
    %5592 = vmatmul.mubr.f32.gmra.mxu0 %v5076
    %v5593 = vpop.f32.mrf.mxu0
    %v5594 = vadd.f32 0.0, %v5593
    %v5595 = vpop.f32.mrf.mxu0
    %5596 = vdwg.mxu0
    %v5597 = vadd.f32 %v5382, %v5523
    %v5598 = vxor.u32 %v5597, 2147483648
    %v5599 = vmul.f32 %v5598, 1.442695
    %v5600 = vpow.pop %v5599
    %v5601 = vadd.f32 %v5600, 1.0
    %v5602 = vrcp.pop %v5601
    %v5603 = vmul.f32 1.0, %v5602
    %v5604 = vadd.f32 %v5384, %v5525
    %v5605 = vxor.u32 %v5604, 2147483648
    %v5606 = vmul.f32 %v5605, 1.442695
    %v5607 = vpow.pop %v5606
    %v5608 = vadd.f32 %v5607, 1.0
    %v5609 = vrcp.pop %v5608
    %v5610 = vmul.f32 1.0, %v5609
    %v5611 = vadd.f32 %v5594, %v647
    %v5612 = vmul.f32 %v5603, %v5611
    %v5613 = vadd.f32 %v5453, %v5612
    %v5614 = vtanh.pop %v5613
    %v5615 = vsub.f32 1.0, %v5610
    %v5616 = vmul.f32 %v5615, %v5614
    %v5617 = vmul.f32 %v5610, %v5076
    %v5618 = vadd.f32 %v5616, %v5617
    %5619 = vmatprep.subr.mxu0 0.0
    %5620 = vmatpush1.msra.mxu0 %v664
    %5621 = vmatprep.subr.mxu0 0.0
    %5622 = vmatpush1.msra.mxu0 %v663
    %5623 = vmatprep.subr.mxu0 0.0
    %5624 = vmatpush1.msra.mxu0 %v662
    %5625 = vmatprep.subr.mxu0 0.0
    %5626 = vmatpush1.msra.mxu0 %v661
    %5627 = vmatprep.subr.mxu0 0.0
    %5628 = vmatpush1.msra.mxu0 %v660
    %5629 = vmatprep.subr.mxu0 0.0
    %5630 = vmatpush1.msra.mxu0 %v659
    %5631 = vmatprep.subr.mxu0 0.0
    %5632 = vmatpush1.msra.mxu0 %v658
    %5633 = vmatprep.subr.mxu0 0.0
    %5634 = vmatpush1.msra.mxu0 %v657
    %5635 = vmatprep.subr.mxu0 0.0
    %5636 = vmatpush1.msra.mxu0 %v656
    %5637 = vmatprep.subr.mxu0 0.0
    %5638 = vmatpush1.msra.mxu0 %v655
    %5639 = vmatprep.subr.mxu0 0.0
    %5640 = vmatpush1.msra.mxu0 %v654
    %5641 = vmatprep.subr.mxu0 0.0
    %5642 = vmatpush1.msra.mxu0 %v653
    %5643 = vmatprep.subr.mxu0 0.0
    %5644 = vmatpush1.msra.mxu0 %v652
    %5645 = vmatprep.subr.mxu0 0.0
    %5646 = vmatpush1.msra.mxu0 %v651
    %5647 = vmatprep.subr.mxu0 0.0
    %5648 = vmatpush1.msra.mxu0 %v650
    %5649 = vmatprep.subr.mxu0 0.0
    %5650 = vmatpush1.msra.mxu0 %v649
    %5651 = vmatprep.subr.mxu0 0.0
    %5652 = vmatpush2.msra.mxu0 0.0
    %5653 = vmatprep.subr.mxu0 0.0
    %5654 = vmatpush2.msra.mxu0 0.0
    %5655 = vmatprep.subr.mxu0 0.0
    %5656 = vmatpush2.msra.mxu0 0.0
    %5657 = vmatprep.subr.mxu0 0.0
    %5658 = vmatpush2.msra.mxu0 0.0
    %5659 = vmatprep.subr.mxu0 0.0
    %5660 = vmatpush2.msra.mxu0 0.0
    %5661 = vmatprep.subr.mxu0 0.0
    %5662 = vmatpush2.msra.mxu0 0.0
    %5663 = vmatprep.subr.mxu0 0.0
    %5664 = vmatpush2.msra.mxu0 0.0
    %5665 = vmatprep.subr.mxu0 0.0
    %5666 = vmatpush2.msra.mxu0 0.0
    %5667 = vmatprep.subr.mxu0 0.0
    %5668 = vmatpush2.msra.mxu0 0.0
    %5669 = vmatprep.subr.mxu0 0.0
    %5670 = vmatpush2.msra.mxu0 0.0
    %5671 = vmatprep.subr.mxu0 0.0
    %5672 = vmatpush2.msra.mxu0 0.0
    %5673 = vmatprep.subr.mxu0 0.0
    %5674 = vmatpush2.msra.mxu0 0.0
    %5675 = vmatprep.subr.mxu0 0.0
    %5676 = vmatpush2.msra.mxu0 0.0
    %5677 = vmatprep.subr.mxu0 0.0
    %5678 = vmatpush2.msra.mxu0 0.0
    %5679 = vmatprep.subr.mxu0 0.0
    %5680 = vmatpush2.msra.mxu0 0.0
    %5681 = vmatprep.subr.mxu0 0.0
    %5682 = vmatpush2.msra.mxu0 0.0
    %5683 = vmatprep.mubr.f32.mxu0 0.0
    %5684 = vmatmul.mubr.f32.gmra.mxu0 %v5618
    %v5685 = vpop.f32.mrf.mxu0
    %v5686 = vadd.f32 %v670, %v5685
    %v5687 = vpop.f32.mrf.mxu0
    %5688 = vdwg.mxu0
    %s5689 = scalar_lea.vmem [#allocation12], 8
    %5690 = vst [vmem:[%s5689] sm:$0xff] %v5686
    %s5691 = scalar_lea.vmem [#allocation2], 264
    %v5692 = vld [vmem:[%s5691] sm:$0xff]
    %v5693 = vld [vmem:[%s5691 + $0x8] sm:$0xff]
    %v5694 = vld [vmem:[%s5691 + $0x10] sm:$0xff]
    %5695 = vmatprep.subr.mxu0 %v516
    %5696 = vmatpush1.msra.mxu0 %v515
    %5697 = vmatprep.subr.mxu0 %v513
    %5698 = vmatpush1.msra.mxu0 %v512
    %5699 = vmatprep.subr.mxu0 %v510
    %5700 = vmatpush1.msra.mxu0 %v509
    %5701 = vmatprep.subr.mxu0 %v507
    %5702 = vmatpush1.msra.mxu0 %v506
    %5703 = vmatprep.subr.mxu0 %v504
    %5704 = vmatpush1.msra.mxu0 %v503
    %5705 = vmatprep.subr.mxu0 %v501
    %5706 = vmatpush1.msra.mxu0 %v500
    %5707 = vmatprep.subr.mxu0 %v498
    %5708 = vmatpush1.msra.mxu0 %v497
    %5709 = vmatprep.subr.mxu0 %v495
    %5710 = vmatpush1.msra.mxu0 %v494
    %5711 = vmatprep.subr.mxu0 %v492
    %5712 = vmatpush1.msra.mxu0 %v491
    %5713 = vmatprep.subr.mxu0 %v489
    %5714 = vmatpush1.msra.mxu0 %v488
    %5715 = vmatprep.subr.mxu0 %v486
    %5716 = vmatpush1.msra.mxu0 %v485
    %5717 = vmatprep.subr.mxu0 %v483
    %5718 = vmatpush1.msra.mxu0 %v482
    %5719 = vmatprep.subr.mxu0 %v480
    %5720 = vmatpush1.msra.mxu0 %v479
    %5721 = vmatprep.subr.mxu0 %v477
    %5722 = vmatpush1.msra.mxu0 %v476
    %5723 = vmatprep.subr.mxu0 %v474
    %5724 = vmatpush1.msra.mxu0 %v473
    %5725 = vmatprep.subr.mxu0 %v471
    %5726 = vmatpush1.msra.mxu0 %v470
    %5727 = vmatprep.subr.mxu0 0.0
    %5728 = vmatpush2.msra.mxu0 0.0
    %5729 = vmatprep.subr.mxu0 0.0
    %5730 = vmatpush2.msra.mxu0 0.0
    %5731 = vmatprep.subr.mxu0 0.0
    %5732 = vmatpush2.msra.mxu0 0.0
    %5733 = vmatprep.subr.mxu0 0.0
    %5734 = vmatpush2.msra.mxu0 0.0
    %5735 = vmatprep.subr.mxu0 0.0
    %5736 = vmatpush2.msra.mxu0 0.0
    %5737 = vmatprep.subr.mxu0 0.0
    %5738 = vmatpush2.msra.mxu0 0.0
    %5739 = vmatprep.subr.mxu0 0.0
    %5740 = vmatpush2.msra.mxu0 0.0
    %5741 = vmatprep.subr.mxu0 0.0
    %5742 = vmatpush2.msra.mxu0 0.0
    %5743 = vmatprep.subr.mxu0 0.0
    %5744 = vmatpush2.msra.mxu0 0.0
    %5745 = vmatprep.subr.mxu0 0.0
    %5746 = vmatpush2.msra.mxu0 0.0
    %5747 = vmatprep.subr.mxu0 0.0
    %5748 = vmatpush2.msra.mxu0 0.0
    %5749 = vmatprep.subr.mxu0 0.0
    %5750 = vmatpush2.msra.mxu0 0.0
    %5751 = vmatprep.subr.mxu0 0.0
    %5752 = vmatpush2.msra.mxu0 0.0
    %5753 = vmatprep.subr.mxu0 0.0
    %5754 = vmatpush2.msra.mxu0 0.0
    %5755 = vmatprep.subr.mxu0 0.0
    %5756 = vmatpush2.msra.mxu0 0.0
    %5757 = vmatprep.subr.mxu0 0.0
    %5758 = vmatpush2.msra.mxu0 0.0
    %5759 = vmatprep.mubr.f32.mxu0 0.0
    %5760 = vmatmul.mubr.f32.gmra.mxu0 %v5314
    %v5761 = vpop.f32.mrf.mxu0
    %v5762 = vadd.f32 0.0, %v5761
    %v5763 = vpop.f32.mrf.mxu0
    %v5764 = vadd.f32 0.0, %v5763
    %5765 = vdwg.mxu0
    %5766 = vmatprep.subr.mxu0 0.0
    %5767 = vmatpush1.msra.mxu0 %v517
    %5768 = vmatprep.subr.mxu0 0.0
    %5769 = vmatpush1.msra.mxu0 %v514
    %5770 = vmatprep.subr.mxu0 0.0
    %5771 = vmatpush1.msra.mxu0 %v511
    %5772 = vmatprep.subr.mxu0 0.0
    %5773 = vmatpush1.msra.mxu0 %v508
    %5774 = vmatprep.subr.mxu0 0.0
    %5775 = vmatpush1.msra.mxu0 %v505
    %5776 = vmatprep.subr.mxu0 0.0
    %5777 = vmatpush1.msra.mxu0 %v502
    %5778 = vmatprep.subr.mxu0 0.0
    %5779 = vmatpush1.msra.mxu0 %v499
    %5780 = vmatprep.subr.mxu0 0.0
    %5781 = vmatpush1.msra.mxu0 %v496
    %5782 = vmatprep.subr.mxu0 0.0
    %5783 = vmatpush1.msra.mxu0 %v493
    %5784 = vmatprep.subr.mxu0 0.0
    %5785 = vmatpush1.msra.mxu0 %v490
    %5786 = vmatprep.subr.mxu0 0.0
    %5787 = vmatpush1.msra.mxu0 %v487
    %5788 = vmatprep.subr.mxu0 0.0
    %5789 = vmatpush1.msra.mxu0 %v484
    %5790 = vmatprep.subr.mxu0 0.0
    %5791 = vmatpush1.msra.mxu0 %v481
    %5792 = vmatprep.subr.mxu0 0.0
    %5793 = vmatpush1.msra.mxu0 %v478
    %5794 = vmatprep.subr.mxu0 0.0
    %5795 = vmatpush1.msra.mxu0 %v475
    %5796 = vmatprep.subr.mxu0 0.0
    %5797 = vmatpush1.msra.mxu0 %v472
    %5798 = vmatprep.subr.mxu0 0.0
    %5799 = vmatpush2.msra.mxu0 0.0
    %5800 = vmatprep.subr.mxu0 0.0
    %5801 = vmatpush2.msra.mxu0 0.0
    %5802 = vmatprep.subr.mxu0 0.0
    %5803 = vmatpush2.msra.mxu0 0.0
    %5804 = vmatprep.subr.mxu0 0.0
    %5805 = vmatpush2.msra.mxu0 0.0
    %5806 = vmatprep.subr.mxu0 0.0
    %5807 = vmatpush2.msra.mxu0 0.0
    %5808 = vmatprep.subr.mxu0 0.0
    %5809 = vmatpush2.msra.mxu0 0.0
    %5810 = vmatprep.subr.mxu0 0.0
    %5811 = vmatpush2.msra.mxu0 0.0
    %5812 = vmatprep.subr.mxu0 0.0
    %5813 = vmatpush2.msra.mxu0 0.0
    %5814 = vmatprep.subr.mxu0 0.0
    %5815 = vmatpush2.msra.mxu0 0.0
    %5816 = vmatprep.subr.mxu0 0.0
    %5817 = vmatpush2.msra.mxu0 0.0
    %5818 = vmatprep.subr.mxu0 0.0
    %5819 = vmatpush2.msra.mxu0 0.0
    %5820 = vmatprep.subr.mxu0 0.0
    %5821 = vmatpush2.msra.mxu0 0.0
    %5822 = vmatprep.subr.mxu0 0.0
    %5823 = vmatpush2.msra.mxu0 0.0
    %5824 = vmatprep.subr.mxu0 0.0
    %5825 = vmatpush2.msra.mxu0 0.0
    %5826 = vmatprep.subr.mxu0 0.0
    %5827 = vmatpush2.msra.mxu0 0.0
    %5828 = vmatprep.subr.mxu0 0.0
    %5829 = vmatpush2.msra.mxu0 0.0
    %5830 = vmatprep.mubr.f32.mxu0 0.0
    %5831 = vmatmul.mubr.f32.gmra.mxu0 %v5314
    %v5832 = vpop.f32.mrf.mxu0
    %v5833 = vadd.f32 0.0, %v5832
    %v5834 = vpop.f32.mrf.mxu0
    %5835 = vdwg.mxu0
    %v5836 = vadd.f32 %v5692, %v5762
    %v5837 = vxor.u32 %v5836, 2147483648
    %v5838 = vmul.f32 %v5837, 1.442695
    %v5839 = vpow.pop %v5838
    %v5840 = vadd.f32 %v5839, 1.0
    %v5841 = vrcp.pop %v5840
    %v5842 = vmul.f32 1.0, %v5841
    %v5843 = vadd.f32 %v5693, %v5764
    %v5844 = vxor.u32 %v5843, 2147483648
    %v5845 = vmul.f32 %v5844, 1.442695
    %v5846 = vpow.pop %v5845
    %v5847 = vadd.f32 %v5846, 1.0
    %v5848 = vrcp.pop %v5847
    %v5849 = vmul.f32 1.0, %v5848
    %v5850 = vadd.f32 %v5833, %v639
    %v5851 = vmul.f32 %v5842, %v5850
    %v5852 = vadd.f32 %v5694, %v5851
    %v5853 = vtanh.pop %v5852
    %v5854 = vsub.f32 1.0, %v5849
    %v5855 = vmul.f32 %v5854, %v5853
    %v5856 = vmul.f32 %v5849, %v5314
    %v5857 = vadd.f32 %v5855, %v5856
    %5858 = vmatprep.subr.mxu0 %v614
    %5859 = vmatpush1.msra.mxu0 %v613
    %5860 = vmatprep.subr.mxu0 %v611
    %5861 = vmatpush1.msra.mxu0 %v610
    %5862 = vmatprep.subr.mxu0 %v608
    %5863 = vmatpush1.msra.mxu0 %v607
    %5864 = vmatprep.subr.mxu0 %v605
    %5865 = vmatpush1.msra.mxu0 %v604
    %5866 = vmatprep.subr.mxu0 %v602
    %5867 = vmatpush1.msra.mxu0 %v601
    %5868 = vmatprep.subr.mxu0 %v599
    %5869 = vmatpush1.msra.mxu0 %v598
    %5870 = vmatprep.subr.mxu0 %v596
    %5871 = vmatpush1.msra.mxu0 %v595
    %5872 = vmatprep.subr.mxu0 %v593
    %5873 = vmatpush1.msra.mxu0 %v592
    %5874 = vmatprep.subr.mxu0 %v590
    %5875 = vmatpush1.msra.mxu0 %v589
    %5876 = vmatprep.subr.mxu0 %v587
    %5877 = vmatpush1.msra.mxu0 %v586
    %5878 = vmatprep.subr.mxu0 %v584
    %5879 = vmatpush1.msra.mxu0 %v583
    %5880 = vmatprep.subr.mxu0 %v581
    %5881 = vmatpush1.msra.mxu0 %v580
    %5882 = vmatprep.subr.mxu0 %v578
    %5883 = vmatpush1.msra.mxu0 %v577
    %5884 = vmatprep.subr.mxu0 %v575
    %5885 = vmatpush1.msra.mxu0 %v574
    %5886 = vmatprep.subr.mxu0 %v572
    %5887 = vmatpush1.msra.mxu0 %v571
    %5888 = vmatprep.subr.mxu0 %v569
    %5889 = vmatpush1.msra.mxu0 %v568
    %5890 = vmatprep.subr.mxu0 0.0
    %5891 = vmatpush2.msra.mxu0 0.0
    %5892 = vmatprep.subr.mxu0 0.0
    %5893 = vmatpush2.msra.mxu0 0.0
    %5894 = vmatprep.subr.mxu0 0.0
    %5895 = vmatpush2.msra.mxu0 0.0
    %5896 = vmatprep.subr.mxu0 0.0
    %5897 = vmatpush2.msra.mxu0 0.0
    %5898 = vmatprep.subr.mxu0 0.0
    %5899 = vmatpush2.msra.mxu0 0.0
    %5900 = vmatprep.subr.mxu0 0.0
    %5901 = vmatpush2.msra.mxu0 0.0
    %5902 = vmatprep.subr.mxu0 0.0
    %5903 = vmatpush2.msra.mxu0 0.0
    %5904 = vmatprep.subr.mxu0 0.0
    %5905 = vmatpush2.msra.mxu0 0.0
    %5906 = vmatprep.subr.mxu0 0.0
    %5907 = vmatpush2.msra.mxu0 0.0
    %5908 = vmatprep.subr.mxu0 0.0
    %5909 = vmatpush2.msra.mxu0 0.0
    %5910 = vmatprep.subr.mxu0 0.0
    %5911 = vmatpush2.msra.mxu0 0.0
    %5912 = vmatprep.subr.mxu0 0.0
    %5913 = vmatpush2.msra.mxu0 0.0
    %5914 = vmatprep.subr.mxu0 0.0
    %5915 = vmatpush2.msra.mxu0 0.0
    %5916 = vmatprep.subr.mxu0 0.0
    %5917 = vmatpush2.msra.mxu0 0.0
    %5918 = vmatprep.subr.mxu0 0.0
    %5919 = vmatpush2.msra.mxu0 0.0
    %5920 = vmatprep.subr.mxu0 0.0
    %5921 = vmatpush2.msra.mxu0 0.0
    %5922 = vmatprep.mubr.f32.mxu0 0.0
    %5923 = vmatmul.mubr.f32.gmra.mxu0 %v5314
    %v5924 = vpop.f32.mrf.mxu0
    %v5925 = vadd.f32 %v622, %v5924
    %v5926 = vpop.f32.mrf.mxu0
    %v5927 = vadd.f32 %v626, %v5926
    %5928 = vdwg.mxu0
    %5929 = vmatprep.subr.mxu0 0.0
    %5930 = vmatpush1.msra.mxu0 %v615
    %5931 = vmatprep.subr.mxu0 0.0
    %5932 = vmatpush1.msra.mxu0 %v612
    %5933 = vmatprep.subr.mxu0 0.0
    %5934 = vmatpush1.msra.mxu0 %v609
    %5935 = vmatprep.subr.mxu0 0.0
    %5936 = vmatpush1.msra.mxu0 %v606
    %5937 = vmatprep.subr.mxu0 0.0
    %5938 = vmatpush1.msra.mxu0 %v603
    %5939 = vmatprep.subr.mxu0 0.0
    %5940 = vmatpush1.msra.mxu0 %v600
    %5941 = vmatprep.subr.mxu0 0.0
    %5942 = vmatpush1.msra.mxu0 %v597
    %5943 = vmatprep.subr.mxu0 0.0
    %5944 = vmatpush1.msra.mxu0 %v594
    %5945 = vmatprep.subr.mxu0 0.0
    %5946 = vmatpush1.msra.mxu0 %v591
    %5947 = vmatprep.subr.mxu0 0.0
    %5948 = vmatpush1.msra.mxu0 %v588
    %5949 = vmatprep.subr.mxu0 0.0
    %5950 = vmatpush1.msra.mxu0 %v585
    %5951 = vmatprep.subr.mxu0 0.0
    %5952 = vmatpush1.msra.mxu0 %v582
    %5953 = vmatprep.subr.mxu0 0.0
    %5954 = vmatpush1.msra.mxu0 %v579
    %5955 = vmatprep.subr.mxu0 0.0
    %5956 = vmatpush1.msra.mxu0 %v576
    %5957 = vmatprep.subr.mxu0 0.0
    %5958 = vmatpush1.msra.mxu0 %v573
    %5959 = vmatprep.subr.mxu0 0.0
    %5960 = vmatpush1.msra.mxu0 %v570
    %5961 = vmatprep.subr.mxu0 0.0
    %5962 = vmatpush2.msra.mxu0 0.0
    %5963 = vmatprep.subr.mxu0 0.0
    %5964 = vmatpush2.msra.mxu0 0.0
    %5965 = vmatprep.subr.mxu0 0.0
    %5966 = vmatpush2.msra.mxu0 0.0
    %5967 = vmatprep.subr.mxu0 0.0
    %5968 = vmatpush2.msra.mxu0 0.0
    %5969 = vmatprep.subr.mxu0 0.0
    %5970 = vmatpush2.msra.mxu0 0.0
    %5971 = vmatprep.subr.mxu0 0.0
    %5972 = vmatpush2.msra.mxu0 0.0
    %5973 = vmatprep.subr.mxu0 0.0
    %5974 = vmatpush2.msra.mxu0 0.0
    %5975 = vmatprep.subr.mxu0 0.0
    %5976 = vmatpush2.msra.mxu0 0.0
    %5977 = vmatprep.subr.mxu0 0.0
    %5978 = vmatpush2.msra.mxu0 0.0
    %5979 = vmatprep.subr.mxu0 0.0
    %5980 = vmatpush2.msra.mxu0 0.0
    %5981 = vmatprep.subr.mxu0 0.0
    %5982 = vmatpush2.msra.mxu0 0.0
    %5983 = vmatprep.subr.mxu0 0.0
    %5984 = vmatpush2.msra.mxu0 0.0
    %5985 = vmatprep.subr.mxu0 0.0
    %5986 = vmatpush2.msra.mxu0 0.0
    %5987 = vmatprep.subr.mxu0 0.0
    %5988 = vmatpush2.msra.mxu0 0.0
    %5989 = vmatprep.subr.mxu0 0.0
    %5990 = vmatpush2.msra.mxu0 0.0
    %5991 = vmatprep.subr.mxu0 0.0
    %5992 = vmatpush2.msra.mxu0 0.0
    %5993 = vmatprep.mubr.f32.mxu0 0.0
    %5994 = vmatmul.mubr.f32.gmra.mxu0 %v5314
    %v5995 = vpop.f32.mrf.mxu0
    %v5996 = vadd.f32 %v630, %v5995
    %v5997 = vpop.f32.mrf.mxu0
    %5998 = vdwg.mxu0
    %5999 = vmatprep.subr.mxu0 %v565
    %6000 = vmatpush1.msra.mxu0 %v564
    %6001 = vmatprep.subr.mxu0 %v562
    %6002 = vmatpush1.msra.mxu0 %v561
    %6003 = vmatprep.subr.mxu0 %v559
    %6004 = vmatpush1.msra.mxu0 %v558
    %6005 = vmatprep.subr.mxu0 %v556
    %6006 = vmatpush1.msra.mxu0 %v555
    %6007 = vmatprep.subr.mxu0 %v553
    %6008 = vmatpush1.msra.mxu0 %v552
    %6009 = vmatprep.subr.mxu0 %v550
    %6010 = vmatpush1.msra.mxu0 %v549
    %6011 = vmatprep.subr.mxu0 %v547
    %6012 = vmatpush1.msra.mxu0 %v546
    %6013 = vmatprep.subr.mxu0 %v544
    %6014 = vmatpush1.msra.mxu0 %v543
    %6015 = vmatprep.subr.mxu0 %v541
    %6016 = vmatpush1.msra.mxu0 %v540
    %6017 = vmatprep.subr.mxu0 %v538
    %6018 = vmatpush1.msra.mxu0 %v537
    %6019 = vmatprep.subr.mxu0 %v535
    %6020 = vmatpush1.msra.mxu0 %v534
    %6021 = vmatprep.subr.mxu0 %v532
    %6022 = vmatpush1.msra.mxu0 %v531
    %6023 = vmatprep.subr.mxu0 %v529
    %6024 = vmatpush1.msra.mxu0 %v528
    %6025 = vmatprep.subr.mxu0 %v526
    %6026 = vmatpush1.msra.mxu0 %v525
    %6027 = vmatprep.subr.mxu0 %v523
    %6028 = vmatpush1.msra.mxu0 %v522
    %6029 = vmatprep.subr.mxu0 %v520
    %6030 = vmatpush1.msra.mxu0 %v519
    %6031 = vmatprep.subr.mxu0 0.0
    %6032 = vmatpush2.msra.mxu0 0.0
    %6033 = vmatprep.subr.mxu0 0.0
    %6034 = vmatpush2.msra.mxu0 0.0
    %6035 = vmatprep.subr.mxu0 0.0
    %6036 = vmatpush2.msra.mxu0 0.0
    %6037 = vmatprep.subr.mxu0 0.0
    %6038 = vmatpush2.msra.mxu0 0.0
    %6039 = vmatprep.subr.mxu0 0.0
    %6040 = vmatpush2.msra.mxu0 0.0
    %6041 = vmatprep.subr.mxu0 0.0
    %6042 = vmatpush2.msra.mxu0 0.0
    %6043 = vmatprep.subr.mxu0 0.0
    %6044 = vmatpush2.msra.mxu0 0.0
    %6045 = vmatprep.subr.mxu0 0.0
    %6046 = vmatpush2.msra.mxu0 0.0
    %6047 = vmatprep.subr.mxu0 0.0
    %6048 = vmatpush2.msra.mxu0 0.0
    %6049 = vmatprep.subr.mxu0 0.0
    %6050 = vmatpush2.msra.mxu0 0.0
    %6051 = vmatprep.subr.mxu0 0.0
    %6052 = vmatpush2.msra.mxu0 0.0
    %6053 = vmatprep.subr.mxu0 0.0
    %6054 = vmatpush2.msra.mxu0 0.0
    %6055 = vmatprep.subr.mxu0 0.0
    %6056 = vmatpush2.msra.mxu0 0.0
    %6057 = vmatprep.subr.mxu0 0.0
    %6058 = vmatpush2.msra.mxu0 0.0
    %6059 = vmatprep.subr.mxu0 0.0
    %6060 = vmatpush2.msra.mxu0 0.0
    %6061 = vmatprep.subr.mxu0 0.0
    %6062 = vmatpush2.msra.mxu0 0.0
    %6063 = vmatprep.mubr.f32.mxu0 0.0
    %6064 = vmatmul.mubr.f32.gmra.mxu0 %v5618
    %v6065 = vpop.f32.mrf.mxu0
    %v6066 = vadd.f32 0.0, %v6065
    %v6067 = vpop.f32.mrf.mxu0
    %v6068 = vadd.f32 0.0, %v6067
    %6069 = vdwg.mxu0
    %6070 = vmatprep.subr.mxu0 0.0
    %6071 = vmatpush1.msra.mxu0 %v566
    %6072 = vmatprep.subr.mxu0 0.0
    %6073 = vmatpush1.msra.mxu0 %v563
    %6074 = vmatprep.subr.mxu0 0.0
    %6075 = vmatpush1.msra.mxu0 %v560
    %6076 = vmatprep.subr.mxu0 0.0
    %6077 = vmatpush1.msra.mxu0 %v557
    %6078 = vmatprep.subr.mxu0 0.0
    %6079 = vmatpush1.msra.mxu0 %v554
    %6080 = vmatprep.subr.mxu0 0.0
    %6081 = vmatpush1.msra.mxu0 %v551
    %6082 = vmatprep.subr.mxu0 0.0
    %6083 = vmatpush1.msra.mxu0 %v548
    %6084 = vmatprep.subr.mxu0 0.0
    %6085 = vmatpush1.msra.mxu0 %v545
    %6086 = vmatprep.subr.mxu0 0.0
    %6087 = vmatpush1.msra.mxu0 %v542
    %6088 = vmatprep.subr.mxu0 0.0
    %6089 = vmatpush1.msra.mxu0 %v539
    %6090 = vmatprep.subr.mxu0 0.0
    %6091 = vmatpush1.msra.mxu0 %v536
    %6092 = vmatprep.subr.mxu0 0.0
    %6093 = vmatpush1.msra.mxu0 %v533
    %6094 = vmatprep.subr.mxu0 0.0
    %6095 = vmatpush1.msra.mxu0 %v530
    %6096 = vmatprep.subr.mxu0 0.0
    %6097 = vmatpush1.msra.mxu0 %v527
    %6098 = vmatprep.subr.mxu0 0.0
    %6099 = vmatpush1.msra.mxu0 %v524
    %6100 = vmatprep.subr.mxu0 0.0
    %6101 = vmatpush1.msra.mxu0 %v521
    %6102 = vmatprep.subr.mxu0 0.0
    %6103 = vmatpush2.msra.mxu0 0.0
    %6104 = vmatprep.subr.mxu0 0.0
    %6105 = vmatpush2.msra.mxu0 0.0
    %6106 = vmatprep.subr.mxu0 0.0
    %6107 = vmatpush2.msra.mxu0 0.0
    %6108 = vmatprep.subr.mxu0 0.0
    %6109 = vmatpush2.msra.mxu0 0.0
    %6110 = vmatprep.subr.mxu0 0.0
    %6111 = vmatpush2.msra.mxu0 0.0
    %6112 = vmatprep.subr.mxu0 0.0
    %6113 = vmatpush2.msra.mxu0 0.0
    %6114 = vmatprep.subr.mxu0 0.0
    %6115 = vmatpush2.msra.mxu0 0.0
    %6116 = vmatprep.subr.mxu0 0.0
    %6117 = vmatpush2.msra.mxu0 0.0
    %6118 = vmatprep.subr.mxu0 0.0
    %6119 = vmatpush2.msra.mxu0 0.0
    %6120 = vmatprep.subr.mxu0 0.0
    %6121 = vmatpush2.msra.mxu0 0.0
    %6122 = vmatprep.subr.mxu0 0.0
    %6123 = vmatpush2.msra.mxu0 0.0
    %6124 = vmatprep.subr.mxu0 0.0
    %6125 = vmatpush2.msra.mxu0 0.0
    %6126 = vmatprep.subr.mxu0 0.0
    %6127 = vmatpush2.msra.mxu0 0.0
    %6128 = vmatprep.subr.mxu0 0.0
    %6129 = vmatpush2.msra.mxu0 0.0
    %6130 = vmatprep.subr.mxu0 0.0
    %6131 = vmatpush2.msra.mxu0 0.0
    %6132 = vmatprep.subr.mxu0 0.0
    %6133 = vmatpush2.msra.mxu0 0.0
    %6134 = vmatprep.mubr.f32.mxu0 0.0
    %6135 = vmatmul.mubr.f32.gmra.mxu0 %v5618
    %v6136 = vpop.f32.mrf.mxu0
    %v6137 = vadd.f32 0.0, %v6136
    %v6138 = vpop.f32.mrf.mxu0
    %6139 = vdwg.mxu0
    %v6140 = vadd.f32 %v5925, %v6066
    %v6141 = vxor.u32 %v6140, 2147483648
    %v6142 = vmul.f32 %v6141, 1.442695
    %v6143 = vpow.pop %v6142
    %v6144 = vadd.f32 %v6143, 1.0
    %v6145 = vrcp.pop %v6144
    %v6146 = vmul.f32 1.0, %v6145
    %v6147 = vadd.f32 %v5927, %v6068
    %v6148 = vxor.u32 %v6147, 2147483648
    %v6149 = vmul.f32 %v6148, 1.442695
    %v6150 = vpow.pop %v6149
    %v6151 = vadd.f32 %v6150, 1.0
    %v6152 = vrcp.pop %v6151
    %v6153 = vmul.f32 1.0, %v6152
    %v6154 = vadd.f32 %v6137, %v647
    %v6155 = vmul.f32 %v6146, %v6154
    %v6156 = vadd.f32 %v5996, %v6155
    %v6157 = vtanh.pop %v6156
    %v6158 = vsub.f32 1.0, %v6153
    %v6159 = vmul.f32 %v6158, %v6157
    %v6160 = vmul.f32 %v6153, %v5618
    %v6161 = vadd.f32 %v6159, %v6160
    %6162 = vmatprep.subr.mxu0 0.0
    %6163 = vmatpush1.msra.mxu0 %v664
    %6164 = vmatprep.subr.mxu0 0.0
    %6165 = vmatpush1.msra.mxu0 %v663
    %6166 = vmatprep.subr.mxu0 0.0
    %6167 = vmatpush1.msra.mxu0 %v662
    %6168 = vmatprep.subr.mxu0 0.0
    %6169 = vmatpush1.msra.mxu0 %v661
    %6170 = vmatprep.subr.mxu0 0.0
    %6171 = vmatpush1.msra.mxu0 %v660
    %6172 = vmatprep.subr.mxu0 0.0
    %6173 = vmatpush1.msra.mxu0 %v659
    %6174 = vmatprep.subr.mxu0 0.0
    %6175 = vmatpush1.msra.mxu0 %v658
    %6176 = vmatprep.subr.mxu0 0.0
    %6177 = vmatpush1.msra.mxu0 %v657
    %6178 = vmatprep.subr.mxu0 0.0
    %6179 = vmatpush1.msra.mxu0 %v656
    %6180 = vmatprep.subr.mxu0 0.0
    %6181 = vmatpush1.msra.mxu0 %v655
    %6182 = vmatprep.subr.mxu0 0.0
    %6183 = vmatpush1.msra.mxu0 %v654
    %6184 = vmatprep.subr.mxu0 0.0
    %6185 = vmatpush1.msra.mxu0 %v653
    %6186 = vmatprep.subr.mxu0 0.0
    %6187 = vmatpush1.msra.mxu0 %v652
    %6188 = vmatprep.subr.mxu0 0.0
    %6189 = vmatpush1.msra.mxu0 %v651
    %6190 = vmatprep.subr.mxu0 0.0
    %6191 = vmatpush1.msra.mxu0 %v650
    %6192 = vmatprep.subr.mxu0 0.0
    %6193 = vmatpush1.msra.mxu0 %v649
    %6194 = vmatprep.subr.mxu0 0.0
    %6195 = vmatpush2.msra.mxu0 0.0
    %6196 = vmatprep.subr.mxu0 0.0
    %6197 = vmatpush2.msra.mxu0 0.0
    %6198 = vmatprep.subr.mxu0 0.0
    %6199 = vmatpush2.msra.mxu0 0.0
    %6200 = vmatprep.subr.mxu0 0.0
    %6201 = vmatpush2.msra.mxu0 0.0
    %6202 = vmatprep.subr.mxu0 0.0
    %6203 = vmatpush2.msra.mxu0 0.0
    %6204 = vmatprep.subr.mxu0 0.0
    %6205 = vmatpush2.msra.mxu0 0.0
    %6206 = vmatprep.subr.mxu0 0.0
    %6207 = vmatpush2.msra.mxu0 0.0
    %6208 = vmatprep.subr.mxu0 0.0
    %6209 = vmatpush2.msra.mxu0 0.0
    %6210 = vmatprep.subr.mxu0 0.0
    %6211 = vmatpush2.msra.mxu0 0.0
    %6212 = vmatprep.subr.mxu0 0.0
    %6213 = vmatpush2.msra.mxu0 0.0
    %6214 = vmatprep.subr.mxu0 0.0
    %6215 = vmatpush2.msra.mxu0 0.0
    %6216 = vmatprep.subr.mxu0 0.0
    %6217 = vmatpush2.msra.mxu0 0.0
    %6218 = vmatprep.subr.mxu0 0.0
    %6219 = vmatpush2.msra.mxu0 0.0
    %6220 = vmatprep.subr.mxu0 0.0
    %6221 = vmatpush2.msra.mxu0 0.0
    %6222 = vmatprep.subr.mxu0 0.0
    %6223 = vmatpush2.msra.mxu0 0.0
    %6224 = vmatprep.subr.mxu0 0.0
    %6225 = vmatpush2.msra.mxu0 0.0
    %6226 = vmatprep.mubr.f32.mxu0 0.0
    %6227 = vmatmul.mubr.f32.gmra.mxu0 %v6161
    %v6228 = vpop.f32.mrf.mxu0
    %v6229 = vadd.f32 %v670, %v6228
    %v6230 = vpop.f32.mrf.mxu0
    %6231 = vdwg.mxu0
    %s6232 = scalar_lea.vmem [#allocation12], 16
    %6233 = vst [vmem:[%s6232] sm:$0xff] %v6229
    %6234 = vmatprep.subr.mxu0 %v614
    %6235 = vmatpush1.msra.mxu0 %v613
    %6236 = vmatprep.subr.mxu0 %v611
    %6237 = vmatpush1.msra.mxu0 %v610
    %6238 = vmatprep.subr.mxu0 %v608
    %6239 = vmatpush1.msra.mxu0 %v607
    %6240 = vmatprep.subr.mxu0 %v605
    %6241 = vmatpush1.msra.mxu0 %v604
    %6242 = vmatprep.subr.mxu0 %v602
    %6243 = vmatpush1.msra.mxu0 %v601
    %6244 = vmatprep.subr.mxu0 %v599
    %6245 = vmatpush1.msra.mxu0 %v598
    %6246 = vmatprep.subr.mxu0 %v596
    %6247 = vmatpush1.msra.mxu0 %v595
    %6248 = vmatprep.subr.mxu0 %v593
    %6249 = vmatpush1.msra.mxu0 %v592
    %6250 = vmatprep.subr.mxu0 %v590
    %6251 = vmatpush1.msra.mxu0 %v589
    %6252 = vmatprep.subr.mxu0 %v587
    %6253 = vmatpush1.msra.mxu0 %v586
    %6254 = vmatprep.subr.mxu0 %v584
    %6255 = vmatpush1.msra.mxu0 %v583
    %6256 = vmatprep.subr.mxu0 %v581
    %6257 = vmatpush1.msra.mxu0 %v580
    %6258 = vmatprep.subr.mxu0 %v578
    %6259 = vmatpush1.msra.mxu0 %v577
    %6260 = vmatprep.subr.mxu0 %v575
    %6261 = vmatpush1.msra.mxu0 %v574
    %6262 = vmatprep.subr.mxu0 %v572
    %6263 = vmatpush1.msra.mxu0 %v571
    %6264 = vmatprep.subr.mxu0 %v569
    %6265 = vmatpush1.msra.mxu0 %v568
    %6266 = vmatprep.subr.mxu0 0.0
    %6267 = vmatpush2.msra.mxu0 0.0
    %6268 = vmatprep.subr.mxu0 0.0
    %6269 = vmatpush2.msra.mxu0 0.0
    %6270 = vmatprep.subr.mxu0 0.0
    %6271 = vmatpush2.msra.mxu0 0.0
    %6272 = vmatprep.subr.mxu0 0.0
    %6273 = vmatpush2.msra.mxu0 0.0
    %6274 = vmatprep.subr.mxu0 0.0
    %6275 = vmatpush2.msra.mxu0 0.0
    %6276 = vmatprep.subr.mxu0 0.0
    %6277 = vmatpush2.msra.mxu0 0.0
    %6278 = vmatprep.subr.mxu0 0.0
    %6279 = vmatpush2.msra.mxu0 0.0
    %6280 = vmatprep.subr.mxu0 0.0
    %6281 = vmatpush2.msra.mxu0 0.0
    %6282 = vmatprep.subr.mxu0 0.0
    %6283 = vmatpush2.msra.mxu0 0.0
    %6284 = vmatprep.subr.mxu0 0.0
    %6285 = vmatpush2.msra.mxu0 0.0
    %6286 = vmatprep.subr.mxu0 0.0
    %6287 = vmatpush2.msra.mxu0 0.0
    %6288 = vmatprep.subr.mxu0 0.0
    %6289 = vmatpush2.msra.mxu0 0.0
    %6290 = vmatprep.subr.mxu0 0.0
    %6291 = vmatpush2.msra.mxu0 0.0
    %6292 = vmatprep.subr.mxu0 0.0
    %6293 = vmatpush2.msra.mxu0 0.0
    %6294 = vmatprep.subr.mxu0 0.0
    %6295 = vmatpush2.msra.mxu0 0.0
    %6296 = vmatprep.subr.mxu0 0.0
    %6297 = vmatpush2.msra.mxu0 0.0
    %6298 = vmatprep.mubr.f32.mxu0 0.0
    %6299 = vmatmul.mubr.f32.gmra.mxu0 %v5857
    %v6300 = vpop.f32.mrf.mxu0
    %v6301 = vadd.f32 %v622, %v6300
    %v6302 = vpop.f32.mrf.mxu0
    %v6303 = vadd.f32 %v626, %v6302
    %6304 = vdwg.mxu0
    %6305 = vmatprep.subr.mxu0 0.0
    %6306 = vmatpush1.msra.mxu0 %v615
    %6307 = vmatprep.subr.mxu0 0.0
    %6308 = vmatpush1.msra.mxu0 %v612
    %6309 = vmatprep.subr.mxu0 0.0
    %6310 = vmatpush1.msra.mxu0 %v609
    %6311 = vmatprep.subr.mxu0 0.0
    %6312 = vmatpush1.msra.mxu0 %v606
    %6313 = vmatprep.subr.mxu0 0.0
    %6314 = vmatpush1.msra.mxu0 %v603
    %6315 = vmatprep.subr.mxu0 0.0
    %6316 = vmatpush1.msra.mxu0 %v600
    %6317 = vmatprep.subr.mxu0 0.0
    %6318 = vmatpush1.msra.mxu0 %v597
    %6319 = vmatprep.subr.mxu0 0.0
    %6320 = vmatpush1.msra.mxu0 %v594
    %6321 = vmatprep.subr.mxu0 0.0
    %6322 = vmatpush1.msra.mxu0 %v591
    %6323 = vmatprep.subr.mxu0 0.0
    %6324 = vmatpush1.msra.mxu0 %v588
    %6325 = vmatprep.subr.mxu0 0.0
    %6326 = vmatpush1.msra.mxu0 %v585
    %6327 = vmatprep.subr.mxu0 0.0
    %6328 = vmatpush1.msra.mxu0 %v582
    %6329 = vmatprep.subr.mxu0 0.0
    %6330 = vmatpush1.msra.mxu0 %v579
    %6331 = vmatprep.subr.mxu0 0.0
    %6332 = vmatpush1.msra.mxu0 %v576
    %6333 = vmatprep.subr.mxu0 0.0
    %6334 = vmatpush1.msra.mxu0 %v573
    %6335 = vmatprep.subr.mxu0 0.0
    %6336 = vmatpush1.msra.mxu0 %v570
    %6337 = vmatprep.subr.mxu0 0.0
    %6338 = vmatpush2.msra.mxu0 0.0
    %6339 = vmatprep.subr.mxu0 0.0
    %6340 = vmatpush2.msra.mxu0 0.0
    %6341 = vmatprep.subr.mxu0 0.0
    %6342 = vmatpush2.msra.mxu0 0.0
    %6343 = vmatprep.subr.mxu0 0.0
    %6344 = vmatpush2.msra.mxu0 0.0
    %6345 = vmatprep.subr.mxu0 0.0
    %6346 = vmatpush2.msra.mxu0 0.0
    %6347 = vmatprep.subr.mxu0 0.0
    %6348 = vmatpush2.msra.mxu0 0.0
    %6349 = vmatprep.subr.mxu0 0.0
    %6350 = vmatpush2.msra.mxu0 0.0
    %6351 = vmatprep.subr.mxu0 0.0
    %6352 = vmatpush2.msra.mxu0 0.0
    %6353 = vmatprep.subr.mxu0 0.0
    %6354 = vmatpush2.msra.mxu0 0.0
    %6355 = vmatprep.subr.mxu0 0.0
    %6356 = vmatpush2.msra.mxu0 0.0
    %6357 = vmatprep.subr.mxu0 0.0
    %6358 = vmatpush2.msra.mxu0 0.0
    %6359 = vmatprep.subr.mxu0 0.0
    %6360 = vmatpush2.msra.mxu0 0.0
    %6361 = vmatprep.subr.mxu0 0.0
    %6362 = vmatpush2.msra.mxu0 0.0
    %6363 = vmatprep.subr.mxu0 0.0
    %6364 = vmatpush2.msra.mxu0 0.0
    %6365 = vmatprep.subr.mxu0 0.0
    %6366 = vmatpush2.msra.mxu0 0.0
    %6367 = vmatprep.subr.mxu0 0.0
    %6368 = vmatpush2.msra.mxu0 0.0
    %6369 = vmatprep.mubr.f32.mxu0 0.0
    %6370 = vmatmul.mubr.f32.gmra.mxu0 %v5857
    %v6371 = vpop.f32.mrf.mxu0
    %v6372 = vadd.f32 %v630, %v6371
    %v6373 = vpop.f32.mrf.mxu0
    %6374 = vdwg.mxu0
    %6375 = vmatprep.subr.mxu0 %v565
    %6376 = vmatpush1.msra.mxu0 %v564
    %6377 = vmatprep.subr.mxu0 %v562
    %6378 = vmatpush1.msra.mxu0 %v561
    %6379 = vmatprep.subr.mxu0 %v559
    %6380 = vmatpush1.msra.mxu0 %v558
    %6381 = vmatprep.subr.mxu0 %v556
    %6382 = vmatpush1.msra.mxu0 %v555
    %6383 = vmatprep.subr.mxu0 %v553
    %6384 = vmatpush1.msra.mxu0 %v552
    %6385 = vmatprep.subr.mxu0 %v550
    %6386 = vmatpush1.msra.mxu0 %v549
    %6387 = vmatprep.subr.mxu0 %v547
    %6388 = vmatpush1.msra.mxu0 %v546
    %6389 = vmatprep.subr.mxu0 %v544
    %6390 = vmatpush1.msra.mxu0 %v543
    %6391 = vmatprep.subr.mxu0 %v541
    %6392 = vmatpush1.msra.mxu0 %v540
    %6393 = vmatprep.subr.mxu0 %v538
    %6394 = vmatpush1.msra.mxu0 %v537
    %6395 = vmatprep.subr.mxu0 %v535
    %6396 = vmatpush1.msra.mxu0 %v534
    %6397 = vmatprep.subr.mxu0 %v532
    %6398 = vmatpush1.msra.mxu0 %v531
    %6399 = vmatprep.subr.mxu0 %v529
    %6400 = vmatpush1.msra.mxu0 %v528
    %6401 = vmatprep.subr.mxu0 %v526
    %6402 = vmatpush1.msra.mxu0 %v525
    %6403 = vmatprep.subr.mxu0 %v523
    %6404 = vmatpush1.msra.mxu0 %v522
    %6405 = vmatprep.subr.mxu0 %v520
    %6406 = vmatpush1.msra.mxu0 %v519
    %6407 = vmatprep.subr.mxu0 0.0
    %6408 = vmatpush2.msra.mxu0 0.0
    %6409 = vmatprep.subr.mxu0 0.0
    %6410 = vmatpush2.msra.mxu0 0.0
    %6411 = vmatprep.subr.mxu0 0.0
    %6412 = vmatpush2.msra.mxu0 0.0
    %6413 = vmatprep.subr.mxu0 0.0
    %6414 = vmatpush2.msra.mxu0 0.0
    %6415 = vmatprep.subr.mxu0 0.0
    %6416 = vmatpush2.msra.mxu0 0.0
    %6417 = vmatprep.subr.mxu0 0.0
    %6418 = vmatpush2.msra.mxu0 0.0
    %6419 = vmatprep.subr.mxu0 0.0
    %6420 = vmatpush2.msra.mxu0 0.0
    %6421 = vmatprep.subr.mxu0 0.0
    %6422 = vmatpush2.msra.mxu0 0.0
    %6423 = vmatprep.subr.mxu0 0.0
    %6424 = vmatpush2.msra.mxu0 0.0
    %6425 = vmatprep.subr.mxu0 0.0
    %6426 = vmatpush2.msra.mxu0 0.0
    %6427 = vmatprep.subr.mxu0 0.0
    %6428 = vmatpush2.msra.mxu0 0.0
    %6429 = vmatprep.subr.mxu0 0.0
    %6430 = vmatpush2.msra.mxu0 0.0
    %6431 = vmatprep.subr.mxu0 0.0
    %6432 = vmatpush2.msra.mxu0 0.0
    %6433 = vmatprep.subr.mxu0 0.0
    %6434 = vmatpush2.msra.mxu0 0.0
    %6435 = vmatprep.subr.mxu0 0.0
    %6436 = vmatpush2.msra.mxu0 0.0
    %6437 = vmatprep.subr.mxu0 0.0
    %6438 = vmatpush2.msra.mxu0 0.0
    %6439 = vmatprep.mubr.f32.mxu0 0.0
    %6440 = vmatmul.mubr.f32.gmra.mxu0 %v6161
    %v6441 = vpop.f32.mrf.mxu0
    %v6442 = vadd.f32 0.0, %v6441
    %v6443 = vpop.f32.mrf.mxu0
    %v6444 = vadd.f32 0.0, %v6443
    %6445 = vdwg.mxu0
    %6446 = vmatprep.subr.mxu0 0.0
    %6447 = vmatpush1.msra.mxu0 %v566
    %6448 = vmatprep.subr.mxu0 0.0
    %6449 = vmatpush1.msra.mxu0 %v563
    %6450 = vmatprep.subr.mxu0 0.0
    %6451 = vmatpush1.msra.mxu0 %v560
    %6452 = vmatprep.subr.mxu0 0.0
    %6453 = vmatpush1.msra.mxu0 %v557
    %6454 = vmatprep.subr.mxu0 0.0
    %6455 = vmatpush1.msra.mxu0 %v554
    %6456 = vmatprep.subr.mxu0 0.0
    %6457 = vmatpush1.msra.mxu0 %v551
    %6458 = vmatprep.subr.mxu0 0.0
    %6459 = vmatpush1.msra.mxu0 %v548
    %6460 = vmatprep.subr.mxu0 0.0
    %6461 = vmatpush1.msra.mxu0 %v545
    %6462 = vmatprep.subr.mxu0 0.0
    %6463 = vmatpush1.msra.mxu0 %v542
    %6464 = vmatprep.subr.mxu0 0.0
    %6465 = vmatpush1.msra.mxu0 %v539
    %6466 = vmatprep.subr.mxu0 0.0
    %6467 = vmatpush1.msra.mxu0 %v536
    %6468 = vmatprep.subr.mxu0 0.0
    %6469 = vmatpush1.msra.mxu0 %v533
    %6470 = vmatprep.subr.mxu0 0.0
    %6471 = vmatpush1.msra.mxu0 %v530
    %6472 = vmatprep.subr.mxu0 0.0
    %6473 = vmatpush1.msra.mxu0 %v527
    %6474 = vmatprep.subr.mxu0 0.0
    %6475 = vmatpush1.msra.mxu0 %v524
    %6476 = vmatprep.subr.mxu0 0.0
    %6477 = vmatpush1.msra.mxu0 %v521
    %6478 = vmatprep.subr.mxu0 0.0
    %6479 = vmatpush2.msra.mxu0 0.0
    %6480 = vmatprep.subr.mxu0 0.0
    %6481 = vmatpush2.msra.mxu0 0.0
    %6482 = vmatprep.subr.mxu0 0.0
    %6483 = vmatpush2.msra.mxu0 0.0
    %6484 = vmatprep.subr.mxu0 0.0
    %6485 = vmatpush2.msra.mxu0 0.0
    %6486 = vmatprep.subr.mxu0 0.0
    %6487 = vmatpush2.msra.mxu0 0.0
    %6488 = vmatprep.subr.mxu0 0.0
    %6489 = vmatpush2.msra.mxu0 0.0
    %6490 = vmatprep.subr.mxu0 0.0
    %6491 = vmatpush2.msra.mxu0 0.0
    %6492 = vmatprep.subr.mxu0 0.0
    %6493 = vmatpush2.msra.mxu0 0.0
    %6494 = vmatprep.subr.mxu0 0.0
    %6495 = vmatpush2.msra.mxu0 0.0
    %6496 = vmatprep.subr.mxu0 0.0
    %6497 = vmatpush2.msra.mxu0 0.0
    %6498 = vmatprep.subr.mxu0 0.0
    %6499 = vmatpush2.msra.mxu0 0.0
    %6500 = vmatprep.subr.mxu0 0.0
    %6501 = vmatpush2.msra.mxu0 0.0
    %6502 = vmatprep.subr.mxu0 0.0
    %6503 = vmatpush2.msra.mxu0 0.0
    %6504 = vmatprep.subr.mxu0 0.0
    %6505 = vmatpush2.msra.mxu0 0.0
    %6506 = vmatprep.subr.mxu0 0.0
    %6507 = vmatpush2.msra.mxu0 0.0
    %6508 = vmatprep.subr.mxu0 0.0
    %6509 = vmatpush2.msra.mxu0 0.0
    %6510 = vmatprep.mubr.f32.mxu0 0.0
    %6511 = vmatmul.mubr.f32.gmra.mxu0 %v6161
    %v6512 = vpop.f32.mrf.mxu0
    %v6513 = vadd.f32 0.0, %v6512
    %v6514 = vpop.f32.mrf.mxu0
    %6515 = vdwg.mxu0
    %v6516 = vadd.f32 %v6301, %v6442
    %v6517 = vxor.u32 %v6516, 2147483648
    %v6518 = vmul.f32 %v6517, 1.442695
    %v6519 = vpow.pop %v6518
    %v6520 = vadd.f32 %v6519, 1.0
    %v6521 = vrcp.pop %v6520
    %v6522 = vmul.f32 1.0, %v6521
    %v6523 = vadd.f32 %v6303, %v6444
    %v6524 = vxor.u32 %v6523, 2147483648
    %v6525 = vmul.f32 %v6524, 1.442695
    %v6526 = vpow.pop %v6525
    %v6527 = vadd.f32 %v6526, 1.0
    %v6528 = vrcp.pop %v6527
    %v6529 = vmul.f32 1.0, %v6528
    %v6530 = vadd.f32 %v6513, %v647
    %v6531 = vmul.f32 %v6522, %v6530
    %v6532 = vadd.f32 %v6372, %v6531
    %v6533 = vtanh.pop %v6532
    %v6534 = vsub.f32 1.0, %v6529
    %v6535 = vmul.f32 %v6534, %v6533
    %v6536 = vmul.f32 %v6529, %v6161
    %v6537 = vadd.f32 %v6535, %v6536
    %6538 = vmatprep.subr.mxu0 0.0
    %6539 = vmatpush1.msra.mxu0 %v664
    %6540 = vmatprep.subr.mxu0 0.0
    %6541 = vmatpush1.msra.mxu0 %v663
    %6542 = vmatprep.subr.mxu0 0.0
    %6543 = vmatpush1.msra.mxu0 %v662
    %6544 = vmatprep.subr.mxu0 0.0
    %6545 = vmatpush1.msra.mxu0 %v661
    %6546 = vmatprep.subr.mxu0 0.0
    %6547 = vmatpush1.msra.mxu0 %v660
    %6548 = vmatprep.subr.mxu0 0.0
    %6549 = vmatpush1.msra.mxu0 %v659
    %6550 = vmatprep.subr.mxu0 0.0
    %6551 = vmatpush1.msra.mxu0 %v658
    %6552 = vmatprep.subr.mxu0 0.0
    %6553 = vmatpush1.msra.mxu0 %v657
    %6554 = vmatprep.subr.mxu0 0.0
    %6555 = vmatpush1.msra.mxu0 %v656
    %6556 = vmatprep.subr.mxu0 0.0
    %6557 = vmatpush1.msra.mxu0 %v655
    %6558 = vmatprep.subr.mxu0 0.0
    %6559 = vmatpush1.msra.mxu0 %v654
    %6560 = vmatprep.subr.mxu0 0.0
    %6561 = vmatpush1.msra.mxu0 %v653
    %6562 = vmatprep.subr.mxu0 0.0
    %6563 = vmatpush1.msra.mxu0 %v652
    %6564 = vmatprep.subr.mxu0 0.0
    %6565 = vmatpush1.msra.mxu0 %v651
    %6566 = vmatprep.subr.mxu0 0.0
    %6567 = vmatpush1.msra.mxu0 %v650
    %6568 = vmatprep.subr.mxu0 0.0
    %6569 = vmatpush1.msra.mxu0 %v649
    %6570 = vmatprep.subr.mxu0 0.0
    %6571 = vmatpush2.msra.mxu0 0.0
    %6572 = vmatprep.subr.mxu0 0.0
    %6573 = vmatpush2.msra.mxu0 0.0
    %6574 = vmatprep.subr.mxu0 0.0
    %6575 = vmatpush2.msra.mxu0 0.0
    %6576 = vmatprep.subr.mxu0 0.0
    %6577 = vmatpush2.msra.mxu0 0.0
    %6578 = vmatprep.subr.mxu0 0.0
    %6579 = vmatpush2.msra.mxu0 0.0
    %6580 = vmatprep.subr.mxu0 0.0
    %6581 = vmatpush2.msra.mxu0 0.0
    %6582 = vmatprep.subr.mxu0 0.0
    %6583 = vmatpush2.msra.mxu0 0.0
    %6584 = vmatprep.subr.mxu0 0.0
    %6585 = vmatpush2.msra.mxu0 0.0
    %6586 = vmatprep.subr.mxu0 0.0
    %6587 = vmatpush2.msra.mxu0 0.0
    %6588 = vmatprep.subr.mxu0 0.0
    %6589 = vmatpush2.msra.mxu0 0.0
    %6590 = vmatprep.subr.mxu0 0.0
    %6591 = vmatpush2.msra.mxu0 0.0
    %6592 = vmatprep.subr.mxu0 0.0
    %6593 = vmatpush2.msra.mxu0 0.0
    %6594 = vmatprep.subr.mxu0 0.0
    %6595 = vmatpush2.msra.mxu0 0.0
    %6596 = vmatprep.subr.mxu0 0.0
    %6597 = vmatpush2.msra.mxu0 0.0
    %6598 = vmatprep.subr.mxu0 0.0
    %6599 = vmatpush2.msra.mxu0 0.0
    %6600 = vmatprep.subr.mxu0 0.0
    %6601 = vmatpush2.msra.mxu0 0.0
    %6602 = vmatprep.mubr.f32.mxu0 0.0
    %6603 = vmatmul.mubr.f32.gmra.mxu0 %v6537
    %v6604 = vpop.f32.mrf.mxu0
    %v6605 = vadd.f32 %v670, %v6604
    %v6606 = vpop.f32.mrf.mxu0
    %6607 = vdwg.mxu0
    %s6608 = scalar_lea.vmem [#allocation12], 24
    %6609 = vst [vmem:[%s6608] sm:$0xff] %v6605
    // Predicated region
    $region50: #{tpu_custom_call.1} parent=1 // pred_check
      _
    $region51: #{tpu_custom_call.1} parent=1 // pred_check_branch
      %6611 = sbr.rel (0) target = $region53
    $region52: #{tpu_custom_call.1} parent=1 // pred_region
      %s6613 = ssub.s32 512, 512
      %6614 = vsyncadd [#allocation5], %s6613
      %s6615 = sshll.u32 [#allocation12], 4
      %s6616 = int_to_ptr.vmem [resolvable:$true] %s6615
      %6621 = dma.vmem_to_hbm [thread:$0]  %s6616, 512, %s7, [#allocation5], 128, 128, 8
    $region53: #{tpu_custom_call.1} parent=1 // pred_fallthru
      _
    // Predicated region
    $region54: #{tpu_custom_call.1} parent=1 // pred_check
      _
    $region55: #{tpu_custom_call.1} parent=1 // pred_check_branch
      %6623 = sbr.rel (0) target = $region57
    $region56: #{tpu_custom_call.1} parent=1 // pred_region
      %6624 = dma.done [#allocation5], 512
    $region57: #{tpu_custom_call.1} parent=1 // pred_fallthru
      _
    %6625 = vsyncpa [#allocation4], 1
    %6626 = vsyncpa [#allocation7], 1
    %6627 = vsyncpa [#allocation10], 1
    %6628 = vsyncpa [#allocation5], 1

</llo_original>
